<compile_context>
chip_gen: v7x
topology: tpu7x:2x2x1
jax: 0.10.0
libtpu: 0.0.40
codegen_flags: <defaults>
</compile_context>

<pallas_src>
import functools

import jax
import jax.numpy as jnp
import numpy as np
from jax.experimental import pallas as pl
from jax.experimental.pallas import tpu as pltpu

BN_EPS = 1e-5


# ----------------------------------------------------------------------------
# Layout helpers: NCHW <-> channel-major rows (C*B, H*W); row = c*B + b.
# ----------------------------------------------------------------------------
def nchw_to_rows(x):
    B, C, H, W = x.shape
    return jnp.transpose(x, (1, 0, 2, 3)).reshape(C * B, H * W)


def rows_to_nchw(y, B, H, W):
    C = y.shape[0] // B
    return jnp.transpose(y.reshape(C, B, H, W), (1, 0, 2, 3))


def _round_up(n, m):
    return -(-n // m) * m


# ----------------------------------------------------------------------------
# Exact ortho rfft2 / irfft2 as real matrices (built once at trace time).
#   forward:  spec_re = x @ d_re,  spec_im = x @ d_im        (x: (rows, H*W))
#   inverse:  y       = re @ i_re + im @ i_im                (y: (rows, H*W))
# The spectral length H*(W//2+1) is zero-padded to a multiple of 128 so every
# matmul / elementwise op is full-(8,128)-tile aligned inside the kernel.
# ----------------------------------------------------------------------------
@functools.lru_cache(maxsize=None)
def build_dft_mats(H, W):
    HW = H * W
    Wf = W // 2 + 1
    S = H * Wf
    S_pad = _round_up(S, 128)

    eye = np.eye(HW, dtype=np.float64).reshape(HW, H, W)
    fwd = np.fft.rfft2(eye, norm="ortho").reshape(HW, S)
    d_re = np.zeros((HW, S_pad), np.float32)
    d_im = np.zeros((HW, S_pad), np.float32)
    d_re[:, :S] = fwd.real
    d_im[:, :S] = fwd.imag

    eyec = np.eye(S, dtype=np.complex128).reshape(S, H, Wf)
    i_re = np.zeros((S_pad, HW), np.float32)
    i_im = np.zeros((S_pad, HW), np.float32)
    i_re[:S] = np.fft.irfft2(eyec, s=(H, W), norm="ortho").reshape(S, HW)
    i_im[:S] = np.fft.irfft2(1j * eyec, s=(H, W), norm="ortho").reshape(S, HW)
    return d_re, d_im, i_re, i_im, S_pad


# ----------------------------------------------------------------------------
# Parameter prep: fold BatchNorm (inference) scale/shift into the 1x1 convs.
# ----------------------------------------------------------------------------
def fold_params(p):
    def fold(w, bn):
        scale = bn["gamma"] / jnp.sqrt(bn["var"] + BN_EPS)
        return w * scale[:, None], bn["beta"] - bn["mean"] * scale

    w1_f, b1 = fold(p["w1"], p["bn1"])
    wfu_f, bfu = fold(p["w_fu"], p["bn_fu"])
    wl2l_f, b_l = fold(p["w_l2l"], p["bn_l"])
    wg2l_f, _ = fold(p["w_g2l"], p["bn_l"])
    wl2g_f, b_g = fold(p["w_l2g"], p["bn_g"])
    w2_f, _ = fold(p["w2"], p["bn_g"])
    return dict(w1=w1_f, b1=b1, w_fu=wfu_f, b_fu=bfu,
                w_l2l=wl2l_f, w_g2l=wg2l_f, b_l=b_l,
                w_l2g=wl2g_f, w2=w2_f, b_g=b_g)


def _flatten_params(f):
    """Pack all folded channel-mix weights / biases into two flat SMEM vectors."""
    order_w = ["w1", "w_fu", "w_l2l", "w_g2l", "w_l2g", "w2"]
    order_b = ["b1", "b_fu", "b_l", "b_g"]
    w_off, b_off, w_parts, b_parts = {}, {}, [], []
    o = 0
    for name in order_w:
        w = jnp.asarray(f[name], jnp.float32)
        w_off[name] = o
        w_parts.append(w.reshape(-1))
        o += int(np.prod(w.shape))
    o = 0
    for name in order_b:
        b = jnp.asarray(f[name], jnp.float32)
        b_off[name] = o
        b_parts.append(b.reshape(-1))
        o += int(b.shape[0])
    return jnp.concatenate(w_parts), jnp.concatenate(b_parts), w_off, b_off


# ----------------------------------------------------------------------------
# FFC_BN_ACT forward: everything in a single fused Pallas kernel.
# ----------------------------------------------------------------------------
def ffc_bn_act_forward(x_l, x_g, params):
    B, in_cl, H, W = x_l.shape
    in_cg = int(x_g.shape[1])
    HW = H * W

    f = fold_params(params)
    out_cl = int(f["w_l2l"].shape[0])
    out_cg = int(f["w_l2g"].shape[0])
    c_half = int(f["w1"].shape[0])

    d_re, d_im, i_re, i_im, S_pad = build_dft_mats(H, W)

    # The fused DFT-matmul path keeps everything resident in VMEM; only sensible
    # for small spatial maps (16x16 here -> 4 x 256 KiB of DFT matrices).
    # TODO(synk): for large H*W fall back to a tiled multi-kernel path with XLA FFTs.
    assert 4 * HW * S_pad * 4 < 8 * 1024 * 1024, "spatial map too large for fused DFT path"

    w_flat, b_flat, w_off, b_off = _flatten_params(f)

    xl_rows = nchw_to_rows(x_l)            # (in_cl*B, HW)  f32, (8,128)-aligned
    xg_rows = nchw_to_rows(x_g)            # (in_cg*B, HW)

    mrows = max(8, _round_up(c_half * B, 8))   # MXU-aligned row count for the DFTs
    zpad = mrows - c_half * B

    def kernel(xl_ref, xg_ref, dre_ref, dim_ref, ire_ref, iim_ref,
               w_ref, b_ref, ol_ref, og_ref):
        hi = jax.lax.Precision.HIGHEST

        def slab(ref, c):                   # (B, HW) per-channel slab, lane-dense
            return ref[pl.ds(c * B, B), :]

        xl = [slab(xl_ref, c) for c in range(in_cl)]
        xg = [slab(xg_ref, c) for c in range(in_cg)]

        def mix(groups, bname, o):
            # relu( sum over groups, channels of  W[o, c] * slab_c  + bias_o )
            acc = None
            for slabs, wname, cin in groups:
                base = w_off[wname] + o * cin
                for c in range(cin):
                    t = slabs[c] * w_ref[base + c]
                    acc = t if acc is None else acc + t
            acc = acc + b_ref[b_off[bname] + o]
            return jnp.maximum(acc, 0.0)

        def stack_rows(parts, width):       # pad rows to mrows (aligned matmul M)
            if zpad:
                parts = parts + [jnp.zeros((zpad, width), jnp.float32)]
            return jnp.concatenate(parts, axis=0)

        # SpectralTransform.conv1 + BN + ReLU -> h1 (c_half slabs of (B, HW))
        h1 = [mix([(xg, "w1", in_cg)], "b1", o) for o in range(c_half)]

        # FourierUnit rfft2 via real DFT matmuls on (channel, batch)-major rows.
        lhs = stack_rows(h1, HW)                                       # (mrows, HW)
        spec_re = jnp.dot(lhs, dre_ref[...],
                          preferred_element_type=jnp.float32, precision=hi)
        spec_im = jnp.dot(lhs, dim_ref[...],
                          preferred_element_type=jnp.float32, precision=hi)

        # Spectral channels in module order (c0_re, c0_im, c1_re, c1_im, ...).
        sp = []
        for c in range(c_half):
            sp.append(spec_re[c * B:(c + 1) * B, :])
            sp.append(spec_im[c * B:(c + 1) * B, :])

        # FourierUnit conv + BN + ReLU (channel mix at every spectral position).
        fuc = [mix([(sp, "w_fu", 2 * c_half)], "b_fu", o)
               for o in range(2 * c_half)]

        # FourierUnit irfft2 (zero rows of i_re/i_im kill the padded spectrum).
        re_stack = stack_rows([fuc[2 * c] for c in range(c_half)], S_pad)
        im_stack = stack_rows([fuc[2 * c + 1] for c in range(c_half)], S_pad)
        fu_all = (jnp.dot(re_stack, ire_ref[...],
                          preferred_element_type=jnp.float32, precision=hi)
                  + jnp.dot(im_stack, iim_ref[...],
                            preferred_element_type=jnp.float32, precision=hi))

        # SpectralTransform.conv2 input: h1 + fu, summed once.
        hf = [h1[c] + fu_all[c * B:(c + 1) * B, :] for c in range(c_half)]

        # out_l = relu(bn_l(convl2l(x_l) + convg2l(x_g)))   (direct slab stores)
        for o in range(out_cl):
            ol_ref[pl.ds(o * B, B), :] = mix(
                [(xl, "w_l2l", in_cl), (xg, "w_g2l", in_cg)], "b_l", o)

        # out_g = relu(bn_g(convl2g(x_l) + conv2(h1 + fu)))
        for o in range(out_cg):
            og_ref[pl.ds(o * B, B), :] = mix(
                [(xl, "w_l2g", in_cl), (hf, "w2", c_half)], "b_g", o)

    smem = pltpu.MemorySpace.SMEM
    in_specs = [
        pl.BlockSpec(xl_rows.shape, lambda i: (0, 0)),
        pl.BlockSpec(xg_rows.shape, lambda i: (0, 0)),
        pl.BlockSpec(d_re.shape, lambda i: (0, 0)),
        pl.BlockSpec(d_im.shape, lambda i: (0, 0)),
        pl.BlockSpec(i_re.shape, lambda i: (0, 0)),
        pl.BlockSpec(i_im.shape, lambda i: (0, 0)),
        pl.BlockSpec(memory_space=smem),
        pl.BlockSpec(memory_space=smem),
    ]
    out_specs = (
        pl.BlockSpec((out_cl * B, HW), lambda i: (0, 0)),
        pl.BlockSpec((out_cg * B, HW), lambda i: (0, 0)),
    )
    out_shape = (
        jax.ShapeDtypeStruct((out_cl * B, HW), jnp.float32),
        jax.ShapeDtypeStruct((out_cg * B, HW), jnp.float32),
    )

    flops = (8 * mrows * HW * S_pad
             + 2 * B * (HW * (c_half * in_cg
                              + out_cl * (in_cl + in_cg)
                              + out_cg * (in_cl + c_half))
                        + S_pad * (2 * c_half) ** 2))
    bytes_accessed = 4 * (B * HW * (in_cl + in_cg + out_cl + out_cg)
                          + 4 * HW * S_pad
                          + int(w_flat.size) + int(b_flat.size))

    out_l_rows, out_g_rows = pl.pallas_call(
        kernel,
        grid=(1,),
        in_specs=in_specs,
        out_specs=out_specs,
        out_shape=out_shape,
        compiler_params=pltpu.CompilerParams(dimension_semantics=("arbitrary",)),
        cost_estimate=pl.CostEstimate(flops=int(flops), transcendentals=0,
                                      bytes_accessed=int(bytes_accessed)),
    )(xl_rows, xg_rows,
      jnp.asarray(d_re), jnp.asarray(d_im), jnp.asarray(i_re), jnp.asarray(i_im),
      w_flat, b_flat)

    return rows_to_nchw(out_l_rows, B, H, W), rows_to_nchw(out_g_rows, B, H, W)


# ----------------------------------------------------------------------------
# Pure-JAX NCHW reference mirroring the PyTorch module (unfolded BN, XLA FFTs),
# used to verify the folded / fused Pallas path.
# ----------------------------------------------------------------------------
def _conv1x1_nchw(x, w):
    return jnp.einsum("oc,bchw->bohw", w, x)


def _bn_nchw(x, bn):
    s = bn["gamma"] / jnp.sqrt(bn["var"] + BN_EPS)
    b = bn["beta"] - bn["mean"] * s
    return x * s[None, :, None, None] + b[None, :, None, None]


def _fourier_unit_ref(x, w, bn):
    B, C, H, W = x.shape
    ff = jnp.fft.rfftn(x, axes=(-2, -1), norm="ortho")
    ff = jnp.stack((ff.real, ff.imag), axis=-1)                       # (B,C,H,Wf,2)
    ff = jnp.transpose(ff, (0, 1, 4, 2, 3)).reshape(B, 2 * C, H, -1)  # (B,2C,H,Wf)
    y = jnp.maximum(_bn_nchw(_conv1x1_nchw(ff, w), bn), 0.0)
    Co = y.shape[1] // 2
    y = y.reshape(B, Co, 2, H, -1).transpose(0, 1, 3, 4, 2)
    return jnp.fft.irfftn(y[..., 0] + 1j * y[..., 1], s=(H, W),
                          axes=(-2, -1), norm="ortho")


def ffc_bn_act_ref(x_l, x_g, p):
    out_l = _conv1x1_nchw(x_l, p["w_l2l"]) + _conv1x1_nchw(x_g, p["w_g2l"])
    out_l = jnp.maximum(_bn_nchw(out_l, p["bn_l"]), 0.0)
    h1 = jnp.maximum(_bn_nchw(_conv1x1_nchw(x_g, p["w1"]), p["bn1"]), 0.0)
    fu = _fourier_unit_ref(h1, p["w_fu"], p["bn_fu"])
    spec = _conv1x1_nchw(h1 + fu, p["w2"])            # enable_lfu=False -> xs = 0
    out_g = _conv1x1_nchw(x_l, p["w_l2g"]) + spec
    out_g = jnp.maximum(_bn_nchw(out_g, p["bn_g"]), 0.0)
    return out_l, out_g


# ----------------------------------------------------------------------------
# Deterministic parameter init (shapes from the module's __init__)
# ----------------------------------------------------------------------------
def init_params(key, in_channels=8, out_channels=8, ratio_gin=0.5, ratio_gout=0.5):
    in_cg = int(in_channels * ratio_gin)
    in_cl = in_channels - in_cg
    out_cg = int(out_channels * ratio_gout)
    out_cl = out_channels - out_cg
    c_half = out_cg // 2
    ks = jax.random.split(key, 10)

    def conv_w(k, cout, cin):   # 1x1 Conv2d weight, stored as (cout, cin)
        return jax.random.normal(k, (cout, cin), jnp.float32) / np.sqrt(cin)

    def bn(k, c):
        k1, k2, k3, k4 = jax.random.split(k, 4)
        return dict(gamma=1.0 + 0.1 * jax.random.normal(k1, (c,), jnp.float32),
                    beta=0.1 * jax.random.normal(k2, (c,), jnp.float32),
                    mean=0.1 * jax.random.normal(k3, (c,), jnp.float32),
                    var=1.0 + 0.1 * jax.random.uniform(k4, (c,), jnp.float32))

    return dict(
        w_l2l=conv_w(ks[0], out_cl, in_cl),
        w_g2l=conv_w(ks[1], out_cl, in_cg),
        w_l2g=conv_w(ks[2], out_cg, in_cl),
        w1=conv_w(ks[3], c_half, in_cg),
        w_fu=conv_w(ks[4], 2 * c_half, 2 * c_half),
        w2=conv_w(ks[5], out_cg, c_half),
        bn_l=bn(ks[6], out_cl), bn_g=bn(ks[7], out_cg),
        bn1=bn(ks[8], c_half), bn_fu=bn(ks[9], 2 * c_half),
    )


# ----------------------------------------------------------------------------
if __name__ == "__main__":
    key = jax.random.PRNGKey(0)
    k_x, k_p = jax.random.split(key)

    B, C_in, C_out, H, W = 2, 8, 8, 16, 16
    ratio = 0.5
    in_cg = int(C_in * ratio)
    in_cl = C_in - in_cg
    out_cg = int(C_out * ratio)
    out_cl = C_out - out_cg

    kx_l, kx_g = jax.random.split(k_x)
    x_l = jax.random.normal(kx_l, (B, in_cl, H, W), jnp.float32)
    x_g = jax.random.normal(kx_g, (B, in_cg, H, W), jnp.float32)
    params = init_params(k_p, C_in, C_out, ratio, ratio)

    fwd = jax.jit(ffc_bn_act_forward)
    out_l, out_g = fwd(x_l, x_g, params)
    jax.block_until_ready((out_l, out_g))

    # Verify against the pure-JAX (unfolded-BN, XLA-FFT) reference.
    ref_l, ref_g = ffc_bn_act_ref(x_l, x_g, params)
    err_l = float(jnp.max(jnp.abs(out_l - ref_l)))
    err_g = float(jnp.max(jnp.abs(out_g - ref_g)))
    assert out_l.shape == (B, out_cl, H, W) and out_g.shape == (B, out_cg, H, W)
    assert np.isfinite(err_l) and np.isfinite(err_g)
    # In-kernel f32 DFT matmuls are requested at Precision.HIGHEST; the tolerance
    # leaves margin for the MXU's multi-pass bf16 emulation of f32 matmuls.
    assert err_l < 1e-2 and err_g < 1e-2, (err_l, err_g)

    print("KERNEL_OK")
</pallas_src>

<mosaic_0001>
module attributes {stable_mosaic.version = 11 : i64} {
  func.func @kernel(%arg0: i32, %arg1: memref<8x256xf32, #tpu.memory_space<vmem>>, %arg2: memref<8x256xf32, #tpu.memory_space<vmem>>, %arg3: memref<256x256xf32, #tpu.memory_space<vmem>>, %arg4: memref<256x256xf32, #tpu.memory_space<vmem>>, %arg5: memref<256x256xf32, #tpu.memory_space<vmem>>, %arg6: memref<256x256xf32, #tpu.memory_space<vmem>>, %arg7: memref<80xf32, #tpu.memory_space<smem>>, %arg8: memref<14xf32, #tpu.memory_space<smem>>, %arg9: memref<8x256xf32, #tpu.memory_space<vmem>>, %arg10: memref<8x256xf32, #tpu.memory_space<vmem>>) attributes {dimension_semantics = [#tpu.dimension_semantics<arbitrary>], iteration_bounds = array<i64: 1>, scalar_prefetch = 0 : i64, scratch_operands = 0 : i64, tpu.core_type = #tpu.core_type<tc>, window_params = [{pipeline_mode = #tpu.pipeline_mode<synchronous>, transform_indices = @transform_0, window_bounds = array<i64: 8, 256>}, {pipeline_mode = #tpu.pipeline_mode<synchronous>, transform_indices = @transform_1, window_bounds = array<i64: 8, 256>}, {pipeline_mode = #tpu.pipeline_mode<synchronous>, transform_indices = @transform_2, window_bounds = array<i64: 256, 256>}, {pipeline_mode = #tpu.pipeline_mode<synchronous>, transform_indices = @transform_3, window_bounds = array<i64: 256, 256>}, {pipeline_mode = #tpu.pipeline_mode<synchronous>, transform_indices = @transform_4, window_bounds = array<i64: 256, 256>}, {pipeline_mode = #tpu.pipeline_mode<synchronous>, transform_indices = @transform_5, window_bounds = array<i64: 256, 256>}, {transform_indices = @transform_6, window_bounds = array<i64: 80>}, {transform_indices = @transform_7, window_bounds = array<i64: 14>}, {pipeline_mode = #tpu.pipeline_mode<synchronous>, transform_indices = @transform_8, window_bounds = array<i64: 8, 256>}, {pipeline_mode = #tpu.pipeline_mode<synchronous>, transform_indices = @transform_9, window_bounds = array<i64: 8, 256>}]} {
    %c0 = arith.constant 0 : index
    %c0_0 = arith.constant 0 : index
    %0 = vector.load %arg1[%c0, %c0_0] : memref<8x256xf32, #tpu.memory_space<vmem>>, vector<2x256xf32>
    %c2 = arith.constant 2 : index
    %c0_1 = arith.constant 0 : index
    %1 = vector.load %arg1[%c2, %c0_1] : memref<8x256xf32, #tpu.memory_space<vmem>>, vector<2x256xf32>
    %c4 = arith.constant 4 : index
    %c0_2 = arith.constant 0 : index
    %2 = vector.load %arg1[%c4, %c0_2] : memref<8x256xf32, #tpu.memory_space<vmem>>, vector<2x256xf32>
    %c6 = arith.constant 6 : index
    %c0_3 = arith.constant 0 : index
    %3 = vector.load %arg1[%c6, %c0_3] : memref<8x256xf32, #tpu.memory_space<vmem>>, vector<2x256xf32>
    %c0_4 = arith.constant 0 : index
    %c0_5 = arith.constant 0 : index
    %4 = vector.load %arg2[%c0_4, %c0_5] : memref<8x256xf32, #tpu.memory_space<vmem>>, vector<2x256xf32>
    %c2_6 = arith.constant 2 : index
    %c0_7 = arith.constant 0 : index
    %5 = vector.load %arg2[%c2_6, %c0_7] : memref<8x256xf32, #tpu.memory_space<vmem>>, vector<2x256xf32>
    %c4_8 = arith.constant 4 : index
    %c0_9 = arith.constant 0 : index
    %6 = vector.load %arg2[%c4_8, %c0_9] : memref<8x256xf32, #tpu.memory_space<vmem>>, vector<2x256xf32>
    %c6_10 = arith.constant 6 : index
    %c0_11 = arith.constant 0 : index
    %7 = vector.load %arg2[%c6_10, %c0_11] : memref<8x256xf32, #tpu.memory_space<vmem>>, vector<2x256xf32>
    %c0_12 = arith.constant 0 : index
    %8 = memref.load %arg7[%c0_12] : memref<80xf32, #tpu.memory_space<smem>>
    %9 = vector.broadcast %8 : f32 to vector<2x256xf32>
    %10 = arith.mulf %4, %9 : vector<2x256xf32>
    %c1 = arith.constant 1 : index
    %11 = memref.load %arg7[%c1] : memref<80xf32, #tpu.memory_space<smem>>
    %12 = vector.broadcast %11 : f32 to vector<2x256xf32>
    %13 = arith.mulf %5, %12 : vector<2x256xf32>
    %14 = arith.addf %10, %13 : vector<2x256xf32>
    %c2_13 = arith.constant 2 : index
    %15 = memref.load %arg7[%c2_13] : memref<80xf32, #tpu.memory_space<smem>>
    %16 = vector.broadcast %15 : f32 to vector<2x256xf32>
    %17 = arith.mulf %6, %16 : vector<2x256xf32>
    %18 = arith.addf %14, %17 : vector<2x256xf32>
    %c3 = arith.constant 3 : index
    %19 = memref.load %arg7[%c3] : memref<80xf32, #tpu.memory_space<smem>>
    %20 = vector.broadcast %19 : f32 to vector<2x256xf32>
    %21 = arith.mulf %7, %20 : vector<2x256xf32>
    %22 = arith.addf %18, %21 : vector<2x256xf32>
    %c0_14 = arith.constant 0 : index
    %23 = memref.load %arg8[%c0_14] : memref<14xf32, #tpu.memory_space<smem>>
    %24 = vector.broadcast %23 : f32 to vector<2x256xf32>
    %25 = arith.addf %22, %24 : vector<2x256xf32>
    %cst = arith.constant 0.000000e+00 : f32
    %26 = vector.broadcast %cst : f32 to vector<2x256xf32>
    %27 = arith.maximumf %25, %26 : vector<2x256xf32>
    %c4_15 = arith.constant 4 : index
    %28 = memref.load %arg7[%c4_15] : memref<80xf32, #tpu.memory_space<smem>>
    %29 = vector.broadcast %28 : f32 to vector<2x256xf32>
    %30 = arith.mulf %4, %29 : vector<2x256xf32>
    %c5 = arith.constant 5 : index
    %31 = memref.load %arg7[%c5] : memref<80xf32, #tpu.memory_space<smem>>
    %32 = vector.broadcast %31 : f32 to vector<2x256xf32>
    %33 = arith.mulf %5, %32 : vector<2x256xf32>
    %34 = arith.addf %30, %33 : vector<2x256xf32>
    %c6_16 = arith.constant 6 : index
    %35 = memref.load %arg7[%c6_16] : memref<80xf32, #tpu.memory_space<smem>>
    %36 = vector.broadcast %35 : f32 to vector<2x256xf32>
    %37 = arith.mulf %6, %36 : vector<2x256xf32>
    %38 = arith.addf %34, %37 : vector<2x256xf32>
    %c7 = arith.constant 7 : index
    %39 = memref.load %arg7[%c7] : memref<80xf32, #tpu.memory_space<smem>>
    %40 = vector.broadcast %39 : f32 to vector<2x256xf32>
    %41 = arith.mulf %7, %40 : vector<2x256xf32>
    %42 = arith.addf %38, %41 : vector<2x256xf32>
    %c1_17 = arith.constant 1 : index
    %43 = memref.load %arg8[%c1_17] : memref<14xf32, #tpu.memory_space<smem>>
    %44 = vector.broadcast %43 : f32 to vector<2x256xf32>
    %45 = arith.addf %42, %44 : vector<2x256xf32>
    %cst_18 = arith.constant 0.000000e+00 : f32
    %46 = vector.broadcast %cst_18 : f32 to vector<2x256xf32>
    %47 = arith.maximumf %45, %46 : vector<2x256xf32>
    %cst_19 = arith.constant 0.000000e+00 : f32
    %48 = vector.broadcast %cst_19 : f32 to vector<4x256xf32>
    %49 = tpu.concatenate %27, %47, %48 in 0 : vector<2x256xf32>, vector<2x256xf32>, vector<4x256xf32> -> vector<8x256xf32>
    %c0_20 = arith.constant 0 : index
    %c0_21 = arith.constant 0 : index
    %50 = vector.load %arg3[%c0_20, %c0_21] : memref<256x256xf32, #tpu.memory_space<vmem>>, vector<256x256xf32>
    %cst_22 = arith.constant dense<0.000000e+00> : vector<8x256xf32>
    %51 = tpu.matmul %49, %50, %cst_22 {dimension_numbers = #tpu.dot_dimension_numbers<[1], [0], [0], [1], [0, 0, 1, 1], [], []>, precision = #tpu.contract_precision<fp32>} : vector<8x256xf32>, vector<256x256xf32>, vector<8x256xf32> -> vector<8x256xf32>
    %c0_23 = arith.constant 0 : index
    %c0_24 = arith.constant 0 : index
    %52 = vector.load %arg4[%c0_23, %c0_24] : memref<256x256xf32, #tpu.memory_space<vmem>>, vector<256x256xf32>
    %cst_25 = arith.constant dense<0.000000e+00> : vector<8x256xf32>
    %53 = tpu.matmul %49, %52, %cst_25 {dimension_numbers = #tpu.dot_dimension_numbers<[1], [0], [0], [1], [0, 0, 1, 1], [], []>, precision = #tpu.contract_precision<fp32>} : vector<8x256xf32>, vector<256x256xf32>, vector<8x256xf32> -> vector<8x256xf32>
    %54 = vector.extract_strided_slice %51 {offsets = [0, 0], sizes = [2, 256], strides = [1, 1]} : vector<8x256xf32> to vector<2x256xf32>
    %55 = vector.extract_strided_slice %53 {offsets = [0, 0], sizes = [2, 256], strides = [1, 1]} : vector<8x256xf32> to vector<2x256xf32>
    %56 = vector.extract_strided_slice %51 {offsets = [2, 0], sizes = [2, 256], strides = [1, 1]} : vector<8x256xf32> to vector<2x256xf32>
    %57 = vector.extract_strided_slice %53 {offsets = [2, 0], sizes = [2, 256], strides = [1, 1]} : vector<8x256xf32> to vector<2x256xf32>
    %c8 = arith.constant 8 : index
    %58 = memref.load %arg7[%c8] : memref<80xf32, #tpu.memory_space<smem>>
    %59 = vector.broadcast %58 : f32 to vector<2x256xf32>
    %60 = arith.mulf %54, %59 : vector<2x256xf32>
    %c9 = arith.constant 9 : index
    %61 = memref.load %arg7[%c9] : memref<80xf32, #tpu.memory_space<smem>>
    %62 = vector.broadcast %61 : f32 to vector<2x256xf32>
    %63 = arith.mulf %55, %62 : vector<2x256xf32>
    %64 = arith.addf %60, %63 : vector<2x256xf32>
    %c10 = arith.constant 10 : index
    %65 = memref.load %arg7[%c10] : memref<80xf32, #tpu.memory_space<smem>>
    %66 = vector.broadcast %65 : f32 to vector<2x256xf32>
    %67 = arith.mulf %56, %66 : vector<2x256xf32>
    %68 = arith.addf %64, %67 : vector<2x256xf32>
    %c11 = arith.constant 11 : index
    %69 = memref.load %arg7[%c11] : memref<80xf32, #tpu.memory_space<smem>>
    %70 = vector.broadcast %69 : f32 to vector<2x256xf32>
    %71 = arith.mulf %57, %70 : vector<2x256xf32>
    %72 = arith.addf %68, %71 : vector<2x256xf32>
    %c2_26 = arith.constant 2 : index
    %73 = memref.load %arg8[%c2_26] : memref<14xf32, #tpu.memory_space<smem>>
    %74 = vector.broadcast %73 : f32 to vector<2x256xf32>
    %75 = arith.addf %72, %74 : vector<2x256xf32>
    %cst_27 = arith.constant 0.000000e+00 : f32
    %76 = vector.broadcast %cst_27 : f32 to vector<2x256xf32>
    %77 = arith.maximumf %75, %76 : vector<2x256xf32>
    %c12 = arith.constant 12 : index
    %78 = memref.load %arg7[%c12] : memref<80xf32, #tpu.memory_space<smem>>
    %79 = vector.broadcast %78 : f32 to vector<2x256xf32>
    %80 = arith.mulf %54, %79 : vector<2x256xf32>
    %c13 = arith.constant 13 : index
    %81 = memref.load %arg7[%c13] : memref<80xf32, #tpu.memory_space<smem>>
    %82 = vector.broadcast %81 : f32 to vector<2x256xf32>
    %83 = arith.mulf %55, %82 : vector<2x256xf32>
    %84 = arith.addf %80, %83 : vector<2x256xf32>
    %c14 = arith.constant 14 : index
    %85 = memref.load %arg7[%c14] : memref<80xf32, #tpu.memory_space<smem>>
    %86 = vector.broadcast %85 : f32 to vector<2x256xf32>
    %87 = arith.mulf %56, %86 : vector<2x256xf32>
    %88 = arith.addf %84, %87 : vector<2x256xf32>
    %c15 = arith.constant 15 : index
    %89 = memref.load %arg7[%c15] : memref<80xf32, #tpu.memory_space<smem>>
    %90 = vector.broadcast %89 : f32 to vector<2x256xf32>
    %91 = arith.mulf %57, %90 : vector<2x256xf32>
    %92 = arith.addf %88, %91 : vector<2x256xf32>
    %c3_28 = arith.constant 3 : index
    %93 = memref.load %arg8[%c3_28] : memref<14xf32, #tpu.memory_space<smem>>
    %94 = vector.broadcast %93 : f32 to vector<2x256xf32>
    %95 = arith.addf %92, %94 : vector<2x256xf32>
    %cst_29 = arith.constant 0.000000e+00 : f32
    %96 = vector.broadcast %cst_29 : f32 to vector<2x256xf32>
    %97 = arith.maximumf %95, %96 : vector<2x256xf32>
    %c16 = arith.constant 16 : index
    %98 = memref.load %arg7[%c16] : memref<80xf32, #tpu.memory_space<smem>>
    %99 = vector.broadcast %98 : f32 to vector<2x256xf32>
    %100 = arith.mulf %54, %99 : vector<2x256xf32>
    %c17 = arith.constant 17 : index
    %101 = memref.load %arg7[%c17] : memref<80xf32, #tpu.memory_space<smem>>
    %102 = vector.broadcast %101 : f32 to vector<2x256xf32>
    %103 = arith.mulf %55, %102 : vector<2x256xf32>
    %104 = arith.addf %100, %103 : vector<2x256xf32>
    %c18 = arith.constant 18 : index
    %105 = memref.load %arg7[%c18] : memref<80xf32, #tpu.memory_space<smem>>
    %106 = vector.broadcast %105 : f32 to vector<2x256xf32>
    %107 = arith.mulf %56, %106 : vector<2x256xf32>
    %108 = arith.addf %104, %107 : vector<2x256xf32>
    %c19 = arith.constant 19 : index
    %109 = memref.load %arg7[%c19] : memref<80xf32, #tpu.memory_space<smem>>
    %110 = vector.broadcast %109 : f32 to vector<2x256xf32>
    %111 = arith.mulf %57, %110 : vector<2x256xf32>
    %112 = arith.addf %108, %111 : vector<2x256xf32>
    %c4_30 = arith.constant 4 : index
    %113 = memref.load %arg8[%c4_30] : memref<14xf32, #tpu.memory_space<smem>>
    %114 = vector.broadcast %113 : f32 to vector<2x256xf32>
    %115 = arith.addf %112, %114 : vector<2x256xf32>
    %cst_31 = arith.constant 0.000000e+00 : f32
    %116 = vector.broadcast %cst_31 : f32 to vector<2x256xf32>
    %117 = arith.maximumf %115, %116 : vector<2x256xf32>
    %c20 = arith.constant 20 : index
    %118 = memref.load %arg7[%c20] : memref<80xf32, #tpu.memory_space<smem>>
    %119 = vector.broadcast %118 : f32 to vector<2x256xf32>
    %120 = arith.mulf %54, %119 : vector<2x256xf32>
    %c21 = arith.constant 21 : index
    %121 = memref.load %arg7[%c21] : memref<80xf32, #tpu.memory_space<smem>>
    %122 = vector.broadcast %121 : f32 to vector<2x256xf32>
    %123 = arith.mulf %55, %122 : vector<2x256xf32>
    %124 = arith.addf %120, %123 : vector<2x256xf32>
    %c22 = arith.constant 22 : index
    %125 = memref.load %arg7[%c22] : memref<80xf32, #tpu.memory_space<smem>>
    %126 = vector.broadcast %125 : f32 to vector<2x256xf32>
    %127 = arith.mulf %56, %126 : vector<2x256xf32>
    %128 = arith.addf %124, %127 : vector<2x256xf32>
    %c23 = arith.constant 23 : index
    %129 = memref.load %arg7[%c23] : memref<80xf32, #tpu.memory_space<smem>>
    %130 = vector.broadcast %129 : f32 to vector<2x256xf32>
    %131 = arith.mulf %57, %130 : vector<2x256xf32>
    %132 = arith.addf %128, %131 : vector<2x256xf32>
    %c5_32 = arith.constant 5 : index
    %133 = memref.load %arg8[%c5_32] : memref<14xf32, #tpu.memory_space<smem>>
    %134 = vector.broadcast %133 : f32 to vector<2x256xf32>
    %135 = arith.addf %132, %134 : vector<2x256xf32>
    %cst_33 = arith.constant 0.000000e+00 : f32
    %136 = vector.broadcast %cst_33 : f32 to vector<2x256xf32>
    %137 = arith.maximumf %135, %136 : vector<2x256xf32>
    %cst_34 = arith.constant 0.000000e+00 : f32
    %138 = vector.broadcast %cst_34 : f32 to vector<4x256xf32>
    %139 = tpu.concatenate %77, %117, %138 in 0 : vector<2x256xf32>, vector<2x256xf32>, vector<4x256xf32> -> vector<8x256xf32>
    %cst_35 = arith.constant 0.000000e+00 : f32
    %140 = vector.broadcast %cst_35 : f32 to vector<4x256xf32>
    %141 = tpu.concatenate %97, %137, %140 in 0 : vector<2x256xf32>, vector<2x256xf32>, vector<4x256xf32> -> vector<8x256xf32>
    %c0_36 = arith.constant 0 : index
    %c0_37 = arith.constant 0 : index
    %142 = vector.load %arg5[%c0_36, %c0_37] : memref<256x256xf32, #tpu.memory_space<vmem>>, vector<256x256xf32>
    %cst_38 = arith.constant dense<0.000000e+00> : vector<8x256xf32>
    %143 = tpu.matmul %139, %142, %cst_38 {dimension_numbers = #tpu.dot_dimension_numbers<[1], [0], [0], [1], [0, 0, 1, 1], [], []>, precision = #tpu.contract_precision<fp32>} : vector<8x256xf32>, vector<256x256xf32>, vector<8x256xf32> -> vector<8x256xf32>
    %c0_39 = arith.constant 0 : index
    %c0_40 = arith.constant 0 : index
    %144 = vector.load %arg6[%c0_39, %c0_40] : memref<256x256xf32, #tpu.memory_space<vmem>>, vector<256x256xf32>
    %cst_41 = arith.constant dense<0.000000e+00> : vector<8x256xf32>
    %145 = tpu.matmul %141, %144, %cst_41 {dimension_numbers = #tpu.dot_dimension_numbers<[1], [0], [0], [1], [0, 0, 1, 1], [], []>, precision = #tpu.contract_precision<fp32>} : vector<8x256xf32>, vector<256x256xf32>, vector<8x256xf32> -> vector<8x256xf32>
    %146 = arith.addf %143, %145 : vector<8x256xf32>
    %147 = vector.extract_strided_slice %146 {offsets = [0, 0], sizes = [2, 256], strides = [1, 1]} : vector<8x256xf32> to vector<2x256xf32>
    %148 = arith.addf %27, %147 : vector<2x256xf32>
    %149 = vector.extract_strided_slice %146 {offsets = [2, 0], sizes = [2, 256], strides = [1, 1]} : vector<8x256xf32> to vector<2x256xf32>
    %150 = arith.addf %47, %149 : vector<2x256xf32>
    %c24 = arith.constant 24 : index
    %151 = memref.load %arg7[%c24] : memref<80xf32, #tpu.memory_space<smem>>
    %152 = vector.broadcast %151 : f32 to vector<2x256xf32>
    %153 = arith.mulf %0, %152 : vector<2x256xf32>
    %c25 = arith.constant 25 : index
    %154 = memref.load %arg7[%c25] : memref<80xf32, #tpu.memory_space<smem>>
    %155 = vector.broadcast %154 : f32 to vector<2x256xf32>
    %156 = arith.mulf %1, %155 : vector<2x256xf32>
    %157 = arith.addf %153, %156 : vector<2x256xf32>
    %c26 = arith.constant 26 : index
    %158 = memref.load %arg7[%c26] : memref<80xf32, #tpu.memory_space<smem>>
    %159 = vector.broadcast %158 : f32 to vector<2x256xf32>
    %160 = arith.mulf %2, %159 : vector<2x256xf32>
    %161 = arith.addf %157, %160 : vector<2x256xf32>
    %c27 = arith.constant 27 : index
    %162 = memref.load %arg7[%c27] : memref<80xf32, #tpu.memory_space<smem>>
    %163 = vector.broadcast %162 : f32 to vector<2x256xf32>
    %164 = arith.mulf %3, %163 : vector<2x256xf32>
    %165 = arith.addf %161, %164 : vector<2x256xf32>
    %c40 = arith.constant 40 : index
    %166 = memref.load %arg7[%c40] : memref<80xf32, #tpu.memory_space<smem>>
    %167 = vector.broadcast %166 : f32 to vector<2x256xf32>
    %168 = arith.mulf %4, %167 : vector<2x256xf32>
    %169 = arith.addf %165, %168 : vector<2x256xf32>
    %c41 = arith.constant 41 : index
    %170 = memref.load %arg7[%c41] : memref<80xf32, #tpu.memory_space<smem>>
    %171 = vector.broadcast %170 : f32 to vector<2x256xf32>
    %172 = arith.mulf %5, %171 : vector<2x256xf32>
    %173 = arith.addf %169, %172 : vector<2x256xf32>
    %c42 = arith.constant 42 : index
    %174 = memref.load %arg7[%c42] : memref<80xf32, #tpu.memory_space<smem>>
    %175 = vector.broadcast %174 : f32 to vector<2x256xf32>
    %176 = arith.mulf %6, %175 : vector<2x256xf32>
    %177 = arith.addf %173, %176 : vector<2x256xf32>
    %c43 = arith.constant 43 : index
    %178 = memref.load %arg7[%c43] : memref<80xf32, #tpu.memory_space<smem>>
    %179 = vector.broadcast %178 : f32 to vector<2x256xf32>
    %180 = arith.mulf %7, %179 : vector<2x256xf32>
    %181 = arith.addf %177, %180 : vector<2x256xf32>
    %c6_42 = arith.constant 6 : index
    %182 = memref.load %arg8[%c6_42] : memref<14xf32, #tpu.memory_space<smem>>
    %183 = vector.broadcast %182 : f32 to vector<2x256xf32>
    %184 = arith.addf %181, %183 : vector<2x256xf32>
    %cst_43 = arith.constant 0.000000e+00 : f32
    %185 = vector.broadcast %cst_43 : f32 to vector<2x256xf32>
    %186 = arith.maximumf %184, %185 : vector<2x256xf32>
    %c0_44 = arith.constant 0 : index
    %c0_45 = arith.constant 0 : index
    %187 = vector.load %arg9[%c0_44, %c0_45] : memref<8x256xf32, #tpu.memory_space<vmem>>, vector<2x256xf32>
    tpu.vector_store %arg9[%c0_44, %c0_45], %186 {strides = array<i32>} : memref<8x256xf32, #tpu.memory_space<vmem>>, vector<2x256xf32>,
    %c28 = arith.constant 28 : index
    %188 = memref.load %arg7[%c28] : memref<80xf32, #tpu.memory_space<smem>>
    %189 = vector.broadcast %188 : f32 to vector<2x256xf32>
    %190 = arith.mulf %0, %189 : vector<2x256xf32>
    %c29 = arith.constant 29 : index
    %191 = memref.load %arg7[%c29] : memref<80xf32, #tpu.memory_space<smem>>
    %192 = vector.broadcast %191 : f32 to vector<2x256xf32>
    %193 = arith.mulf %1, %192 : vector<2x256xf32>
    %194 = arith.addf %190, %193 : vector<2x256xf32>
    %c30 = arith.constant 30 : index
    %195 = memref.load %arg7[%c30] : memref<80xf32, #tpu.memory_space<smem>>
    %196 = vector.broadcast %195 : f32 to vector<2x256xf32>
    %197 = arith.mulf %2, %196 : vector<2x256xf32>
    %198 = arith.addf %194, %197 : vector<2x256xf32>
    %c31 = arith.constant 31 : index
    %199 = memref.load %arg7[%c31] : memref<80xf32, #tpu.memory_space<smem>>
    %200 = vector.broadcast %199 : f32 to vector<2x256xf32>
    %201 = arith.mulf %3, %200 : vector<2x256xf32>
    %202 = arith.addf %198, %201 : vector<2x256xf32>
    %c44 = arith.constant 44 : index
    %203 = memref.load %arg7[%c44] : memref<80xf32, #tpu.memory_space<smem>>
    %204 = vector.broadcast %203 : f32 to vector<2x256xf32>
    %205 = arith.mulf %4, %204 : vector<2x256xf32>
    %206 = arith.addf %202, %205 : vector<2x256xf32>
    %c45 = arith.constant 45 : index
    %207 = memref.load %arg7[%c45] : memref<80xf32, #tpu.memory_space<smem>>
    %208 = vector.broadcast %207 : f32 to vector<2x256xf32>
    %209 = arith.mulf %5, %208 : vector<2x256xf32>
    %210 = arith.addf %206, %209 : vector<2x256xf32>
    %c46 = arith.constant 46 : index
    %211 = memref.load %arg7[%c46] : memref<80xf32, #tpu.memory_space<smem>>
    %212 = vector.broadcast %211 : f32 to vector<2x256xf32>
    %213 = arith.mulf %6, %212 : vector<2x256xf32>
    %214 = arith.addf %210, %213 : vector<2x256xf32>
    %c47 = arith.constant 47 : index
    %215 = memref.load %arg7[%c47] : memref<80xf32, #tpu.memory_space<smem>>
    %216 = vector.broadcast %215 : f32 to vector<2x256xf32>
    %217 = arith.mulf %7, %216 : vector<2x256xf32>
    %218 = arith.addf %214, %217 : vector<2x256xf32>
    %c7_46 = arith.constant 7 : index
    %219 = memref.load %arg8[%c7_46] : memref<14xf32, #tpu.memory_space<smem>>
    %220 = vector.broadcast %219 : f32 to vector<2x256xf32>
    %221 = arith.addf %218, %220 : vector<2x256xf32>
    %cst_47 = arith.constant 0.000000e+00 : f32
    %222 = vector.broadcast %cst_47 : f32 to vector<2x256xf32>
    %223 = arith.maximumf %221, %222 : vector<2x256xf32>
    %c2_48 = arith.constant 2 : index
    %c0_49 = arith.constant 0 : index
    %224 = vector.load %arg9[%c2_48, %c0_49] : memref<8x256xf32, #tpu.memory_space<vmem>>, vector<2x256xf32>
    tpu.vector_store %arg9[%c2_48, %c0_49], %223 {strides = array<i32>} : memref<8x256xf32, #tpu.memory_space<vmem>>, vector<2x256xf32>,
    %c32 = arith.constant 32 : index
    %225 = memref.load %arg7[%c32] : memref<80xf32, #tpu.memory_space<smem>>
    %226 = vector.broadcast %225 : f32 to vector<2x256xf32>
    %227 = arith.mulf %0, %226 : vector<2x256xf32>
    %c33 = arith.constant 33 : index
    %228 = memref.load %arg7[%c33] : memref<80xf32, #tpu.memory_space<smem>>
    %229 = vector.broadcast %228 : f32 to vector<2x256xf32>
    %230 = arith.mulf %1, %229 : vector<2x256xf32>
    %231 = arith.addf %227, %230 : vector<2x256xf32>
    %c34 = arith.constant 34 : index
    %232 = memref.load %arg7[%c34] : memref<80xf32, #tpu.memory_space<smem>>
    %233 = vector.broadcast %232 : f32 to vector<2x256xf32>
    %234 = arith.mulf %2, %233 : vector<2x256xf32>
    %235 = arith.addf %231, %234 : vector<2x256xf32>
    %c35 = arith.constant 35 : index
    %236 = memref.load %arg7[%c35] : memref<80xf32, #tpu.memory_space<smem>>
    %237 = vector.broadcast %236 : f32 to vector<2x256xf32>
    %238 = arith.mulf %3, %237 : vector<2x256xf32>
    %239 = arith.addf %235, %238 : vector<2x256xf32>
    %c48 = arith.constant 48 : index
    %240 = memref.load %arg7[%c48] : memref<80xf32, #tpu.memory_space<smem>>
    %241 = vector.broadcast %240 : f32 to vector<2x256xf32>
    %242 = arith.mulf %4, %241 : vector<2x256xf32>
    %243 = arith.addf %239, %242 : vector<2x256xf32>
    %c49 = arith.constant 49 : index
    %244 = memref.load %arg7[%c49] : memref<80xf32, #tpu.memory_space<smem>>
    %245 = vector.broadcast %244 : f32 to vector<2x256xf32>
    %246 = arith.mulf %5, %245 : vector<2x256xf32>
    %247 = arith.addf %243, %246 : vector<2x256xf32>
    %c50 = arith.constant 50 : index
    %248 = memref.load %arg7[%c50] : memref<80xf32, #tpu.memory_space<smem>>
    %249 = vector.broadcast %248 : f32 to vector<2x256xf32>
    %250 = arith.mulf %6, %249 : vector<2x256xf32>
    %251 = arith.addf %247, %250 : vector<2x256xf32>
    %c51 = arith.constant 51 : index
    %252 = memref.load %arg7[%c51] : memref<80xf32, #tpu.memory_space<smem>>
    %253 = vector.broadcast %252 : f32 to vector<2x256xf32>
    %254 = arith.mulf %7, %253 : vector<2x256xf32>
    %255 = arith.addf %251, %254 : vector<2x256xf32>
    %c8_50 = arith.constant 8 : index
    %256 = memref.load %arg8[%c8_50] : memref<14xf32, #tpu.memory_space<smem>>
    %257 = vector.broadcast %256 : f32 to vector<2x256xf32>
    %258 = arith.addf %255, %257 : vector<2x256xf32>
    %cst_51 = arith.constant 0.000000e+00 : f32
    %259 = vector.broadcast %cst_51 : f32 to vector<2x256xf32>
    %260 = arith.maximumf %258, %259 : vector<2x256xf32>
    %c4_52 = arith.constant 4 : index
    %c0_53 = arith.constant 0 : index
    %261 = vector.load %arg9[%c4_52, %c0_53] : memref<8x256xf32, #tpu.memory_space<vmem>>, vector<2x256xf32>
    tpu.vector_store %arg9[%c4_52, %c0_53], %260 {strides = array<i32>} : memref<8x256xf32, #tpu.memory_space<vmem>>, vector<2x256xf32>,
    %c36 = arith.constant 36 : index
    %262 = memref.load %arg7[%c36] : memref<80xf32, #tpu.memory_space<smem>>
    %263 = vector.broadcast %262 : f32 to vector<2x256xf32>
    %264 = arith.mulf %0, %263 : vector<2x256xf32>
    %c37 = arith.constant 37 : index
    %265 = memref.load %arg7[%c37] : memref<80xf32, #tpu.memory_space<smem>>
    %266 = vector.broadcast %265 : f32 to vector<2x256xf32>
    %267 = arith.mulf %1, %266 : vector<2x256xf32>
    %268 = arith.addf %264, %267 : vector<2x256xf32>
    %c38 = arith.constant 38 : index
    %269 = memref.load %arg7[%c38] : memref<80xf32, #tpu.memory_space<smem>>
    %270 = vector.broadcast %269 : f32 to vector<2x256xf32>
    %271 = arith.mulf %2, %270 : vector<2x256xf32>
    %272 = arith.addf %268, %271 : vector<2x256xf32>
    %c39 = arith.constant 39 : index
    %273 = memref.load %arg7[%c39] : memref<80xf32, #tpu.memory_space<smem>>
    %274 = vector.broadcast %273 : f32 to vector<2x256xf32>
    %275 = arith.mulf %3, %274 : vector<2x256xf32>
    %276 = arith.addf %272, %275 : vector<2x256xf32>
    %c52 = arith.constant 52 : index
    %277 = memref.load %arg7[%c52] : memref<80xf32, #tpu.memory_space<smem>>
    %278 = vector.broadcast %277 : f32 to vector<2x256xf32>
    %279 = arith.mulf %4, %278 : vector<2x256xf32>
    %280 = arith.addf %276, %279 : vector<2x256xf32>
    %c53 = arith.constant 53 : index
    %281 = memref.load %arg7[%c53] : memref<80xf32, #tpu.memory_space<smem>>
    %282 = vector.broadcast %281 : f32 to vector<2x256xf32>
    %283 = arith.mulf %5, %282 : vector<2x256xf32>
    %284 = arith.addf %280, %283 : vector<2x256xf32>
    %c54 = arith.constant 54 : index
    %285 = memref.load %arg7[%c54] : memref<80xf32, #tpu.memory_space<smem>>
    %286 = vector.broadcast %285 : f32 to vector<2x256xf32>
    %287 = arith.mulf %6, %286 : vector<2x256xf32>
    %288 = arith.addf %284, %287 : vector<2x256xf32>
    %c55 = arith.constant 55 : index
    %289 = memref.load %arg7[%c55] : memref<80xf32, #tpu.memory_space<smem>>
    %290 = vector.broadcast %289 : f32 to vector<2x256xf32>
    %291 = arith.mulf %7, %290 : vector<2x256xf32>
    %292 = arith.addf %288, %291 : vector<2x256xf32>
    %c9_54 = arith.constant 9 : index
    %293 = memref.load %arg8[%c9_54] : memref<14xf32, #tpu.memory_space<smem>>
    %294 = vector.broadcast %293 : f32 to vector<2x256xf32>
    %295 = arith.addf %292, %294 : vector<2x256xf32>
    %cst_55 = arith.constant 0.000000e+00 : f32
    %296 = vector.broadcast %cst_55 : f32 to vector<2x256xf32>
    %297 = arith.maximumf %295, %296 : vector<2x256xf32>
    %c6_56 = arith.constant 6 : index
    %c0_57 = arith.constant 0 : index
    %298 = vector.load %arg9[%c6_56, %c0_57] : memref<8x256xf32, #tpu.memory_space<vmem>>, vector<2x256xf32>
    tpu.vector_store %arg9[%c6_56, %c0_57], %297 {strides = array<i32>} : memref<8x256xf32, #tpu.memory_space<vmem>>, vector<2x256xf32>,
    %c56 = arith.constant 56 : index
    %299 = memref.load %arg7[%c56] : memref<80xf32, #tpu.memory_space<smem>>
    %300 = vector.broadcast %299 : f32 to vector<2x256xf32>
    %301 = arith.mulf %0, %300 : vector<2x256xf32>
    %c57 = arith.constant 57 : index
    %302 = memref.load %arg7[%c57] : memref<80xf32, #tpu.memory_space<smem>>
    %303 = vector.broadcast %302 : f32 to vector<2x256xf32>
    %304 = arith.mulf %1, %303 : vector<2x256xf32>
    %305 = arith.addf %301, %304 : vector<2x256xf32>
    %c58 = arith.constant 58 : index
    %306 = memref.load %arg7[%c58] : memref<80xf32, #tpu.memory_space<smem>>
    %307 = vector.broadcast %306 : f32 to vector<2x256xf32>
    %308 = arith.mulf %2, %307 : vector<2x256xf32>
    %309 = arith.addf %305, %308 : vector<2x256xf32>
    %c59 = arith.constant 59 : index
    %310 = memref.load %arg7[%c59] : memref<80xf32, #tpu.memory_space<smem>>
    %311 = vector.broadcast %310 : f32 to vector<2x256xf32>
    %312 = arith.mulf %3, %311 : vector<2x256xf32>
    %313 = arith.addf %309, %312 : vector<2x256xf32>
    %c72 = arith.constant 72 : index
    %314 = memref.load %arg7[%c72] : memref<80xf32, #tpu.memory_space<smem>>
    %315 = vector.broadcast %314 : f32 to vector<2x256xf32>
    %316 = arith.mulf %148, %315 : vector<2x256xf32>
    %317 = arith.addf %313, %316 : vector<2x256xf32>
    %c73 = arith.constant 73 : index
    %318 = memref.load %arg7[%c73] : memref<80xf32, #tpu.memory_space<smem>>
    %319 = vector.broadcast %318 : f32 to vector<2x256xf32>
    %320 = arith.mulf %150, %319 : vector<2x256xf32>
    %321 = arith.addf %317, %320 : vector<2x256xf32>
    %c10_58 = arith.constant 10 : index
    %322 = memref.load %arg8[%c10_58] : memref<14xf32, #tpu.memory_space<smem>>
    %323 = vector.broadcast %322 : f32 to vector<2x256xf32>
    %324 = arith.addf %321, %323 : vector<2x256xf32>
    %cst_59 = arith.constant 0.000000e+00 : f32
    %325 = vector.broadcast %cst_59 : f32 to vector<2x256xf32>
    %326 = arith.maximumf %324, %325 : vector<2x256xf32>
    %c0_60 = arith.constant 0 : index
    %c0_61 = arith.constant 0 : index
    %327 = vector.load %arg10[%c0_60, %c0_61] : memref<8x256xf32, #tpu.memory_space<vmem>>, vector<2x256xf32>
    tpu.vector_store %arg10[%c0_60, %c0_61], %326 {strides = array<i32>} : memref<8x256xf32, #tpu.memory_space<vmem>>, vector<2x256xf32>,
    %c60 = arith.constant 60 : index
    %328 = memref.load %arg7[%c60] : memref<80xf32, #tpu.memory_space<smem>>
    %329 = vector.broadcast %328 : f32 to vector<2x256xf32>
    %330 = arith.mulf %0, %329 : vector<2x256xf32>
    %c61 = arith.constant 61 : index
    %331 = memref.load %arg7[%c61] : memref<80xf32, #tpu.memory_space<smem>>
    %332 = vector.broadcast %331 : f32 to vector<2x256xf32>
    %333 = arith.mulf %1, %332 : vector<2x256xf32>
    %334 = arith.addf %330, %333 : vector<2x256xf32>
    %c62 = arith.constant 62 : index
    %335 = memref.load %arg7[%c62] : memref<80xf32, #tpu.memory_space<smem>>
    %336 = vector.broadcast %335 : f32 to vector<2x256xf32>
    %337 = arith.mulf %2, %336 : vector<2x256xf32>
    %338 = arith.addf %334, %337 : vector<2x256xf32>
    %c63 = arith.constant 63 : index
    %339 = memref.load %arg7[%c63] : memref<80xf32, #tpu.memory_space<smem>>
    %340 = vector.broadcast %339 : f32 to vector<2x256xf32>
    %341 = arith.mulf %3, %340 : vector<2x256xf32>
    %342 = arith.addf %338, %341 : vector<2x256xf32>
    %c74 = arith.constant 74 : index
    %343 = memref.load %arg7[%c74] : memref<80xf32, #tpu.memory_space<smem>>
    %344 = vector.broadcast %343 : f32 to vector<2x256xf32>
    %345 = arith.mulf %148, %344 : vector<2x256xf32>
    %346 = arith.addf %342, %345 : vector<2x256xf32>
    %c75 = arith.constant 75 : index
    %347 = memref.load %arg7[%c75] : memref<80xf32, #tpu.memory_space<smem>>
    %348 = vector.broadcast %347 : f32 to vector<2x256xf32>
    %349 = arith.mulf %150, %348 : vector<2x256xf32>
    %350 = arith.addf %346, %349 : vector<2x256xf32>
    %c11_62 = arith.constant 11 : index
    %351 = memref.load %arg8[%c11_62] : memref<14xf32, #tpu.memory_space<smem>>
    %352 = vector.broadcast %351 : f32 to vector<2x256xf32>
    %353 = arith.addf %350, %352 : vector<2x256xf32>
    %cst_63 = arith.constant 0.000000e+00 : f32
    %354 = vector.broadcast %cst_63 : f32 to vector<2x256xf32>
    %355 = arith.maximumf %353, %354 : vector<2x256xf32>
    %c2_64 = arith.constant 2 : index
    %c0_65 = arith.constant 0 : index
    %356 = vector.load %arg10[%c2_64, %c0_65] : memref<8x256xf32, #tpu.memory_space<vmem>>, vector<2x256xf32>
    tpu.vector_store %arg10[%c2_64, %c0_65], %355 {strides = array<i32>} : memref<8x256xf32, #tpu.memory_space<vmem>>, vector<2x256xf32>,
    %c64 = arith.constant 64 : index
    %357 = memref.load %arg7[%c64] : memref<80xf32, #tpu.memory_space<smem>>
    %358 = vector.broadcast %357 : f32 to vector<2x256xf32>
    %359 = arith.mulf %0, %358 : vector<2x256xf32>
    %c65 = arith.constant 65 : index
    %360 = memref.load %arg7[%c65] : memref<80xf32, #tpu.memory_space<smem>>
    %361 = vector.broadcast %360 : f32 to vector<2x256xf32>
    %362 = arith.mulf %1, %361 : vector<2x256xf32>
    %363 = arith.addf %359, %362 : vector<2x256xf32>
    %c66 = arith.constant 66 : index
    %364 = memref.load %arg7[%c66] : memref<80xf32, #tpu.memory_space<smem>>
    %365 = vector.broadcast %364 : f32 to vector<2x256xf32>
    %366 = arith.mulf %2, %365 : vector<2x256xf32>
    %367 = arith.addf %363, %366 : vector<2x256xf32>
    %c67 = arith.constant 67 : index
    %368 = memref.load %arg7[%c67] : memref<80xf32, #tpu.memory_space<smem>>
    %369 = vector.broadcast %368 : f32 to vector<2x256xf32>
    %370 = arith.mulf %3, %369 : vector<2x256xf32>
    %371 = arith.addf %367, %370 : vector<2x256xf32>
    %c76 = arith.constant 76 : index
    %372 = memref.load %arg7[%c76] : memref<80xf32, #tpu.memory_space<smem>>
    %373 = vector.broadcast %372 : f32 to vector<2x256xf32>
    %374 = arith.mulf %148, %373 : vector<2x256xf32>
    %375 = arith.addf %371, %374 : vector<2x256xf32>
    %c77 = arith.constant 77 : index
    %376 = memref.load %arg7[%c77] : memref<80xf32, #tpu.memory_space<smem>>
    %377 = vector.broadcast %376 : f32 to vector<2x256xf32>
    %378 = arith.mulf %150, %377 : vector<2x256xf32>
    %379 = arith.addf %375, %378 : vector<2x256xf32>
    %c12_66 = arith.constant 12 : index
    %380 = memref.load %arg8[%c12_66] : memref<14xf32, #tpu.memory_space<smem>>
    %381 = vector.broadcast %380 : f32 to vector<2x256xf32>
    %382 = arith.addf %379, %381 : vector<2x256xf32>
    %cst_67 = arith.constant 0.000000e+00 : f32
    %383 = vector.broadcast %cst_67 : f32 to vector<2x256xf32>
    %384 = arith.maximumf %382, %383 : vector<2x256xf32>
    %c4_68 = arith.constant 4 : index
    %c0_69 = arith.constant 0 : index
    %385 = vector.load %arg10[%c4_68, %c0_69] : memref<8x256xf32, #tpu.memory_space<vmem>>, vector<2x256xf32>
    tpu.vector_store %arg10[%c4_68, %c0_69], %384 {strides = array<i32>} : memref<8x256xf32, #tpu.memory_space<vmem>>, vector<2x256xf32>,
    %c68 = arith.constant 68 : index
    %386 = memref.load %arg7[%c68] : memref<80xf32, #tpu.memory_space<smem>>
    %387 = vector.broadcast %386 : f32 to vector<2x256xf32>
    %388 = arith.mulf %0, %387 : vector<2x256xf32>
    %c69 = arith.constant 69 : index
    %389 = memref.load %arg7[%c69] : memref<80xf32, #tpu.memory_space<smem>>
    %390 = vector.broadcast %389 : f32 to vector<2x256xf32>
    %391 = arith.mulf %1, %390 : vector<2x256xf32>
    %392 = arith.addf %388, %391 : vector<2x256xf32>
    %c70 = arith.constant 70 : index
    %393 = memref.load %arg7[%c70] : memref<80xf32, #tpu.memory_space<smem>>
    %394 = vector.broadcast %393 : f32 to vector<2x256xf32>
    %395 = arith.mulf %2, %394 : vector<2x256xf32>
    %396 = arith.addf %392, %395 : vector<2x256xf32>
    %c71 = arith.constant 71 : index
    %397 = memref.load %arg7[%c71] : memref<80xf32, #tpu.memory_space<smem>>
    %398 = vector.broadcast %397 : f32 to vector<2x256xf32>
    %399 = arith.mulf %3, %398 : vector<2x256xf32>
    %400 = arith.addf %396, %399 : vector<2x256xf32>
    %c78 = arith.constant 78 : index
    %401 = memref.load %arg7[%c78] : memref<80xf32, #tpu.memory_space<smem>>
    %402 = vector.broadcast %401 : f32 to vector<2x256xf32>
    %403 = arith.mulf %148, %402 : vector<2x256xf32>
    %404 = arith.addf %400, %403 : vector<2x256xf32>
    %c79 = arith.constant 79 : index
    %405 = memref.load %arg7[%c79] : memref<80xf32, #tpu.memory_space<smem>>
    %406 = vector.broadcast %405 : f32 to vector<2x256xf32>
    %407 = arith.mulf %150, %406 : vector<2x256xf32>
    %408 = arith.addf %404, %407 : vector<2x256xf32>
    %c13_70 = arith.constant 13 : index
    %409 = memref.load %arg8[%c13_70] : memref<14xf32, #tpu.memory_space<smem>>
    %410 = vector.broadcast %409 : f32 to vector<2x256xf32>
    %411 = arith.addf %408, %410 : vector<2x256xf32>
    %cst_71 = arith.constant 0.000000e+00 : f32
    %412 = vector.broadcast %cst_71 : f32 to vector<2x256xf32>
    %413 = arith.maximumf %411, %412 : vector<2x256xf32>
    %c6_72 = arith.constant 6 : index
    %c0_73 = arith.constant 0 : index
    %414 = vector.load %arg10[%c6_72, %c0_73] : memref<8x256xf32, #tpu.memory_space<vmem>>, vector<2x256xf32>
    tpu.vector_store %arg10[%c6_72, %c0_73], %413 {strides = array<i32>} : memref<8x256xf32, #tpu.memory_space<vmem>>, vector<2x256xf32>,
    return
  }
  func.func @transform_0(%arg0: i32) -> (i32, i32) {
    %c0_i32 = arith.constant 0 : i32
    %c0_i32_0 = arith.constant 0 : i32
    %c0_i32_1 = arith.constant 0 : i32
    return %c0_i32, %c0_i32_0 : i32, i32
  }
  func.func @transform_1(%arg0: i32) -> (i32, i32) {
    %c0_i32 = arith.constant 0 : i32
    %c0_i32_0 = arith.constant 0 : i32
    %c0_i32_1 = arith.constant 0 : i32
    return %c0_i32, %c0_i32_0 : i32, i32
  }
  func.func @transform_2(%arg0: i32) -> (i32, i32) {
    %c0_i32 = arith.constant 0 : i32
    %c0_i32_0 = arith.constant 0 : i32
    %c0_i32_1 = arith.constant 0 : i32
    return %c0_i32, %c0_i32_0 : i32, i32
  }
  func.func @transform_3(%arg0: i32) -> (i32, i32) {
    %c0_i32 = arith.constant 0 : i32
    %c0_i32_0 = arith.constant 0 : i32
    %c0_i32_1 = arith.constant 0 : i32
    return %c0_i32, %c0_i32_0 : i32, i32
  }
  func.func @transform_4(%arg0: i32) -> (i32, i32) {
    %c0_i32 = arith.constant 0 : i32
    %c0_i32_0 = arith.constant 0 : i32
    %c0_i32_1 = arith.constant 0 : i32
    return %c0_i32, %c0_i32_0 : i32, i32
  }
  func.func @transform_5(%arg0: i32) -> (i32, i32) {
    %c0_i32 = arith.constant 0 : i32
    %c0_i32_0 = arith.constant 0 : i32
    %c0_i32_1 = arith.constant 0 : i32
    return %c0_i32, %c0_i32_0 : i32, i32
  }
  func.func @transform_6(%arg0: i32) -> i32 {
    %c0_i32 = arith.constant 0 : i32
    %c0_i32_0 = arith.constant 0 : i32
    return %c0_i32 : i32
  }
  func.func @transform_7(%arg0: i32) -> i32 {
    %c0_i32 = arith.constant 0 : i32
    %c0_i32_0 = arith.constant 0 : i32
    return %c0_i32 : i32
  }
  func.func @transform_8(%arg0: i32) -> (i32, i32) {
    %c0_i32 = arith.constant 0 : i32
    %c0_i32_0 = arith.constant 0 : i32
    %c0_i32_1 = arith.constant 0 : i32
    return %c0_i32, %c0_i32_0 : i32, i32
  }
  func.func @transform_9(%arg0: i32) -> (i32, i32) {
    %c0_i32 = arith.constant 0 : i32
    %c0_i32_0 = arith.constant 0 : i32
    %c0_i32_1 = arith.constant 0 : i32
    return %c0_i32, %c0_i32_0 : i32, i32
  }
}

</mosaic_0001>

<llo_original>
// kernel: ffc_bn_act_forward.1
$region0: #{ffc_bn_act_forward.1}
  #allocation0 [shape = 'u32[]', space=smem, size = 0x4, offset = 0x4, fixed_abs, tag = 'smem constant byte address 0x4 - core index']
  #allocation1 [shape = 'u32[144,128]{1,0:T(1,128)}', space=vmem, size = 0x12000, scoped, tag = 'internal scratch']
  %s0 = inlined_call_operand.vmem [shape: f32[8,256], index: 0, kind: input, shape index: {}]
  %s1 = inlined_call_operand.vmem [shape: f32[8,256], index: 1, kind: input, shape index: {}]
  %s2 = inlined_call_operand.hbm [shape: f32[256,256], index: 2, kind: input, shape index: {}]
  %s3 = inlined_call_operand.hbm [shape: f32[256,256], index: 3, kind: input, shape index: {}]
  %s4 = inlined_call_operand.vmem [shape: f32[256,256], index: 4, kind: input, shape index: {}]
  %s5 = inlined_call_operand.vmem [shape: f32[256,256], index: 5, kind: input, shape index: {}]
  %s6 = inlined_call_operand.vmem [shape: f32[80], index: 6, kind: input, shape index: {}]
  %s7 = inlined_call_operand.vmem [shape: f32[14], index: 7, kind: input, shape index: {}]
  %s8 = inlined_call_operand.vmem [shape: f32[8,256], index: 8, kind: output, shape index: {0}]
  %s9 = inlined_call_operand.vmem [shape: f32[8,256], index: 9, kind: output, shape index: {1}]
  %10 = xla_tuple %s8, %s9
  %s11 = sld [smem:[#allocation0]]
  $region66: #{ffc_bn_act_forward.1} parent=0
    _
  %s13 = ssub.s32 1, %s11
  %s14 = scalar_select 0, %s13, %s11
  $region1: #{ffc_bn_act_forward.1} parent=0
    #allocation2 [shape = 'u8[262144]{0}', space=vmem, size = 0x40000, scoped, tag = 'input window, operand 2, single buffered']
    #allocation3 [shape = 's32[1]{0}', space=sflag, size = 0x4, scoped, tag = 'scoped memory for ffc_bn_act_forward.1']
    #allocation4 [shape = 's32[1]{0}', space=sflag, size = 0x4, scoped, tag = 'scoped memory for ffc_bn_act_forward.1']
    #allocation5 [shape = 'u8[262144]{0}', space=vmem, size = 0x40000, scoped, tag = 'input window, operand 3, single buffered']
    #allocation6 [shape = 's32[1]{0}', space=sflag, size = 0x4, scoped, tag = 'scoped memory for ffc_bn_act_forward.1']
    #allocation7 [shape = 'u8[512]{0}', space=smem, size = 0x200, scoped, tag = 'input window, operand 6, single buffered']
    #allocation8 [shape = 'u8[512]{0}', space=smem, size = 0x200, scoped, tag = 'input window, operand 7, single buffered']
    #allocation9 [shape = 's32[1]{0}', space=sflag, size = 0x4, scoped, tag = 'scoped memory for ffc_bn_act_forward.1']
    %15 = vsyncpa [#allocation3], 0
    %16 = vsyncpa [#allocation6], 0
    %17 = vsyncpa [#allocation4], 0
    %18 = vsyncpa [#allocation9], 0
    // Predicated region
    $region2: #{ffc_bn_act_forward.1} parent=1 // pred_check
      _
    $region3: #{ffc_bn_act_forward.1} parent=1 // pred_check_branch
      %20 = sbr.rel (0) target = $region5
    $region4: #{ffc_bn_act_forward.1} parent=1 // pred_region
      _
    $region5: #{ffc_bn_act_forward.1} parent=1 // pred_fallthru
      _
    // Predicated region
    $region6: #{ffc_bn_act_forward.1} parent=1 // pred_check
      _
    $region7: #{ffc_bn_act_forward.1} parent=1 // pred_check_branch
      %22 = sbr.rel (0) target = $region9
    $region8: #{ffc_bn_act_forward.1} parent=1 // pred_region
      _
    $region9: #{ffc_bn_act_forward.1} parent=1 // pred_fallthru
      _
    // Predicated region
    $region10: #{ffc_bn_act_forward.1} parent=1 // pred_check
      _
    $region11: #{ffc_bn_act_forward.1} parent=1 // pred_check_branch
      %24 = sbr.rel (0) target = $region13
    $region12: #{ffc_bn_act_forward.1} parent=1 // pred_region
      %s26 = ssub.s32 8192, 8192
      %27 = vsyncadd [#allocation3], %s26
      %s28 = sshll.u32 [#allocation2], 4
      %s29 = int_to_ptr.vmem [resolvable:$true] %s28
      %34 = dma.hbm_to_vmem [thread:$0]  %s2, 8192, %s29, [#allocation3], 256, 256, 16
    $region13: #{ffc_bn_act_forward.1} parent=1 // pred_fallthru
      _
    // Predicated region
    $region14: #{ffc_bn_act_forward.1} parent=1 // pred_check
      _
    $region15: #{ffc_bn_act_forward.1} parent=1 // pred_check_branch
      %36 = sbr.rel (0) target = $region17
    $region16: #{ffc_bn_act_forward.1} parent=1 // pred_region
      %s38 = ssub.s32 8192, 8192
      %39 = vsyncadd [#allocation6], %s38
      %s40 = sshll.u32 [#allocation5], 4
      %s41 = int_to_ptr.vmem [resolvable:$true] %s40
      %46 = dma.hbm_to_vmem [thread:$0]  %s3, 8192, %s41, [#allocation6], 256, 256, 16
    $region17: #{ffc_bn_act_forward.1} parent=1 // pred_fallthru
      _
    // Predicated region
    $region18: #{ffc_bn_act_forward.1} parent=1 // pred_check
      _
    $region19: #{ffc_bn_act_forward.1} parent=1 // pred_check_branch
      %48 = sbr.rel (0) target = $region21
    $region20: #{ffc_bn_act_forward.1} parent=1 // pred_region
      _
    $region21: #{ffc_bn_act_forward.1} parent=1 // pred_fallthru
      _
    // Predicated region
    $region22: #{ffc_bn_act_forward.1} parent=1 // pred_check
      _
    $region23: #{ffc_bn_act_forward.1} parent=1 // pred_check_branch
      %50 = sbr.rel (0) target = $region25
    $region24: #{ffc_bn_act_forward.1} parent=1 // pred_region
      _
    $region25: #{ffc_bn_act_forward.1} parent=1 // pred_fallthru
      _
    // Predicated region
    $region26: #{ffc_bn_act_forward.1} parent=1 // pred_check
      _
    $region27: #{ffc_bn_act_forward.1} parent=1 // pred_check_branch
      %52 = sbr.rel (0) target = $region29
    $region28: #{ffc_bn_act_forward.1} parent=1 // pred_region
      %s54 = ssub.s32 16, 16
      %55 = vsyncadd [#allocation4], %s54
      %s57 = sshll.u32 %s6, 4
      %s58 = int_to_ptr.vmem [resolvable:$true] %s57
      %60 = dma.vmem_to_smem %s58, 16, [#allocation7], [#allocation4]
    $region29: #{ffc_bn_act_forward.1} parent=1 // pred_fallthru
      _
    // Predicated region
    $region30: #{ffc_bn_act_forward.1} parent=1 // pred_check
      _
    $region31: #{ffc_bn_act_forward.1} parent=1 // pred_check_branch
      %62 = sbr.rel (0) target = $region33
    $region32: #{ffc_bn_act_forward.1} parent=1 // pred_region
      %s64 = ssub.s32 16, 16
      %65 = vsyncadd [#allocation9], %s64
      %s67 = sshll.u32 %s7, 4
      %s68 = int_to_ptr.vmem [resolvable:$true] %s67
      %70 = dma.vmem_to_smem %s68, 16, [#allocation8], [#allocation9]
    $region33: #{ffc_bn_act_forward.1} parent=1 // pred_fallthru
      _
    // Predicated region
    $region34: #{ffc_bn_act_forward.1} parent=1 // pred_check
      _
    $region35: #{ffc_bn_act_forward.1} parent=1 // pred_check_branch
      %72 = sbr.rel (0) target = $region37
    $region36: #{ffc_bn_act_forward.1} parent=1 // pred_region
      %73 = dma.done [#allocation3], 8192
    $region37: #{ffc_bn_act_forward.1} parent=1 // pred_fallthru
      _
    // Predicated region
    $region38: #{ffc_bn_act_forward.1} parent=1 // pred_check
      _
    $region39: #{ffc_bn_act_forward.1} parent=1 // pred_check_branch
      %75 = sbr.rel (0) target = $region41
    $region40: #{ffc_bn_act_forward.1} parent=1 // pred_region
      %76 = dma.done [#allocation6], 8192
    $region41: #{ffc_bn_act_forward.1} parent=1 // pred_fallthru
      _
    // Predicated region
    $region42: #{ffc_bn_act_forward.1} parent=1 // pred_check
      _
    $region43: #{ffc_bn_act_forward.1} parent=1 // pred_check_branch
      %78 = sbr.rel (0) target = $region45
    $region44: #{ffc_bn_act_forward.1} parent=1 // pred_region
      %79 = dma.done [#allocation4], 16
    $region45: #{ffc_bn_act_forward.1} parent=1 // pred_fallthru
      _
    // Predicated region
    $region46: #{ffc_bn_act_forward.1} parent=1 // pred_check
      _
    $region47: #{ffc_bn_act_forward.1} parent=1 // pred_check_branch
      %81 = sbr.rel (0) target = $region49
    $region48: #{ffc_bn_act_forward.1} parent=1 // pred_region
      %82 = dma.done [#allocation9], 16
    $region49: #{ffc_bn_act_forward.1} parent=1 // pred_fallthru
      _
    %83 = sfence
    %v84 = vld [vmem:[%s0] sm:$0x3]
    %v85 = vld [vmem:[%s0 + $0x8] sm:$0x3]
    %v86 = vld [vmem:[%s0] sm:$0xc]
    %v87 = vld [vmem:[%s0 + $0x8] sm:$0xc]
    %v88 = vld [vmem:[%s0] sm:$0x30]
    %v89 = vld [vmem:[%s0 + $0x8] sm:$0x30]
    %v90 = vld [vmem:[%s0] sm:$0xc0]
    %v91 = vld [vmem:[%s0 + $0x8] sm:$0xc0]
    %v92 = vld [vmem:[%s1] sm:$0x3]
    %v93 = vld [vmem:[%s1 + $0x8] sm:$0x3]
    %v94 = vld [vmem:[%s1] sm:$0xc]
    %v95 = vld [vmem:[%s1 + $0x8] sm:$0xc]
    %v96 = vld [vmem:[%s1] sm:$0x30]
    %v97 = vld [vmem:[%s1 + $0x8] sm:$0x30]
    %v98 = vld [vmem:[%s1] sm:$0xc0]
    %v99 = vld [vmem:[%s1 + $0x8] sm:$0xc0]
    %s100 = sld [smem:[#allocation7]]
    %v101 = vstv %s100
    %v102 = vmul.f32 %v92, %v101
    %v103 = vmul.f32 %v93, %v101
    %s104 = sld [smem:[#allocation7 + $0x1]]
    %v105 = vstv %s104
    %v106 = vmul.f32 %v94, %v105
    %v107 = vmul.f32 %v95, %v105
    %v110 = vrot.slane %v106, 2
    %v111 = vrot.slane %v107, 2
    %v114 = vadd.f32 %v102, %v110
    %v115 = vadd.f32 %v103, %v111
    %s116 = sld [smem:[#allocation7 + $0x2]]
    %v117 = vstv %s116
    %v118 = vmul.f32 %v96, %v117
    %v119 = vmul.f32 %v97, %v117
    %v122 = vrot.slane %v118, 4
    %v123 = vrot.slane %v119, 4
    %v126 = vadd.f32 %v114, %v122
    %v127 = vadd.f32 %v115, %v123
    %s128 = sld [smem:[#allocation7 + $0x3]]
    %v129 = vstv %s128
    %v130 = vmul.f32 %v98, %v129
    %v131 = vmul.f32 %v99, %v129
    %v134 = vrot.slane %v130, 6
    %v135 = vrot.slane %v131, 6
    %v138 = vadd.f32 %v126, %v134
    %v139 = vadd.f32 %v127, %v135
    %s140 = sld [smem:[#allocation8]]
    %v141 = vstv %s140
    %v142 = vadd.f32 %v138, %v141
    %v143 = vadd.f32 %v139, %v141
    %v144 = vmax.f32 %v142, 0.0
    %v145 = vmax.f32 %v143, 0.0
    %s146 = sld [smem:[#allocation7 + $0x4]]
    %v147 = vstv %s146
    %v148 = vmul.f32 %v92, %v147
    %v149 = vmul.f32 %v93, %v147
    %s150 = sld [smem:[#allocation7 + $0x5]]
    %v151 = vstv %s150
    %v152 = vmul.f32 %v94, %v151
    %v153 = vmul.f32 %v95, %v151
    %v156 = vrot.slane %v152, 2
    %v157 = vrot.slane %v153, 2
    %v160 = vadd.f32 %v148, %v156
    %v161 = vadd.f32 %v149, %v157
    %s162 = sld [smem:[#allocation7 + $0x6]]
    %v163 = vstv %s162
    %v164 = vmul.f32 %v96, %v163
    %v165 = vmul.f32 %v97, %v163
    %v168 = vrot.slane %v164, 4
    %v169 = vrot.slane %v165, 4
    %v172 = vadd.f32 %v160, %v168
    %v173 = vadd.f32 %v161, %v169
    %s174 = sld [smem:[#allocation7 + $0x7]]
    %v175 = vstv %s174
    %v176 = vmul.f32 %v98, %v175
    %v177 = vmul.f32 %v99, %v175
    %v180 = vrot.slane %v176, 6
    %v181 = vrot.slane %v177, 6
    %v184 = vadd.f32 %v172, %v180
    %v185 = vadd.f32 %v173, %v181
    %s186 = sld [smem:[#allocation8 + $0x1]]
    %v187 = vstv %s186
    %v188 = vadd.f32 %v184, %v187
    %v189 = vadd.f32 %v185, %v187
    %v190 = vmax.f32 %v188, 0.0
    %v191 = vmax.f32 %v189, 0.0
    %v194 = vrot.slane %v190, 6
    %v195 = vrot.slane %v191, 6
    %vm198 = vcmask 1041408
    %v199 = vsel %vm198, %v144, %v194
    %v200 = vsel %vm198, %v145, %v195
    %vm201 = vcmask 1043456
    %v202 = vsel %vm201, %v199, 0.0
    %v203 = vsel %vm201, %v200, 0.0
    %v204 = vld [vmem:[#allocation2] sm:$0xff]
    %v205 = vld [vmem:[#allocation2 + $0x8] sm:$0xff]
    %v206 = vld [vmem:[#allocation2 + $0x10] sm:$0xff]
    %v207 = vld [vmem:[#allocation2 + $0x18] sm:$0xff]
    %v208 = vld [vmem:[#allocation2 + $0x20] sm:$0xff]
    %v209 = vld [vmem:[#allocation2 + $0x28] sm:$0xff]
    %v210 = vld [vmem:[#allocation2 + $0x30] sm:$0xff]
    %v211 = vld [vmem:[#allocation2 + $0x38] sm:$0xff]
    %v212 = vld [vmem:[#allocation2 + $0x40] sm:$0xff]
    %v213 = vld [vmem:[#allocation2 + $0x48] sm:$0xff]
    %v214 = vld [vmem:[#allocation2 + $0x50] sm:$0xff]
    %v215 = vld [vmem:[#allocation2 + $0x58] sm:$0xff]
    %v216 = vld [vmem:[#allocation2 + $0x60] sm:$0xff]
    %v217 = vld [vmem:[#allocation2 + $0x68] sm:$0xff]
    %v218 = vld [vmem:[#allocation2 + $0x70] sm:$0xff]
    %v219 = vld [vmem:[#allocation2 + $0x78] sm:$0xff]
    %v220 = vld [vmem:[#allocation2 + $0x80] sm:$0xff]
    %v221 = vld [vmem:[#allocation2 + $0x88] sm:$0xff]
    %v222 = vld [vmem:[#allocation2 + $0x90] sm:$0xff]
    %v223 = vld [vmem:[#allocation2 + $0x98] sm:$0xff]
    %v224 = vld [vmem:[#allocation2 + $0xa0] sm:$0xff]
    %v225 = vld [vmem:[#allocation2 + $0xa8] sm:$0xff]
    %v226 = vld [vmem:[#allocation2 + $0xb0] sm:$0xff]
    %v227 = vld [vmem:[#allocation2 + $0xb8] sm:$0xff]
    %v228 = vld [vmem:[#allocation2 + $0xc0] sm:$0xff]
    %v229 = vld [vmem:[#allocation2 + $0xc8] sm:$0xff]
    %v230 = vld [vmem:[#allocation2 + $0xd0] sm:$0xff]
    %v231 = vld [vmem:[#allocation2 + $0xd8] sm:$0xff]
    %v232 = vld [vmem:[#allocation2 + $0xe0] sm:$0xff]
    %v233 = vld [vmem:[#allocation2 + $0xe8] sm:$0xff]
    %v234 = vld [vmem:[#allocation2 + $0xf0] sm:$0xff]
    %v235 = vld [vmem:[#allocation2 + $0xf8] sm:$0xff]
    %v236 = vld [vmem:[#allocation2 + $0x100] sm:$0xff]
    %v237 = vld [vmem:[#allocation2 + $0x108] sm:$0xff]
    %v238 = vld [vmem:[#allocation2 + $0x110] sm:$0xff]
    %v239 = vld [vmem:[#allocation2 + $0x118] sm:$0xff]
    %v240 = vld [vmem:[#allocation2 + $0x120] sm:$0xff]
    %v241 = vld [vmem:[#allocation2 + $0x128] sm:$0xff]
    %v242 = vld [vmem:[#allocation2 + $0x130] sm:$0xff]
    %v243 = vld [vmem:[#allocation2 + $0x138] sm:$0xff]
    %v244 = vld [vmem:[#allocation2 + $0x140] sm:$0xff]
    %v245 = vld [vmem:[#allocation2 + $0x148] sm:$0xff]
    %v246 = vld [vmem:[#allocation2 + $0x150] sm:$0xff]
    %v247 = vld [vmem:[#allocation2 + $0x158] sm:$0xff]
    %v248 = vld [vmem:[#allocation2 + $0x160] sm:$0xff]
    %v249 = vld [vmem:[#allocation2 + $0x168] sm:$0xff]
    %v250 = vld [vmem:[#allocation2 + $0x170] sm:$0xff]
    %v251 = vld [vmem:[#allocation2 + $0x178] sm:$0xff]
    %v252 = vld [vmem:[#allocation2 + $0x180] sm:$0xff]
    %v253 = vld [vmem:[#allocation2 + $0x188] sm:$0xff]
    %v254 = vld [vmem:[#allocation2 + $0x190] sm:$0xff]
    %v255 = vld [vmem:[#allocation2 + $0x198] sm:$0xff]
    %v256 = vld [vmem:[#allocation2 + $0x1a0] sm:$0xff]
    %v257 = vld [vmem:[#allocation2 + $0x1a8] sm:$0xff]
    %v258 = vld [vmem:[#allocation2 + $0x1b0] sm:$0xff]
    %v259 = vld [vmem:[#allocation2 + $0x1b8] sm:$0xff]
    %v260 = vld [vmem:[#allocation2 + $0x1c0] sm:$0xff]
    %v261 = vld [vmem:[#allocation2 + $0x1c8] sm:$0xff]
    %v262 = vld [vmem:[#allocation2 + $0x1d0] sm:$0xff]
    %v263 = vld [vmem:[#allocation2 + $0x1d8] sm:$0xff]
    %v264 = vld [vmem:[#allocation2 + $0x1e0] sm:$0xff]
    %v265 = vld [vmem:[#allocation2 + $0x1e8] sm:$0xff]
    %v266 = vld [vmem:[#allocation2 + $0x1f0] sm:$0xff]
    %v267 = vld [vmem:[#allocation2 + $0x1f8] sm:$0xff]
    %v268 = vand.u32 %v205, 4294901760
    %269 = vmatprep.subr.mxu0 %v268
    %v270 = vand.u32 %v204, 4294901760
    %271 = vmatpush1.msra.mxu0 %v270
    %v272 = vand.u32 %v207, 4294901760
    %273 = vmatprep.subr.mxu0 %v272
    %v274 = vand.u32 %v206, 4294901760
    %275 = vmatpush1.msra.mxu0 %v274
    %v276 = vand.u32 %v209, 4294901760
    %277 = vmatprep.subr.mxu0 %v276
    %v278 = vand.u32 %v208, 4294901760
    %279 = vmatpush1.msra.mxu0 %v278
    %v280 = vand.u32 %v211, 4294901760
    %281 = vmatprep.subr.mxu0 %v280
    %v282 = vand.u32 %v210, 4294901760
    %283 = vmatpush1.msra.mxu0 %v282
    %v284 = vand.u32 %v213, 4294901760
    %285 = vmatprep.subr.mxu0 %v284
    %v286 = vand.u32 %v212, 4294901760
    %287 = vmatpush1.msra.mxu0 %v286
    %v288 = vand.u32 %v215, 4294901760
    %289 = vmatprep.subr.mxu0 %v288
    %v290 = vand.u32 %v214, 4294901760
    %291 = vmatpush1.msra.mxu0 %v290
    %v292 = vand.u32 %v217, 4294901760
    %293 = vmatprep.subr.mxu0 %v292
    %v294 = vand.u32 %v216, 4294901760
    %295 = vmatpush1.msra.mxu0 %v294
    %v296 = vand.u32 %v219, 4294901760
    %297 = vmatprep.subr.mxu0 %v296
    %v298 = vand.u32 %v218, 4294901760
    %299 = vmatpush1.msra.mxu0 %v298
    %v300 = vand.u32 %v221, 4294901760
    %301 = vmatprep.subr.mxu0 %v300
    %v302 = vand.u32 %v220, 4294901760
    %303 = vmatpush1.msra.mxu0 %v302
    %v304 = vand.u32 %v223, 4294901760
    %305 = vmatprep.subr.mxu0 %v304
    %v306 = vand.u32 %v222, 4294901760
    %307 = vmatpush1.msra.mxu0 %v306
    %v308 = vand.u32 %v225, 4294901760
    %309 = vmatprep.subr.mxu0 %v308
    %v310 = vand.u32 %v224, 4294901760
    %311 = vmatpush1.msra.mxu0 %v310
    %v312 = vand.u32 %v227, 4294901760
    %313 = vmatprep.subr.mxu0 %v312
    %v314 = vand.u32 %v226, 4294901760
    %315 = vmatpush1.msra.mxu0 %v314
    %v316 = vand.u32 %v229, 4294901760
    %317 = vmatprep.subr.mxu0 %v316
    %v318 = vand.u32 %v228, 4294901760
    %319 = vmatpush1.msra.mxu0 %v318
    %v320 = vand.u32 %v231, 4294901760
    %321 = vmatprep.subr.mxu0 %v320
    %v322 = vand.u32 %v230, 4294901760
    %323 = vmatpush1.msra.mxu0 %v322
    %v324 = vand.u32 %v233, 4294901760
    %325 = vmatprep.subr.mxu0 %v324
    %v326 = vand.u32 %v232, 4294901760
    %327 = vmatpush1.msra.mxu0 %v326
    %v328 = vand.u32 %v235, 4294901760
    %329 = vmatprep.subr.mxu0 %v328
    %v330 = vand.u32 %v234, 4294901760
    %331 = vmatpush1.msra.mxu0 %v330
    %v332 = vand.u32 %v237, 4294901760
    %333 = vmatprep.subr.mxu0 %v332
    %v334 = vand.u32 %v236, 4294901760
    %335 = vmatpush1.msra.mxu0 %v334
    %v336 = vand.u32 %v239, 4294901760
    %337 = vmatprep.subr.mxu0 %v336
    %v338 = vand.u32 %v238, 4294901760
    %339 = vmatpush1.msra.mxu0 %v338
    %v340 = vand.u32 %v241, 4294901760
    %341 = vmatprep.subr.mxu0 %v340
    %v342 = vand.u32 %v240, 4294901760
    %343 = vmatpush1.msra.mxu0 %v342
    %v344 = vand.u32 %v243, 4294901760
    %345 = vmatprep.subr.mxu0 %v344
    %v346 = vand.u32 %v242, 4294901760
    %347 = vmatpush1.msra.mxu0 %v346
    %v348 = vand.u32 %v245, 4294901760
    %349 = vmatprep.subr.mxu0 %v348
    %v350 = vand.u32 %v244, 4294901760
    %351 = vmatpush1.msra.mxu0 %v350
    %v352 = vand.u32 %v247, 4294901760
    %353 = vmatprep.subr.mxu0 %v352
    %v354 = vand.u32 %v246, 4294901760
    %355 = vmatpush1.msra.mxu0 %v354
    %v356 = vand.u32 %v249, 4294901760
    %357 = vmatprep.subr.mxu0 %v356
    %v358 = vand.u32 %v248, 4294901760
    %359 = vmatpush1.msra.mxu0 %v358
    %v360 = vand.u32 %v251, 4294901760
    %361 = vmatprep.subr.mxu0 %v360
    %v362 = vand.u32 %v250, 4294901760
    %363 = vmatpush1.msra.mxu0 %v362
    %v364 = vand.u32 %v253, 4294901760
    %365 = vmatprep.subr.mxu0 %v364
    %v366 = vand.u32 %v252, 4294901760
    %367 = vmatpush1.msra.mxu0 %v366
    %v368 = vand.u32 %v255, 4294901760
    %369 = vmatprep.subr.mxu0 %v368
    %v370 = vand.u32 %v254, 4294901760
    %371 = vmatpush1.msra.mxu0 %v370
    %v372 = vand.u32 %v257, 4294901760
    %373 = vmatprep.subr.mxu0 %v372
    %v374 = vand.u32 %v256, 4294901760
    %375 = vmatpush1.msra.mxu0 %v374
    %v376 = vand.u32 %v259, 4294901760
    %377 = vmatprep.subr.mxu0 %v376
    %v378 = vand.u32 %v258, 4294901760
    %379 = vmatpush1.msra.mxu0 %v378
    %v380 = vand.u32 %v261, 4294901760
    %381 = vmatprep.subr.mxu0 %v380
    %v382 = vand.u32 %v260, 4294901760
    %383 = vmatpush1.msra.mxu0 %v382
    %v384 = vand.u32 %v263, 4294901760
    %385 = vmatprep.subr.mxu0 %v384
    %v386 = vand.u32 %v262, 4294901760
    %387 = vmatpush1.msra.mxu0 %v386
    %v388 = vand.u32 %v265, 4294901760
    %389 = vmatprep.subr.mxu0 %v388
    %v390 = vand.u32 %v264, 4294901760
    %391 = vmatpush1.msra.mxu0 %v390
    %v392 = vand.u32 %v267, 4294901760
    %393 = vmatprep.subr.mxu0 %v392
    %v394 = vand.u32 %v266, 4294901760
    %395 = vmatpush1.msra.mxu0 %v394
    %v396 = vand.u32 %v203, 4294901760
    %v397 = vsub.f32 %v203, %v396
    %v398 = vand.u32 %v397, 4294901760
    %v399 = vsub.f32 %v397, %v398
    %v400 = vand.u32 %v399, 4294901760
    %401 = vmatprep.mubr.f32.mxu0 %v400
    %v402 = vand.u32 %v202, 4294901760
    %v403 = vsub.f32 %v202, %v402
    %v404 = vand.u32 %v403, 4294901760
    %v405 = vsub.f32 %v403, %v404
    %v406 = vand.u32 %v405, 4294901760
    %407 = vmatmul.mubr.f32.gmra.mrb[0].mxu0 %v406
    %v408 = vpop.f32.mrb[0].mxu0
    %v409 = vadd.f32 0.0, %v408
    %v410 = vpop.f32.mrb[0].mxu0
    %v411 = vadd.f32 0.0, %v410
    %412 = vdwg.mxu0
    %v413 = vand.u32 %v205, 4294901760
    %v414 = vsub.f32 %v205, %v413
    %v415 = vand.u32 %v414, 4294901760
    %v416 = vsub.f32 %v414, %v415
    %v417 = vand.u32 %v416, 4294901760
    %418 = vmatprep.subr.mxu0 %v417
    %v419 = vand.u32 %v204, 4294901760
    %v420 = vsub.f32 %v204, %v419
    %v421 = vand.u32 %v420, 4294901760
    %v422 = vsub.f32 %v420, %v421
    %v423 = vand.u32 %v422, 4294901760
    %424 = vmatpush1.msra.mxu0 %v423
    %v425 = vand.u32 %v207, 4294901760
    %v426 = vsub.f32 %v207, %v425
    %v427 = vand.u32 %v426, 4294901760
    %v428 = vsub.f32 %v426, %v427
    %v429 = vand.u32 %v428, 4294901760
    %430 = vmatprep.subr.mxu0 %v429
    %v431 = vand.u32 %v206, 4294901760
    %v432 = vsub.f32 %v206, %v431
    %v433 = vand.u32 %v432, 4294901760
    %v434 = vsub.f32 %v432, %v433
    %v435 = vand.u32 %v434, 4294901760
    %436 = vmatpush1.msra.mxu0 %v435
    %v437 = vand.u32 %v209, 4294901760
    %v438 = vsub.f32 %v209, %v437
    %v439 = vand.u32 %v438, 4294901760
    %v440 = vsub.f32 %v438, %v439
    %v441 = vand.u32 %v440, 4294901760
    %442 = vmatprep.subr.mxu0 %v441
    %v443 = vand.u32 %v208, 4294901760
    %v444 = vsub.f32 %v208, %v443
    %v445 = vand.u32 %v444, 4294901760
    %v446 = vsub.f32 %v444, %v445
    %v447 = vand.u32 %v446, 4294901760
    %448 = vmatpush1.msra.mxu0 %v447
    %v449 = vand.u32 %v211, 4294901760
    %v450 = vsub.f32 %v211, %v449
    %v451 = vand.u32 %v450, 4294901760
    %v452 = vsub.f32 %v450, %v451
    %v453 = vand.u32 %v452, 4294901760
    %454 = vmatprep.subr.mxu0 %v453
    %v455 = vand.u32 %v210, 4294901760
    %v456 = vsub.f32 %v210, %v455
    %v457 = vand.u32 %v456, 4294901760
    %v458 = vsub.f32 %v456, %v457
    %v459 = vand.u32 %v458, 4294901760
    %460 = vmatpush1.msra.mxu0 %v459
    %v461 = vand.u32 %v213, 4294901760
    %v462 = vsub.f32 %v213, %v461
    %v463 = vand.u32 %v462, 4294901760
    %v464 = vsub.f32 %v462, %v463
    %v465 = vand.u32 %v464, 4294901760
    %466 = vmatprep.subr.mxu0 %v465
    %v467 = vand.u32 %v212, 4294901760
    %v468 = vsub.f32 %v212, %v467
    %v469 = vand.u32 %v468, 4294901760
    %v470 = vsub.f32 %v468, %v469
    %v471 = vand.u32 %v470, 4294901760
    %472 = vmatpush1.msra.mxu0 %v471
    %v473 = vand.u32 %v215, 4294901760
    %v474 = vsub.f32 %v215, %v473
    %v475 = vand.u32 %v474, 4294901760
    %v476 = vsub.f32 %v474, %v475
    %v477 = vand.u32 %v476, 4294901760
    %478 = vmatprep.subr.mxu0 %v477
    %v479 = vand.u32 %v214, 4294901760
    %v480 = vsub.f32 %v214, %v479
    %v481 = vand.u32 %v480, 4294901760
    %v482 = vsub.f32 %v480, %v481
    %v483 = vand.u32 %v482, 4294901760
    %484 = vmatpush1.msra.mxu0 %v483
    %v485 = vand.u32 %v217, 4294901760
    %v486 = vsub.f32 %v217, %v485
    %v487 = vand.u32 %v486, 4294901760
    %v488 = vsub.f32 %v486, %v487
    %v489 = vand.u32 %v488, 4294901760
    %490 = vmatprep.subr.mxu0 %v489
    %v491 = vand.u32 %v216, 4294901760
    %v492 = vsub.f32 %v216, %v491
    %v493 = vand.u32 %v492, 4294901760
    %v494 = vsub.f32 %v492, %v493
    %v495 = vand.u32 %v494, 4294901760
    %496 = vmatpush1.msra.mxu0 %v495
    %v497 = vand.u32 %v219, 4294901760
    %v498 = vsub.f32 %v219, %v497
    %v499 = vand.u32 %v498, 4294901760
    %v500 = vsub.f32 %v498, %v499
    %v501 = vand.u32 %v500, 4294901760
    %502 = vmatprep.subr.mxu0 %v501
    %v503 = vand.u32 %v218, 4294901760
    %v504 = vsub.f32 %v218, %v503
    %v505 = vand.u32 %v504, 4294901760
    %v506 = vsub.f32 %v504, %v505
    %v507 = vand.u32 %v506, 4294901760
    %508 = vmatpush1.msra.mxu0 %v507
    %v509 = vand.u32 %v221, 4294901760
    %v510 = vsub.f32 %v221, %v509
    %v511 = vand.u32 %v510, 4294901760
    %v512 = vsub.f32 %v510, %v511
    %v513 = vand.u32 %v512, 4294901760
    %514 = vmatprep.subr.mxu0 %v513
    %v515 = vand.u32 %v220, 4294901760
    %v516 = vsub.f32 %v220, %v515
    %v517 = vand.u32 %v516, 4294901760
    %v518 = vsub.f32 %v516, %v517
    %v519 = vand.u32 %v518, 4294901760
    %520 = vmatpush1.msra.mxu0 %v519
    %v521 = vand.u32 %v223, 4294901760
    %v522 = vsub.f32 %v223, %v521
    %v523 = vand.u32 %v522, 4294901760
    %v524 = vsub.f32 %v522, %v523
    %v525 = vand.u32 %v524, 4294901760
    %526 = vmatprep.subr.mxu0 %v525
    %v527 = vand.u32 %v222, 4294901760
    %v528 = vsub.f32 %v222, %v527
    %v529 = vand.u32 %v528, 4294901760
    %v530 = vsub.f32 %v528, %v529
    %v531 = vand.u32 %v530, 4294901760
    %532 = vmatpush1.msra.mxu0 %v531
    %v533 = vand.u32 %v225, 4294901760
    %v534 = vsub.f32 %v225, %v533
    %v535 = vand.u32 %v534, 4294901760
    %v536 = vsub.f32 %v534, %v535
    %v537 = vand.u32 %v536, 4294901760
    %538 = vmatprep.subr.mxu0 %v537
    %v539 = vand.u32 %v224, 4294901760
    %v540 = vsub.f32 %v224, %v539
    %v541 = vand.u32 %v540, 4294901760
    %v542 = vsub.f32 %v540, %v541
    %v543 = vand.u32 %v542, 4294901760
    %544 = vmatpush1.msra.mxu0 %v543
    %v545 = vand.u32 %v227, 4294901760
    %v546 = vsub.f32 %v227, %v545
    %v547 = vand.u32 %v546, 4294901760
    %v548 = vsub.f32 %v546, %v547
    %v549 = vand.u32 %v548, 4294901760
    %550 = vmatprep.subr.mxu0 %v549
    %v551 = vand.u32 %v226, 4294901760
    %v552 = vsub.f32 %v226, %v551
    %v553 = vand.u32 %v552, 4294901760
    %v554 = vsub.f32 %v552, %v553
    %v555 = vand.u32 %v554, 4294901760
    %556 = vmatpush1.msra.mxu0 %v555
    %v557 = vand.u32 %v229, 4294901760
    %v558 = vsub.f32 %v229, %v557
    %v559 = vand.u32 %v558, 4294901760
    %v560 = vsub.f32 %v558, %v559
    %v561 = vand.u32 %v560, 4294901760
    %562 = vmatprep.subr.mxu0 %v561
    %v563 = vand.u32 %v228, 4294901760
    %v564 = vsub.f32 %v228, %v563
    %v565 = vand.u32 %v564, 4294901760
    %v566 = vsub.f32 %v564, %v565
    %v567 = vand.u32 %v566, 4294901760
    %568 = vmatpush1.msra.mxu0 %v567
    %v569 = vand.u32 %v231, 4294901760
    %v570 = vsub.f32 %v231, %v569
    %v571 = vand.u32 %v570, 4294901760
    %v572 = vsub.f32 %v570, %v571
    %v573 = vand.u32 %v572, 4294901760
    %574 = vmatprep.subr.mxu0 %v573
    %v575 = vand.u32 %v230, 4294901760
    %v576 = vsub.f32 %v230, %v575
    %v577 = vand.u32 %v576, 4294901760
    %v578 = vsub.f32 %v576, %v577
    %v579 = vand.u32 %v578, 4294901760
    %580 = vmatpush1.msra.mxu0 %v579
    %v581 = vand.u32 %v233, 4294901760
    %v582 = vsub.f32 %v233, %v581
    %v583 = vand.u32 %v582, 4294901760
    %v584 = vsub.f32 %v582, %v583
    %v585 = vand.u32 %v584, 4294901760
    %586 = vmatprep.subr.mxu0 %v585
    %v587 = vand.u32 %v232, 4294901760
    %v588 = vsub.f32 %v232, %v587
    %v589 = vand.u32 %v588, 4294901760
    %v590 = vsub.f32 %v588, %v589
    %v591 = vand.u32 %v590, 4294901760
    %592 = vmatpush1.msra.mxu0 %v591
    %v593 = vand.u32 %v235, 4294901760
    %v594 = vsub.f32 %v235, %v593
    %v595 = vand.u32 %v594, 4294901760
    %v596 = vsub.f32 %v594, %v595
    %v597 = vand.u32 %v596, 4294901760
    %598 = vmatprep.subr.mxu0 %v597
    %v599 = vand.u32 %v234, 4294901760
    %v600 = vsub.f32 %v234, %v599
    %v601 = vand.u32 %v600, 4294901760
    %v602 = vsub.f32 %v600, %v601
    %v603 = vand.u32 %v602, 4294901760
    %604 = vmatpush1.msra.mxu0 %v603
    %v605 = vand.u32 %v237, 4294901760
    %v606 = vsub.f32 %v237, %v605
    %v607 = vand.u32 %v606, 4294901760
    %v608 = vsub.f32 %v606, %v607
    %v609 = vand.u32 %v608, 4294901760
    %610 = vmatprep.subr.mxu0 %v609
    %v611 = vand.u32 %v236, 4294901760
    %v612 = vsub.f32 %v236, %v611
    %v613 = vand.u32 %v612, 4294901760
    %v614 = vsub.f32 %v612, %v613
    %v615 = vand.u32 %v614, 4294901760
    %616 = vmatpush1.msra.mxu0 %v615
    %v617 = vand.u32 %v239, 4294901760
    %v618 = vsub.f32 %v239, %v617
    %v619 = vand.u32 %v618, 4294901760
    %v620 = vsub.f32 %v618, %v619
    %v621 = vand.u32 %v620, 4294901760
    %622 = vmatprep.subr.mxu0 %v621
    %v623 = vand.u32 %v238, 4294901760
    %v624 = vsub.f32 %v238, %v623
    %v625 = vand.u32 %v624, 4294901760
    %v626 = vsub.f32 %v624, %v625
    %v627 = vand.u32 %v626, 4294901760
    %628 = vmatpush1.msra.mxu0 %v627
    %v629 = vand.u32 %v241, 4294901760
    %v630 = vsub.f32 %v241, %v629
    %v631 = vand.u32 %v630, 4294901760
    %v632 = vsub.f32 %v630, %v631
    %v633 = vand.u32 %v632, 4294901760
    %634 = vmatprep.subr.mxu0 %v633
    %v635 = vand.u32 %v240, 4294901760
    %v636 = vsub.f32 %v240, %v635
    %v637 = vand.u32 %v636, 4294901760
    %v638 = vsub.f32 %v636, %v637
    %v639 = vand.u32 %v638, 4294901760
    %640 = vmatpush1.msra.mxu0 %v639
    %v641 = vand.u32 %v243, 4294901760
    %v642 = vsub.f32 %v243, %v641
    %v643 = vand.u32 %v642, 4294901760
    %v644 = vsub.f32 %v642, %v643
    %v645 = vand.u32 %v644, 4294901760
    %646 = vmatprep.subr.mxu0 %v645
    %v647 = vand.u32 %v242, 4294901760
    %v648 = vsub.f32 %v242, %v647
    %v649 = vand.u32 %v648, 4294901760
    %v650 = vsub.f32 %v648, %v649
    %v651 = vand.u32 %v650, 4294901760
    %652 = vmatpush1.msra.mxu0 %v651
    %v653 = vand.u32 %v245, 4294901760
    %v654 = vsub.f32 %v245, %v653
    %v655 = vand.u32 %v654, 4294901760
    %v656 = vsub.f32 %v654, %v655
    %v657 = vand.u32 %v656, 4294901760
    %658 = vmatprep.subr.mxu0 %v657
    %v659 = vand.u32 %v244, 4294901760
    %v660 = vsub.f32 %v244, %v659
    %v661 = vand.u32 %v660, 4294901760
    %v662 = vsub.f32 %v660, %v661
    %v663 = vand.u32 %v662, 4294901760
    %664 = vmatpush1.msra.mxu0 %v663
    %v665 = vand.u32 %v247, 4294901760
    %v666 = vsub.f32 %v247, %v665
    %v667 = vand.u32 %v666, 4294901760
    %v668 = vsub.f32 %v666, %v667
    %v669 = vand.u32 %v668, 4294901760
    %670 = vmatprep.subr.mxu0 %v669
    %v671 = vand.u32 %v246, 4294901760
    %v672 = vsub.f32 %v246, %v671
    %v673 = vand.u32 %v672, 4294901760
    %v674 = vsub.f32 %v672, %v673
    %v675 = vand.u32 %v674, 4294901760
    %676 = vmatpush1.msra.mxu0 %v675
    %v677 = vand.u32 %v249, 4294901760
    %v678 = vsub.f32 %v249, %v677
    %v679 = vand.u32 %v678, 4294901760
    %v680 = vsub.f32 %v678, %v679
    %v681 = vand.u32 %v680, 4294901760
    %682 = vmatprep.subr.mxu0 %v681
    %v683 = vand.u32 %v248, 4294901760
    %v684 = vsub.f32 %v248, %v683
    %v685 = vand.u32 %v684, 4294901760
    %v686 = vsub.f32 %v684, %v685
    %v687 = vand.u32 %v686, 4294901760
    %688 = vmatpush1.msra.mxu0 %v687
    %v689 = vand.u32 %v251, 4294901760
    %v690 = vsub.f32 %v251, %v689
    %v691 = vand.u32 %v690, 4294901760
    %v692 = vsub.f32 %v690, %v691
    %v693 = vand.u32 %v692, 4294901760
    %694 = vmatprep.subr.mxu0 %v693
    %v695 = vand.u32 %v250, 4294901760
    %v696 = vsub.f32 %v250, %v695
    %v697 = vand.u32 %v696, 4294901760
    %v698 = vsub.f32 %v696, %v697
    %v699 = vand.u32 %v698, 4294901760
    %700 = vmatpush1.msra.mxu0 %v699
    %v701 = vand.u32 %v253, 4294901760
    %v702 = vsub.f32 %v253, %v701
    %v703 = vand.u32 %v702, 4294901760
    %v704 = vsub.f32 %v702, %v703
    %v705 = vand.u32 %v704, 4294901760
    %706 = vmatprep.subr.mxu0 %v705
    %v707 = vand.u32 %v252, 4294901760
    %v708 = vsub.f32 %v252, %v707
    %v709 = vand.u32 %v708, 4294901760
    %v710 = vsub.f32 %v708, %v709
    %v711 = vand.u32 %v710, 4294901760
    %712 = vmatpush1.msra.mxu0 %v711
    %v713 = vand.u32 %v255, 4294901760
    %v714 = vsub.f32 %v255, %v713
    %v715 = vand.u32 %v714, 4294901760
    %v716 = vsub.f32 %v714, %v715
    %v717 = vand.u32 %v716, 4294901760
    %718 = vmatprep.subr.mxu0 %v717
    %v719 = vand.u32 %v254, 4294901760
    %v720 = vsub.f32 %v254, %v719
    %v721 = vand.u32 %v720, 4294901760
    %v722 = vsub.f32 %v720, %v721
    %v723 = vand.u32 %v722, 4294901760
    %724 = vmatpush1.msra.mxu0 %v723
    %v725 = vand.u32 %v257, 4294901760
    %v726 = vsub.f32 %v257, %v725
    %v727 = vand.u32 %v726, 4294901760
    %v728 = vsub.f32 %v726, %v727
    %v729 = vand.u32 %v728, 4294901760
    %730 = vmatprep.subr.mxu0 %v729
    %v731 = vand.u32 %v256, 4294901760
    %v732 = vsub.f32 %v256, %v731
    %v733 = vand.u32 %v732, 4294901760
    %v734 = vsub.f32 %v732, %v733
    %v735 = vand.u32 %v734, 4294901760
    %736 = vmatpush1.msra.mxu0 %v735
    %v737 = vand.u32 %v259, 4294901760
    %v738 = vsub.f32 %v259, %v737
    %v739 = vand.u32 %v738, 4294901760
    %v740 = vsub.f32 %v738, %v739
    %v741 = vand.u32 %v740, 4294901760
    %742 = vmatprep.subr.mxu0 %v741
    %v743 = vand.u32 %v258, 4294901760
    %v744 = vsub.f32 %v258, %v743
    %v745 = vand.u32 %v744, 4294901760
    %v746 = vsub.f32 %v744, %v745
    %v747 = vand.u32 %v746, 4294901760
    %748 = vmatpush1.msra.mxu0 %v747
    %v749 = vand.u32 %v261, 4294901760
    %v750 = vsub.f32 %v261, %v749
    %v751 = vand.u32 %v750, 4294901760
    %v752 = vsub.f32 %v750, %v751
    %v753 = vand.u32 %v752, 4294901760
    %754 = vmatprep.subr.mxu0 %v753
    %v755 = vand.u32 %v260, 4294901760
    %v756 = vsub.f32 %v260, %v755
    %v757 = vand.u32 %v756, 4294901760
    %v758 = vsub.f32 %v756, %v757
    %v759 = vand.u32 %v758, 4294901760
    %760 = vmatpush1.msra.mxu0 %v759
    %v761 = vand.u32 %v263, 4294901760
    %v762 = vsub.f32 %v263, %v761
    %v763 = vand.u32 %v762, 4294901760
    %v764 = vsub.f32 %v762, %v763
    %v765 = vand.u32 %v764, 4294901760
    %766 = vmatprep.subr.mxu0 %v765
    %v767 = vand.u32 %v262, 4294901760
    %v768 = vsub.f32 %v262, %v767
    %v769 = vand.u32 %v768, 4294901760
    %v770 = vsub.f32 %v768, %v769
    %v771 = vand.u32 %v770, 4294901760
    %772 = vmatpush1.msra.mxu0 %v771
    %v773 = vand.u32 %v265, 4294901760
    %v774 = vsub.f32 %v265, %v773
    %v775 = vand.u32 %v774, 4294901760
    %v776 = vsub.f32 %v774, %v775
    %v777 = vand.u32 %v776, 4294901760
    %778 = vmatprep.subr.mxu0 %v777
    %v779 = vand.u32 %v264, 4294901760
    %v780 = vsub.f32 %v264, %v779
    %v781 = vand.u32 %v780, 4294901760
    %v782 = vsub.f32 %v780, %v781
    %v783 = vand.u32 %v782, 4294901760
    %784 = vmatpush1.msra.mxu0 %v783
    %v785 = vand.u32 %v267, 4294901760
    %v786 = vsub.f32 %v267, %v785
    %v787 = vand.u32 %v786, 4294901760
    %v788 = vsub.f32 %v786, %v787
    %v789 = vand.u32 %v788, 4294901760
    %790 = vmatprep.subr.mxu0 %v789
    %v791 = vand.u32 %v266, 4294901760
    %v792 = vsub.f32 %v266, %v791
    %v793 = vand.u32 %v792, 4294901760
    %v794 = vsub.f32 %v792, %v793
    %v795 = vand.u32 %v794, 4294901760
    %796 = vmatpush1.msra.mxu0 %v795
    %v797 = vand.u32 %v203, 4294901760
    %798 = vmatprep.mubr.f32.mxu0 %v797
    %v799 = vand.u32 %v202, 4294901760
    %800 = vmatmul.mubr.f32.gmra.mrb[0].mxu0 %v799
    %v801 = vpop.f32.mrb[0].mxu0
    %v802 = vadd.f32 %v409, %v801
    %v803 = vpop.f32.mrb[0].mxu0
    %v804 = vadd.f32 %v411, %v803
    %805 = vdwg.mxu0
    %v806 = vand.u32 %v205, 4294901760
    %v807 = vsub.f32 %v205, %v806
    %808 = vmatprep.subr.mxu0 %v807
    %v809 = vand.u32 %v204, 4294901760
    %v810 = vsub.f32 %v204, %v809
    %811 = vmatpush1.msra.mxu0 %v810
    %v812 = vand.u32 %v207, 4294901760
    %v813 = vsub.f32 %v207, %v812
    %814 = vmatprep.subr.mxu0 %v813
    %v815 = vand.u32 %v206, 4294901760
    %v816 = vsub.f32 %v206, %v815
    %817 = vmatpush1.msra.mxu0 %v816
    %v818 = vand.u32 %v209, 4294901760
    %v819 = vsub.f32 %v209, %v818
    %820 = vmatprep.subr.mxu0 %v819
    %v821 = vand.u32 %v208, 4294901760
    %v822 = vsub.f32 %v208, %v821
    %823 = vmatpush1.msra.mxu0 %v822
    %v824 = vand.u32 %v211, 4294901760
    %v825 = vsub.f32 %v211, %v824
    %826 = vmatprep.subr.mxu0 %v825
    %v827 = vand.u32 %v210, 4294901760
    %v828 = vsub.f32 %v210, %v827
    %829 = vmatpush1.msra.mxu0 %v828
    %v830 = vand.u32 %v213, 4294901760
    %v831 = vsub.f32 %v213, %v830
    %832 = vmatprep.subr.mxu0 %v831
    %v833 = vand.u32 %v212, 4294901760
    %v834 = vsub.f32 %v212, %v833
    %835 = vmatpush1.msra.mxu0 %v834
    %v836 = vand.u32 %v215, 4294901760
    %v837 = vsub.f32 %v215, %v836
    %838 = vmatprep.subr.mxu0 %v837
    %v839 = vand.u32 %v214, 4294901760
    %v840 = vsub.f32 %v214, %v839
    %841 = vmatpush1.msra.mxu0 %v840
    %v842 = vand.u32 %v217, 4294901760
    %v843 = vsub.f32 %v217, %v842
    %844 = vmatprep.subr.mxu0 %v843
    %v845 = vand.u32 %v216, 4294901760
    %v846 = vsub.f32 %v216, %v845
    %847 = vmatpush1.msra.mxu0 %v846
    %v848 = vand.u32 %v219, 4294901760
    %v849 = vsub.f32 %v219, %v848
    %850 = vmatprep.subr.mxu0 %v849
    %v851 = vand.u32 %v218, 4294901760
    %v852 = vsub.f32 %v218, %v851
    %853 = vmatpush1.msra.mxu0 %v852
    %v854 = vand.u32 %v221, 4294901760
    %v855 = vsub.f32 %v221, %v854
    %856 = vmatprep.subr.mxu0 %v855
    %v857 = vand.u32 %v220, 4294901760
    %v858 = vsub.f32 %v220, %v857
    %859 = vmatpush1.msra.mxu0 %v858
    %v860 = vand.u32 %v223, 4294901760
    %v861 = vsub.f32 %v223, %v860
    %862 = vmatprep.subr.mxu0 %v861
    %v863 = vand.u32 %v222, 4294901760
    %v864 = vsub.f32 %v222, %v863
    %865 = vmatpush1.msra.mxu0 %v864
    %v866 = vand.u32 %v225, 4294901760
    %v867 = vsub.f32 %v225, %v866
    %868 = vmatprep.subr.mxu0 %v867
    %v869 = vand.u32 %v224, 4294901760
    %v870 = vsub.f32 %v224, %v869
    %871 = vmatpush1.msra.mxu0 %v870
    %v872 = vand.u32 %v227, 4294901760
    %v873 = vsub.f32 %v227, %v872
    %874 = vmatprep.subr.mxu0 %v873
    %v875 = vand.u32 %v226, 4294901760
    %v876 = vsub.f32 %v226, %v875
    %877 = vmatpush1.msra.mxu0 %v876
    %v878 = vand.u32 %v229, 4294901760
    %v879 = vsub.f32 %v229, %v878
    %880 = vmatprep.subr.mxu0 %v879
    %v881 = vand.u32 %v228, 4294901760
    %v882 = vsub.f32 %v228, %v881
    %883 = vmatpush1.msra.mxu0 %v882
    %v884 = vand.u32 %v231, 4294901760
    %v885 = vsub.f32 %v231, %v884
    %886 = vmatprep.subr.mxu0 %v885
    %v887 = vand.u32 %v230, 4294901760
    %v888 = vsub.f32 %v230, %v887
    %889 = vmatpush1.msra.mxu0 %v888
    %v890 = vand.u32 %v233, 4294901760
    %v891 = vsub.f32 %v233, %v890
    %892 = vmatprep.subr.mxu0 %v891
    %v893 = vand.u32 %v232, 4294901760
    %v894 = vsub.f32 %v232, %v893
    %895 = vmatpush1.msra.mxu0 %v894
    %v896 = vand.u32 %v235, 4294901760
    %v897 = vsub.f32 %v235, %v896
    %898 = vmatprep.subr.mxu0 %v897
    %v899 = vand.u32 %v234, 4294901760
    %v900 = vsub.f32 %v234, %v899
    %901 = vmatpush1.msra.mxu0 %v900
    %v902 = vand.u32 %v237, 4294901760
    %v903 = vsub.f32 %v237, %v902
    %904 = vmatprep.subr.mxu0 %v903
    %v905 = vand.u32 %v236, 4294901760
    %v906 = vsub.f32 %v236, %v905
    %907 = vmatpush1.msra.mxu0 %v906
    %v908 = vand.u32 %v239, 4294901760
    %v909 = vsub.f32 %v239, %v908
    %910 = vmatprep.subr.mxu0 %v909
    %v911 = vand.u32 %v238, 4294901760
    %v912 = vsub.f32 %v238, %v911
    %913 = vmatpush1.msra.mxu0 %v912
    %v914 = vand.u32 %v241, 4294901760
    %v915 = vsub.f32 %v241, %v914
    %916 = vmatprep.subr.mxu0 %v915
    %v917 = vand.u32 %v240, 4294901760
    %v918 = vsub.f32 %v240, %v917
    %919 = vmatpush1.msra.mxu0 %v918
    %v920 = vand.u32 %v243, 4294901760
    %v921 = vsub.f32 %v243, %v920
    %922 = vmatprep.subr.mxu0 %v921
    %v923 = vand.u32 %v242, 4294901760
    %v924 = vsub.f32 %v242, %v923
    %925 = vmatpush1.msra.mxu0 %v924
    %v926 = vand.u32 %v245, 4294901760
    %v927 = vsub.f32 %v245, %v926
    %928 = vmatprep.subr.mxu0 %v927
    %v929 = vand.u32 %v244, 4294901760
    %v930 = vsub.f32 %v244, %v929
    %931 = vmatpush1.msra.mxu0 %v930
    %v932 = vand.u32 %v247, 4294901760
    %v933 = vsub.f32 %v247, %v932
    %934 = vmatprep.subr.mxu0 %v933
    %v935 = vand.u32 %v246, 4294901760
    %v936 = vsub.f32 %v246, %v935
    %937 = vmatpush1.msra.mxu0 %v936
    %v938 = vand.u32 %v249, 4294901760
    %v939 = vsub.f32 %v249, %v938
    %940 = vmatprep.subr.mxu0 %v939
    %v941 = vand.u32 %v248, 4294901760
    %v942 = vsub.f32 %v248, %v941
    %943 = vmatpush1.msra.mxu0 %v942
    %v944 = vand.u32 %v251, 4294901760
    %v945 = vsub.f32 %v251, %v944
    %946 = vmatprep.subr.mxu0 %v945
    %v947 = vand.u32 %v250, 4294901760
    %v948 = vsub.f32 %v250, %v947
    %949 = vmatpush1.msra.mxu0 %v948
    %v950 = vand.u32 %v253, 4294901760
    %v951 = vsub.f32 %v253, %v950
    %952 = vmatprep.subr.mxu0 %v951
    %v953 = vand.u32 %v252, 4294901760
    %v954 = vsub.f32 %v252, %v953
    %955 = vmatpush1.msra.mxu0 %v954
    %v956 = vand.u32 %v255, 4294901760
    %v957 = vsub.f32 %v255, %v956
    %958 = vmatprep.subr.mxu0 %v957
    %v959 = vand.u32 %v254, 4294901760
    %v960 = vsub.f32 %v254, %v959
    %961 = vmatpush1.msra.mxu0 %v960
    %v962 = vand.u32 %v257, 4294901760
    %v963 = vsub.f32 %v257, %v962
    %964 = vmatprep.subr.mxu0 %v963
    %v965 = vand.u32 %v256, 4294901760
    %v966 = vsub.f32 %v256, %v965
    %967 = vmatpush1.msra.mxu0 %v966
    %v968 = vand.u32 %v259, 4294901760
    %v969 = vsub.f32 %v259, %v968
    %970 = vmatprep.subr.mxu0 %v969
    %v971 = vand.u32 %v258, 4294901760
    %v972 = vsub.f32 %v258, %v971
    %973 = vmatpush1.msra.mxu0 %v972
    %v974 = vand.u32 %v261, 4294901760
    %v975 = vsub.f32 %v261, %v974
    %976 = vmatprep.subr.mxu0 %v975
    %v977 = vand.u32 %v260, 4294901760
    %v978 = vsub.f32 %v260, %v977
    %979 = vmatpush1.msra.mxu0 %v978
    %v980 = vand.u32 %v263, 4294901760
    %v981 = vsub.f32 %v263, %v980
    %982 = vmatprep.subr.mxu0 %v981
    %v983 = vand.u32 %v262, 4294901760
    %v984 = vsub.f32 %v262, %v983
    %985 = vmatpush1.msra.mxu0 %v984
    %v986 = vand.u32 %v265, 4294901760
    %v987 = vsub.f32 %v265, %v986
    %988 = vmatprep.subr.mxu0 %v987
    %v989 = vand.u32 %v264, 4294901760
    %v990 = vsub.f32 %v264, %v989
    %991 = vmatpush1.msra.mxu0 %v990
    %v992 = vand.u32 %v267, 4294901760
    %v993 = vsub.f32 %v267, %v992
    %994 = vmatprep.subr.mxu0 %v993
    %v995 = vand.u32 %v266, 4294901760
    %v996 = vsub.f32 %v266, %v995
    %997 = vmatpush1.msra.mxu0 %v996
    %v998 = vand.u32 %v203, 4294901760
    %v999 = vsub.f32 %v203, %v998
    %1000 = vmatprep.mubr.f32.mxu0 %v999
    %v1001 = vand.u32 %v202, 4294901760
    %v1002 = vsub.f32 %v202, %v1001
    %1003 = vmatmul.mubr.f32.gmra.mrb[0].mxu0 %v1002
    %v1004 = vpop.f32.mrb[0].mxu0
    %v1005 = vadd.f32 %v802, %v1004
    %v1006 = vpop.f32.mrb[0].mxu0
    %v1007 = vadd.f32 %v804, %v1006
    %1008 = vdwg.mxu0
    %v1009 = vand.u32 %v205, 4294901760
    %1010 = vmatprep.subr.mxu0 %v1009
    %v1011 = vand.u32 %v204, 4294901760
    %1012 = vmatpush1.msra.mxu0 %v1011
    %v1013 = vand.u32 %v207, 4294901760
    %1014 = vmatprep.subr.mxu0 %v1013
    %v1015 = vand.u32 %v206, 4294901760
    %1016 = vmatpush1.msra.mxu0 %v1015
    %v1017 = vand.u32 %v209, 4294901760
    %1018 = vmatprep.subr.mxu0 %v1017
    %v1019 = vand.u32 %v208, 4294901760
    %1020 = vmatpush1.msra.mxu0 %v1019
    %v1021 = vand.u32 %v211, 4294901760
    %1022 = vmatprep.subr.mxu0 %v1021
    %v1023 = vand.u32 %v210, 4294901760
    %1024 = vmatpush1.msra.mxu0 %v1023
    %v1025 = vand.u32 %v213, 4294901760
    %1026 = vmatprep.subr.mxu0 %v1025
    %v1027 = vand.u32 %v212, 4294901760
    %1028 = vmatpush1.msra.mxu0 %v1027
    %v1029 = vand.u32 %v215, 4294901760
    %1030 = vmatprep.subr.mxu0 %v1029
    %v1031 = vand.u32 %v214, 4294901760
    %1032 = vmatpush1.msra.mxu0 %v1031
    %v1033 = vand.u32 %v217, 4294901760
    %1034 = vmatprep.subr.mxu0 %v1033
    %v1035 = vand.u32 %v216, 4294901760
    %1036 = vmatpush1.msra.mxu0 %v1035
    %v1037 = vand.u32 %v219, 4294901760
    %1038 = vmatprep.subr.mxu0 %v1037
    %v1039 = vand.u32 %v218, 4294901760
    %1040 = vmatpush1.msra.mxu0 %v1039
    %v1041 = vand.u32 %v221, 4294901760
    %1042 = vmatprep.subr.mxu0 %v1041
    %v1043 = vand.u32 %v220, 4294901760
    %1044 = vmatpush1.msra.mxu0 %v1043
    %v1045 = vand.u32 %v223, 4294901760
    %1046 = vmatprep.subr.mxu0 %v1045
    %v1047 = vand.u32 %v222, 4294901760
    %1048 = vmatpush1.msra.mxu0 %v1047
    %v1049 = vand.u32 %v225, 4294901760
    %1050 = vmatprep.subr.mxu0 %v1049
    %v1051 = vand.u32 %v224, 4294901760
    %1052 = vmatpush1.msra.mxu0 %v1051
    %v1053 = vand.u32 %v227, 4294901760
    %1054 = vmatprep.subr.mxu0 %v1053
    %v1055 = vand.u32 %v226, 4294901760
    %1056 = vmatpush1.msra.mxu0 %v1055
    %v1057 = vand.u32 %v229, 4294901760
    %1058 = vmatprep.subr.mxu0 %v1057
    %v1059 = vand.u32 %v228, 4294901760
    %1060 = vmatpush1.msra.mxu0 %v1059
    %v1061 = vand.u32 %v231, 4294901760
    %1062 = vmatprep.subr.mxu0 %v1061
    %v1063 = vand.u32 %v230, 4294901760
    %1064 = vmatpush1.msra.mxu0 %v1063
    %v1065 = vand.u32 %v233, 4294901760
    %1066 = vmatprep.subr.mxu0 %v1065
    %v1067 = vand.u32 %v232, 4294901760
    %1068 = vmatpush1.msra.mxu0 %v1067
    %v1069 = vand.u32 %v235, 4294901760
    %1070 = vmatprep.subr.mxu0 %v1069
    %v1071 = vand.u32 %v234, 4294901760
    %1072 = vmatpush1.msra.mxu0 %v1071
    %v1073 = vand.u32 %v237, 4294901760
    %1074 = vmatprep.subr.mxu0 %v1073
    %v1075 = vand.u32 %v236, 4294901760
    %1076 = vmatpush1.msra.mxu0 %v1075
    %v1077 = vand.u32 %v239, 4294901760
    %1078 = vmatprep.subr.mxu0 %v1077
    %v1079 = vand.u32 %v238, 4294901760
    %1080 = vmatpush1.msra.mxu0 %v1079
    %v1081 = vand.u32 %v241, 4294901760
    %1082 = vmatprep.subr.mxu0 %v1081
    %v1083 = vand.u32 %v240, 4294901760
    %1084 = vmatpush1.msra.mxu0 %v1083
    %v1085 = vand.u32 %v243, 4294901760
    %1086 = vmatprep.subr.mxu0 %v1085
    %v1087 = vand.u32 %v242, 4294901760
    %1088 = vmatpush1.msra.mxu0 %v1087
    %v1089 = vand.u32 %v245, 4294901760
    %1090 = vmatprep.subr.mxu0 %v1089
    %v1091 = vand.u32 %v244, 4294901760
    %1092 = vmatpush1.msra.mxu0 %v1091
    %v1093 = vand.u32 %v247, 4294901760
    %1094 = vmatprep.subr.mxu0 %v1093
    %v1095 = vand.u32 %v246, 4294901760
    %1096 = vmatpush1.msra.mxu0 %v1095
    %v1097 = vand.u32 %v249, 4294901760
    %1098 = vmatprep.subr.mxu0 %v1097
    %v1099 = vand.u32 %v248, 4294901760
    %1100 = vmatpush1.msra.mxu0 %v1099
    %v1101 = vand.u32 %v251, 4294901760
    %1102 = vmatprep.subr.mxu0 %v1101
    %v1103 = vand.u32 %v250, 4294901760
    %1104 = vmatpush1.msra.mxu0 %v1103
    %v1105 = vand.u32 %v253, 4294901760
    %1106 = vmatprep.subr.mxu0 %v1105
    %v1107 = vand.u32 %v252, 4294901760
    %1108 = vmatpush1.msra.mxu0 %v1107
    %v1109 = vand.u32 %v255, 4294901760
    %1110 = vmatprep.subr.mxu0 %v1109
    %v1111 = vand.u32 %v254, 4294901760
    %1112 = vmatpush1.msra.mxu0 %v1111
    %v1113 = vand.u32 %v257, 4294901760
    %1114 = vmatprep.subr.mxu0 %v1113
    %v1115 = vand.u32 %v256, 4294901760
    %1116 = vmatpush1.msra.mxu0 %v1115
    %v1117 = vand.u32 %v259, 4294901760
    %1118 = vmatprep.subr.mxu0 %v1117
    %v1119 = vand.u32 %v258, 4294901760
    %1120 = vmatpush1.msra.mxu0 %v1119
    %v1121 = vand.u32 %v261, 4294901760
    %1122 = vmatprep.subr.mxu0 %v1121
    %v1123 = vand.u32 %v260, 4294901760
    %1124 = vmatpush1.msra.mxu0 %v1123
    %v1125 = vand.u32 %v263, 4294901760
    %1126 = vmatprep.subr.mxu0 %v1125
    %v1127 = vand.u32 %v262, 4294901760
    %1128 = vmatpush1.msra.mxu0 %v1127
    %v1129 = vand.u32 %v265, 4294901760
    %1130 = vmatprep.subr.mxu0 %v1129
    %v1131 = vand.u32 %v264, 4294901760
    %1132 = vmatpush1.msra.mxu0 %v1131
    %v1133 = vand.u32 %v267, 4294901760
    %1134 = vmatprep.subr.mxu0 %v1133
    %v1135 = vand.u32 %v266, 4294901760
    %1136 = vmatpush1.msra.mxu0 %v1135
    %v1137 = vand.u32 %v203, 4294901760
    %v1138 = vsub.f32 %v203, %v1137
    %v1139 = vand.u32 %v1138, 4294901760
    %1140 = vmatprep.mubr.f32.mxu0 %v1139
    %v1141 = vand.u32 %v202, 4294901760
    %v1142 = vsub.f32 %v202, %v1141
    %v1143 = vand.u32 %v1142, 4294901760
    %1144 = vmatmul.mubr.f32.gmra.mrb[0].mxu0 %v1143
    %v1145 = vpop.f32.mrb[0].mxu0
    %v1146 = vadd.f32 %v1005, %v1145
    %v1147 = vpop.f32.mrb[0].mxu0
    %v1148 = vadd.f32 %v1007, %v1147
    %1149 = vdwg.mxu0
    %v1150 = vand.u32 %v205, 4294901760
    %v1151 = vsub.f32 %v205, %v1150
    %v1152 = vand.u32 %v1151, 4294901760
    %1153 = vmatprep.subr.mxu0 %v1152
    %v1154 = vand.u32 %v204, 4294901760
    %v1155 = vsub.f32 %v204, %v1154
    %v1156 = vand.u32 %v1155, 4294901760
    %1157 = vmatpush1.msra.mxu0 %v1156
    %v1158 = vand.u32 %v207, 4294901760
    %v1159 = vsub.f32 %v207, %v1158
    %v1160 = vand.u32 %v1159, 4294901760
    %1161 = vmatprep.subr.mxu0 %v1160
    %v1162 = vand.u32 %v206, 4294901760
    %v1163 = vsub.f32 %v206, %v1162
    %v1164 = vand.u32 %v1163, 4294901760
    %1165 = vmatpush1.msra.mxu0 %v1164
    %v1166 = vand.u32 %v209, 4294901760
    %v1167 = vsub.f32 %v209, %v1166
    %v1168 = vand.u32 %v1167, 4294901760
    %1169 = vmatprep.subr.mxu0 %v1168
    %v1170 = vand.u32 %v208, 4294901760
    %v1171 = vsub.f32 %v208, %v1170
    %v1172 = vand.u32 %v1171, 4294901760
    %1173 = vmatpush1.msra.mxu0 %v1172
    %v1174 = vand.u32 %v211, 4294901760
    %v1175 = vsub.f32 %v211, %v1174
    %v1176 = vand.u32 %v1175, 4294901760
    %1177 = vmatprep.subr.mxu0 %v1176
    %v1178 = vand.u32 %v210, 4294901760
    %v1179 = vsub.f32 %v210, %v1178
    %v1180 = vand.u32 %v1179, 4294901760
    %1181 = vmatpush1.msra.mxu0 %v1180
    %v1182 = vand.u32 %v213, 4294901760
    %v1183 = vsub.f32 %v213, %v1182
    %v1184 = vand.u32 %v1183, 4294901760
    %1185 = vmatprep.subr.mxu0 %v1184
    %v1186 = vand.u32 %v212, 4294901760
    %v1187 = vsub.f32 %v212, %v1186
    %v1188 = vand.u32 %v1187, 4294901760
    %1189 = vmatpush1.msra.mxu0 %v1188
    %v1190 = vand.u32 %v215, 4294901760
    %v1191 = vsub.f32 %v215, %v1190
    %v1192 = vand.u32 %v1191, 4294901760
    %1193 = vmatprep.subr.mxu0 %v1192
    %v1194 = vand.u32 %v214, 4294901760
    %v1195 = vsub.f32 %v214, %v1194
    %v1196 = vand.u32 %v1195, 4294901760
    %1197 = vmatpush1.msra.mxu0 %v1196
    %v1198 = vand.u32 %v217, 4294901760
    %v1199 = vsub.f32 %v217, %v1198
    %v1200 = vand.u32 %v1199, 4294901760
    %1201 = vmatprep.subr.mxu0 %v1200
    %v1202 = vand.u32 %v216, 4294901760
    %v1203 = vsub.f32 %v216, %v1202
    %v1204 = vand.u32 %v1203, 4294901760
    %1205 = vmatpush1.msra.mxu0 %v1204
    %v1206 = vand.u32 %v219, 4294901760
    %v1207 = vsub.f32 %v219, %v1206
    %v1208 = vand.u32 %v1207, 4294901760
    %1209 = vmatprep.subr.mxu0 %v1208
    %v1210 = vand.u32 %v218, 4294901760
    %v1211 = vsub.f32 %v218, %v1210
    %v1212 = vand.u32 %v1211, 4294901760
    %1213 = vmatpush1.msra.mxu0 %v1212
    %v1214 = vand.u32 %v221, 4294901760
    %v1215 = vsub.f32 %v221, %v1214
    %v1216 = vand.u32 %v1215, 4294901760
    %1217 = vmatprep.subr.mxu0 %v1216
    %v1218 = vand.u32 %v220, 4294901760
    %v1219 = vsub.f32 %v220, %v1218
    %v1220 = vand.u32 %v1219, 4294901760
    %1221 = vmatpush1.msra.mxu0 %v1220
    %v1222 = vand.u32 %v223, 4294901760
    %v1223 = vsub.f32 %v223, %v1222
    %v1224 = vand.u32 %v1223, 4294901760
    %1225 = vmatprep.subr.mxu0 %v1224
    %v1226 = vand.u32 %v222, 4294901760
    %v1227 = vsub.f32 %v222, %v1226
    %v1228 = vand.u32 %v1227, 4294901760
    %1229 = vmatpush1.msra.mxu0 %v1228
    %v1230 = vand.u32 %v225, 4294901760
    %v1231 = vsub.f32 %v225, %v1230
    %v1232 = vand.u32 %v1231, 4294901760
    %1233 = vmatprep.subr.mxu0 %v1232
    %v1234 = vand.u32 %v224, 4294901760
    %v1235 = vsub.f32 %v224, %v1234
    %v1236 = vand.u32 %v1235, 4294901760
    %1237 = vmatpush1.msra.mxu0 %v1236
    %v1238 = vand.u32 %v227, 4294901760
    %v1239 = vsub.f32 %v227, %v1238
    %v1240 = vand.u32 %v1239, 4294901760
    %1241 = vmatprep.subr.mxu0 %v1240
    %v1242 = vand.u32 %v226, 4294901760
    %v1243 = vsub.f32 %v226, %v1242
    %v1244 = vand.u32 %v1243, 4294901760
    %1245 = vmatpush1.msra.mxu0 %v1244
    %v1246 = vand.u32 %v229, 4294901760
    %v1247 = vsub.f32 %v229, %v1246
    %v1248 = vand.u32 %v1247, 4294901760
    %1249 = vmatprep.subr.mxu0 %v1248
    %v1250 = vand.u32 %v228, 4294901760
    %v1251 = vsub.f32 %v228, %v1250
    %v1252 = vand.u32 %v1251, 4294901760
    %1253 = vmatpush1.msra.mxu0 %v1252
    %v1254 = vand.u32 %v231, 4294901760
    %v1255 = vsub.f32 %v231, %v1254
    %v1256 = vand.u32 %v1255, 4294901760
    %1257 = vmatprep.subr.mxu0 %v1256
    %v1258 = vand.u32 %v230, 4294901760
    %v1259 = vsub.f32 %v230, %v1258
    %v1260 = vand.u32 %v1259, 4294901760
    %1261 = vmatpush1.msra.mxu0 %v1260
    %v1262 = vand.u32 %v233, 4294901760
    %v1263 = vsub.f32 %v233, %v1262
    %v1264 = vand.u32 %v1263, 4294901760
    %1265 = vmatprep.subr.mxu0 %v1264
    %v1266 = vand.u32 %v232, 4294901760
    %v1267 = vsub.f32 %v232, %v1266
    %v1268 = vand.u32 %v1267, 4294901760
    %1269 = vmatpush1.msra.mxu0 %v1268
    %v1270 = vand.u32 %v235, 4294901760
    %v1271 = vsub.f32 %v235, %v1270
    %v1272 = vand.u32 %v1271, 4294901760
    %1273 = vmatprep.subr.mxu0 %v1272
    %v1274 = vand.u32 %v234, 4294901760
    %v1275 = vsub.f32 %v234, %v1274
    %v1276 = vand.u32 %v1275, 4294901760
    %1277 = vmatpush1.msra.mxu0 %v1276
    %v1278 = vand.u32 %v237, 4294901760
    %v1279 = vsub.f32 %v237, %v1278
    %v1280 = vand.u32 %v1279, 4294901760
    %1281 = vmatprep.subr.mxu0 %v1280
    %v1282 = vand.u32 %v236, 4294901760
    %v1283 = vsub.f32 %v236, %v1282
    %v1284 = vand.u32 %v1283, 4294901760
    %1285 = vmatpush1.msra.mxu0 %v1284
    %v1286 = vand.u32 %v239, 4294901760
    %v1287 = vsub.f32 %v239, %v1286
    %v1288 = vand.u32 %v1287, 4294901760
    %1289 = vmatprep.subr.mxu0 %v1288
    %v1290 = vand.u32 %v238, 4294901760
    %v1291 = vsub.f32 %v238, %v1290
    %v1292 = vand.u32 %v1291, 4294901760
    %1293 = vmatpush1.msra.mxu0 %v1292
    %v1294 = vand.u32 %v241, 4294901760
    %v1295 = vsub.f32 %v241, %v1294
    %v1296 = vand.u32 %v1295, 4294901760
    %1297 = vmatprep.subr.mxu0 %v1296
    %v1298 = vand.u32 %v240, 4294901760
    %v1299 = vsub.f32 %v240, %v1298
    %v1300 = vand.u32 %v1299, 4294901760
    %1301 = vmatpush1.msra.mxu0 %v1300
    %v1302 = vand.u32 %v243, 4294901760
    %v1303 = vsub.f32 %v243, %v1302
    %v1304 = vand.u32 %v1303, 4294901760
    %1305 = vmatprep.subr.mxu0 %v1304
    %v1306 = vand.u32 %v242, 4294901760
    %v1307 = vsub.f32 %v242, %v1306
    %v1308 = vand.u32 %v1307, 4294901760
    %1309 = vmatpush1.msra.mxu0 %v1308
    %v1310 = vand.u32 %v245, 4294901760
    %v1311 = vsub.f32 %v245, %v1310
    %v1312 = vand.u32 %v1311, 4294901760
    %1313 = vmatprep.subr.mxu0 %v1312
    %v1314 = vand.u32 %v244, 4294901760
    %v1315 = vsub.f32 %v244, %v1314
    %v1316 = vand.u32 %v1315, 4294901760
    %1317 = vmatpush1.msra.mxu0 %v1316
    %v1318 = vand.u32 %v247, 4294901760
    %v1319 = vsub.f32 %v247, %v1318
    %v1320 = vand.u32 %v1319, 4294901760
    %1321 = vmatprep.subr.mxu0 %v1320
    %v1322 = vand.u32 %v246, 4294901760
    %v1323 = vsub.f32 %v246, %v1322
    %v1324 = vand.u32 %v1323, 4294901760
    %1325 = vmatpush1.msra.mxu0 %v1324
    %v1326 = vand.u32 %v249, 4294901760
    %v1327 = vsub.f32 %v249, %v1326
    %v1328 = vand.u32 %v1327, 4294901760
    %1329 = vmatprep.subr.mxu0 %v1328
    %v1330 = vand.u32 %v248, 4294901760
    %v1331 = vsub.f32 %v248, %v1330
    %v1332 = vand.u32 %v1331, 4294901760
    %1333 = vmatpush1.msra.mxu0 %v1332
    %v1334 = vand.u32 %v251, 4294901760
    %v1335 = vsub.f32 %v251, %v1334
    %v1336 = vand.u32 %v1335, 4294901760
    %1337 = vmatprep.subr.mxu0 %v1336
    %v1338 = vand.u32 %v250, 4294901760
    %v1339 = vsub.f32 %v250, %v1338
    %v1340 = vand.u32 %v1339, 4294901760
    %1341 = vmatpush1.msra.mxu0 %v1340
    %v1342 = vand.u32 %v253, 4294901760
    %v1343 = vsub.f32 %v253, %v1342
    %v1344 = vand.u32 %v1343, 4294901760
    %1345 = vmatprep.subr.mxu0 %v1344
    %v1346 = vand.u32 %v252, 4294901760
    %v1347 = vsub.f32 %v252, %v1346
    %v1348 = vand.u32 %v1347, 4294901760
    %1349 = vmatpush1.msra.mxu0 %v1348
    %v1350 = vand.u32 %v255, 4294901760
    %v1351 = vsub.f32 %v255, %v1350
    %v1352 = vand.u32 %v1351, 4294901760
    %1353 = vmatprep.subr.mxu0 %v1352
    %v1354 = vand.u32 %v254, 4294901760
    %v1355 = vsub.f32 %v254, %v1354
    %v1356 = vand.u32 %v1355, 4294901760
    %1357 = vmatpush1.msra.mxu0 %v1356
    %v1358 = vand.u32 %v257, 4294901760
    %v1359 = vsub.f32 %v257, %v1358
    %v1360 = vand.u32 %v1359, 4294901760
    %1361 = vmatprep.subr.mxu0 %v1360
    %v1362 = vand.u32 %v256, 4294901760
    %v1363 = vsub.f32 %v256, %v1362
    %v1364 = vand.u32 %v1363, 4294901760
    %1365 = vmatpush1.msra.mxu0 %v1364
    %v1366 = vand.u32 %v259, 4294901760
    %v1367 = vsub.f32 %v259, %v1366
    %v1368 = vand.u32 %v1367, 4294901760
    %1369 = vmatprep.subr.mxu0 %v1368
    %v1370 = vand.u32 %v258, 4294901760
    %v1371 = vsub.f32 %v258, %v1370
    %v1372 = vand.u32 %v1371, 4294901760
    %1373 = vmatpush1.msra.mxu0 %v1372
    %v1374 = vand.u32 %v261, 4294901760
    %v1375 = vsub.f32 %v261, %v1374
    %v1376 = vand.u32 %v1375, 4294901760
    %1377 = vmatprep.subr.mxu0 %v1376
    %v1378 = vand.u32 %v260, 4294901760
    %v1379 = vsub.f32 %v260, %v1378
    %v1380 = vand.u32 %v1379, 4294901760
    %1381 = vmatpush1.msra.mxu0 %v1380
    %v1382 = vand.u32 %v263, 4294901760
    %v1383 = vsub.f32 %v263, %v1382
    %v1384 = vand.u32 %v1383, 4294901760
    %1385 = vmatprep.subr.mxu0 %v1384
    %v1386 = vand.u32 %v262, 4294901760
    %v1387 = vsub.f32 %v262, %v1386
    %v1388 = vand.u32 %v1387, 4294901760
    %1389 = vmatpush1.msra.mxu0 %v1388
    %v1390 = vand.u32 %v265, 4294901760
    %v1391 = vsub.f32 %v265, %v1390
    %v1392 = vand.u32 %v1391, 4294901760
    %1393 = vmatprep.subr.mxu0 %v1392
    %v1394 = vand.u32 %v264, 4294901760
    %v1395 = vsub.f32 %v264, %v1394
    %v1396 = vand.u32 %v1395, 4294901760
    %1397 = vmatpush1.msra.mxu0 %v1396
    %v1398 = vand.u32 %v267, 4294901760
    %v1399 = vsub.f32 %v267, %v1398
    %v1400 = vand.u32 %v1399, 4294901760
    %1401 = vmatprep.subr.mxu0 %v1400
    %v1402 = vand.u32 %v266, 4294901760
    %v1403 = vsub.f32 %v266, %v1402
    %v1404 = vand.u32 %v1403, 4294901760
    %1405 = vmatpush1.msra.mxu0 %v1404
    %v1406 = vand.u32 %v203, 4294901760
    %1407 = vmatprep.mubr.f32.mxu0 %v1406
    %v1408 = vand.u32 %v202, 4294901760
    %1409 = vmatmul.mubr.f32.gmra.mrb[0].mxu0 %v1408
    %v1410 = vpop.f32.mrb[0].mxu0
    %v1411 = vadd.f32 %v1146, %v1410
    %v1412 = vpop.f32.mrb[0].mxu0
    %v1413 = vadd.f32 %v1148, %v1412
    %1414 = vdwg.mxu0
    %v1415 = vand.u32 %v205, 4294901760
    %1416 = vmatprep.subr.mxu0 %v1415
    %v1417 = vand.u32 %v204, 4294901760
    %1418 = vmatpush1.msra.mxu0 %v1417
    %v1419 = vand.u32 %v207, 4294901760
    %1420 = vmatprep.subr.mxu0 %v1419
    %v1421 = vand.u32 %v206, 4294901760
    %1422 = vmatpush1.msra.mxu0 %v1421
    %v1423 = vand.u32 %v209, 4294901760
    %1424 = vmatprep.subr.mxu0 %v1423
    %v1425 = vand.u32 %v208, 4294901760
    %1426 = vmatpush1.msra.mxu0 %v1425
    %v1427 = vand.u32 %v211, 4294901760
    %1428 = vmatprep.subr.mxu0 %v1427
    %v1429 = vand.u32 %v210, 4294901760
    %1430 = vmatpush1.msra.mxu0 %v1429
    %v1431 = vand.u32 %v213, 4294901760
    %1432 = vmatprep.subr.mxu0 %v1431
    %v1433 = vand.u32 %v212, 4294901760
    %1434 = vmatpush1.msra.mxu0 %v1433
    %v1435 = vand.u32 %v215, 4294901760
    %1436 = vmatprep.subr.mxu0 %v1435
    %v1437 = vand.u32 %v214, 4294901760
    %1438 = vmatpush1.msra.mxu0 %v1437
    %v1439 = vand.u32 %v217, 4294901760
    %1440 = vmatprep.subr.mxu0 %v1439
    %v1441 = vand.u32 %v216, 4294901760
    %1442 = vmatpush1.msra.mxu0 %v1441
    %v1443 = vand.u32 %v219, 4294901760
    %1444 = vmatprep.subr.mxu0 %v1443
    %v1445 = vand.u32 %v218, 4294901760
    %1446 = vmatpush1.msra.mxu0 %v1445
    %v1447 = vand.u32 %v221, 4294901760
    %1448 = vmatprep.subr.mxu0 %v1447
    %v1449 = vand.u32 %v220, 4294901760
    %1450 = vmatpush1.msra.mxu0 %v1449
    %v1451 = vand.u32 %v223, 4294901760
    %1452 = vmatprep.subr.mxu0 %v1451
    %v1453 = vand.u32 %v222, 4294901760
    %1454 = vmatpush1.msra.mxu0 %v1453
    %v1455 = vand.u32 %v225, 4294901760
    %1456 = vmatprep.subr.mxu0 %v1455
    %v1457 = vand.u32 %v224, 4294901760
    %1458 = vmatpush1.msra.mxu0 %v1457
    %v1459 = vand.u32 %v227, 4294901760
    %1460 = vmatprep.subr.mxu0 %v1459
    %v1461 = vand.u32 %v226, 4294901760
    %1462 = vmatpush1.msra.mxu0 %v1461
    %v1463 = vand.u32 %v229, 4294901760
    %1464 = vmatprep.subr.mxu0 %v1463
    %v1465 = vand.u32 %v228, 4294901760
    %1466 = vmatpush1.msra.mxu0 %v1465
    %v1467 = vand.u32 %v231, 4294901760
    %1468 = vmatprep.subr.mxu0 %v1467
    %v1469 = vand.u32 %v230, 4294901760
    %1470 = vmatpush1.msra.mxu0 %v1469
    %v1471 = vand.u32 %v233, 4294901760
    %1472 = vmatprep.subr.mxu0 %v1471
    %v1473 = vand.u32 %v232, 4294901760
    %1474 = vmatpush1.msra.mxu0 %v1473
    %v1475 = vand.u32 %v235, 4294901760
    %1476 = vmatprep.subr.mxu0 %v1475
    %v1477 = vand.u32 %v234, 4294901760
    %1478 = vmatpush1.msra.mxu0 %v1477
    %v1479 = vand.u32 %v237, 4294901760
    %1480 = vmatprep.subr.mxu0 %v1479
    %v1481 = vand.u32 %v236, 4294901760
    %1482 = vmatpush1.msra.mxu0 %v1481
    %v1483 = vand.u32 %v239, 4294901760
    %1484 = vmatprep.subr.mxu0 %v1483
    %v1485 = vand.u32 %v238, 4294901760
    %1486 = vmatpush1.msra.mxu0 %v1485
    %v1487 = vand.u32 %v241, 4294901760
    %1488 = vmatprep.subr.mxu0 %v1487
    %v1489 = vand.u32 %v240, 4294901760
    %1490 = vmatpush1.msra.mxu0 %v1489
    %v1491 = vand.u32 %v243, 4294901760
    %1492 = vmatprep.subr.mxu0 %v1491
    %v1493 = vand.u32 %v242, 4294901760
    %1494 = vmatpush1.msra.mxu0 %v1493
    %v1495 = vand.u32 %v245, 4294901760
    %1496 = vmatprep.subr.mxu0 %v1495
    %v1497 = vand.u32 %v244, 4294901760
    %1498 = vmatpush1.msra.mxu0 %v1497
    %v1499 = vand.u32 %v247, 4294901760
    %1500 = vmatprep.subr.mxu0 %v1499
    %v1501 = vand.u32 %v246, 4294901760
    %1502 = vmatpush1.msra.mxu0 %v1501
    %v1503 = vand.u32 %v249, 4294901760
    %1504 = vmatprep.subr.mxu0 %v1503
    %v1505 = vand.u32 %v248, 4294901760
    %1506 = vmatpush1.msra.mxu0 %v1505
    %v1507 = vand.u32 %v251, 4294901760
    %1508 = vmatprep.subr.mxu0 %v1507
    %v1509 = vand.u32 %v250, 4294901760
    %1510 = vmatpush1.msra.mxu0 %v1509
    %v1511 = vand.u32 %v253, 4294901760
    %1512 = vmatprep.subr.mxu0 %v1511
    %v1513 = vand.u32 %v252, 4294901760
    %1514 = vmatpush1.msra.mxu0 %v1513
    %v1515 = vand.u32 %v255, 4294901760
    %1516 = vmatprep.subr.mxu0 %v1515
    %v1517 = vand.u32 %v254, 4294901760
    %1518 = vmatpush1.msra.mxu0 %v1517
    %v1519 = vand.u32 %v257, 4294901760
    %1520 = vmatprep.subr.mxu0 %v1519
    %v1521 = vand.u32 %v256, 4294901760
    %1522 = vmatpush1.msra.mxu0 %v1521
    %v1523 = vand.u32 %v259, 4294901760
    %1524 = vmatprep.subr.mxu0 %v1523
    %v1525 = vand.u32 %v258, 4294901760
    %1526 = vmatpush1.msra.mxu0 %v1525
    %v1527 = vand.u32 %v261, 4294901760
    %1528 = vmatprep.subr.mxu0 %v1527
    %v1529 = vand.u32 %v260, 4294901760
    %1530 = vmatpush1.msra.mxu0 %v1529
    %v1531 = vand.u32 %v263, 4294901760
    %1532 = vmatprep.subr.mxu0 %v1531
    %v1533 = vand.u32 %v262, 4294901760
    %1534 = vmatpush1.msra.mxu0 %v1533
    %v1535 = vand.u32 %v265, 4294901760
    %1536 = vmatprep.subr.mxu0 %v1535
    %v1537 = vand.u32 %v264, 4294901760
    %1538 = vmatpush1.msra.mxu0 %v1537
    %v1539 = vand.u32 %v267, 4294901760
    %1540 = vmatprep.subr.mxu0 %v1539
    %v1541 = vand.u32 %v266, 4294901760
    %1542 = vmatpush1.msra.mxu0 %v1541
    %v1543 = vand.u32 %v203, 4294901760
    %1544 = vmatprep.mubr.f32.mxu0 %v1543
    %v1545 = vand.u32 %v202, 4294901760
    %1546 = vmatmul.mubr.f32.gmra.mrb[0].mxu0 %v1545
    %v1547 = vpop.f32.mrb[0].mxu0
    %v1548 = vadd.f32 %v1411, %v1547
    %v1549 = vpop.f32.mrb[0].mxu0
    %v1550 = vadd.f32 %v1413, %v1549
    %1551 = vdwg.mxu0
    %v1552 = vld [vmem:[#allocation5] sm:$0xff]
    %v1553 = vld [vmem:[#allocation5 + $0x8] sm:$0xff]
    %v1554 = vld [vmem:[#allocation5 + $0x10] sm:$0xff]
    %v1555 = vld [vmem:[#allocation5 + $0x18] sm:$0xff]
    %v1556 = vld [vmem:[#allocation5 + $0x20] sm:$0xff]
    %v1557 = vld [vmem:[#allocation5 + $0x28] sm:$0xff]
    %v1558 = vld [vmem:[#allocation5 + $0x30] sm:$0xff]
    %v1559 = vld [vmem:[#allocation5 + $0x38] sm:$0xff]
    %v1560 = vld [vmem:[#allocation5 + $0x40] sm:$0xff]
    %v1561 = vld [vmem:[#allocation5 + $0x48] sm:$0xff]
    %v1562 = vld [vmem:[#allocation5 + $0x50] sm:$0xff]
    %v1563 = vld [vmem:[#allocation5 + $0x58] sm:$0xff]
    %v1564 = vld [vmem:[#allocation5 + $0x60] sm:$0xff]
    %v1565 = vld [vmem:[#allocation5 + $0x68] sm:$0xff]
    %v1566 = vld [vmem:[#allocation5 + $0x70] sm:$0xff]
    %v1567 = vld [vmem:[#allocation5 + $0x78] sm:$0xff]
    %v1568 = vld [vmem:[#allocation5 + $0x80] sm:$0xff]
    %v1569 = vld [vmem:[#allocation5 + $0x88] sm:$0xff]
    %v1570 = vld [vmem:[#allocation5 + $0x90] sm:$0xff]
    %v1571 = vld [vmem:[#allocation5 + $0x98] sm:$0xff]
    %v1572 = vld [vmem:[#allocation5 + $0xa0] sm:$0xff]
    %v1573 = vld [vmem:[#allocation5 + $0xa8] sm:$0xff]
    %v1574 = vld [vmem:[#allocation5 + $0xb0] sm:$0xff]
    %v1575 = vld [vmem:[#allocation5 + $0xb8] sm:$0xff]
    %v1576 = vld [vmem:[#allocation5 + $0xc0] sm:$0xff]
    %v1577 = vld [vmem:[#allocation5 + $0xc8] sm:$0xff]
    %v1578 = vld [vmem:[#allocation5 + $0xd0] sm:$0xff]
    %v1579 = vld [vmem:[#allocation5 + $0xd8] sm:$0xff]
    %v1580 = vld [vmem:[#allocation5 + $0xe0] sm:$0xff]
    %v1581 = vld [vmem:[#allocation5 + $0xe8] sm:$0xff]
    %v1582 = vld [vmem:[#allocation5 + $0xf0] sm:$0xff]
    %v1583 = vld [vmem:[#allocation5 + $0xf8] sm:$0xff]
    %v1584 = vld [vmem:[#allocation5 + $0x100] sm:$0xff]
    %v1585 = vld [vmem:[#allocation5 + $0x108] sm:$0xff]
    %v1586 = vld [vmem:[#allocation5 + $0x110] sm:$0xff]
    %v1587 = vld [vmem:[#allocation5 + $0x118] sm:$0xff]
    %v1588 = vld [vmem:[#allocation5 + $0x120] sm:$0xff]
    %v1589 = vld [vmem:[#allocation5 + $0x128] sm:$0xff]
    %v1590 = vld [vmem:[#allocation5 + $0x130] sm:$0xff]
    %v1591 = vld [vmem:[#allocation5 + $0x138] sm:$0xff]
    %v1592 = vld [vmem:[#allocation5 + $0x140] sm:$0xff]
    %v1593 = vld [vmem:[#allocation5 + $0x148] sm:$0xff]
    %v1594 = vld [vmem:[#allocation5 + $0x150] sm:$0xff]
    %v1595 = vld [vmem:[#allocation5 + $0x158] sm:$0xff]
    %v1596 = vld [vmem:[#allocation5 + $0x160] sm:$0xff]
    %v1597 = vld [vmem:[#allocation5 + $0x168] sm:$0xff]
    %v1598 = vld [vmem:[#allocation5 + $0x170] sm:$0xff]
    %v1599 = vld [vmem:[#allocation5 + $0x178] sm:$0xff]
    %v1600 = vld [vmem:[#allocation5 + $0x180] sm:$0xff]
    %v1601 = vld [vmem:[#allocation5 + $0x188] sm:$0xff]
    %v1602 = vld [vmem:[#allocation5 + $0x190] sm:$0xff]
    %v1603 = vld [vmem:[#allocation5 + $0x198] sm:$0xff]
    %v1604 = vld [vmem:[#allocation5 + $0x1a0] sm:$0xff]
    %v1605 = vld [vmem:[#allocation5 + $0x1a8] sm:$0xff]
    %v1606 = vld [vmem:[#allocation5 + $0x1b0] sm:$0xff]
    %v1607 = vld [vmem:[#allocation5 + $0x1b8] sm:$0xff]
    %v1608 = vld [vmem:[#allocation5 + $0x1c0] sm:$0xff]
    %v1609 = vld [vmem:[#allocation5 + $0x1c8] sm:$0xff]
    %v1610 = vld [vmem:[#allocation5 + $0x1d0] sm:$0xff]
    %v1611 = vld [vmem:[#allocation5 + $0x1d8] sm:$0xff]
    %v1612 = vld [vmem:[#allocation5 + $0x1e0] sm:$0xff]
    %v1613 = vld [vmem:[#allocation5 + $0x1e8] sm:$0xff]
    %v1614 = vld [vmem:[#allocation5 + $0x1f0] sm:$0xff]
    %v1615 = vld [vmem:[#allocation5 + $0x1f8] sm:$0xff]
    %v1616 = vand.u32 %v1553, 4294901760
    %1617 = vmatprep.subr.mxu0 %v1616
    %v1618 = vand.u32 %v1552, 4294901760
    %1619 = vmatpush1.msra.mxu0 %v1618
    %v1620 = vand.u32 %v1555, 4294901760
    %1621 = vmatprep.subr.mxu0 %v1620
    %v1622 = vand.u32 %v1554, 4294901760
    %1623 = vmatpush1.msra.mxu0 %v1622
    %v1624 = vand.u32 %v1557, 4294901760
    %1625 = vmatprep.subr.mxu0 %v1624
    %v1626 = vand.u32 %v1556, 4294901760
    %1627 = vmatpush1.msra.mxu0 %v1626
    %v1628 = vand.u32 %v1559, 4294901760
    %1629 = vmatprep.subr.mxu0 %v1628
    %v1630 = vand.u32 %v1558, 4294901760
    %1631 = vmatpush1.msra.mxu0 %v1630
    %v1632 = vand.u32 %v1561, 4294901760
    %1633 = vmatprep.subr.mxu0 %v1632
    %v1634 = vand.u32 %v1560, 4294901760
    %1635 = vmatpush1.msra.mxu0 %v1634
    %v1636 = vand.u32 %v1563, 4294901760
    %1637 = vmatprep.subr.mxu0 %v1636
    %v1638 = vand.u32 %v1562, 4294901760
    %1639 = vmatpush1.msra.mxu0 %v1638
    %v1640 = vand.u32 %v1565, 4294901760
    %1641 = vmatprep.subr.mxu0 %v1640
    %v1642 = vand.u32 %v1564, 4294901760
    %1643 = vmatpush1.msra.mxu0 %v1642
    %v1644 = vand.u32 %v1567, 4294901760
    %1645 = vmatprep.subr.mxu0 %v1644
    %v1646 = vand.u32 %v1566, 4294901760
    %1647 = vmatpush1.msra.mxu0 %v1646
    %v1648 = vand.u32 %v1569, 4294901760
    %1649 = vmatprep.subr.mxu0 %v1648
    %v1650 = vand.u32 %v1568, 4294901760
    %1651 = vmatpush1.msra.mxu0 %v1650
    %v1652 = vand.u32 %v1571, 4294901760
    %1653 = vmatprep.subr.mxu0 %v1652
    %v1654 = vand.u32 %v1570, 4294901760
    %1655 = vmatpush1.msra.mxu0 %v1654
    %v1656 = vand.u32 %v1573, 4294901760
    %1657 = vmatprep.subr.mxu0 %v1656
    %v1658 = vand.u32 %v1572, 4294901760
    %1659 = vmatpush1.msra.mxu0 %v1658
    %v1660 = vand.u32 %v1575, 4294901760
    %1661 = vmatprep.subr.mxu0 %v1660
    %v1662 = vand.u32 %v1574, 4294901760
    %1663 = vmatpush1.msra.mxu0 %v1662
    %v1664 = vand.u32 %v1577, 4294901760
    %1665 = vmatprep.subr.mxu0 %v1664
    %v1666 = vand.u32 %v1576, 4294901760
    %1667 = vmatpush1.msra.mxu0 %v1666
    %v1668 = vand.u32 %v1579, 4294901760
    %1669 = vmatprep.subr.mxu0 %v1668
    %v1670 = vand.u32 %v1578, 4294901760
    %1671 = vmatpush1.msra.mxu0 %v1670
    %v1672 = vand.u32 %v1581, 4294901760
    %1673 = vmatprep.subr.mxu0 %v1672
    %v1674 = vand.u32 %v1580, 4294901760
    %1675 = vmatpush1.msra.mxu0 %v1674
    %v1676 = vand.u32 %v1583, 4294901760
    %1677 = vmatprep.subr.mxu0 %v1676
    %v1678 = vand.u32 %v1582, 4294901760
    %1679 = vmatpush1.msra.mxu0 %v1678
    %v1680 = vand.u32 %v1585, 4294901760
    %1681 = vmatprep.subr.mxu0 %v1680
    %v1682 = vand.u32 %v1584, 4294901760
    %1683 = vmatpush1.msra.mxu0 %v1682
    %v1684 = vand.u32 %v1587, 4294901760
    %1685 = vmatprep.subr.mxu0 %v1684
    %v1686 = vand.u32 %v1586, 4294901760
    %1687 = vmatpush1.msra.mxu0 %v1686
    %v1688 = vand.u32 %v1589, 4294901760
    %1689 = vmatprep.subr.mxu0 %v1688
    %v1690 = vand.u32 %v1588, 4294901760
    %1691 = vmatpush1.msra.mxu0 %v1690
    %v1692 = vand.u32 %v1591, 4294901760
    %1693 = vmatprep.subr.mxu0 %v1692
    %v1694 = vand.u32 %v1590, 4294901760
    %1695 = vmatpush1.msra.mxu0 %v1694
    %v1696 = vand.u32 %v1593, 4294901760
    %1697 = vmatprep.subr.mxu0 %v1696
    %v1698 = vand.u32 %v1592, 4294901760
    %1699 = vmatpush1.msra.mxu0 %v1698
    %v1700 = vand.u32 %v1595, 4294901760
    %1701 = vmatprep.subr.mxu0 %v1700
    %v1702 = vand.u32 %v1594, 4294901760
    %1703 = vmatpush1.msra.mxu0 %v1702
    %v1704 = vand.u32 %v1597, 4294901760
    %1705 = vmatprep.subr.mxu0 %v1704
    %v1706 = vand.u32 %v1596, 4294901760
    %1707 = vmatpush1.msra.mxu0 %v1706
    %v1708 = vand.u32 %v1599, 4294901760
    %1709 = vmatprep.subr.mxu0 %v1708
    %v1710 = vand.u32 %v1598, 4294901760
    %1711 = vmatpush1.msra.mxu0 %v1710
    %v1712 = vand.u32 %v1601, 4294901760
    %1713 = vmatprep.subr.mxu0 %v1712
    %v1714 = vand.u32 %v1600, 4294901760
    %1715 = vmatpush1.msra.mxu0 %v1714
    %v1716 = vand.u32 %v1603, 4294901760
    %1717 = vmatprep.subr.mxu0 %v1716
    %v1718 = vand.u32 %v1602, 4294901760
    %1719 = vmatpush1.msra.mxu0 %v1718
    %v1720 = vand.u32 %v1605, 4294901760
    %1721 = vmatprep.subr.mxu0 %v1720
    %v1722 = vand.u32 %v1604, 4294901760
    %1723 = vmatpush1.msra.mxu0 %v1722
    %v1724 = vand.u32 %v1607, 4294901760
    %1725 = vmatprep.subr.mxu0 %v1724
    %v1726 = vand.u32 %v1606, 4294901760
    %1727 = vmatpush1.msra.mxu0 %v1726
    %v1728 = vand.u32 %v1609, 4294901760
    %1729 = vmatprep.subr.mxu0 %v1728
    %v1730 = vand.u32 %v1608, 4294901760
    %1731 = vmatpush1.msra.mxu0 %v1730
    %v1732 = vand.u32 %v1611, 4294901760
    %1733 = vmatprep.subr.mxu0 %v1732
    %v1734 = vand.u32 %v1610, 4294901760
    %1735 = vmatpush1.msra.mxu0 %v1734
    %v1736 = vand.u32 %v1613, 4294901760
    %1737 = vmatprep.subr.mxu0 %v1736
    %v1738 = vand.u32 %v1612, 4294901760
    %1739 = vmatpush1.msra.mxu0 %v1738
    %v1740 = vand.u32 %v1615, 4294901760
    %1741 = vmatprep.subr.mxu0 %v1740
    %v1742 = vand.u32 %v1614, 4294901760
    %1743 = vmatpush1.msra.mxu0 %v1742
    %v1744 = vand.u32 %v203, 4294901760
    %v1745 = vsub.f32 %v203, %v1744
    %v1746 = vand.u32 %v1745, 4294901760
    %v1747 = vsub.f32 %v1745, %v1746
    %v1748 = vand.u32 %v1747, 4294901760
    %1749 = vmatprep.mubr.f32.mxu0 %v1748
    %v1750 = vand.u32 %v202, 4294901760
    %v1751 = vsub.f32 %v202, %v1750
    %v1752 = vand.u32 %v1751, 4294901760
    %v1753 = vsub.f32 %v1751, %v1752
    %v1754 = vand.u32 %v1753, 4294901760
    %1755 = vmatmul.mubr.f32.gmra.mrb[0].mxu0 %v1754
    %v1756 = vpop.f32.mrb[0].mxu0
    %v1757 = vadd.f32 0.0, %v1756
    %v1758 = vpop.f32.mrb[0].mxu0
    %v1759 = vadd.f32 0.0, %v1758
    %1760 = vdwg.mxu0
    %v1761 = vand.u32 %v1553, 4294901760
    %v1762 = vsub.f32 %v1553, %v1761
    %v1763 = vand.u32 %v1762, 4294901760
    %v1764 = vsub.f32 %v1762, %v1763
    %v1765 = vand.u32 %v1764, 4294901760
    %1766 = vmatprep.subr.mxu0 %v1765
    %v1767 = vand.u32 %v1552, 4294901760
    %v1768 = vsub.f32 %v1552, %v1767
    %v1769 = vand.u32 %v1768, 4294901760
    %v1770 = vsub.f32 %v1768, %v1769
    %v1771 = vand.u32 %v1770, 4294901760
    %1772 = vmatpush1.msra.mxu0 %v1771
    %v1773 = vand.u32 %v1555, 4294901760
    %v1774 = vsub.f32 %v1555, %v1773
    %v1775 = vand.u32 %v1774, 4294901760
    %v1776 = vsub.f32 %v1774, %v1775
    %v1777 = vand.u32 %v1776, 4294901760
    %1778 = vmatprep.subr.mxu0 %v1777
    %v1779 = vand.u32 %v1554, 4294901760
    %v1780 = vsub.f32 %v1554, %v1779
    %v1781 = vand.u32 %v1780, 4294901760
    %v1782 = vsub.f32 %v1780, %v1781
    %v1783 = vand.u32 %v1782, 4294901760
    %1784 = vmatpush1.msra.mxu0 %v1783
    %v1785 = vand.u32 %v1557, 4294901760
    %v1786 = vsub.f32 %v1557, %v1785
    %v1787 = vand.u32 %v1786, 4294901760
    %v1788 = vsub.f32 %v1786, %v1787
    %v1789 = vand.u32 %v1788, 4294901760
    %1790 = vmatprep.subr.mxu0 %v1789
    %v1791 = vand.u32 %v1556, 4294901760
    %v1792 = vsub.f32 %v1556, %v1791
    %v1793 = vand.u32 %v1792, 4294901760
    %v1794 = vsub.f32 %v1792, %v1793
    %v1795 = vand.u32 %v1794, 4294901760
    %1796 = vmatpush1.msra.mxu0 %v1795
    %v1797 = vand.u32 %v1559, 4294901760
    %v1798 = vsub.f32 %v1559, %v1797
    %v1799 = vand.u32 %v1798, 4294901760
    %v1800 = vsub.f32 %v1798, %v1799
    %v1801 = vand.u32 %v1800, 4294901760
    %1802 = vmatprep.subr.mxu0 %v1801
    %v1803 = vand.u32 %v1558, 4294901760
    %v1804 = vsub.f32 %v1558, %v1803
    %v1805 = vand.u32 %v1804, 4294901760
    %v1806 = vsub.f32 %v1804, %v1805
    %v1807 = vand.u32 %v1806, 4294901760
    %1808 = vmatpush1.msra.mxu0 %v1807
    %v1809 = vand.u32 %v1561, 4294901760
    %v1810 = vsub.f32 %v1561, %v1809
    %v1811 = vand.u32 %v1810, 4294901760
    %v1812 = vsub.f32 %v1810, %v1811
    %v1813 = vand.u32 %v1812, 4294901760
    %1814 = vmatprep.subr.mxu0 %v1813
    %v1815 = vand.u32 %v1560, 4294901760
    %v1816 = vsub.f32 %v1560, %v1815
    %v1817 = vand.u32 %v1816, 4294901760
    %v1818 = vsub.f32 %v1816, %v1817
    %v1819 = vand.u32 %v1818, 4294901760
    %1820 = vmatpush1.msra.mxu0 %v1819
    %v1821 = vand.u32 %v1563, 4294901760
    %v1822 = vsub.f32 %v1563, %v1821
    %v1823 = vand.u32 %v1822, 4294901760
    %v1824 = vsub.f32 %v1822, %v1823
    %v1825 = vand.u32 %v1824, 4294901760
    %1826 = vmatprep.subr.mxu0 %v1825
    %v1827 = vand.u32 %v1562, 4294901760
    %v1828 = vsub.f32 %v1562, %v1827
    %v1829 = vand.u32 %v1828, 4294901760
    %v1830 = vsub.f32 %v1828, %v1829
    %v1831 = vand.u32 %v1830, 4294901760
    %1832 = vmatpush1.msra.mxu0 %v1831
    %v1833 = vand.u32 %v1565, 4294901760
    %v1834 = vsub.f32 %v1565, %v1833
    %v1835 = vand.u32 %v1834, 4294901760
    %v1836 = vsub.f32 %v1834, %v1835
    %v1837 = vand.u32 %v1836, 4294901760
    %1838 = vmatprep.subr.mxu0 %v1837
    %v1839 = vand.u32 %v1564, 4294901760
    %v1840 = vsub.f32 %v1564, %v1839
    %v1841 = vand.u32 %v1840, 4294901760
    %v1842 = vsub.f32 %v1840, %v1841
    %v1843 = vand.u32 %v1842, 4294901760
    %1844 = vmatpush1.msra.mxu0 %v1843
    %v1845 = vand.u32 %v1567, 4294901760
    %v1846 = vsub.f32 %v1567, %v1845
    %v1847 = vand.u32 %v1846, 4294901760
    %v1848 = vsub.f32 %v1846, %v1847
    %v1849 = vand.u32 %v1848, 4294901760
    %1850 = vmatprep.subr.mxu0 %v1849
    %v1851 = vand.u32 %v1566, 4294901760
    %v1852 = vsub.f32 %v1566, %v1851
    %v1853 = vand.u32 %v1852, 4294901760
    %v1854 = vsub.f32 %v1852, %v1853
    %v1855 = vand.u32 %v1854, 4294901760
    %1856 = vmatpush1.msra.mxu0 %v1855
    %v1857 = vand.u32 %v1569, 4294901760
    %v1858 = vsub.f32 %v1569, %v1857
    %v1859 = vand.u32 %v1858, 4294901760
    %v1860 = vsub.f32 %v1858, %v1859
    %v1861 = vand.u32 %v1860, 4294901760
    %1862 = vmatprep.subr.mxu0 %v1861
    %v1863 = vand.u32 %v1568, 4294901760
    %v1864 = vsub.f32 %v1568, %v1863
    %v1865 = vand.u32 %v1864, 4294901760
    %v1866 = vsub.f32 %v1864, %v1865
    %v1867 = vand.u32 %v1866, 4294901760
    %1868 = vmatpush1.msra.mxu0 %v1867
    %v1869 = vand.u32 %v1571, 4294901760
    %v1870 = vsub.f32 %v1571, %v1869
    %v1871 = vand.u32 %v1870, 4294901760
    %v1872 = vsub.f32 %v1870, %v1871
    %v1873 = vand.u32 %v1872, 4294901760
    %1874 = vmatprep.subr.mxu0 %v1873
    %v1875 = vand.u32 %v1570, 4294901760
    %v1876 = vsub.f32 %v1570, %v1875
    %v1877 = vand.u32 %v1876, 4294901760
    %v1878 = vsub.f32 %v1876, %v1877
    %v1879 = vand.u32 %v1878, 4294901760
    %1880 = vmatpush1.msra.mxu0 %v1879
    %v1881 = vand.u32 %v1573, 4294901760
    %v1882 = vsub.f32 %v1573, %v1881
    %v1883 = vand.u32 %v1882, 4294901760
    %v1884 = vsub.f32 %v1882, %v1883
    %v1885 = vand.u32 %v1884, 4294901760
    %1886 = vmatprep.subr.mxu0 %v1885
    %v1887 = vand.u32 %v1572, 4294901760
    %v1888 = vsub.f32 %v1572, %v1887
    %v1889 = vand.u32 %v1888, 4294901760
    %v1890 = vsub.f32 %v1888, %v1889
    %v1891 = vand.u32 %v1890, 4294901760
    %1892 = vmatpush1.msra.mxu0 %v1891
    %v1893 = vand.u32 %v1575, 4294901760
    %v1894 = vsub.f32 %v1575, %v1893
    %v1895 = vand.u32 %v1894, 4294901760
    %v1896 = vsub.f32 %v1894, %v1895
    %v1897 = vand.u32 %v1896, 4294901760
    %1898 = vmatprep.subr.mxu0 %v1897
    %v1899 = vand.u32 %v1574, 4294901760
    %v1900 = vsub.f32 %v1574, %v1899
    %v1901 = vand.u32 %v1900, 4294901760
    %v1902 = vsub.f32 %v1900, %v1901
    %v1903 = vand.u32 %v1902, 4294901760
    %1904 = vmatpush1.msra.mxu0 %v1903
    %v1905 = vand.u32 %v1577, 4294901760
    %v1906 = vsub.f32 %v1577, %v1905
    %v1907 = vand.u32 %v1906, 4294901760
    %v1908 = vsub.f32 %v1906, %v1907
    %v1909 = vand.u32 %v1908, 4294901760
    %1910 = vmatprep.subr.mxu0 %v1909
    %v1911 = vand.u32 %v1576, 4294901760
    %v1912 = vsub.f32 %v1576, %v1911
    %v1913 = vand.u32 %v1912, 4294901760
    %v1914 = vsub.f32 %v1912, %v1913
    %v1915 = vand.u32 %v1914, 4294901760
    %1916 = vmatpush1.msra.mxu0 %v1915
    %v1917 = vand.u32 %v1579, 4294901760
    %v1918 = vsub.f32 %v1579, %v1917
    %v1919 = vand.u32 %v1918, 4294901760
    %v1920 = vsub.f32 %v1918, %v1919
    %v1921 = vand.u32 %v1920, 4294901760
    %1922 = vmatprep.subr.mxu0 %v1921
    %v1923 = vand.u32 %v1578, 4294901760
    %v1924 = vsub.f32 %v1578, %v1923
    %v1925 = vand.u32 %v1924, 4294901760
    %v1926 = vsub.f32 %v1924, %v1925
    %v1927 = vand.u32 %v1926, 4294901760
    %1928 = vmatpush1.msra.mxu0 %v1927
    %v1929 = vand.u32 %v1581, 4294901760
    %v1930 = vsub.f32 %v1581, %v1929
    %v1931 = vand.u32 %v1930, 4294901760
    %v1932 = vsub.f32 %v1930, %v1931
    %v1933 = vand.u32 %v1932, 4294901760
    %1934 = vmatprep.subr.mxu0 %v1933
    %v1935 = vand.u32 %v1580, 4294901760
    %v1936 = vsub.f32 %v1580, %v1935
    %v1937 = vand.u32 %v1936, 4294901760
    %v1938 = vsub.f32 %v1936, %v1937
    %v1939 = vand.u32 %v1938, 4294901760
    %1940 = vmatpush1.msra.mxu0 %v1939
    %v1941 = vand.u32 %v1583, 4294901760
    %v1942 = vsub.f32 %v1583, %v1941
    %v1943 = vand.u32 %v1942, 4294901760
    %v1944 = vsub.f32 %v1942, %v1943
    %v1945 = vand.u32 %v1944, 4294901760
    %1946 = vmatprep.subr.mxu0 %v1945
    %v1947 = vand.u32 %v1582, 4294901760
    %v1948 = vsub.f32 %v1582, %v1947
    %v1949 = vand.u32 %v1948, 4294901760
    %v1950 = vsub.f32 %v1948, %v1949
    %v1951 = vand.u32 %v1950, 4294901760
    %1952 = vmatpush1.msra.mxu0 %v1951
    %v1953 = vand.u32 %v1585, 4294901760
    %v1954 = vsub.f32 %v1585, %v1953
    %v1955 = vand.u32 %v1954, 4294901760
    %v1956 = vsub.f32 %v1954, %v1955
    %v1957 = vand.u32 %v1956, 4294901760
    %1958 = vmatprep.subr.mxu0 %v1957
    %v1959 = vand.u32 %v1584, 4294901760
    %v1960 = vsub.f32 %v1584, %v1959
    %v1961 = vand.u32 %v1960, 4294901760
    %v1962 = vsub.f32 %v1960, %v1961
    %v1963 = vand.u32 %v1962, 4294901760
    %1964 = vmatpush1.msra.mxu0 %v1963
    %v1965 = vand.u32 %v1587, 4294901760
    %v1966 = vsub.f32 %v1587, %v1965
    %v1967 = vand.u32 %v1966, 4294901760
    %v1968 = vsub.f32 %v1966, %v1967
    %v1969 = vand.u32 %v1968, 4294901760
    %1970 = vmatprep.subr.mxu0 %v1969
    %v1971 = vand.u32 %v1586, 4294901760
    %v1972 = vsub.f32 %v1586, %v1971
    %v1973 = vand.u32 %v1972, 4294901760
    %v1974 = vsub.f32 %v1972, %v1973
    %v1975 = vand.u32 %v1974, 4294901760
    %1976 = vmatpush1.msra.mxu0 %v1975
    %v1977 = vand.u32 %v1589, 4294901760
    %v1978 = vsub.f32 %v1589, %v1977
    %v1979 = vand.u32 %v1978, 4294901760
    %v1980 = vsub.f32 %v1978, %v1979
    %v1981 = vand.u32 %v1980, 4294901760
    %1982 = vmatprep.subr.mxu0 %v1981
    %v1983 = vand.u32 %v1588, 4294901760
    %v1984 = vsub.f32 %v1588, %v1983
    %v1985 = vand.u32 %v1984, 4294901760
    %v1986 = vsub.f32 %v1984, %v1985
    %v1987 = vand.u32 %v1986, 4294901760
    %1988 = vmatpush1.msra.mxu0 %v1987
    %v1989 = vand.u32 %v1591, 4294901760
    %v1990 = vsub.f32 %v1591, %v1989
    %v1991 = vand.u32 %v1990, 4294901760
    %v1992 = vsub.f32 %v1990, %v1991
    %v1993 = vand.u32 %v1992, 4294901760
    %1994 = vmatprep.subr.mxu0 %v1993
    %v1995 = vand.u32 %v1590, 4294901760
    %v1996 = vsub.f32 %v1590, %v1995
    %v1997 = vand.u32 %v1996, 4294901760
    %v1998 = vsub.f32 %v1996, %v1997
    %v1999 = vand.u32 %v1998, 4294901760
    %2000 = vmatpush1.msra.mxu0 %v1999
    %v2001 = vand.u32 %v1593, 4294901760
    %v2002 = vsub.f32 %v1593, %v2001
    %v2003 = vand.u32 %v2002, 4294901760
    %v2004 = vsub.f32 %v2002, %v2003
    %v2005 = vand.u32 %v2004, 4294901760
    %2006 = vmatprep.subr.mxu0 %v2005
    %v2007 = vand.u32 %v1592, 4294901760
    %v2008 = vsub.f32 %v1592, %v2007
    %v2009 = vand.u32 %v2008, 4294901760
    %v2010 = vsub.f32 %v2008, %v2009
    %v2011 = vand.u32 %v2010, 4294901760
    %2012 = vmatpush1.msra.mxu0 %v2011
    %v2013 = vand.u32 %v1595, 4294901760
    %v2014 = vsub.f32 %v1595, %v2013
    %v2015 = vand.u32 %v2014, 4294901760
    %v2016 = vsub.f32 %v2014, %v2015
    %v2017 = vand.u32 %v2016, 4294901760
    %2018 = vmatprep.subr.mxu0 %v2017
    %v2019 = vand.u32 %v1594, 4294901760
    %v2020 = vsub.f32 %v1594, %v2019
    %v2021 = vand.u32 %v2020, 4294901760
    %v2022 = vsub.f32 %v2020, %v2021
    %v2023 = vand.u32 %v2022, 4294901760
    %2024 = vmatpush1.msra.mxu0 %v2023
    %v2025 = vand.u32 %v1597, 4294901760
    %v2026 = vsub.f32 %v1597, %v2025
    %v2027 = vand.u32 %v2026, 4294901760
    %v2028 = vsub.f32 %v2026, %v2027
    %v2029 = vand.u32 %v2028, 4294901760
    %2030 = vmatprep.subr.mxu0 %v2029
    %v2031 = vand.u32 %v1596, 4294901760
    %v2032 = vsub.f32 %v1596, %v2031
    %v2033 = vand.u32 %v2032, 4294901760
    %v2034 = vsub.f32 %v2032, %v2033
    %v2035 = vand.u32 %v2034, 4294901760
    %2036 = vmatpush1.msra.mxu0 %v2035
    %v2037 = vand.u32 %v1599, 4294901760
    %v2038 = vsub.f32 %v1599, %v2037
    %v2039 = vand.u32 %v2038, 4294901760
    %v2040 = vsub.f32 %v2038, %v2039
    %v2041 = vand.u32 %v2040, 4294901760
    %2042 = vmatprep.subr.mxu0 %v2041
    %v2043 = vand.u32 %v1598, 4294901760
    %v2044 = vsub.f32 %v1598, %v2043
    %v2045 = vand.u32 %v2044, 4294901760
    %v2046 = vsub.f32 %v2044, %v2045
    %v2047 = vand.u32 %v2046, 4294901760
    %2048 = vmatpush1.msra.mxu0 %v2047
    %v2049 = vand.u32 %v1601, 4294901760
    %v2050 = vsub.f32 %v1601, %v2049
    %v2051 = vand.u32 %v2050, 4294901760
    %v2052 = vsub.f32 %v2050, %v2051
    %v2053 = vand.u32 %v2052, 4294901760
    %2054 = vmatprep.subr.mxu0 %v2053
    %v2055 = vand.u32 %v1600, 4294901760
    %v2056 = vsub.f32 %v1600, %v2055
    %v2057 = vand.u32 %v2056, 4294901760
    %v2058 = vsub.f32 %v2056, %v2057
    %v2059 = vand.u32 %v2058, 4294901760
    %2060 = vmatpush1.msra.mxu0 %v2059
    %v2061 = vand.u32 %v1603, 4294901760
    %v2062 = vsub.f32 %v1603, %v2061
    %v2063 = vand.u32 %v2062, 4294901760
    %v2064 = vsub.f32 %v2062, %v2063
    %v2065 = vand.u32 %v2064, 4294901760
    %2066 = vmatprep.subr.mxu0 %v2065
    %v2067 = vand.u32 %v1602, 4294901760
    %v2068 = vsub.f32 %v1602, %v2067
    %v2069 = vand.u32 %v2068, 4294901760
    %v2070 = vsub.f32 %v2068, %v2069
    %v2071 = vand.u32 %v2070, 4294901760
    %2072 = vmatpush1.msra.mxu0 %v2071
    %v2073 = vand.u32 %v1605, 4294901760
    %v2074 = vsub.f32 %v1605, %v2073
    %v2075 = vand.u32 %v2074, 4294901760
    %v2076 = vsub.f32 %v2074, %v2075
    %v2077 = vand.u32 %v2076, 4294901760
    %2078 = vmatprep.subr.mxu0 %v2077
    %v2079 = vand.u32 %v1604, 4294901760
    %v2080 = vsub.f32 %v1604, %v2079
    %v2081 = vand.u32 %v2080, 4294901760
    %v2082 = vsub.f32 %v2080, %v2081
    %v2083 = vand.u32 %v2082, 4294901760
    %2084 = vmatpush1.msra.mxu0 %v2083
    %v2085 = vand.u32 %v1607, 4294901760
    %v2086 = vsub.f32 %v1607, %v2085
    %v2087 = vand.u32 %v2086, 4294901760
    %v2088 = vsub.f32 %v2086, %v2087
    %v2089 = vand.u32 %v2088, 4294901760
    %2090 = vmatprep.subr.mxu0 %v2089
    %v2091 = vand.u32 %v1606, 4294901760
    %v2092 = vsub.f32 %v1606, %v2091
    %v2093 = vand.u32 %v2092, 4294901760
    %v2094 = vsub.f32 %v2092, %v2093
    %v2095 = vand.u32 %v2094, 4294901760
    %2096 = vmatpush1.msra.mxu0 %v2095
    %v2097 = vand.u32 %v1609, 4294901760
    %v2098 = vsub.f32 %v1609, %v2097
    %v2099 = vand.u32 %v2098, 4294901760
    %v2100 = vsub.f32 %v2098, %v2099
    %v2101 = vand.u32 %v2100, 4294901760
    %2102 = vmatprep.subr.mxu0 %v2101
    %v2103 = vand.u32 %v1608, 4294901760
    %v2104 = vsub.f32 %v1608, %v2103
    %v2105 = vand.u32 %v2104, 4294901760
    %v2106 = vsub.f32 %v2104, %v2105
    %v2107 = vand.u32 %v2106, 4294901760
    %2108 = vmatpush1.msra.mxu0 %v2107
    %v2109 = vand.u32 %v1611, 4294901760
    %v2110 = vsub.f32 %v1611, %v2109
    %v2111 = vand.u32 %v2110, 4294901760
    %v2112 = vsub.f32 %v2110, %v2111
    %v2113 = vand.u32 %v2112, 4294901760
    %2114 = vmatprep.subr.mxu0 %v2113
    %v2115 = vand.u32 %v1610, 4294901760
    %v2116 = vsub.f32 %v1610, %v2115
    %v2117 = vand.u32 %v2116, 4294901760
    %v2118 = vsub.f32 %v2116, %v2117
    %v2119 = vand.u32 %v2118, 4294901760
    %2120 = vmatpush1.msra.mxu0 %v2119
    %v2121 = vand.u32 %v1613, 4294901760
    %v2122 = vsub.f32 %v1613, %v2121
    %v2123 = vand.u32 %v2122, 4294901760
    %v2124 = vsub.f32 %v2122, %v2123
    %v2125 = vand.u32 %v2124, 4294901760
    %2126 = vmatprep.subr.mxu0 %v2125
    %v2127 = vand.u32 %v1612, 4294901760
    %v2128 = vsub.f32 %v1612, %v2127
    %v2129 = vand.u32 %v2128, 4294901760
    %v2130 = vsub.f32 %v2128, %v2129
    %v2131 = vand.u32 %v2130, 4294901760
    %2132 = vmatpush1.msra.mxu0 %v2131
    %v2133 = vand.u32 %v1615, 4294901760
    %v2134 = vsub.f32 %v1615, %v2133
    %v2135 = vand.u32 %v2134, 4294901760
    %v2136 = vsub.f32 %v2134, %v2135
    %v2137 = vand.u32 %v2136, 4294901760
    %2138 = vmatprep.subr.mxu0 %v2137
    %v2139 = vand.u32 %v1614, 4294901760
    %v2140 = vsub.f32 %v1614, %v2139
    %v2141 = vand.u32 %v2140, 4294901760
    %v2142 = vsub.f32 %v2140, %v2141
    %v2143 = vand.u32 %v2142, 4294901760
    %2144 = vmatpush1.msra.mxu0 %v2143
    %v2145 = vand.u32 %v203, 4294901760
    %2146 = vmatprep.mubr.f32.mxu0 %v2145
    %v2147 = vand.u32 %v202, 4294901760
    %2148 = vmatmul.mubr.f32.gmra.mrb[0].mxu0 %v2147
    %v2149 = vpop.f32.mrb[0].mxu0
    %v2150 = vadd.f32 %v1757, %v2149
    %v2151 = vpop.f32.mrb[0].mxu0
    %v2152 = vadd.f32 %v1759, %v2151
    %2153 = vdwg.mxu0
    %v2154 = vand.u32 %v1553, 4294901760
    %v2155 = vsub.f32 %v1553, %v2154
    %2156 = vmatprep.subr.mxu0 %v2155
    %v2157 = vand.u32 %v1552, 4294901760
    %v2158 = vsub.f32 %v1552, %v2157
    %2159 = vmatpush1.msra.mxu0 %v2158
    %v2160 = vand.u32 %v1555, 4294901760
    %v2161 = vsub.f32 %v1555, %v2160
    %2162 = vmatprep.subr.mxu0 %v2161
    %v2163 = vand.u32 %v1554, 4294901760
    %v2164 = vsub.f32 %v1554, %v2163
    %2165 = vmatpush1.msra.mxu0 %v2164
    %v2166 = vand.u32 %v1557, 4294901760
    %v2167 = vsub.f32 %v1557, %v2166
    %2168 = vmatprep.subr.mxu0 %v2167
    %v2169 = vand.u32 %v1556, 4294901760
    %v2170 = vsub.f32 %v1556, %v2169
    %2171 = vmatpush1.msra.mxu0 %v2170
    %v2172 = vand.u32 %v1559, 4294901760
    %v2173 = vsub.f32 %v1559, %v2172
    %2174 = vmatprep.subr.mxu0 %v2173
    %v2175 = vand.u32 %v1558, 4294901760
    %v2176 = vsub.f32 %v1558, %v2175
    %2177 = vmatpush1.msra.mxu0 %v2176
    %v2178 = vand.u32 %v1561, 4294901760
    %v2179 = vsub.f32 %v1561, %v2178
    %2180 = vmatprep.subr.mxu0 %v2179
    %v2181 = vand.u32 %v1560, 4294901760
    %v2182 = vsub.f32 %v1560, %v2181
    %2183 = vmatpush1.msra.mxu0 %v2182
    %v2184 = vand.u32 %v1563, 4294901760
    %v2185 = vsub.f32 %v1563, %v2184
    %2186 = vmatprep.subr.mxu0 %v2185
    %v2187 = vand.u32 %v1562, 4294901760
    %v2188 = vsub.f32 %v1562, %v2187
    %2189 = vmatpush1.msra.mxu0 %v2188
    %v2190 = vand.u32 %v1565, 4294901760
    %v2191 = vsub.f32 %v1565, %v2190
    %2192 = vmatprep.subr.mxu0 %v2191
    %v2193 = vand.u32 %v1564, 4294901760
    %v2194 = vsub.f32 %v1564, %v2193
    %2195 = vmatpush1.msra.mxu0 %v2194
    %v2196 = vand.u32 %v1567, 4294901760
    %v2197 = vsub.f32 %v1567, %v2196
    %2198 = vmatprep.subr.mxu0 %v2197
    %v2199 = vand.u32 %v1566, 4294901760
    %v2200 = vsub.f32 %v1566, %v2199
    %2201 = vmatpush1.msra.mxu0 %v2200
    %v2202 = vand.u32 %v1569, 4294901760
    %v2203 = vsub.f32 %v1569, %v2202
    %2204 = vmatprep.subr.mxu0 %v2203
    %v2205 = vand.u32 %v1568, 4294901760
    %v2206 = vsub.f32 %v1568, %v2205
    %2207 = vmatpush1.msra.mxu0 %v2206
    %v2208 = vand.u32 %v1571, 4294901760
    %v2209 = vsub.f32 %v1571, %v2208
    %2210 = vmatprep.subr.mxu0 %v2209
    %v2211 = vand.u32 %v1570, 4294901760
    %v2212 = vsub.f32 %v1570, %v2211
    %2213 = vmatpush1.msra.mxu0 %v2212
    %v2214 = vand.u32 %v1573, 4294901760
    %v2215 = vsub.f32 %v1573, %v2214
    %2216 = vmatprep.subr.mxu0 %v2215
    %v2217 = vand.u32 %v1572, 4294901760
    %v2218 = vsub.f32 %v1572, %v2217
    %2219 = vmatpush1.msra.mxu0 %v2218
    %v2220 = vand.u32 %v1575, 4294901760
    %v2221 = vsub.f32 %v1575, %v2220
    %2222 = vmatprep.subr.mxu0 %v2221
    %v2223 = vand.u32 %v1574, 4294901760
    %v2224 = vsub.f32 %v1574, %v2223
    %2225 = vmatpush1.msra.mxu0 %v2224
    %v2226 = vand.u32 %v1577, 4294901760
    %v2227 = vsub.f32 %v1577, %v2226
    %2228 = vmatprep.subr.mxu0 %v2227
    %v2229 = vand.u32 %v1576, 4294901760
    %v2230 = vsub.f32 %v1576, %v2229
    %2231 = vmatpush1.msra.mxu0 %v2230
    %v2232 = vand.u32 %v1579, 4294901760
    %v2233 = vsub.f32 %v1579, %v2232
    %2234 = vmatprep.subr.mxu0 %v2233
    %v2235 = vand.u32 %v1578, 4294901760
    %v2236 = vsub.f32 %v1578, %v2235
    %2237 = vmatpush1.msra.mxu0 %v2236
    %v2238 = vand.u32 %v1581, 4294901760
    %v2239 = vsub.f32 %v1581, %v2238
    %2240 = vmatprep.subr.mxu0 %v2239
    %v2241 = vand.u32 %v1580, 4294901760
    %v2242 = vsub.f32 %v1580, %v2241
    %2243 = vmatpush1.msra.mxu0 %v2242
    %v2244 = vand.u32 %v1583, 4294901760
    %v2245 = vsub.f32 %v1583, %v2244
    %2246 = vmatprep.subr.mxu0 %v2245
    %v2247 = vand.u32 %v1582, 4294901760
    %v2248 = vsub.f32 %v1582, %v2247
    %2249 = vmatpush1.msra.mxu0 %v2248
    %v2250 = vand.u32 %v1585, 4294901760
    %v2251 = vsub.f32 %v1585, %v2250
    %2252 = vmatprep.subr.mxu0 %v2251
    %v2253 = vand.u32 %v1584, 4294901760
    %v2254 = vsub.f32 %v1584, %v2253
    %2255 = vmatpush1.msra.mxu0 %v2254
    %v2256 = vand.u32 %v1587, 4294901760
    %v2257 = vsub.f32 %v1587, %v2256
    %2258 = vmatprep.subr.mxu0 %v2257
    %v2259 = vand.u32 %v1586, 4294901760
    %v2260 = vsub.f32 %v1586, %v2259
    %2261 = vmatpush1.msra.mxu0 %v2260
    %v2262 = vand.u32 %v1589, 4294901760
    %v2263 = vsub.f32 %v1589, %v2262
    %2264 = vmatprep.subr.mxu0 %v2263
    %v2265 = vand.u32 %v1588, 4294901760
    %v2266 = vsub.f32 %v1588, %v2265
    %2267 = vmatpush1.msra.mxu0 %v2266
    %v2268 = vand.u32 %v1591, 4294901760
    %v2269 = vsub.f32 %v1591, %v2268
    %2270 = vmatprep.subr.mxu0 %v2269
    %v2271 = vand.u32 %v1590, 4294901760
    %v2272 = vsub.f32 %v1590, %v2271
    %2273 = vmatpush1.msra.mxu0 %v2272
    %v2274 = vand.u32 %v1593, 4294901760
    %v2275 = vsub.f32 %v1593, %v2274
    %2276 = vmatprep.subr.mxu0 %v2275
    %v2277 = vand.u32 %v1592, 4294901760
    %v2278 = vsub.f32 %v1592, %v2277
    %2279 = vmatpush1.msra.mxu0 %v2278
    %v2280 = vand.u32 %v1595, 4294901760
    %v2281 = vsub.f32 %v1595, %v2280
    %2282 = vmatprep.subr.mxu0 %v2281
    %v2283 = vand.u32 %v1594, 4294901760
    %v2284 = vsub.f32 %v1594, %v2283
    %2285 = vmatpush1.msra.mxu0 %v2284
    %v2286 = vand.u32 %v1597, 4294901760
    %v2287 = vsub.f32 %v1597, %v2286
    %2288 = vmatprep.subr.mxu0 %v2287
    %v2289 = vand.u32 %v1596, 4294901760
    %v2290 = vsub.f32 %v1596, %v2289
    %2291 = vmatpush1.msra.mxu0 %v2290
    %v2292 = vand.u32 %v1599, 4294901760
    %v2293 = vsub.f32 %v1599, %v2292
    %2294 = vmatprep.subr.mxu0 %v2293
    %v2295 = vand.u32 %v1598, 4294901760
    %v2296 = vsub.f32 %v1598, %v2295
    %2297 = vmatpush1.msra.mxu0 %v2296
    %v2298 = vand.u32 %v1601, 4294901760
    %v2299 = vsub.f32 %v1601, %v2298
    %2300 = vmatprep.subr.mxu0 %v2299
    %v2301 = vand.u32 %v1600, 4294901760
    %v2302 = vsub.f32 %v1600, %v2301
    %2303 = vmatpush1.msra.mxu0 %v2302
    %v2304 = vand.u32 %v1603, 4294901760
    %v2305 = vsub.f32 %v1603, %v2304
    %2306 = vmatprep.subr.mxu0 %v2305
    %v2307 = vand.u32 %v1602, 4294901760
    %v2308 = vsub.f32 %v1602, %v2307
    %2309 = vmatpush1.msra.mxu0 %v2308
    %v2310 = vand.u32 %v1605, 4294901760
    %v2311 = vsub.f32 %v1605, %v2310
    %2312 = vmatprep.subr.mxu0 %v2311
    %v2313 = vand.u32 %v1604, 4294901760
    %v2314 = vsub.f32 %v1604, %v2313
    %2315 = vmatpush1.msra.mxu0 %v2314
    %v2316 = vand.u32 %v1607, 4294901760
    %v2317 = vsub.f32 %v1607, %v2316
    %2318 = vmatprep.subr.mxu0 %v2317
    %v2319 = vand.u32 %v1606, 4294901760
    %v2320 = vsub.f32 %v1606, %v2319
    %2321 = vmatpush1.msra.mxu0 %v2320
    %v2322 = vand.u32 %v1609, 4294901760
    %v2323 = vsub.f32 %v1609, %v2322
    %2324 = vmatprep.subr.mxu0 %v2323
    %v2325 = vand.u32 %v1608, 4294901760
    %v2326 = vsub.f32 %v1608, %v2325
    %2327 = vmatpush1.msra.mxu0 %v2326
    %v2328 = vand.u32 %v1611, 4294901760
    %v2329 = vsub.f32 %v1611, %v2328
    %2330 = vmatprep.subr.mxu0 %v2329
    %v2331 = vand.u32 %v1610, 4294901760
    %v2332 = vsub.f32 %v1610, %v2331
    %2333 = vmatpush1.msra.mxu0 %v2332
    %v2334 = vand.u32 %v1613, 4294901760
    %v2335 = vsub.f32 %v1613, %v2334
    %2336 = vmatprep.subr.mxu0 %v2335
    %v2337 = vand.u32 %v1612, 4294901760
    %v2338 = vsub.f32 %v1612, %v2337
    %2339 = vmatpush1.msra.mxu0 %v2338
    %v2340 = vand.u32 %v1615, 4294901760
    %v2341 = vsub.f32 %v1615, %v2340
    %2342 = vmatprep.subr.mxu0 %v2341
    %v2343 = vand.u32 %v1614, 4294901760
    %v2344 = vsub.f32 %v1614, %v2343
    %2345 = vmatpush1.msra.mxu0 %v2344
    %v2346 = vand.u32 %v203, 4294901760
    %v2347 = vsub.f32 %v203, %v2346
    %2348 = vmatprep.mubr.f32.mxu0 %v2347
    %v2349 = vand.u32 %v202, 4294901760
    %v2350 = vsub.f32 %v202, %v2349
    %2351 = vmatmul.mubr.f32.gmra.mrb[0].mxu0 %v2350
    %v2352 = vpop.f32.mrb[0].mxu0
    %v2353 = vadd.f32 %v2150, %v2352
    %v2354 = vpop.f32.mrb[0].mxu0
    %v2355 = vadd.f32 %v2152, %v2354
    %2356 = vdwg.mxu0
    %v2357 = vand.u32 %v1553, 4294901760
    %2358 = vmatprep.subr.mxu0 %v2357
    %v2359 = vand.u32 %v1552, 4294901760
    %2360 = vmatpush1.msra.mxu0 %v2359
    %v2361 = vand.u32 %v1555, 4294901760
    %2362 = vmatprep.subr.mxu0 %v2361
    %v2363 = vand.u32 %v1554, 4294901760
    %2364 = vmatpush1.msra.mxu0 %v2363
    %v2365 = vand.u32 %v1557, 4294901760
    %2366 = vmatprep.subr.mxu0 %v2365
    %v2367 = vand.u32 %v1556, 4294901760
    %2368 = vmatpush1.msra.mxu0 %v2367
    %v2369 = vand.u32 %v1559, 4294901760
    %2370 = vmatprep.subr.mxu0 %v2369
    %v2371 = vand.u32 %v1558, 4294901760
    %2372 = vmatpush1.msra.mxu0 %v2371
    %v2373 = vand.u32 %v1561, 4294901760
    %2374 = vmatprep.subr.mxu0 %v2373
    %v2375 = vand.u32 %v1560, 4294901760
    %2376 = vmatpush1.msra.mxu0 %v2375
    %v2377 = vand.u32 %v1563, 4294901760
    %2378 = vmatprep.subr.mxu0 %v2377
    %v2379 = vand.u32 %v1562, 4294901760
    %2380 = vmatpush1.msra.mxu0 %v2379
    %v2381 = vand.u32 %v1565, 4294901760
    %2382 = vmatprep.subr.mxu0 %v2381
    %v2383 = vand.u32 %v1564, 4294901760
    %2384 = vmatpush1.msra.mxu0 %v2383
    %v2385 = vand.u32 %v1567, 4294901760
    %2386 = vmatprep.subr.mxu0 %v2385
    %v2387 = vand.u32 %v1566, 4294901760
    %2388 = vmatpush1.msra.mxu0 %v2387
    %v2389 = vand.u32 %v1569, 4294901760
    %2390 = vmatprep.subr.mxu0 %v2389
    %v2391 = vand.u32 %v1568, 4294901760
    %2392 = vmatpush1.msra.mxu0 %v2391
    %v2393 = vand.u32 %v1571, 4294901760
    %2394 = vmatprep.subr.mxu0 %v2393
    %v2395 = vand.u32 %v1570, 4294901760
    %2396 = vmatpush1.msra.mxu0 %v2395
    %v2397 = vand.u32 %v1573, 4294901760
    %2398 = vmatprep.subr.mxu0 %v2397
    %v2399 = vand.u32 %v1572, 4294901760
    %2400 = vmatpush1.msra.mxu0 %v2399
    %v2401 = vand.u32 %v1575, 4294901760
    %2402 = vmatprep.subr.mxu0 %v2401
    %v2403 = vand.u32 %v1574, 4294901760
    %2404 = vmatpush1.msra.mxu0 %v2403
    %v2405 = vand.u32 %v1577, 4294901760
    %2406 = vmatprep.subr.mxu0 %v2405
    %v2407 = vand.u32 %v1576, 4294901760
    %2408 = vmatpush1.msra.mxu0 %v2407
    %v2409 = vand.u32 %v1579, 4294901760
    %2410 = vmatprep.subr.mxu0 %v2409
    %v2411 = vand.u32 %v1578, 4294901760
    %2412 = vmatpush1.msra.mxu0 %v2411
    %v2413 = vand.u32 %v1581, 4294901760
    %2414 = vmatprep.subr.mxu0 %v2413
    %v2415 = vand.u32 %v1580, 4294901760
    %2416 = vmatpush1.msra.mxu0 %v2415
    %v2417 = vand.u32 %v1583, 4294901760
    %2418 = vmatprep.subr.mxu0 %v2417
    %v2419 = vand.u32 %v1582, 4294901760
    %2420 = vmatpush1.msra.mxu0 %v2419
    %v2421 = vand.u32 %v1585, 4294901760
    %2422 = vmatprep.subr.mxu0 %v2421
    %v2423 = vand.u32 %v1584, 4294901760
    %2424 = vmatpush1.msra.mxu0 %v2423
    %v2425 = vand.u32 %v1587, 4294901760
    %2426 = vmatprep.subr.mxu0 %v2425
    %v2427 = vand.u32 %v1586, 4294901760
    %2428 = vmatpush1.msra.mxu0 %v2427
    %v2429 = vand.u32 %v1589, 4294901760
    %2430 = vmatprep.subr.mxu0 %v2429
    %v2431 = vand.u32 %v1588, 4294901760
    %2432 = vmatpush1.msra.mxu0 %v2431
    %v2433 = vand.u32 %v1591, 4294901760
    %2434 = vmatprep.subr.mxu0 %v2433
    %v2435 = vand.u32 %v1590, 4294901760
    %2436 = vmatpush1.msra.mxu0 %v2435
    %v2437 = vand.u32 %v1593, 4294901760
    %2438 = vmatprep.subr.mxu0 %v2437
    %v2439 = vand.u32 %v1592, 4294901760
    %2440 = vmatpush1.msra.mxu0 %v2439
    %v2441 = vand.u32 %v1595, 4294901760
    %2442 = vmatprep.subr.mxu0 %v2441
    %v2443 = vand.u32 %v1594, 4294901760
    %2444 = vmatpush1.msra.mxu0 %v2443
    %v2445 = vand.u32 %v1597, 4294901760
    %2446 = vmatprep.subr.mxu0 %v2445
    %v2447 = vand.u32 %v1596, 4294901760
    %2448 = vmatpush1.msra.mxu0 %v2447
    %v2449 = vand.u32 %v1599, 4294901760
    %2450 = vmatprep.subr.mxu0 %v2449
    %v2451 = vand.u32 %v1598, 4294901760
    %2452 = vmatpush1.msra.mxu0 %v2451
    %v2453 = vand.u32 %v1601, 4294901760
    %2454 = vmatprep.subr.mxu0 %v2453
    %v2455 = vand.u32 %v1600, 4294901760
    %2456 = vmatpush1.msra.mxu0 %v2455
    %v2457 = vand.u32 %v1603, 4294901760
    %2458 = vmatprep.subr.mxu0 %v2457
    %v2459 = vand.u32 %v1602, 4294901760
    %2460 = vmatpush1.msra.mxu0 %v2459
    %v2461 = vand.u32 %v1605, 4294901760
    %2462 = vmatprep.subr.mxu0 %v2461
    %v2463 = vand.u32 %v1604, 4294901760
    %2464 = vmatpush1.msra.mxu0 %v2463
    %v2465 = vand.u32 %v1607, 4294901760
    %2466 = vmatprep.subr.mxu0 %v2465
    %v2467 = vand.u32 %v1606, 4294901760
    %2468 = vmatpush1.msra.mxu0 %v2467
    %v2469 = vand.u32 %v1609, 4294901760
    %2470 = vmatprep.subr.mxu0 %v2469
    %v2471 = vand.u32 %v1608, 4294901760
    %2472 = vmatpush1.msra.mxu0 %v2471
    %v2473 = vand.u32 %v1611, 4294901760
    %2474 = vmatprep.subr.mxu0 %v2473
    %v2475 = vand.u32 %v1610, 4294901760
    %2476 = vmatpush1.msra.mxu0 %v2475
    %v2477 = vand.u32 %v1613, 4294901760
    %2478 = vmatprep.subr.mxu0 %v2477
    %v2479 = vand.u32 %v1612, 4294901760
    %2480 = vmatpush1.msra.mxu0 %v2479
    %v2481 = vand.u32 %v1615, 4294901760
    %2482 = vmatprep.subr.mxu0 %v2481
    %v2483 = vand.u32 %v1614, 4294901760
    %2484 = vmatpush1.msra.mxu0 %v2483
    %v2485 = vand.u32 %v203, 4294901760
    %v2486 = vsub.f32 %v203, %v2485
    %v2487 = vand.u32 %v2486, 4294901760
    %2488 = vmatprep.mubr.f32.mxu0 %v2487
    %v2489 = vand.u32 %v202, 4294901760
    %v2490 = vsub.f32 %v202, %v2489
    %v2491 = vand.u32 %v2490, 4294901760
    %2492 = vmatmul.mubr.f32.gmra.mrb[0].mxu0 %v2491
    %v2493 = vpop.f32.mrb[0].mxu0
    %v2494 = vadd.f32 %v2353, %v2493
    %v2495 = vpop.f32.mrb[0].mxu0
    %v2496 = vadd.f32 %v2355, %v2495
    %2497 = vdwg.mxu0
    %v2498 = vand.u32 %v1553, 4294901760
    %v2499 = vsub.f32 %v1553, %v2498
    %v2500 = vand.u32 %v2499, 4294901760
    %2501 = vmatprep.subr.mxu0 %v2500
    %v2502 = vand.u32 %v1552, 4294901760
    %v2503 = vsub.f32 %v1552, %v2502
    %v2504 = vand.u32 %v2503, 4294901760
    %2505 = vmatpush1.msra.mxu0 %v2504
    %v2506 = vand.u32 %v1555, 4294901760
    %v2507 = vsub.f32 %v1555, %v2506
    %v2508 = vand.u32 %v2507, 4294901760
    %2509 = vmatprep.subr.mxu0 %v2508
    %v2510 = vand.u32 %v1554, 4294901760
    %v2511 = vsub.f32 %v1554, %v2510
    %v2512 = vand.u32 %v2511, 4294901760
    %2513 = vmatpush1.msra.mxu0 %v2512
    %v2514 = vand.u32 %v1557, 4294901760
    %v2515 = vsub.f32 %v1557, %v2514
    %v2516 = vand.u32 %v2515, 4294901760
    %2517 = vmatprep.subr.mxu0 %v2516
    %v2518 = vand.u32 %v1556, 4294901760
    %v2519 = vsub.f32 %v1556, %v2518
    %v2520 = vand.u32 %v2519, 4294901760
    %2521 = vmatpush1.msra.mxu0 %v2520
    %v2522 = vand.u32 %v1559, 4294901760
    %v2523 = vsub.f32 %v1559, %v2522
    %v2524 = vand.u32 %v2523, 4294901760
    %2525 = vmatprep.subr.mxu0 %v2524
    %v2526 = vand.u32 %v1558, 4294901760
    %v2527 = vsub.f32 %v1558, %v2526
    %v2528 = vand.u32 %v2527, 4294901760
    %2529 = vmatpush1.msra.mxu0 %v2528
    %v2530 = vand.u32 %v1561, 4294901760
    %v2531 = vsub.f32 %v1561, %v2530
    %v2532 = vand.u32 %v2531, 4294901760
    %2533 = vmatprep.subr.mxu0 %v2532
    %v2534 = vand.u32 %v1560, 4294901760
    %v2535 = vsub.f32 %v1560, %v2534
    %v2536 = vand.u32 %v2535, 4294901760
    %2537 = vmatpush1.msra.mxu0 %v2536
    %v2538 = vand.u32 %v1563, 4294901760
    %v2539 = vsub.f32 %v1563, %v2538
    %v2540 = vand.u32 %v2539, 4294901760
    %2541 = vmatprep.subr.mxu0 %v2540
    %v2542 = vand.u32 %v1562, 4294901760
    %v2543 = vsub.f32 %v1562, %v2542
    %v2544 = vand.u32 %v2543, 4294901760
    %2545 = vmatpush1.msra.mxu0 %v2544
    %v2546 = vand.u32 %v1565, 4294901760
    %v2547 = vsub.f32 %v1565, %v2546
    %v2548 = vand.u32 %v2547, 4294901760
    %2549 = vmatprep.subr.mxu0 %v2548
    %v2550 = vand.u32 %v1564, 4294901760
    %v2551 = vsub.f32 %v1564, %v2550
    %v2552 = vand.u32 %v2551, 4294901760
    %2553 = vmatpush1.msra.mxu0 %v2552
    %v2554 = vand.u32 %v1567, 4294901760
    %v2555 = vsub.f32 %v1567, %v2554
    %v2556 = vand.u32 %v2555, 4294901760
    %2557 = vmatprep.subr.mxu0 %v2556
    %v2558 = vand.u32 %v1566, 4294901760
    %v2559 = vsub.f32 %v1566, %v2558
    %v2560 = vand.u32 %v2559, 4294901760
    %2561 = vmatpush1.msra.mxu0 %v2560
    %v2562 = vand.u32 %v1569, 4294901760
    %v2563 = vsub.f32 %v1569, %v2562
    %v2564 = vand.u32 %v2563, 4294901760
    %2565 = vmatprep.subr.mxu0 %v2564
    %v2566 = vand.u32 %v1568, 4294901760
    %v2567 = vsub.f32 %v1568, %v2566
    %v2568 = vand.u32 %v2567, 4294901760
    %2569 = vmatpush1.msra.mxu0 %v2568
    %v2570 = vand.u32 %v1571, 4294901760
    %v2571 = vsub.f32 %v1571, %v2570
    %v2572 = vand.u32 %v2571, 4294901760
    %2573 = vmatprep.subr.mxu0 %v2572
    %v2574 = vand.u32 %v1570, 4294901760
    %v2575 = vsub.f32 %v1570, %v2574
    %v2576 = vand.u32 %v2575, 4294901760
    %2577 = vmatpush1.msra.mxu0 %v2576
    %v2578 = vand.u32 %v1573, 4294901760
    %v2579 = vsub.f32 %v1573, %v2578
    %v2580 = vand.u32 %v2579, 4294901760
    %2581 = vmatprep.subr.mxu0 %v2580
    %v2582 = vand.u32 %v1572, 4294901760
    %v2583 = vsub.f32 %v1572, %v2582
    %v2584 = vand.u32 %v2583, 4294901760
    %2585 = vmatpush1.msra.mxu0 %v2584
    %v2586 = vand.u32 %v1575, 4294901760
    %v2587 = vsub.f32 %v1575, %v2586
    %v2588 = vand.u32 %v2587, 4294901760
    %2589 = vmatprep.subr.mxu0 %v2588
    %v2590 = vand.u32 %v1574, 4294901760
    %v2591 = vsub.f32 %v1574, %v2590
    %v2592 = vand.u32 %v2591, 4294901760
    %2593 = vmatpush1.msra.mxu0 %v2592
    %v2594 = vand.u32 %v1577, 4294901760
    %v2595 = vsub.f32 %v1577, %v2594
    %v2596 = vand.u32 %v2595, 4294901760
    %2597 = vmatprep.subr.mxu0 %v2596
    %v2598 = vand.u32 %v1576, 4294901760
    %v2599 = vsub.f32 %v1576, %v2598
    %v2600 = vand.u32 %v2599, 4294901760
    %2601 = vmatpush1.msra.mxu0 %v2600
    %v2602 = vand.u32 %v1579, 4294901760
    %v2603 = vsub.f32 %v1579, %v2602
    %v2604 = vand.u32 %v2603, 4294901760
    %2605 = vmatprep.subr.mxu0 %v2604
    %v2606 = vand.u32 %v1578, 4294901760
    %v2607 = vsub.f32 %v1578, %v2606
    %v2608 = vand.u32 %v2607, 4294901760
    %2609 = vmatpush1.msra.mxu0 %v2608
    %v2610 = vand.u32 %v1581, 4294901760
    %v2611 = vsub.f32 %v1581, %v2610
    %v2612 = vand.u32 %v2611, 4294901760
    %2613 = vmatprep.subr.mxu0 %v2612
    %v2614 = vand.u32 %v1580, 4294901760
    %v2615 = vsub.f32 %v1580, %v2614
    %v2616 = vand.u32 %v2615, 4294901760
    %2617 = vmatpush1.msra.mxu0 %v2616
    %v2618 = vand.u32 %v1583, 4294901760
    %v2619 = vsub.f32 %v1583, %v2618
    %v2620 = vand.u32 %v2619, 4294901760
    %2621 = vmatprep.subr.mxu0 %v2620
    %v2622 = vand.u32 %v1582, 4294901760
    %v2623 = vsub.f32 %v1582, %v2622
    %v2624 = vand.u32 %v2623, 4294901760
    %2625 = vmatpush1.msra.mxu0 %v2624
    %v2626 = vand.u32 %v1585, 4294901760
    %v2627 = vsub.f32 %v1585, %v2626
    %v2628 = vand.u32 %v2627, 4294901760
    %2629 = vmatprep.subr.mxu0 %v2628
    %v2630 = vand.u32 %v1584, 4294901760
    %v2631 = vsub.f32 %v1584, %v2630
    %v2632 = vand.u32 %v2631, 4294901760
    %2633 = vmatpush1.msra.mxu0 %v2632
    %v2634 = vand.u32 %v1587, 4294901760
    %v2635 = vsub.f32 %v1587, %v2634
    %v2636 = vand.u32 %v2635, 4294901760
    %2637 = vmatprep.subr.mxu0 %v2636
    %v2638 = vand.u32 %v1586, 4294901760
    %v2639 = vsub.f32 %v1586, %v2638
    %v2640 = vand.u32 %v2639, 4294901760
    %2641 = vmatpush1.msra.mxu0 %v2640
    %v2642 = vand.u32 %v1589, 4294901760
    %v2643 = vsub.f32 %v1589, %v2642
    %v2644 = vand.u32 %v2643, 4294901760
    %2645 = vmatprep.subr.mxu0 %v2644
    %v2646 = vand.u32 %v1588, 4294901760
    %v2647 = vsub.f32 %v1588, %v2646
    %v2648 = vand.u32 %v2647, 4294901760
    %2649 = vmatpush1.msra.mxu0 %v2648
    %v2650 = vand.u32 %v1591, 4294901760
    %v2651 = vsub.f32 %v1591, %v2650
    %v2652 = vand.u32 %v2651, 4294901760
    %2653 = vmatprep.subr.mxu0 %v2652
    %v2654 = vand.u32 %v1590, 4294901760
    %v2655 = vsub.f32 %v1590, %v2654
    %v2656 = vand.u32 %v2655, 4294901760
    %2657 = vmatpush1.msra.mxu0 %v2656
    %v2658 = vand.u32 %v1593, 4294901760
    %v2659 = vsub.f32 %v1593, %v2658
    %v2660 = vand.u32 %v2659, 4294901760
    %2661 = vmatprep.subr.mxu0 %v2660
    %v2662 = vand.u32 %v1592, 4294901760
    %v2663 = vsub.f32 %v1592, %v2662
    %v2664 = vand.u32 %v2663, 4294901760
    %2665 = vmatpush1.msra.mxu0 %v2664
    %v2666 = vand.u32 %v1595, 4294901760
    %v2667 = vsub.f32 %v1595, %v2666
    %v2668 = vand.u32 %v2667, 4294901760
    %2669 = vmatprep.subr.mxu0 %v2668
    %v2670 = vand.u32 %v1594, 4294901760
    %v2671 = vsub.f32 %v1594, %v2670
    %v2672 = vand.u32 %v2671, 4294901760
    %2673 = vmatpush1.msra.mxu0 %v2672
    %v2674 = vand.u32 %v1597, 4294901760
    %v2675 = vsub.f32 %v1597, %v2674
    %v2676 = vand.u32 %v2675, 4294901760
    %2677 = vmatprep.subr.mxu0 %v2676
    %v2678 = vand.u32 %v1596, 4294901760
    %v2679 = vsub.f32 %v1596, %v2678
    %v2680 = vand.u32 %v2679, 4294901760
    %2681 = vmatpush1.msra.mxu0 %v2680
    %v2682 = vand.u32 %v1599, 4294901760
    %v2683 = vsub.f32 %v1599, %v2682
    %v2684 = vand.u32 %v2683, 4294901760
    %2685 = vmatprep.subr.mxu0 %v2684
    %v2686 = vand.u32 %v1598, 4294901760
    %v2687 = vsub.f32 %v1598, %v2686
    %v2688 = vand.u32 %v2687, 4294901760
    %2689 = vmatpush1.msra.mxu0 %v2688
    %v2690 = vand.u32 %v1601, 4294901760
    %v2691 = vsub.f32 %v1601, %v2690
    %v2692 = vand.u32 %v2691, 4294901760
    %2693 = vmatprep.subr.mxu0 %v2692
    %v2694 = vand.u32 %v1600, 4294901760
    %v2695 = vsub.f32 %v1600, %v2694
    %v2696 = vand.u32 %v2695, 4294901760
    %2697 = vmatpush1.msra.mxu0 %v2696
    %v2698 = vand.u32 %v1603, 4294901760
    %v2699 = vsub.f32 %v1603, %v2698
    %v2700 = vand.u32 %v2699, 4294901760
    %2701 = vmatprep.subr.mxu0 %v2700
    %v2702 = vand.u32 %v1602, 4294901760
    %v2703 = vsub.f32 %v1602, %v2702
    %v2704 = vand.u32 %v2703, 4294901760
    %2705 = vmatpush1.msra.mxu0 %v2704
    %v2706 = vand.u32 %v1605, 4294901760
    %v2707 = vsub.f32 %v1605, %v2706
    %v2708 = vand.u32 %v2707, 4294901760
    %2709 = vmatprep.subr.mxu0 %v2708
    %v2710 = vand.u32 %v1604, 4294901760
    %v2711 = vsub.f32 %v1604, %v2710
    %v2712 = vand.u32 %v2711, 4294901760
    %2713 = vmatpush1.msra.mxu0 %v2712
    %v2714 = vand.u32 %v1607, 4294901760
    %v2715 = vsub.f32 %v1607, %v2714
    %v2716 = vand.u32 %v2715, 4294901760
    %2717 = vmatprep.subr.mxu0 %v2716
    %v2718 = vand.u32 %v1606, 4294901760
    %v2719 = vsub.f32 %v1606, %v2718
    %v2720 = vand.u32 %v2719, 4294901760
    %2721 = vmatpush1.msra.mxu0 %v2720
    %v2722 = vand.u32 %v1609, 4294901760
    %v2723 = vsub.f32 %v1609, %v2722
    %v2724 = vand.u32 %v2723, 4294901760
    %2725 = vmatprep.subr.mxu0 %v2724
    %v2726 = vand.u32 %v1608, 4294901760
    %v2727 = vsub.f32 %v1608, %v2726
    %v2728 = vand.u32 %v2727, 4294901760
    %2729 = vmatpush1.msra.mxu0 %v2728
    %v2730 = vand.u32 %v1611, 4294901760
    %v2731 = vsub.f32 %v1611, %v2730
    %v2732 = vand.u32 %v2731, 4294901760
    %2733 = vmatprep.subr.mxu0 %v2732
    %v2734 = vand.u32 %v1610, 4294901760
    %v2735 = vsub.f32 %v1610, %v2734
    %v2736 = vand.u32 %v2735, 4294901760
    %2737 = vmatpush1.msra.mxu0 %v2736
    %v2738 = vand.u32 %v1613, 4294901760
    %v2739 = vsub.f32 %v1613, %v2738
    %v2740 = vand.u32 %v2739, 4294901760
    %2741 = vmatprep.subr.mxu0 %v2740
    %v2742 = vand.u32 %v1612, 4294901760
    %v2743 = vsub.f32 %v1612, %v2742
    %v2744 = vand.u32 %v2743, 4294901760
    %2745 = vmatpush1.msra.mxu0 %v2744
    %v2746 = vand.u32 %v1615, 4294901760
    %v2747 = vsub.f32 %v1615, %v2746
    %v2748 = vand.u32 %v2747, 4294901760
    %2749 = vmatprep.subr.mxu0 %v2748
    %v2750 = vand.u32 %v1614, 4294901760
    %v2751 = vsub.f32 %v1614, %v2750
    %v2752 = vand.u32 %v2751, 4294901760
    %2753 = vmatpush1.msra.mxu0 %v2752
    %v2754 = vand.u32 %v203, 4294901760
    %2755 = vmatprep.mubr.f32.mxu0 %v2754
    %v2756 = vand.u32 %v202, 4294901760
    %2757 = vmatmul.mubr.f32.gmra.mrb[0].mxu0 %v2756
    %v2758 = vpop.f32.mrb[0].mxu0
    %v2759 = vadd.f32 %v2494, %v2758
    %v2760 = vpop.f32.mrb[0].mxu0
    %v2761 = vadd.f32 %v2496, %v2760
    %2762 = vdwg.mxu0
    %v2763 = vand.u32 %v1553, 4294901760
    %2764 = vmatprep.subr.mxu0 %v2763
    %v2765 = vand.u32 %v1552, 4294901760
    %2766 = vmatpush1.msra.mxu0 %v2765
    %v2767 = vand.u32 %v1555, 4294901760
    %2768 = vmatprep.subr.mxu0 %v2767
    %v2769 = vand.u32 %v1554, 4294901760
    %2770 = vmatpush1.msra.mxu0 %v2769
    %v2771 = vand.u32 %v1557, 4294901760
    %2772 = vmatprep.subr.mxu0 %v2771
    %v2773 = vand.u32 %v1556, 4294901760
    %2774 = vmatpush1.msra.mxu0 %v2773
    %v2775 = vand.u32 %v1559, 4294901760
    %2776 = vmatprep.subr.mxu0 %v2775
    %v2777 = vand.u32 %v1558, 4294901760
    %2778 = vmatpush1.msra.mxu0 %v2777
    %v2779 = vand.u32 %v1561, 4294901760
    %2780 = vmatprep.subr.mxu0 %v2779
    %v2781 = vand.u32 %v1560, 4294901760
    %2782 = vmatpush1.msra.mxu0 %v2781
    %v2783 = vand.u32 %v1563, 4294901760
    %2784 = vmatprep.subr.mxu0 %v2783
    %v2785 = vand.u32 %v1562, 4294901760
    %2786 = vmatpush1.msra.mxu0 %v2785
    %v2787 = vand.u32 %v1565, 4294901760
    %2788 = vmatprep.subr.mxu0 %v2787
    %v2789 = vand.u32 %v1564, 4294901760
    %2790 = vmatpush1.msra.mxu0 %v2789
    %v2791 = vand.u32 %v1567, 4294901760
    %2792 = vmatprep.subr.mxu0 %v2791
    %v2793 = vand.u32 %v1566, 4294901760
    %2794 = vmatpush1.msra.mxu0 %v2793
    %v2795 = vand.u32 %v1569, 4294901760
    %2796 = vmatprep.subr.mxu0 %v2795
    %v2797 = vand.u32 %v1568, 4294901760
    %2798 = vmatpush1.msra.mxu0 %v2797
    %v2799 = vand.u32 %v1571, 4294901760
    %2800 = vmatprep.subr.mxu0 %v2799
    %v2801 = vand.u32 %v1570, 4294901760
    %2802 = vmatpush1.msra.mxu0 %v2801
    %v2803 = vand.u32 %v1573, 4294901760
    %2804 = vmatprep.subr.mxu0 %v2803
    %v2805 = vand.u32 %v1572, 4294901760
    %2806 = vmatpush1.msra.mxu0 %v2805
    %v2807 = vand.u32 %v1575, 4294901760
    %2808 = vmatprep.subr.mxu0 %v2807
    %v2809 = vand.u32 %v1574, 4294901760
    %2810 = vmatpush1.msra.mxu0 %v2809
    %v2811 = vand.u32 %v1577, 4294901760
    %2812 = vmatprep.subr.mxu0 %v2811
    %v2813 = vand.u32 %v1576, 4294901760
    %2814 = vmatpush1.msra.mxu0 %v2813
    %v2815 = vand.u32 %v1579, 4294901760
    %2816 = vmatprep.subr.mxu0 %v2815
    %v2817 = vand.u32 %v1578, 4294901760
    %2818 = vmatpush1.msra.mxu0 %v2817
    %v2819 = vand.u32 %v1581, 4294901760
    %2820 = vmatprep.subr.mxu0 %v2819
    %v2821 = vand.u32 %v1580, 4294901760
    %2822 = vmatpush1.msra.mxu0 %v2821
    %v2823 = vand.u32 %v1583, 4294901760
    %2824 = vmatprep.subr.mxu0 %v2823
    %v2825 = vand.u32 %v1582, 4294901760
    %2826 = vmatpush1.msra.mxu0 %v2825
    %v2827 = vand.u32 %v1585, 4294901760
    %2828 = vmatprep.subr.mxu0 %v2827
    %v2829 = vand.u32 %v1584, 4294901760
    %2830 = vmatpush1.msra.mxu0 %v2829
    %v2831 = vand.u32 %v1587, 4294901760
    %2832 = vmatprep.subr.mxu0 %v2831
    %v2833 = vand.u32 %v1586, 4294901760
    %2834 = vmatpush1.msra.mxu0 %v2833
    %v2835 = vand.u32 %v1589, 4294901760
    %2836 = vmatprep.subr.mxu0 %v2835
    %v2837 = vand.u32 %v1588, 4294901760
    %2838 = vmatpush1.msra.mxu0 %v2837
    %v2839 = vand.u32 %v1591, 4294901760
    %2840 = vmatprep.subr.mxu0 %v2839
    %v2841 = vand.u32 %v1590, 4294901760
    %2842 = vmatpush1.msra.mxu0 %v2841
    %v2843 = vand.u32 %v1593, 4294901760
    %2844 = vmatprep.subr.mxu0 %v2843
    %v2845 = vand.u32 %v1592, 4294901760
    %2846 = vmatpush1.msra.mxu0 %v2845
    %v2847 = vand.u32 %v1595, 4294901760
    %2848 = vmatprep.subr.mxu0 %v2847
    %v2849 = vand.u32 %v1594, 4294901760
    %2850 = vmatpush1.msra.mxu0 %v2849
    %v2851 = vand.u32 %v1597, 4294901760
    %2852 = vmatprep.subr.mxu0 %v2851
    %v2853 = vand.u32 %v1596, 4294901760
    %2854 = vmatpush1.msra.mxu0 %v2853
    %v2855 = vand.u32 %v1599, 4294901760
    %2856 = vmatprep.subr.mxu0 %v2855
    %v2857 = vand.u32 %v1598, 4294901760
    %2858 = vmatpush1.msra.mxu0 %v2857
    %v2859 = vand.u32 %v1601, 4294901760
    %2860 = vmatprep.subr.mxu0 %v2859
    %v2861 = vand.u32 %v1600, 4294901760
    %2862 = vmatpush1.msra.mxu0 %v2861
    %v2863 = vand.u32 %v1603, 4294901760
    %2864 = vmatprep.subr.mxu0 %v2863
    %v2865 = vand.u32 %v1602, 4294901760
    %2866 = vmatpush1.msra.mxu0 %v2865
    %v2867 = vand.u32 %v1605, 4294901760
    %2868 = vmatprep.subr.mxu0 %v2867
    %v2869 = vand.u32 %v1604, 4294901760
    %2870 = vmatpush1.msra.mxu0 %v2869
    %v2871 = vand.u32 %v1607, 4294901760
    %2872 = vmatprep.subr.mxu0 %v2871
    %v2873 = vand.u32 %v1606, 4294901760
    %2874 = vmatpush1.msra.mxu0 %v2873
    %v2875 = vand.u32 %v1609, 4294901760
    %2876 = vmatprep.subr.mxu0 %v2875
    %v2877 = vand.u32 %v1608, 4294901760
    %2878 = vmatpush1.msra.mxu0 %v2877
    %v2879 = vand.u32 %v1611, 4294901760
    %2880 = vmatprep.subr.mxu0 %v2879
    %v2881 = vand.u32 %v1610, 4294901760
    %2882 = vmatpush1.msra.mxu0 %v2881
    %v2883 = vand.u32 %v1613, 4294901760
    %2884 = vmatprep.subr.mxu0 %v2883
    %v2885 = vand.u32 %v1612, 4294901760
    %2886 = vmatpush1.msra.mxu0 %v2885
    %v2887 = vand.u32 %v1615, 4294901760
    %2888 = vmatprep.subr.mxu0 %v2887
    %v2889 = vand.u32 %v1614, 4294901760
    %2890 = vmatpush1.msra.mxu0 %v2889
    %v2891 = vand.u32 %v203, 4294901760
    %2892 = vmatprep.mubr.f32.mxu0 %v2891
    %v2893 = vand.u32 %v202, 4294901760
    %2894 = vmatmul.mubr.f32.gmra.mrb[0].mxu0 %v2893
    %v2895 = vpop.f32.mrb[0].mxu0
    %v2896 = vadd.f32 %v2759, %v2895
    %v2897 = vpop.f32.mrb[0].mxu0
    %v2898 = vadd.f32 %v2761, %v2897
    %2899 = vdwg.mxu0
    %s2900 = sld [smem:[#allocation7 + $0x8]]
    %v2901 = vstv %s2900
    %v2902 = vmul.f32 %v1548, %v2901
    %v2903 = vmul.f32 %v1550, %v2901
    %s2904 = sld [smem:[#allocation7 + $0x9]]
    %v2905 = vstv %s2904
    %v2906 = vmul.f32 %v2896, %v2905
    %v2907 = vmul.f32 %v2898, %v2905
    %v2908 = vadd.f32 %v2902, %v2906
    %v2909 = vadd.f32 %v2903, %v2907
    %s2910 = sld [smem:[#allocation7 + $0xa]]
    %v2911 = vstv %s2910
    %v2912 = vmul.f32 %v1548, %v2911
    %v2913 = vmul.f32 %v1550, %v2911
    %v2916 = vrot.slane %v2912, 2
    %v2917 = vrot.slane %v2913, 2
    %v2920 = vadd.f32 %v2908, %v2916
    %v2921 = vadd.f32 %v2909, %v2917
    %s2922 = sld [smem:[#allocation7 + $0xb]]
    %v2923 = vstv %s2922
    %v2924 = vmul.f32 %v2896, %v2923
    %v2925 = vmul.f32 %v2898, %v2923
    %v2928 = vrot.slane %v2924, 2
    %v2929 = vrot.slane %v2925, 2
    %v2932 = vadd.f32 %v2920, %v2928
    %v2933 = vadd.f32 %v2921, %v2929
    %s2934 = sld [smem:[#allocation8 + $0x2]]
    %v2935 = vstv %s2934
    %v2936 = vadd.f32 %v2932, %v2935
    %v2937 = vadd.f32 %v2933, %v2935
    %v2938 = vmax.f32 %v2936, 0.0
    %v2939 = vmax.f32 %v2937, 0.0
    %s2940 = sld [smem:[#allocation7 + $0xc]]
    %v2941 = vstv %s2940
    %v2942 = vmul.f32 %v1548, %v2941
    %v2943 = vmul.f32 %v1550, %v2941
    %s2944 = sld [smem:[#allocation7 + $0xd]]
    %v2945 = vstv %s2944
    %v2946 = vmul.f32 %v2896, %v2945
    %v2947 = vmul.f32 %v2898, %v2945
    %v2948 = vadd.f32 %v2942, %v2946
    %v2949 = vadd.f32 %v2943, %v2947
    %s2950 = sld [smem:[#allocation7 + $0xe]]
    %v2951 = vstv %s2950
    %v2952 = vmul.f32 %v1548, %v2951
    %v2953 = vmul.f32 %v1550, %v2951
    %v2956 = vrot.slane %v2952, 2
    %v2957 = vrot.slane %v2953, 2
    %v2960 = vadd.f32 %v2948, %v2956
    %v2961 = vadd.f32 %v2949, %v2957
    %s2962 = sld [smem:[#allocation7 + $0xf]]
    %v2963 = vstv %s2962
    %v2964 = vmul.f32 %v2896, %v2963
    %v2965 = vmul.f32 %v2898, %v2963
    %v2968 = vrot.slane %v2964, 2
    %v2969 = vrot.slane %v2965, 2
    %v2972 = vadd.f32 %v2960, %v2968
    %v2973 = vadd.f32 %v2961, %v2969
    %s2974 = sld [smem:[#allocation8 + $0x3]]
    %v2975 = vstv %s2974
    %v2976 = vadd.f32 %v2972, %v2975
    %v2977 = vadd.f32 %v2973, %v2975
    %v2978 = vmax.f32 %v2976, 0.0
    %v2979 = vmax.f32 %v2977, 0.0
    %s2980 = sld [smem:[#allocation7 + $0x10]]
    %v2981 = vstv %s2980
    %v2982 = vmul.f32 %v1548, %v2981
    %v2983 = vmul.f32 %v1550, %v2981
    %s2984 = sld [smem:[#allocation7 + $0x11]]
    %v2985 = vstv %s2984
    %v2986 = vmul.f32 %v2896, %v2985
    %v2987 = vmul.f32 %v2898, %v2985
    %v2988 = vadd.f32 %v2982, %v2986
    %v2989 = vadd.f32 %v2983, %v2987
    %s2990 = sld [smem:[#allocation7 + $0x12]]
    %v2991 = vstv %s2990
    %v2992 = vmul.f32 %v1548, %v2991
    %v2993 = vmul.f32 %v1550, %v2991
    %v2996 = vrot.slane %v2992, 2
    %v2997 = vrot.slane %v2993, 2
    %v3000 = vadd.f32 %v2988, %v2996
    %v3001 = vadd.f32 %v2989, %v2997
    %s3002 = sld [smem:[#allocation7 + $0x13]]
    %v3003 = vstv %s3002
    %v3004 = vmul.f32 %v2896, %v3003
    %v3005 = vmul.f32 %v2898, %v3003
    %v3008 = vrot.slane %v3004, 2
    %v3009 = vrot.slane %v3005, 2
    %v3012 = vadd.f32 %v3000, %v3008
    %v3013 = vadd.f32 %v3001, %v3009
    %s3014 = sld [smem:[#allocation8 + $0x4]]
    %v3015 = vstv %s3014
    %v3016 = vadd.f32 %v3012, %v3015
    %v3017 = vadd.f32 %v3013, %v3015
    %v3018 = vmax.f32 %v3016, 0.0
    %v3019 = vmax.f32 %v3017, 0.0
    %s3020 = sld [smem:[#allocation7 + $0x14]]
    %v3021 = vstv %s3020
    %v3022 = vmul.f32 %v1548, %v3021
    %v3023 = vmul.f32 %v1550, %v3021
    %s3024 = sld [smem:[#allocation7 + $0x15]]
    %v3025 = vstv %s3024
    %v3026 = vmul.f32 %v2896, %v3025
    %v3027 = vmul.f32 %v2898, %v3025
    %v3028 = vadd.f32 %v3022, %v3026
    %v3029 = vadd.f32 %v3023, %v3027
    %s3030 = sld [smem:[#allocation7 + $0x16]]
    %v3031 = vstv %s3030
    %v3032 = vmul.f32 %v1548, %v3031
    %v3033 = vmul.f32 %v1550, %v3031
    %v3036 = vrot.slane %v3032, 2
    %v3037 = vrot.slane %v3033, 2
    %v3040 = vadd.f32 %v3028, %v3036
    %v3041 = vadd.f32 %v3029, %v3037
    %s3042 = sld [smem:[#allocation7 + $0x17]]
    %v3043 = vstv %s3042
    %v3044 = vmul.f32 %v2896, %v3043
    %v3045 = vmul.f32 %v2898, %v3043
    %v3048 = vrot.slane %v3044, 2
    %v3049 = vrot.slane %v3045, 2
    %v3052 = vadd.f32 %v3040, %v3048
    %v3053 = vadd.f32 %v3041, %v3049
    %s3054 = sld [smem:[#allocation8 + $0x5]]
    %v3055 = vstv %s3054
    %v3056 = vadd.f32 %v3052, %v3055
    %v3057 = vadd.f32 %v3053, %v3055
    %v3058 = vmax.f32 %v3056, 0.0
    %v3059 = vmax.f32 %v3057, 0.0
    %v3062 = vrot.slane %v3018, 6
    %v3063 = vrot.slane %v3019, 6
    %v3066 = vsel %vm198, %v2938, %v3062
    %v3067 = vsel %vm198, %v2939, %v3063
    %v3068 = vsel %vm201, %v3066, 0.0
    %v3069 = vsel %vm201, %v3067, 0.0
    %v3072 = vrot.slane %v3058, 6
    %v3073 = vrot.slane %v3059, 6
    %v3076 = vsel %vm198, %v2978, %v3072
    %v3077 = vsel %vm198, %v2979, %v3073
    %v3078 = vsel %vm201, %v3076, 0.0
    %v3079 = vsel %vm201, %v3077, 0.0
    %v3080 = vld [vmem:[%s4] sm:$0xff]
    %v3081 = vld [vmem:[%s4 + $0x8] sm:$0xff]
    %v3082 = vld [vmem:[%s4 + $0x10] sm:$0xff]
    %v3083 = vld [vmem:[%s4 + $0x18] sm:$0xff]
    %v3084 = vld [vmem:[%s4 + $0x20] sm:$0xff]
    %v3085 = vld [vmem:[%s4 + $0x28] sm:$0xff]
    %v3086 = vld [vmem:[%s4 + $0x30] sm:$0xff]
    %v3087 = vld [vmem:[%s4 + $0x38] sm:$0xff]
    %v3088 = vld [vmem:[%s4 + $0x40] sm:$0xff]
    %v3089 = vld [vmem:[%s4 + $0x48] sm:$0xff]
    %v3090 = vld [vmem:[%s4 + $0x50] sm:$0xff]
    %v3091 = vld [vmem:[%s4 + $0x58] sm:$0xff]
    %v3092 = vld [vmem:[%s4 + $0x60] sm:$0xff]
    %v3093 = vld [vmem:[%s4 + $0x68] sm:$0xff]
    %v3094 = vld [vmem:[%s4 + $0x70] sm:$0xff]
    %v3095 = vld [vmem:[%s4 + $0x78] sm:$0xff]
    %v3096 = vld [vmem:[%s4 + $0x80] sm:$0xff]
    %v3097 = vld [vmem:[%s4 + $0x88] sm:$0xff]
    %v3098 = vld [vmem:[%s4 + $0x90] sm:$0xff]
    %v3099 = vld [vmem:[%s4 + $0x98] sm:$0xff]
    %v3100 = vld [vmem:[%s4 + $0xa0] sm:$0xff]
    %v3101 = vld [vmem:[%s4 + $0xa8] sm:$0xff]
    %v3102 = vld [vmem:[%s4 + $0xb0] sm:$0xff]
    %v3103 = vld [vmem:[%s4 + $0xb8] sm:$0xff]
    %v3104 = vld [vmem:[%s4 + $0xc0] sm:$0xff]
    %v3105 = vld [vmem:[%s4 + $0xc8] sm:$0xff]
    %v3106 = vld [vmem:[%s4 + $0xd0] sm:$0xff]
    %v3107 = vld [vmem:[%s4 + $0xd8] sm:$0xff]
    %v3108 = vld [vmem:[%s4 + $0xe0] sm:$0xff]
    %v3109 = vld [vmem:[%s4 + $0xe8] sm:$0xff]
    %v3110 = vld [vmem:[%s4 + $0xf0] sm:$0xff]
    %v3111 = vld [vmem:[%s4 + $0xf8] sm:$0xff]
    %v3112 = vld [vmem:[%s4 + $0x100] sm:$0xff]
    %v3113 = vld [vmem:[%s4 + $0x108] sm:$0xff]
    %v3114 = vld [vmem:[%s4 + $0x110] sm:$0xff]
    %v3115 = vld [vmem:[%s4 + $0x118] sm:$0xff]
    %v3116 = vld [vmem:[%s4 + $0x120] sm:$0xff]
    %v3117 = vld [vmem:[%s4 + $0x128] sm:$0xff]
    %v3118 = vld [vmem:[%s4 + $0x130] sm:$0xff]
    %v3119 = vld [vmem:[%s4 + $0x138] sm:$0xff]
    %v3120 = vld [vmem:[%s4 + $0x140] sm:$0xff]
    %v3121 = vld [vmem:[%s4 + $0x148] sm:$0xff]
    %v3122 = vld [vmem:[%s4 + $0x150] sm:$0xff]
    %v3123 = vld [vmem:[%s4 + $0x158] sm:$0xff]
    %v3124 = vld [vmem:[%s4 + $0x160] sm:$0xff]
    %v3125 = vld [vmem:[%s4 + $0x168] sm:$0xff]
    %v3126 = vld [vmem:[%s4 + $0x170] sm:$0xff]
    %v3127 = vld [vmem:[%s4 + $0x178] sm:$0xff]
    %v3128 = vld [vmem:[%s4 + $0x180] sm:$0xff]
    %v3129 = vld [vmem:[%s4 + $0x188] sm:$0xff]
    %v3130 = vld [vmem:[%s4 + $0x190] sm:$0xff]
    %v3131 = vld [vmem:[%s4 + $0x198] sm:$0xff]
    %v3132 = vld [vmem:[%s4 + $0x1a0] sm:$0xff]
    %v3133 = vld [vmem:[%s4 + $0x1a8] sm:$0xff]
    %v3134 = vld [vmem:[%s4 + $0x1b0] sm:$0xff]
    %v3135 = vld [vmem:[%s4 + $0x1b8] sm:$0xff]
    %v3136 = vld [vmem:[%s4 + $0x1c0] sm:$0xff]
    %v3137 = vld [vmem:[%s4 + $0x1c8] sm:$0xff]
    %v3138 = vld [vmem:[%s4 + $0x1d0] sm:$0xff]
    %v3139 = vld [vmem:[%s4 + $0x1d8] sm:$0xff]
    %v3140 = vld [vmem:[%s4 + $0x1e0] sm:$0xff]
    %v3141 = vld [vmem:[%s4 + $0x1e8] sm:$0xff]
    %v3142 = vld [vmem:[%s4 + $0x1f0] sm:$0xff]
    %v3143 = vld [vmem:[%s4 + $0x1f8] sm:$0xff]
    %v3144 = vld [vmem:[%s5] sm:$0xff]
    %v3145 = vld [vmem:[%s5 + $0x8] sm:$0xff]
    %v3146 = vld [vmem:[%s5 + $0x10] sm:$0xff]
    %v3147 = vld [vmem:[%s5 + $0x18] sm:$0xff]
    %v3148 = vld [vmem:[%s5 + $0x20] sm:$0xff]
    %v3149 = vld [vmem:[%s5 + $0x28] sm:$0xff]
    %v3150 = vld [vmem:[%s5 + $0x30] sm:$0xff]
    %v3151 = vld [vmem:[%s5 + $0x38] sm:$0xff]
    %v3152 = vld [vmem:[%s5 + $0x40] sm:$0xff]
    %v3153 = vld [vmem:[%s5 + $0x48] sm:$0xff]
    %v3154 = vld [vmem:[%s5 + $0x50] sm:$0xff]
    %v3155 = vld [vmem:[%s5 + $0x58] sm:$0xff]
    %v3156 = vld [vmem:[%s5 + $0x60] sm:$0xff]
    %v3157 = vld [vmem:[%s5 + $0x68] sm:$0xff]
    %v3158 = vld [vmem:[%s5 + $0x70] sm:$0xff]
    %v3159 = vld [vmem:[%s5 + $0x78] sm:$0xff]
    %v3160 = vld [vmem:[%s5 + $0x80] sm:$0xff]
    %v3161 = vld [vmem:[%s5 + $0x88] sm:$0xff]
    %v3162 = vld [vmem:[%s5 + $0x90] sm:$0xff]
    %v3163 = vld [vmem:[%s5 + $0x98] sm:$0xff]
    %v3164 = vld [vmem:[%s5 + $0xa0] sm:$0xff]
    %v3165 = vld [vmem:[%s5 + $0xa8] sm:$0xff]
    %v3166 = vld [vmem:[%s5 + $0xb0] sm:$0xff]
    %v3167 = vld [vmem:[%s5 + $0xb8] sm:$0xff]
    %v3168 = vld [vmem:[%s5 + $0xc0] sm:$0xff]
    %v3169 = vld [vmem:[%s5 + $0xc8] sm:$0xff]
    %v3170 = vld [vmem:[%s5 + $0xd0] sm:$0xff]
    %v3171 = vld [vmem:[%s5 + $0xd8] sm:$0xff]
    %v3172 = vld [vmem:[%s5 + $0xe0] sm:$0xff]
    %v3173 = vld [vmem:[%s5 + $0xe8] sm:$0xff]
    %v3174 = vld [vmem:[%s5 + $0xf0] sm:$0xff]
    %v3175 = vld [vmem:[%s5 + $0xf8] sm:$0xff]
    %v3176 = vld [vmem:[%s5 + $0x100] sm:$0xff]
    %v3177 = vld [vmem:[%s5 + $0x108] sm:$0xff]
    %v3178 = vld [vmem:[%s5 + $0x110] sm:$0xff]
    %v3179 = vld [vmem:[%s5 + $0x118] sm:$0xff]
    %v3180 = vld [vmem:[%s5 + $0x120] sm:$0xff]
    %v3181 = vld [vmem:[%s5 + $0x128] sm:$0xff]
    %v3182 = vld [vmem:[%s5 + $0x130] sm:$0xff]
    %v3183 = vld [vmem:[%s5 + $0x138] sm:$0xff]
    %v3184 = vld [vmem:[%s5 + $0x140] sm:$0xff]
    %v3185 = vld [vmem:[%s5 + $0x148] sm:$0xff]
    %v3186 = vld [vmem:[%s5 + $0x150] sm:$0xff]
    %v3187 = vld [vmem:[%s5 + $0x158] sm:$0xff]
    %v3188 = vld [vmem:[%s5 + $0x160] sm:$0xff]
    %v3189 = vld [vmem:[%s5 + $0x168] sm:$0xff]
    %v3190 = vld [vmem:[%s5 + $0x170] sm:$0xff]
    %v3191 = vld [vmem:[%s5 + $0x178] sm:$0xff]
    %v3192 = vld [vmem:[%s5 + $0x180] sm:$0xff]
    %v3193 = vld [vmem:[%s5 + $0x188] sm:$0xff]
    %v3194 = vld [vmem:[%s5 + $0x190] sm:$0xff]
    %v3195 = vld [vmem:[%s5 + $0x198] sm:$0xff]
    %v3196 = vld [vmem:[%s5 + $0x1a0] sm:$0xff]
    %v3197 = vld [vmem:[%s5 + $0x1a8] sm:$0xff]
    %v3198 = vld [vmem:[%s5 + $0x1b0] sm:$0xff]
    %v3199 = vld [vmem:[%s5 + $0x1b8] sm:$0xff]
    %v3200 = vld [vmem:[%s5 + $0x1c0] sm:$0xff]
    %v3201 = vld [vmem:[%s5 + $0x1c8] sm:$0xff]
    %v3202 = vld [vmem:[%s5 + $0x1d0] sm:$0xff]
    %v3203 = vld [vmem:[%s5 + $0x1d8] sm:$0xff]
    %v3204 = vld [vmem:[%s5 + $0x1e0] sm:$0xff]
    %v3205 = vld [vmem:[%s5 + $0x1e8] sm:$0xff]
    %v3206 = vld [vmem:[%s5 + $0x1f0] sm:$0xff]
    %v3207 = vld [vmem:[%s5 + $0x1f8] sm:$0xff]
    %v3208 = vand.u32 %v3145, 4294901760
    %3209 = vmatprep.subr.mxu0 %v3208
    %v3210 = vand.u32 %v3144, 4294901760
    %3211 = vmatpush1.msra.mxu0 %v3210
    %v3212 = vand.u32 %v3147, 4294901760
    %3213 = vmatprep.subr.mxu0 %v3212
    %v3214 = vand.u32 %v3146, 4294901760
    %3215 = vmatpush1.msra.mxu0 %v3214
    %v3216 = vand.u32 %v3149, 4294901760
    %3217 = vmatprep.subr.mxu0 %v3216
    %v3218 = vand.u32 %v3148, 4294901760
    %3219 = vmatpush1.msra.mxu0 %v3218
    %v3220 = vand.u32 %v3151, 4294901760
    %3221 = vmatprep.subr.mxu0 %v3220
    %v3222 = vand.u32 %v3150, 4294901760
    %3223 = vmatpush1.msra.mxu0 %v3222
    %v3224 = vand.u32 %v3153, 4294901760
    %3225 = vmatprep.subr.mxu0 %v3224
    %v3226 = vand.u32 %v3152, 4294901760
    %3227 = vmatpush1.msra.mxu0 %v3226
    %v3228 = vand.u32 %v3155, 4294901760
    %3229 = vmatprep.subr.mxu0 %v3228
    %v3230 = vand.u32 %v3154, 4294901760
    %3231 = vmatpush1.msra.mxu0 %v3230
    %v3232 = vand.u32 %v3157, 4294901760
    %3233 = vmatprep.subr.mxu0 %v3232
    %v3234 = vand.u32 %v3156, 4294901760
    %3235 = vmatpush1.msra.mxu0 %v3234
    %v3236 = vand.u32 %v3159, 4294901760
    %3237 = vmatprep.subr.mxu0 %v3236
    %v3238 = vand.u32 %v3158, 4294901760
    %3239 = vmatpush1.msra.mxu0 %v3238
    %v3240 = vand.u32 %v3161, 4294901760
    %3241 = vmatprep.subr.mxu0 %v3240
    %v3242 = vand.u32 %v3160, 4294901760
    %3243 = vmatpush1.msra.mxu0 %v3242
    %v3244 = vand.u32 %v3163, 4294901760
    %3245 = vmatprep.subr.mxu0 %v3244
    %v3246 = vand.u32 %v3162, 4294901760
    %3247 = vmatpush1.msra.mxu0 %v3246
    %v3248 = vand.u32 %v3165, 4294901760
    %3249 = vmatprep.subr.mxu0 %v3248
    %v3250 = vand.u32 %v3164, 4294901760
    %3251 = vmatpush1.msra.mxu0 %v3250
    %v3252 = vand.u32 %v3167, 4294901760
    %3253 = vmatprep.subr.mxu0 %v3252
    %v3254 = vand.u32 %v3166, 4294901760
    %3255 = vmatpush1.msra.mxu0 %v3254
    %v3256 = vand.u32 %v3169, 4294901760
    %3257 = vmatprep.subr.mxu0 %v3256
    %v3258 = vand.u32 %v3168, 4294901760
    %3259 = vmatpush1.msra.mxu0 %v3258
    %v3260 = vand.u32 %v3171, 4294901760
    %3261 = vmatprep.subr.mxu0 %v3260
    %v3262 = vand.u32 %v3170, 4294901760
    %3263 = vmatpush1.msra.mxu0 %v3262
    %v3264 = vand.u32 %v3173, 4294901760
    %3265 = vmatprep.subr.mxu0 %v3264
    %v3266 = vand.u32 %v3172, 4294901760
    %3267 = vmatpush1.msra.mxu0 %v3266
    %v3268 = vand.u32 %v3175, 4294901760
    %3269 = vmatprep.subr.mxu0 %v3268
    %v3270 = vand.u32 %v3174, 4294901760
    %3271 = vmatpush1.msra.mxu0 %v3270
    %v3272 = vand.u32 %v3177, 4294901760
    %3273 = vmatprep.subr.mxu0 %v3272
    %v3274 = vand.u32 %v3176, 4294901760
    %3275 = vmatpush1.msra.mxu0 %v3274
    %v3276 = vand.u32 %v3179, 4294901760
    %3277 = vmatprep.subr.mxu0 %v3276
    %v3278 = vand.u32 %v3178, 4294901760
    %3279 = vmatpush1.msra.mxu0 %v3278
    %v3280 = vand.u32 %v3181, 4294901760
    %3281 = vmatprep.subr.mxu0 %v3280
    %v3282 = vand.u32 %v3180, 4294901760
    %3283 = vmatpush1.msra.mxu0 %v3282
    %v3284 = vand.u32 %v3183, 4294901760
    %3285 = vmatprep.subr.mxu0 %v3284
    %v3286 = vand.u32 %v3182, 4294901760
    %3287 = vmatpush1.msra.mxu0 %v3286
    %v3288 = vand.u32 %v3185, 4294901760
    %3289 = vmatprep.subr.mxu0 %v3288
    %v3290 = vand.u32 %v3184, 4294901760
    %3291 = vmatpush1.msra.mxu0 %v3290
    %v3292 = vand.u32 %v3187, 4294901760
    %3293 = vmatprep.subr.mxu0 %v3292
    %v3294 = vand.u32 %v3186, 4294901760
    %3295 = vmatpush1.msra.mxu0 %v3294
    %v3296 = vand.u32 %v3189, 4294901760
    %3297 = vmatprep.subr.mxu0 %v3296
    %v3298 = vand.u32 %v3188, 4294901760
    %3299 = vmatpush1.msra.mxu0 %v3298
    %v3300 = vand.u32 %v3191, 4294901760
    %3301 = vmatprep.subr.mxu0 %v3300
    %v3302 = vand.u32 %v3190, 4294901760
    %3303 = vmatpush1.msra.mxu0 %v3302
    %v3304 = vand.u32 %v3193, 4294901760
    %3305 = vmatprep.subr.mxu0 %v3304
    %v3306 = vand.u32 %v3192, 4294901760
    %3307 = vmatpush1.msra.mxu0 %v3306
    %v3308 = vand.u32 %v3195, 4294901760
    %3309 = vmatprep.subr.mxu0 %v3308
    %v3310 = vand.u32 %v3194, 4294901760
    %3311 = vmatpush1.msra.mxu0 %v3310
    %v3312 = vand.u32 %v3197, 4294901760
    %3313 = vmatprep.subr.mxu0 %v3312
    %v3314 = vand.u32 %v3196, 4294901760
    %3315 = vmatpush1.msra.mxu0 %v3314
    %v3316 = vand.u32 %v3199, 4294901760
    %3317 = vmatprep.subr.mxu0 %v3316
    %v3318 = vand.u32 %v3198, 4294901760
    %3319 = vmatpush1.msra.mxu0 %v3318
    %v3320 = vand.u32 %v3201, 4294901760
    %3321 = vmatprep.subr.mxu0 %v3320
    %v3322 = vand.u32 %v3200, 4294901760
    %3323 = vmatpush1.msra.mxu0 %v3322
    %v3324 = vand.u32 %v3203, 4294901760
    %3325 = vmatprep.subr.mxu0 %v3324
    %v3326 = vand.u32 %v3202, 4294901760
    %3327 = vmatpush1.msra.mxu0 %v3326
    %v3328 = vand.u32 %v3205, 4294901760
    %3329 = vmatprep.subr.mxu0 %v3328
    %v3330 = vand.u32 %v3204, 4294901760
    %3331 = vmatpush1.msra.mxu0 %v3330
    %v3332 = vand.u32 %v3207, 4294901760
    %3333 = vmatprep.subr.mxu0 %v3332
    %v3334 = vand.u32 %v3206, 4294901760
    %3335 = vmatpush1.msra.mxu0 %v3334
    %v3336 = vand.u32 %v3079, 4294901760
    %v3337 = vsub.f32 %v3079, %v3336
    %v3338 = vand.u32 %v3337, 4294901760
    %v3339 = vsub.f32 %v3337, %v3338
    %v3340 = vand.u32 %v3339, 4294901760
    %3341 = vmatprep.mubr.f32.mxu0 %v3340
    %v3342 = vand.u32 %v3078, 4294901760
    %v3343 = vsub.f32 %v3078, %v3342
    %v3344 = vand.u32 %v3343, 4294901760
    %v3345 = vsub.f32 %v3343, %v3344
    %v3346 = vand.u32 %v3345, 4294901760
    %3347 = vmatmul.mubr.f32.gmra.mrb[0].mxu0 %v3346
    %v3348 = vpop.f32.mrb[0].mxu0
    %v3349 = vadd.f32 0.0, %v3348
    %v3350 = vpop.f32.mrb[0].mxu0
    %v3351 = vadd.f32 0.0, %v3350
    %3352 = vdwg.mxu0
    %v3353 = vand.u32 %v3145, 4294901760
    %v3354 = vsub.f32 %v3145, %v3353
    %v3355 = vand.u32 %v3354, 4294901760
    %v3356 = vsub.f32 %v3354, %v3355
    %v3357 = vand.u32 %v3356, 4294901760
    %3358 = vmatprep.subr.mxu0 %v3357
    %v3359 = vand.u32 %v3144, 4294901760
    %v3360 = vsub.f32 %v3144, %v3359
    %v3361 = vand.u32 %v3360, 4294901760
    %v3362 = vsub.f32 %v3360, %v3361
    %v3363 = vand.u32 %v3362, 4294901760
    %3364 = vmatpush1.msra.mxu0 %v3363
    %v3365 = vand.u32 %v3147, 4294901760
    %v3366 = vsub.f32 %v3147, %v3365
    %v3367 = vand.u32 %v3366, 4294901760
    %v3368 = vsub.f32 %v3366, %v3367
    %v3369 = vand.u32 %v3368, 4294901760
    %3370 = vmatprep.subr.mxu0 %v3369
    %v3371 = vand.u32 %v3146, 4294901760
    %v3372 = vsub.f32 %v3146, %v3371
    %v3373 = vand.u32 %v3372, 4294901760
    %v3374 = vsub.f32 %v3372, %v3373
    %v3375 = vand.u32 %v3374, 4294901760
    %3376 = vmatpush1.msra.mxu0 %v3375
    %v3377 = vand.u32 %v3149, 4294901760
    %v3378 = vsub.f32 %v3149, %v3377
    %v3379 = vand.u32 %v3378, 4294901760
    %v3380 = vsub.f32 %v3378, %v3379
    %v3381 = vand.u32 %v3380, 4294901760
    %3382 = vmatprep.subr.mxu0 %v3381
    %v3383 = vand.u32 %v3148, 4294901760
    %v3384 = vsub.f32 %v3148, %v3383
    %v3385 = vand.u32 %v3384, 4294901760
    %v3386 = vsub.f32 %v3384, %v3385
    %v3387 = vand.u32 %v3386, 4294901760
    %3388 = vmatpush1.msra.mxu0 %v3387
    %v3389 = vand.u32 %v3151, 4294901760
    %v3390 = vsub.f32 %v3151, %v3389
    %v3391 = vand.u32 %v3390, 4294901760
    %v3392 = vsub.f32 %v3390, %v3391
    %v3393 = vand.u32 %v3392, 4294901760
    %3394 = vmatprep.subr.mxu0 %v3393
    %v3395 = vand.u32 %v3150, 4294901760
    %v3396 = vsub.f32 %v3150, %v3395
    %v3397 = vand.u32 %v3396, 4294901760
    %v3398 = vsub.f32 %v3396, %v3397
    %v3399 = vand.u32 %v3398, 4294901760
    %3400 = vmatpush1.msra.mxu0 %v3399
    %v3401 = vand.u32 %v3153, 4294901760
    %v3402 = vsub.f32 %v3153, %v3401
    %v3403 = vand.u32 %v3402, 4294901760
    %v3404 = vsub.f32 %v3402, %v3403
    %v3405 = vand.u32 %v3404, 4294901760
    %3406 = vmatprep.subr.mxu0 %v3405
    %v3407 = vand.u32 %v3152, 4294901760
    %v3408 = vsub.f32 %v3152, %v3407
    %v3409 = vand.u32 %v3408, 4294901760
    %v3410 = vsub.f32 %v3408, %v3409
    %v3411 = vand.u32 %v3410, 4294901760
    %3412 = vmatpush1.msra.mxu0 %v3411
    %v3413 = vand.u32 %v3155, 4294901760
    %v3414 = vsub.f32 %v3155, %v3413
    %v3415 = vand.u32 %v3414, 4294901760
    %v3416 = vsub.f32 %v3414, %v3415
    %v3417 = vand.u32 %v3416, 4294901760
    %3418 = vmatprep.subr.mxu0 %v3417
    %v3419 = vand.u32 %v3154, 4294901760
    %v3420 = vsub.f32 %v3154, %v3419
    %v3421 = vand.u32 %v3420, 4294901760
    %v3422 = vsub.f32 %v3420, %v3421
    %v3423 = vand.u32 %v3422, 4294901760
    %3424 = vmatpush1.msra.mxu0 %v3423
    %v3425 = vand.u32 %v3157, 4294901760
    %v3426 = vsub.f32 %v3157, %v3425
    %v3427 = vand.u32 %v3426, 4294901760
    %v3428 = vsub.f32 %v3426, %v3427
    %v3429 = vand.u32 %v3428, 4294901760
    %3430 = vmatprep.subr.mxu0 %v3429
    %v3431 = vand.u32 %v3156, 4294901760
    %v3432 = vsub.f32 %v3156, %v3431
    %v3433 = vand.u32 %v3432, 4294901760
    %v3434 = vsub.f32 %v3432, %v3433
    %v3435 = vand.u32 %v3434, 4294901760
    %3436 = vmatpush1.msra.mxu0 %v3435
    %v3437 = vand.u32 %v3159, 4294901760
    %v3438 = vsub.f32 %v3159, %v3437
    %v3439 = vand.u32 %v3438, 4294901760
    %v3440 = vsub.f32 %v3438, %v3439
    %v3441 = vand.u32 %v3440, 4294901760
    %3442 = vmatprep.subr.mxu0 %v3441
    %v3443 = vand.u32 %v3158, 4294901760
    %v3444 = vsub.f32 %v3158, %v3443
    %v3445 = vand.u32 %v3444, 4294901760
    %v3446 = vsub.f32 %v3444, %v3445
    %v3447 = vand.u32 %v3446, 4294901760
    %3448 = vmatpush1.msra.mxu0 %v3447
    %v3449 = vand.u32 %v3161, 4294901760
    %v3450 = vsub.f32 %v3161, %v3449
    %v3451 = vand.u32 %v3450, 4294901760
    %v3452 = vsub.f32 %v3450, %v3451
    %v3453 = vand.u32 %v3452, 4294901760
    %3454 = vmatprep.subr.mxu0 %v3453
    %v3455 = vand.u32 %v3160, 4294901760
    %v3456 = vsub.f32 %v3160, %v3455
    %v3457 = vand.u32 %v3456, 4294901760
    %v3458 = vsub.f32 %v3456, %v3457
    %v3459 = vand.u32 %v3458, 4294901760
    %3460 = vmatpush1.msra.mxu0 %v3459
    %v3461 = vand.u32 %v3163, 4294901760
    %v3462 = vsub.f32 %v3163, %v3461
    %v3463 = vand.u32 %v3462, 4294901760
    %v3464 = vsub.f32 %v3462, %v3463
    %v3465 = vand.u32 %v3464, 4294901760
    %3466 = vmatprep.subr.mxu0 %v3465
    %v3467 = vand.u32 %v3162, 4294901760
    %v3468 = vsub.f32 %v3162, %v3467
    %v3469 = vand.u32 %v3468, 4294901760
    %v3470 = vsub.f32 %v3468, %v3469
    %v3471 = vand.u32 %v3470, 4294901760
    %3472 = vmatpush1.msra.mxu0 %v3471
    %v3473 = vand.u32 %v3165, 4294901760
    %v3474 = vsub.f32 %v3165, %v3473
    %v3475 = vand.u32 %v3474, 4294901760
    %v3476 = vsub.f32 %v3474, %v3475
    %v3477 = vand.u32 %v3476, 4294901760
    %3478 = vmatprep.subr.mxu0 %v3477
    %v3479 = vand.u32 %v3164, 4294901760
    %v3480 = vsub.f32 %v3164, %v3479
    %v3481 = vand.u32 %v3480, 4294901760
    %v3482 = vsub.f32 %v3480, %v3481
    %v3483 = vand.u32 %v3482, 4294901760
    %3484 = vmatpush1.msra.mxu0 %v3483
    %v3485 = vand.u32 %v3167, 4294901760
    %v3486 = vsub.f32 %v3167, %v3485
    %v3487 = vand.u32 %v3486, 4294901760
    %v3488 = vsub.f32 %v3486, %v3487
    %v3489 = vand.u32 %v3488, 4294901760
    %3490 = vmatprep.subr.mxu0 %v3489
    %v3491 = vand.u32 %v3166, 4294901760
    %v3492 = vsub.f32 %v3166, %v3491
    %v3493 = vand.u32 %v3492, 4294901760
    %v3494 = vsub.f32 %v3492, %v3493
    %v3495 = vand.u32 %v3494, 4294901760
    %3496 = vmatpush1.msra.mxu0 %v3495
    %v3497 = vand.u32 %v3169, 4294901760
    %v3498 = vsub.f32 %v3169, %v3497
    %v3499 = vand.u32 %v3498, 4294901760
    %v3500 = vsub.f32 %v3498, %v3499
    %v3501 = vand.u32 %v3500, 4294901760
    %3502 = vmatprep.subr.mxu0 %v3501
    %v3503 = vand.u32 %v3168, 4294901760
    %v3504 = vsub.f32 %v3168, %v3503
    %v3505 = vand.u32 %v3504, 4294901760
    %v3506 = vsub.f32 %v3504, %v3505
    %v3507 = vand.u32 %v3506, 4294901760
    %3508 = vmatpush1.msra.mxu0 %v3507
    %v3509 = vand.u32 %v3171, 4294901760
    %v3510 = vsub.f32 %v3171, %v3509
    %v3511 = vand.u32 %v3510, 4294901760
    %v3512 = vsub.f32 %v3510, %v3511
    %v3513 = vand.u32 %v3512, 4294901760
    %3514 = vmatprep.subr.mxu0 %v3513
    %v3515 = vand.u32 %v3170, 4294901760
    %v3516 = vsub.f32 %v3170, %v3515
    %v3517 = vand.u32 %v3516, 4294901760
    %v3518 = vsub.f32 %v3516, %v3517
    %v3519 = vand.u32 %v3518, 4294901760
    %3520 = vmatpush1.msra.mxu0 %v3519
    %v3521 = vand.u32 %v3173, 4294901760
    %v3522 = vsub.f32 %v3173, %v3521
    %v3523 = vand.u32 %v3522, 4294901760
    %v3524 = vsub.f32 %v3522, %v3523
    %v3525 = vand.u32 %v3524, 4294901760
    %3526 = vmatprep.subr.mxu0 %v3525
    %v3527 = vand.u32 %v3172, 4294901760
    %v3528 = vsub.f32 %v3172, %v3527
    %v3529 = vand.u32 %v3528, 4294901760
    %v3530 = vsub.f32 %v3528, %v3529
    %v3531 = vand.u32 %v3530, 4294901760
    %3532 = vmatpush1.msra.mxu0 %v3531
    %v3533 = vand.u32 %v3175, 4294901760
    %v3534 = vsub.f32 %v3175, %v3533
    %v3535 = vand.u32 %v3534, 4294901760
    %v3536 = vsub.f32 %v3534, %v3535
    %v3537 = vand.u32 %v3536, 4294901760
    %3538 = vmatprep.subr.mxu0 %v3537
    %v3539 = vand.u32 %v3174, 4294901760
    %v3540 = vsub.f32 %v3174, %v3539
    %v3541 = vand.u32 %v3540, 4294901760
    %v3542 = vsub.f32 %v3540, %v3541
    %v3543 = vand.u32 %v3542, 4294901760
    %3544 = vmatpush1.msra.mxu0 %v3543
    %v3545 = vand.u32 %v3177, 4294901760
    %v3546 = vsub.f32 %v3177, %v3545
    %v3547 = vand.u32 %v3546, 4294901760
    %v3548 = vsub.f32 %v3546, %v3547
    %v3549 = vand.u32 %v3548, 4294901760
    %3550 = vmatprep.subr.mxu0 %v3549
    %v3551 = vand.u32 %v3176, 4294901760
    %v3552 = vsub.f32 %v3176, %v3551
    %v3553 = vand.u32 %v3552, 4294901760
    %v3554 = vsub.f32 %v3552, %v3553
    %v3555 = vand.u32 %v3554, 4294901760
    %3556 = vmatpush1.msra.mxu0 %v3555
    %v3557 = vand.u32 %v3179, 4294901760
    %v3558 = vsub.f32 %v3179, %v3557
    %v3559 = vand.u32 %v3558, 4294901760
    %v3560 = vsub.f32 %v3558, %v3559
    %v3561 = vand.u32 %v3560, 4294901760
    %3562 = vmatprep.subr.mxu0 %v3561
    %v3563 = vand.u32 %v3178, 4294901760
    %v3564 = vsub.f32 %v3178, %v3563
    %v3565 = vand.u32 %v3564, 4294901760
    %v3566 = vsub.f32 %v3564, %v3565
    %v3567 = vand.u32 %v3566, 4294901760
    %3568 = vmatpush1.msra.mxu0 %v3567
    %v3569 = vand.u32 %v3181, 4294901760
    %v3570 = vsub.f32 %v3181, %v3569
    %v3571 = vand.u32 %v3570, 4294901760
    %v3572 = vsub.f32 %v3570, %v3571
    %v3573 = vand.u32 %v3572, 4294901760
    %3574 = vmatprep.subr.mxu0 %v3573
    %v3575 = vand.u32 %v3180, 4294901760
    %v3576 = vsub.f32 %v3180, %v3575
    %v3577 = vand.u32 %v3576, 4294901760
    %v3578 = vsub.f32 %v3576, %v3577
    %v3579 = vand.u32 %v3578, 4294901760
    %3580 = vmatpush1.msra.mxu0 %v3579
    %v3581 = vand.u32 %v3183, 4294901760
    %v3582 = vsub.f32 %v3183, %v3581
    %v3583 = vand.u32 %v3582, 4294901760
    %v3584 = vsub.f32 %v3582, %v3583
    %v3585 = vand.u32 %v3584, 4294901760
    %3586 = vmatprep.subr.mxu0 %v3585
    %v3587 = vand.u32 %v3182, 4294901760
    %v3588 = vsub.f32 %v3182, %v3587
    %v3589 = vand.u32 %v3588, 4294901760
    %v3590 = vsub.f32 %v3588, %v3589
    %v3591 = vand.u32 %v3590, 4294901760
    %3592 = vmatpush1.msra.mxu0 %v3591
    %v3593 = vand.u32 %v3185, 4294901760
    %v3594 = vsub.f32 %v3185, %v3593
    %v3595 = vand.u32 %v3594, 4294901760
    %v3596 = vsub.f32 %v3594, %v3595
    %v3597 = vand.u32 %v3596, 4294901760
    %3598 = vmatprep.subr.mxu0 %v3597
    %v3599 = vand.u32 %v3184, 4294901760
    %v3600 = vsub.f32 %v3184, %v3599
    %v3601 = vand.u32 %v3600, 4294901760
    %v3602 = vsub.f32 %v3600, %v3601
    %v3603 = vand.u32 %v3602, 4294901760
    %3604 = vmatpush1.msra.mxu0 %v3603
    %v3605 = vand.u32 %v3187, 4294901760
    %v3606 = vsub.f32 %v3187, %v3605
    %v3607 = vand.u32 %v3606, 4294901760
    %v3608 = vsub.f32 %v3606, %v3607
    %v3609 = vand.u32 %v3608, 4294901760
    %3610 = vmatprep.subr.mxu0 %v3609
    %v3611 = vand.u32 %v3186, 4294901760
    %v3612 = vsub.f32 %v3186, %v3611
    %v3613 = vand.u32 %v3612, 4294901760
    %v3614 = vsub.f32 %v3612, %v3613
    %v3615 = vand.u32 %v3614, 4294901760
    %3616 = vmatpush1.msra.mxu0 %v3615
    %v3617 = vand.u32 %v3189, 4294901760
    %v3618 = vsub.f32 %v3189, %v3617
    %v3619 = vand.u32 %v3618, 4294901760
    %v3620 = vsub.f32 %v3618, %v3619
    %v3621 = vand.u32 %v3620, 4294901760
    %3622 = vmatprep.subr.mxu0 %v3621
    %v3623 = vand.u32 %v3188, 4294901760
    %v3624 = vsub.f32 %v3188, %v3623
    %v3625 = vand.u32 %v3624, 4294901760
    %v3626 = vsub.f32 %v3624, %v3625
    %v3627 = vand.u32 %v3626, 4294901760
    %3628 = vmatpush1.msra.mxu0 %v3627
    %v3629 = vand.u32 %v3191, 4294901760
    %v3630 = vsub.f32 %v3191, %v3629
    %v3631 = vand.u32 %v3630, 4294901760
    %v3632 = vsub.f32 %v3630, %v3631
    %v3633 = vand.u32 %v3632, 4294901760
    %3634 = vmatprep.subr.mxu0 %v3633
    %v3635 = vand.u32 %v3190, 4294901760
    %v3636 = vsub.f32 %v3190, %v3635
    %v3637 = vand.u32 %v3636, 4294901760
    %v3638 = vsub.f32 %v3636, %v3637
    %v3639 = vand.u32 %v3638, 4294901760
    %3640 = vmatpush1.msra.mxu0 %v3639
    %v3641 = vand.u32 %v3193, 4294901760
    %v3642 = vsub.f32 %v3193, %v3641
    %v3643 = vand.u32 %v3642, 4294901760
    %v3644 = vsub.f32 %v3642, %v3643
    %v3645 = vand.u32 %v3644, 4294901760
    %3646 = vmatprep.subr.mxu0 %v3645
    %v3647 = vand.u32 %v3192, 4294901760
    %v3648 = vsub.f32 %v3192, %v3647
    %v3649 = vand.u32 %v3648, 4294901760
    %v3650 = vsub.f32 %v3648, %v3649
    %v3651 = vand.u32 %v3650, 4294901760
    %3652 = vmatpush1.msra.mxu0 %v3651
    %v3653 = vand.u32 %v3195, 4294901760
    %v3654 = vsub.f32 %v3195, %v3653
    %v3655 = vand.u32 %v3654, 4294901760
    %v3656 = vsub.f32 %v3654, %v3655
    %v3657 = vand.u32 %v3656, 4294901760
    %3658 = vmatprep.subr.mxu0 %v3657
    %v3659 = vand.u32 %v3194, 4294901760
    %v3660 = vsub.f32 %v3194, %v3659
    %v3661 = vand.u32 %v3660, 4294901760
    %v3662 = vsub.f32 %v3660, %v3661
    %v3663 = vand.u32 %v3662, 4294901760
    %3664 = vmatpush1.msra.mxu0 %v3663
    %v3665 = vand.u32 %v3197, 4294901760
    %v3666 = vsub.f32 %v3197, %v3665
    %v3667 = vand.u32 %v3666, 4294901760
    %v3668 = vsub.f32 %v3666, %v3667
    %v3669 = vand.u32 %v3668, 4294901760
    %3670 = vmatprep.subr.mxu0 %v3669
    %v3671 = vand.u32 %v3196, 4294901760
    %v3672 = vsub.f32 %v3196, %v3671
    %v3673 = vand.u32 %v3672, 4294901760
    %v3674 = vsub.f32 %v3672, %v3673
    %v3675 = vand.u32 %v3674, 4294901760
    %3676 = vmatpush1.msra.mxu0 %v3675
    %v3677 = vand.u32 %v3199, 4294901760
    %v3678 = vsub.f32 %v3199, %v3677
    %v3679 = vand.u32 %v3678, 4294901760
    %v3680 = vsub.f32 %v3678, %v3679
    %v3681 = vand.u32 %v3680, 4294901760
    %3682 = vmatprep.subr.mxu0 %v3681
    %v3683 = vand.u32 %v3198, 4294901760
    %v3684 = vsub.f32 %v3198, %v3683
    %v3685 = vand.u32 %v3684, 4294901760
    %v3686 = vsub.f32 %v3684, %v3685
    %v3687 = vand.u32 %v3686, 4294901760
    %3688 = vmatpush1.msra.mxu0 %v3687
    %v3689 = vand.u32 %v3201, 4294901760
    %v3690 = vsub.f32 %v3201, %v3689
    %v3691 = vand.u32 %v3690, 4294901760
    %v3692 = vsub.f32 %v3690, %v3691
    %v3693 = vand.u32 %v3692, 4294901760
    %3694 = vmatprep.subr.mxu0 %v3693
    %v3695 = vand.u32 %v3200, 4294901760
    %v3696 = vsub.f32 %v3200, %v3695
    %v3697 = vand.u32 %v3696, 4294901760
    %v3698 = vsub.f32 %v3696, %v3697
    %v3699 = vand.u32 %v3698, 4294901760
    %3700 = vmatpush1.msra.mxu0 %v3699
    %v3701 = vand.u32 %v3203, 4294901760
    %v3702 = vsub.f32 %v3203, %v3701
    %v3703 = vand.u32 %v3702, 4294901760
    %v3704 = vsub.f32 %v3702, %v3703
    %v3705 = vand.u32 %v3704, 4294901760
    %3706 = vmatprep.subr.mxu0 %v3705
    %v3707 = vand.u32 %v3202, 4294901760
    %v3708 = vsub.f32 %v3202, %v3707
    %v3709 = vand.u32 %v3708, 4294901760
    %v3710 = vsub.f32 %v3708, %v3709
    %v3711 = vand.u32 %v3710, 4294901760
    %3712 = vmatpush1.msra.mxu0 %v3711
    %v3713 = vand.u32 %v3205, 4294901760
    %v3714 = vsub.f32 %v3205, %v3713
    %v3715 = vand.u32 %v3714, 4294901760
    %v3716 = vsub.f32 %v3714, %v3715
    %v3717 = vand.u32 %v3716, 4294901760
    %3718 = vmatprep.subr.mxu0 %v3717
    %v3719 = vand.u32 %v3204, 4294901760
    %v3720 = vsub.f32 %v3204, %v3719
    %v3721 = vand.u32 %v3720, 4294901760
    %v3722 = vsub.f32 %v3720, %v3721
    %v3723 = vand.u32 %v3722, 4294901760
    %3724 = vmatpush1.msra.mxu0 %v3723
    %v3725 = vand.u32 %v3207, 4294901760
    %v3726 = vsub.f32 %v3207, %v3725
    %v3727 = vand.u32 %v3726, 4294901760
    %v3728 = vsub.f32 %v3726, %v3727
    %v3729 = vand.u32 %v3728, 4294901760
    %3730 = vmatprep.subr.mxu0 %v3729
    %v3731 = vand.u32 %v3206, 4294901760
    %v3732 = vsub.f32 %v3206, %v3731
    %v3733 = vand.u32 %v3732, 4294901760
    %v3734 = vsub.f32 %v3732, %v3733
    %v3735 = vand.u32 %v3734, 4294901760
    %3736 = vmatpush1.msra.mxu0 %v3735
    %v3737 = vand.u32 %v3079, 4294901760
    %3738 = vmatprep.mubr.f32.mxu0 %v3737
    %v3739 = vand.u32 %v3078, 4294901760
    %3740 = vmatmul.mubr.f32.gmra.mrb[0].mxu0 %v3739
    %v3741 = vpop.f32.mrb[0].mxu0
    %v3742 = vadd.f32 %v3349, %v3741
    %v3743 = vpop.f32.mrb[0].mxu0
    %v3744 = vadd.f32 %v3351, %v3743
    %3745 = vdwg.mxu0
    %v3746 = vand.u32 %v3145, 4294901760
    %v3747 = vsub.f32 %v3145, %v3746
    %3748 = vmatprep.subr.mxu0 %v3747
    %v3749 = vand.u32 %v3144, 4294901760
    %v3750 = vsub.f32 %v3144, %v3749
    %3751 = vmatpush1.msra.mxu0 %v3750
    %v3752 = vand.u32 %v3147, 4294901760
    %v3753 = vsub.f32 %v3147, %v3752
    %3754 = vmatprep.subr.mxu0 %v3753
    %v3755 = vand.u32 %v3146, 4294901760
    %v3756 = vsub.f32 %v3146, %v3755
    %3757 = vmatpush1.msra.mxu0 %v3756
    %v3758 = vand.u32 %v3149, 4294901760
    %v3759 = vsub.f32 %v3149, %v3758
    %3760 = vmatprep.subr.mxu0 %v3759
    %v3761 = vand.u32 %v3148, 4294901760
    %v3762 = vsub.f32 %v3148, %v3761
    %3763 = vmatpush1.msra.mxu0 %v3762
    %v3764 = vand.u32 %v3151, 4294901760
    %v3765 = vsub.f32 %v3151, %v3764
    %3766 = vmatprep.subr.mxu0 %v3765
    %v3767 = vand.u32 %v3150, 4294901760
    %v3768 = vsub.f32 %v3150, %v3767
    %3769 = vmatpush1.msra.mxu0 %v3768
    %v3770 = vand.u32 %v3153, 4294901760
    %v3771 = vsub.f32 %v3153, %v3770
    %3772 = vmatprep.subr.mxu0 %v3771
    %v3773 = vand.u32 %v3152, 4294901760
    %v3774 = vsub.f32 %v3152, %v3773
    %3775 = vmatpush1.msra.mxu0 %v3774
    %v3776 = vand.u32 %v3155, 4294901760
    %v3777 = vsub.f32 %v3155, %v3776
    %3778 = vmatprep.subr.mxu0 %v3777
    %v3779 = vand.u32 %v3154, 4294901760
    %v3780 = vsub.f32 %v3154, %v3779
    %3781 = vmatpush1.msra.mxu0 %v3780
    %v3782 = vand.u32 %v3157, 4294901760
    %v3783 = vsub.f32 %v3157, %v3782
    %3784 = vmatprep.subr.mxu0 %v3783
    %v3785 = vand.u32 %v3156, 4294901760
    %v3786 = vsub.f32 %v3156, %v3785
    %3787 = vmatpush1.msra.mxu0 %v3786
    %v3788 = vand.u32 %v3159, 4294901760
    %v3789 = vsub.f32 %v3159, %v3788
    %3790 = vmatprep.subr.mxu0 %v3789
    %v3791 = vand.u32 %v3158, 4294901760
    %v3792 = vsub.f32 %v3158, %v3791
    %3793 = vmatpush1.msra.mxu0 %v3792
    %v3794 = vand.u32 %v3161, 4294901760
    %v3795 = vsub.f32 %v3161, %v3794
    %3796 = vmatprep.subr.mxu0 %v3795
    %v3797 = vand.u32 %v3160, 4294901760
    %v3798 = vsub.f32 %v3160, %v3797
    %3799 = vmatpush1.msra.mxu0 %v3798
    %v3800 = vand.u32 %v3163, 4294901760
    %v3801 = vsub.f32 %v3163, %v3800
    %3802 = vmatprep.subr.mxu0 %v3801
    %v3803 = vand.u32 %v3162, 4294901760
    %v3804 = vsub.f32 %v3162, %v3803
    %3805 = vmatpush1.msra.mxu0 %v3804
    %v3806 = vand.u32 %v3165, 4294901760
    %v3807 = vsub.f32 %v3165, %v3806
    %3808 = vmatprep.subr.mxu0 %v3807
    %v3809 = vand.u32 %v3164, 4294901760
    %v3810 = vsub.f32 %v3164, %v3809
    %3811 = vmatpush1.msra.mxu0 %v3810
    %v3812 = vand.u32 %v3167, 4294901760
    %v3813 = vsub.f32 %v3167, %v3812
    %3814 = vmatprep.subr.mxu0 %v3813
    %v3815 = vand.u32 %v3166, 4294901760
    %v3816 = vsub.f32 %v3166, %v3815
    %3817 = vmatpush1.msra.mxu0 %v3816
    %v3818 = vand.u32 %v3169, 4294901760
    %v3819 = vsub.f32 %v3169, %v3818
    %3820 = vmatprep.subr.mxu0 %v3819
    %v3821 = vand.u32 %v3168, 4294901760
    %v3822 = vsub.f32 %v3168, %v3821
    %3823 = vmatpush1.msra.mxu0 %v3822
    %v3824 = vand.u32 %v3171, 4294901760
    %v3825 = vsub.f32 %v3171, %v3824
    %3826 = vmatprep.subr.mxu0 %v3825
    %v3827 = vand.u32 %v3170, 4294901760
    %v3828 = vsub.f32 %v3170, %v3827
    %3829 = vmatpush1.msra.mxu0 %v3828
    %v3830 = vand.u32 %v3173, 4294901760
    %v3831 = vsub.f32 %v3173, %v3830
    %3832 = vmatprep.subr.mxu0 %v3831
    %v3833 = vand.u32 %v3172, 4294901760
    %v3834 = vsub.f32 %v3172, %v3833
    %3835 = vmatpush1.msra.mxu0 %v3834
    %v3836 = vand.u32 %v3175, 4294901760
    %v3837 = vsub.f32 %v3175, %v3836
    %3838 = vmatprep.subr.mxu0 %v3837
    %v3839 = vand.u32 %v3174, 4294901760
    %v3840 = vsub.f32 %v3174, %v3839
    %3841 = vmatpush1.msra.mxu0 %v3840
    %v3842 = vand.u32 %v3177, 4294901760
    %v3843 = vsub.f32 %v3177, %v3842
    %3844 = vmatprep.subr.mxu0 %v3843
    %v3845 = vand.u32 %v3176, 4294901760
    %v3846 = vsub.f32 %v3176, %v3845
    %3847 = vmatpush1.msra.mxu0 %v3846
    %v3848 = vand.u32 %v3179, 4294901760
    %v3849 = vsub.f32 %v3179, %v3848
    %3850 = vmatprep.subr.mxu0 %v3849
    %v3851 = vand.u32 %v3178, 4294901760
    %v3852 = vsub.f32 %v3178, %v3851
    %3853 = vmatpush1.msra.mxu0 %v3852
    %v3854 = vand.u32 %v3181, 4294901760
    %v3855 = vsub.f32 %v3181, %v3854
    %3856 = vmatprep.subr.mxu0 %v3855
    %v3857 = vand.u32 %v3180, 4294901760
    %v3858 = vsub.f32 %v3180, %v3857
    %3859 = vmatpush1.msra.mxu0 %v3858
    %v3860 = vand.u32 %v3183, 4294901760
    %v3861 = vsub.f32 %v3183, %v3860
    %3862 = vmatprep.subr.mxu0 %v3861
    %v3863 = vand.u32 %v3182, 4294901760
    %v3864 = vsub.f32 %v3182, %v3863
    %3865 = vmatpush1.msra.mxu0 %v3864
    %v3866 = vand.u32 %v3185, 4294901760
    %v3867 = vsub.f32 %v3185, %v3866
    %3868 = vmatprep.subr.mxu0 %v3867
    %v3869 = vand.u32 %v3184, 4294901760
    %v3870 = vsub.f32 %v3184, %v3869
    %3871 = vmatpush1.msra.mxu0 %v3870
    %v3872 = vand.u32 %v3187, 4294901760
    %v3873 = vsub.f32 %v3187, %v3872
    %3874 = vmatprep.subr.mxu0 %v3873
    %v3875 = vand.u32 %v3186, 4294901760
    %v3876 = vsub.f32 %v3186, %v3875
    %3877 = vmatpush1.msra.mxu0 %v3876
    %v3878 = vand.u32 %v3189, 4294901760
    %v3879 = vsub.f32 %v3189, %v3878
    %3880 = vmatprep.subr.mxu0 %v3879
    %v3881 = vand.u32 %v3188, 4294901760
    %v3882 = vsub.f32 %v3188, %v3881
    %3883 = vmatpush1.msra.mxu0 %v3882
    %v3884 = vand.u32 %v3191, 4294901760
    %v3885 = vsub.f32 %v3191, %v3884
    %3886 = vmatprep.subr.mxu0 %v3885
    %v3887 = vand.u32 %v3190, 4294901760
    %v3888 = vsub.f32 %v3190, %v3887
    %3889 = vmatpush1.msra.mxu0 %v3888
    %v3890 = vand.u32 %v3193, 4294901760
    %v3891 = vsub.f32 %v3193, %v3890
    %3892 = vmatprep.subr.mxu0 %v3891
    %v3893 = vand.u32 %v3192, 4294901760
    %v3894 = vsub.f32 %v3192, %v3893
    %3895 = vmatpush1.msra.mxu0 %v3894
    %v3896 = vand.u32 %v3195, 4294901760
    %v3897 = vsub.f32 %v3195, %v3896
    %3898 = vmatprep.subr.mxu0 %v3897
    %v3899 = vand.u32 %v3194, 4294901760
    %v3900 = vsub.f32 %v3194, %v3899
    %3901 = vmatpush1.msra.mxu0 %v3900
    %v3902 = vand.u32 %v3197, 4294901760
    %v3903 = vsub.f32 %v3197, %v3902
    %3904 = vmatprep.subr.mxu0 %v3903
    %v3905 = vand.u32 %v3196, 4294901760
    %v3906 = vsub.f32 %v3196, %v3905
    %3907 = vmatpush1.msra.mxu0 %v3906
    %v3908 = vand.u32 %v3199, 4294901760
    %v3909 = vsub.f32 %v3199, %v3908
    %3910 = vmatprep.subr.mxu0 %v3909
    %v3911 = vand.u32 %v3198, 4294901760
    %v3912 = vsub.f32 %v3198, %v3911
    %3913 = vmatpush1.msra.mxu0 %v3912
    %v3914 = vand.u32 %v3201, 4294901760
    %v3915 = vsub.f32 %v3201, %v3914
    %3916 = vmatprep.subr.mxu0 %v3915
    %v3917 = vand.u32 %v3200, 4294901760
    %v3918 = vsub.f32 %v3200, %v3917
    %3919 = vmatpush1.msra.mxu0 %v3918
    %v3920 = vand.u32 %v3203, 4294901760
    %v3921 = vsub.f32 %v3203, %v3920
    %3922 = vmatprep.subr.mxu0 %v3921
    %v3923 = vand.u32 %v3202, 4294901760
    %v3924 = vsub.f32 %v3202, %v3923
    %3925 = vmatpush1.msra.mxu0 %v3924
    %v3926 = vand.u32 %v3205, 4294901760
    %v3927 = vsub.f32 %v3205, %v3926
    %3928 = vmatprep.subr.mxu0 %v3927
    %v3929 = vand.u32 %v3204, 4294901760
    %v3930 = vsub.f32 %v3204, %v3929
    %3931 = vmatpush1.msra.mxu0 %v3930
    %v3932 = vand.u32 %v3207, 4294901760
    %v3933 = vsub.f32 %v3207, %v3932
    %3934 = vmatprep.subr.mxu0 %v3933
    %v3935 = vand.u32 %v3206, 4294901760
    %v3936 = vsub.f32 %v3206, %v3935
    %3937 = vmatpush1.msra.mxu0 %v3936
    %v3938 = vand.u32 %v3079, 4294901760
    %v3939 = vsub.f32 %v3079, %v3938
    %3940 = vmatprep.mubr.f32.mxu0 %v3939
    %v3941 = vand.u32 %v3078, 4294901760
    %v3942 = vsub.f32 %v3078, %v3941
    %3943 = vmatmul.mubr.f32.gmra.mrb[0].mxu0 %v3942
    %v3944 = vpop.f32.mrb[0].mxu0
    %v3945 = vadd.f32 %v3742, %v3944
    %v3946 = vpop.f32.mrb[0].mxu0
    %v3947 = vadd.f32 %v3744, %v3946
    %3948 = vdwg.mxu0
    %v3949 = vand.u32 %v3145, 4294901760
    %3950 = vmatprep.subr.mxu0 %v3949
    %v3951 = vand.u32 %v3144, 4294901760
    %3952 = vmatpush1.msra.mxu0 %v3951
    %v3953 = vand.u32 %v3147, 4294901760
    %3954 = vmatprep.subr.mxu0 %v3953
    %v3955 = vand.u32 %v3146, 4294901760
    %3956 = vmatpush1.msra.mxu0 %v3955
    %v3957 = vand.u32 %v3149, 4294901760
    %3958 = vmatprep.subr.mxu0 %v3957
    %v3959 = vand.u32 %v3148, 4294901760
    %3960 = vmatpush1.msra.mxu0 %v3959
    %v3961 = vand.u32 %v3151, 4294901760
    %3962 = vmatprep.subr.mxu0 %v3961
    %v3963 = vand.u32 %v3150, 4294901760
    %3964 = vmatpush1.msra.mxu0 %v3963
    %v3965 = vand.u32 %v3153, 4294901760
    %3966 = vmatprep.subr.mxu0 %v3965
    %v3967 = vand.u32 %v3152, 4294901760
    %3968 = vmatpush1.msra.mxu0 %v3967
    %v3969 = vand.u32 %v3155, 4294901760
    %3970 = vmatprep.subr.mxu0 %v3969
    %v3971 = vand.u32 %v3154, 4294901760
    %3972 = vmatpush1.msra.mxu0 %v3971
    %v3973 = vand.u32 %v3157, 4294901760
    %3974 = vmatprep.subr.mxu0 %v3973
    %v3975 = vand.u32 %v3156, 4294901760
    %3976 = vmatpush1.msra.mxu0 %v3975
    %v3977 = vand.u32 %v3159, 4294901760
    %3978 = vmatprep.subr.mxu0 %v3977
    %v3979 = vand.u32 %v3158, 4294901760
    %3980 = vmatpush1.msra.mxu0 %v3979
    %v3981 = vand.u32 %v3161, 4294901760
    %3982 = vmatprep.subr.mxu0 %v3981
    %v3983 = vand.u32 %v3160, 4294901760
    %3984 = vmatpush1.msra.mxu0 %v3983
    %v3985 = vand.u32 %v3163, 4294901760
    %3986 = vmatprep.subr.mxu0 %v3985
    %v3987 = vand.u32 %v3162, 4294901760
    %3988 = vmatpush1.msra.mxu0 %v3987
    %v3989 = vand.u32 %v3165, 4294901760
    %3990 = vmatprep.subr.mxu0 %v3989
    %v3991 = vand.u32 %v3164, 4294901760
    %3992 = vmatpush1.msra.mxu0 %v3991
    %v3993 = vand.u32 %v3167, 4294901760
    %3994 = vmatprep.subr.mxu0 %v3993
    %v3995 = vand.u32 %v3166, 4294901760
    %3996 = vmatpush1.msra.mxu0 %v3995
    %v3997 = vand.u32 %v3169, 4294901760
    %3998 = vmatprep.subr.mxu0 %v3997
    %v3999 = vand.u32 %v3168, 4294901760
    %4000 = vmatpush1.msra.mxu0 %v3999
    %v4001 = vand.u32 %v3171, 4294901760
    %4002 = vmatprep.subr.mxu0 %v4001
    %v4003 = vand.u32 %v3170, 4294901760
    %4004 = vmatpush1.msra.mxu0 %v4003
    %v4005 = vand.u32 %v3173, 4294901760
    %4006 = vmatprep.subr.mxu0 %v4005
    %v4007 = vand.u32 %v3172, 4294901760
    %4008 = vmatpush1.msra.mxu0 %v4007
    %v4009 = vand.u32 %v3175, 4294901760
    %4010 = vmatprep.subr.mxu0 %v4009
    %v4011 = vand.u32 %v3174, 4294901760
    %4012 = vmatpush1.msra.mxu0 %v4011
    %v4013 = vand.u32 %v3177, 4294901760
    %4014 = vmatprep.subr.mxu0 %v4013
    %v4015 = vand.u32 %v3176, 4294901760
    %4016 = vmatpush1.msra.mxu0 %v4015
    %v4017 = vand.u32 %v3179, 4294901760
    %4018 = vmatprep.subr.mxu0 %v4017
    %v4019 = vand.u32 %v3178, 4294901760
    %4020 = vmatpush1.msra.mxu0 %v4019
    %v4021 = vand.u32 %v3181, 4294901760
    %4022 = vmatprep.subr.mxu0 %v4021
    %v4023 = vand.u32 %v3180, 4294901760
    %4024 = vmatpush1.msra.mxu0 %v4023
    %v4025 = vand.u32 %v3183, 4294901760
    %4026 = vmatprep.subr.mxu0 %v4025
    %v4027 = vand.u32 %v3182, 4294901760
    %4028 = vmatpush1.msra.mxu0 %v4027
    %v4029 = vand.u32 %v3185, 4294901760
    %4030 = vmatprep.subr.mxu0 %v4029
    %v4031 = vand.u32 %v3184, 4294901760
    %4032 = vmatpush1.msra.mxu0 %v4031
    %v4033 = vand.u32 %v3187, 4294901760
    %4034 = vmatprep.subr.mxu0 %v4033
    %v4035 = vand.u32 %v3186, 4294901760
    %4036 = vmatpush1.msra.mxu0 %v4035
    %v4037 = vand.u32 %v3189, 4294901760
    %4038 = vmatprep.subr.mxu0 %v4037
    %v4039 = vand.u32 %v3188, 4294901760
    %4040 = vmatpush1.msra.mxu0 %v4039
    %v4041 = vand.u32 %v3191, 4294901760
    %4042 = vmatprep.subr.mxu0 %v4041
    %v4043 = vand.u32 %v3190, 4294901760
    %4044 = vmatpush1.msra.mxu0 %v4043
    %v4045 = vand.u32 %v3193, 4294901760
    %4046 = vmatprep.subr.mxu0 %v4045
    %v4047 = vand.u32 %v3192, 4294901760
    %4048 = vmatpush1.msra.mxu0 %v4047
    %v4049 = vand.u32 %v3195, 4294901760
    %4050 = vmatprep.subr.mxu0 %v4049
    %v4051 = vand.u32 %v3194, 4294901760
    %4052 = vmatpush1.msra.mxu0 %v4051
    %v4053 = vand.u32 %v3197, 4294901760
    %4054 = vmatprep.subr.mxu0 %v4053
    %v4055 = vand.u32 %v3196, 4294901760
    %4056 = vmatpush1.msra.mxu0 %v4055
    %v4057 = vand.u32 %v3199, 4294901760
    %4058 = vmatprep.subr.mxu0 %v4057
    %v4059 = vand.u32 %v3198, 4294901760
    %4060 = vmatpush1.msra.mxu0 %v4059
    %v4061 = vand.u32 %v3201, 4294901760
    %4062 = vmatprep.subr.mxu0 %v4061
    %v4063 = vand.u32 %v3200, 4294901760
    %4064 = vmatpush1.msra.mxu0 %v4063
    %v4065 = vand.u32 %v3203, 4294901760
    %4066 = vmatprep.subr.mxu0 %v4065
    %v4067 = vand.u32 %v3202, 4294901760
    %4068 = vmatpush1.msra.mxu0 %v4067
    %v4069 = vand.u32 %v3205, 4294901760
    %4070 = vmatprep.subr.mxu0 %v4069
    %v4071 = vand.u32 %v3204, 4294901760
    %4072 = vmatpush1.msra.mxu0 %v4071
    %v4073 = vand.u32 %v3207, 4294901760
    %4074 = vmatprep.subr.mxu0 %v4073
    %v4075 = vand.u32 %v3206, 4294901760
    %4076 = vmatpush1.msra.mxu0 %v4075
    %v4077 = vand.u32 %v3079, 4294901760
    %v4078 = vsub.f32 %v3079, %v4077
    %v4079 = vand.u32 %v4078, 4294901760
    %4080 = vmatprep.mubr.f32.mxu0 %v4079
    %v4081 = vand.u32 %v3078, 4294901760
    %v4082 = vsub.f32 %v3078, %v4081
    %v4083 = vand.u32 %v4082, 4294901760
    %4084 = vmatmul.mubr.f32.gmra.mrb[0].mxu0 %v4083
    %v4085 = vpop.f32.mrb[0].mxu0
    %v4086 = vadd.f32 %v3945, %v4085
    %v4087 = vpop.f32.mrb[0].mxu0
    %v4088 = vadd.f32 %v3947, %v4087
    %4089 = vdwg.mxu0
    %v4090 = vand.u32 %v3145, 4294901760
    %v4091 = vsub.f32 %v3145, %v4090
    %v4092 = vand.u32 %v4091, 4294901760
    %4093 = vmatprep.subr.mxu0 %v4092
    %v4094 = vand.u32 %v3144, 4294901760
    %v4095 = vsub.f32 %v3144, %v4094
    %v4096 = vand.u32 %v4095, 4294901760
    %4097 = vmatpush1.msra.mxu0 %v4096
    %v4098 = vand.u32 %v3147, 4294901760
    %v4099 = vsub.f32 %v3147, %v4098
    %v4100 = vand.u32 %v4099, 4294901760
    %4101 = vmatprep.subr.mxu0 %v4100
    %v4102 = vand.u32 %v3146, 4294901760
    %v4103 = vsub.f32 %v3146, %v4102
    %v4104 = vand.u32 %v4103, 4294901760
    %4105 = vmatpush1.msra.mxu0 %v4104
    %v4106 = vand.u32 %v3149, 4294901760
    %v4107 = vsub.f32 %v3149, %v4106
    %v4108 = vand.u32 %v4107, 4294901760
    %4109 = vmatprep.subr.mxu0 %v4108
    %v4110 = vand.u32 %v3148, 4294901760
    %v4111 = vsub.f32 %v3148, %v4110
    %v4112 = vand.u32 %v4111, 4294901760
    %4113 = vmatpush1.msra.mxu0 %v4112
    %v4114 = vand.u32 %v3151, 4294901760
    %v4115 = vsub.f32 %v3151, %v4114
    %v4116 = vand.u32 %v4115, 4294901760
    %4117 = vmatprep.subr.mxu0 %v4116
    %v4118 = vand.u32 %v3150, 4294901760
    %v4119 = vsub.f32 %v3150, %v4118
    %v4120 = vand.u32 %v4119, 4294901760
    %4121 = vmatpush1.msra.mxu0 %v4120
    %v4122 = vand.u32 %v3153, 4294901760
    %v4123 = vsub.f32 %v3153, %v4122
    %v4124 = vand.u32 %v4123, 4294901760
    %4125 = vmatprep.subr.mxu0 %v4124
    %v4126 = vand.u32 %v3152, 4294901760
    %v4127 = vsub.f32 %v3152, %v4126
    %v4128 = vand.u32 %v4127, 4294901760
    %4129 = vmatpush1.msra.mxu0 %v4128
    %v4130 = vand.u32 %v3155, 4294901760
    %v4131 = vsub.f32 %v3155, %v4130
    %v4132 = vand.u32 %v4131, 4294901760
    %4133 = vmatprep.subr.mxu0 %v4132
    %v4134 = vand.u32 %v3154, 4294901760
    %v4135 = vsub.f32 %v3154, %v4134
    %v4136 = vand.u32 %v4135, 4294901760
    %4137 = vmatpush1.msra.mxu0 %v4136
    %v4138 = vand.u32 %v3157, 4294901760
    %v4139 = vsub.f32 %v3157, %v4138
    %v4140 = vand.u32 %v4139, 4294901760
    %4141 = vmatprep.subr.mxu0 %v4140
    %v4142 = vand.u32 %v3156, 4294901760
    %v4143 = vsub.f32 %v3156, %v4142
    %v4144 = vand.u32 %v4143, 4294901760
    %4145 = vmatpush1.msra.mxu0 %v4144
    %v4146 = vand.u32 %v3159, 4294901760
    %v4147 = vsub.f32 %v3159, %v4146
    %v4148 = vand.u32 %v4147, 4294901760
    %4149 = vmatprep.subr.mxu0 %v4148
    %v4150 = vand.u32 %v3158, 4294901760
    %v4151 = vsub.f32 %v3158, %v4150
    %v4152 = vand.u32 %v4151, 4294901760
    %4153 = vmatpush1.msra.mxu0 %v4152
    %v4154 = vand.u32 %v3161, 4294901760
    %v4155 = vsub.f32 %v3161, %v4154
    %v4156 = vand.u32 %v4155, 4294901760
    %4157 = vmatprep.subr.mxu0 %v4156
    %v4158 = vand.u32 %v3160, 4294901760
    %v4159 = vsub.f32 %v3160, %v4158
    %v4160 = vand.u32 %v4159, 4294901760
    %4161 = vmatpush1.msra.mxu0 %v4160
    %v4162 = vand.u32 %v3163, 4294901760
    %v4163 = vsub.f32 %v3163, %v4162
    %v4164 = vand.u32 %v4163, 4294901760
    %4165 = vmatprep.subr.mxu0 %v4164
    %v4166 = vand.u32 %v3162, 4294901760
    %v4167 = vsub.f32 %v3162, %v4166
    %v4168 = vand.u32 %v4167, 4294901760
    %4169 = vmatpush1.msra.mxu0 %v4168
    %v4170 = vand.u32 %v3165, 4294901760
    %v4171 = vsub.f32 %v3165, %v4170
    %v4172 = vand.u32 %v4171, 4294901760
    %4173 = vmatprep.subr.mxu0 %v4172
    %v4174 = vand.u32 %v3164, 4294901760
    %v4175 = vsub.f32 %v3164, %v4174
    %v4176 = vand.u32 %v4175, 4294901760
    %4177 = vmatpush1.msra.mxu0 %v4176
    %v4178 = vand.u32 %v3167, 4294901760
    %v4179 = vsub.f32 %v3167, %v4178
    %v4180 = vand.u32 %v4179, 4294901760
    %4181 = vmatprep.subr.mxu0 %v4180
    %v4182 = vand.u32 %v3166, 4294901760
    %v4183 = vsub.f32 %v3166, %v4182
    %v4184 = vand.u32 %v4183, 4294901760
    %4185 = vmatpush1.msra.mxu0 %v4184
    %v4186 = vand.u32 %v3169, 4294901760
    %v4187 = vsub.f32 %v3169, %v4186
    %v4188 = vand.u32 %v4187, 4294901760
    %4189 = vmatprep.subr.mxu0 %v4188
    %v4190 = vand.u32 %v3168, 4294901760
    %v4191 = vsub.f32 %v3168, %v4190
    %v4192 = vand.u32 %v4191, 4294901760
    %4193 = vmatpush1.msra.mxu0 %v4192
    %v4194 = vand.u32 %v3171, 4294901760
    %v4195 = vsub.f32 %v3171, %v4194
    %v4196 = vand.u32 %v4195, 4294901760
    %4197 = vmatprep.subr.mxu0 %v4196
    %v4198 = vand.u32 %v3170, 4294901760
    %v4199 = vsub.f32 %v3170, %v4198
    %v4200 = vand.u32 %v4199, 4294901760
    %4201 = vmatpush1.msra.mxu0 %v4200
    %v4202 = vand.u32 %v3173, 4294901760
    %v4203 = vsub.f32 %v3173, %v4202
    %v4204 = vand.u32 %v4203, 4294901760
    %4205 = vmatprep.subr.mxu0 %v4204
    %v4206 = vand.u32 %v3172, 4294901760
    %v4207 = vsub.f32 %v3172, %v4206
    %v4208 = vand.u32 %v4207, 4294901760
    %4209 = vmatpush1.msra.mxu0 %v4208
    %v4210 = vand.u32 %v3175, 4294901760
    %v4211 = vsub.f32 %v3175, %v4210
    %v4212 = vand.u32 %v4211, 4294901760
    %4213 = vmatprep.subr.mxu0 %v4212
    %v4214 = vand.u32 %v3174, 4294901760
    %v4215 = vsub.f32 %v3174, %v4214
    %v4216 = vand.u32 %v4215, 4294901760
    %4217 = vmatpush1.msra.mxu0 %v4216
    %v4218 = vand.u32 %v3177, 4294901760
    %v4219 = vsub.f32 %v3177, %v4218
    %v4220 = vand.u32 %v4219, 4294901760
    %4221 = vmatprep.subr.mxu0 %v4220
    %v4222 = vand.u32 %v3176, 4294901760
    %v4223 = vsub.f32 %v3176, %v4222
    %v4224 = vand.u32 %v4223, 4294901760
    %4225 = vmatpush1.msra.mxu0 %v4224
    %v4226 = vand.u32 %v3179, 4294901760
    %v4227 = vsub.f32 %v3179, %v4226
    %v4228 = vand.u32 %v4227, 4294901760
    %4229 = vmatprep.subr.mxu0 %v4228
    %v4230 = vand.u32 %v3178, 4294901760
    %v4231 = vsub.f32 %v3178, %v4230
    %v4232 = vand.u32 %v4231, 4294901760
    %4233 = vmatpush1.msra.mxu0 %v4232
    %v4234 = vand.u32 %v3181, 4294901760
    %v4235 = vsub.f32 %v3181, %v4234
    %v4236 = vand.u32 %v4235, 4294901760
    %4237 = vmatprep.subr.mxu0 %v4236
    %v4238 = vand.u32 %v3180, 4294901760
    %v4239 = vsub.f32 %v3180, %v4238
    %v4240 = vand.u32 %v4239, 4294901760
    %4241 = vmatpush1.msra.mxu0 %v4240
    %v4242 = vand.u32 %v3183, 4294901760
    %v4243 = vsub.f32 %v3183, %v4242
    %v4244 = vand.u32 %v4243, 4294901760
    %4245 = vmatprep.subr.mxu0 %v4244
    %v4246 = vand.u32 %v3182, 4294901760
    %v4247 = vsub.f32 %v3182, %v4246
    %v4248 = vand.u32 %v4247, 4294901760
    %4249 = vmatpush1.msra.mxu0 %v4248
    %v4250 = vand.u32 %v3185, 4294901760
    %v4251 = vsub.f32 %v3185, %v4250
    %v4252 = vand.u32 %v4251, 4294901760
    %4253 = vmatprep.subr.mxu0 %v4252
    %v4254 = vand.u32 %v3184, 4294901760
    %v4255 = vsub.f32 %v3184, %v4254
    %v4256 = vand.u32 %v4255, 4294901760
    %4257 = vmatpush1.msra.mxu0 %v4256
    %v4258 = vand.u32 %v3187, 4294901760
    %v4259 = vsub.f32 %v3187, %v4258
    %v4260 = vand.u32 %v4259, 4294901760
    %4261 = vmatprep.subr.mxu0 %v4260
    %v4262 = vand.u32 %v3186, 4294901760
    %v4263 = vsub.f32 %v3186, %v4262
    %v4264 = vand.u32 %v4263, 4294901760
    %4265 = vmatpush1.msra.mxu0 %v4264
    %v4266 = vand.u32 %v3189, 4294901760
    %v4267 = vsub.f32 %v3189, %v4266
    %v4268 = vand.u32 %v4267, 4294901760
    %4269 = vmatprep.subr.mxu0 %v4268
    %v4270 = vand.u32 %v3188, 4294901760
    %v4271 = vsub.f32 %v3188, %v4270
    %v4272 = vand.u32 %v4271, 4294901760
    %4273 = vmatpush1.msra.mxu0 %v4272
    %v4274 = vand.u32 %v3191, 4294901760
    %v4275 = vsub.f32 %v3191, %v4274
    %v4276 = vand.u32 %v4275, 4294901760
    %4277 = vmatprep.subr.mxu0 %v4276
    %v4278 = vand.u32 %v3190, 4294901760
    %v4279 = vsub.f32 %v3190, %v4278
    %v4280 = vand.u32 %v4279, 4294901760
    %4281 = vmatpush1.msra.mxu0 %v4280
    %v4282 = vand.u32 %v3193, 4294901760
    %v4283 = vsub.f32 %v3193, %v4282
    %v4284 = vand.u32 %v4283, 4294901760
    %4285 = vmatprep.subr.mxu0 %v4284
    %v4286 = vand.u32 %v3192, 4294901760
    %v4287 = vsub.f32 %v3192, %v4286
    %v4288 = vand.u32 %v4287, 4294901760
    %4289 = vmatpush1.msra.mxu0 %v4288
    %v4290 = vand.u32 %v3195, 4294901760
    %v4291 = vsub.f32 %v3195, %v4290
    %v4292 = vand.u32 %v4291, 4294901760
    %4293 = vmatprep.subr.mxu0 %v4292
    %v4294 = vand.u32 %v3194, 4294901760
    %v4295 = vsub.f32 %v3194, %v4294
    %v4296 = vand.u32 %v4295, 4294901760
    %4297 = vmatpush1.msra.mxu0 %v4296
    %v4298 = vand.u32 %v3197, 4294901760
    %v4299 = vsub.f32 %v3197, %v4298
    %v4300 = vand.u32 %v4299, 4294901760
    %4301 = vmatprep.subr.mxu0 %v4300
    %v4302 = vand.u32 %v3196, 4294901760
    %v4303 = vsub.f32 %v3196, %v4302
    %v4304 = vand.u32 %v4303, 4294901760
    %4305 = vmatpush1.msra.mxu0 %v4304
    %v4306 = vand.u32 %v3199, 4294901760
    %v4307 = vsub.f32 %v3199, %v4306
    %v4308 = vand.u32 %v4307, 4294901760
    %4309 = vmatprep.subr.mxu0 %v4308
    %v4310 = vand.u32 %v3198, 4294901760
    %v4311 = vsub.f32 %v3198, %v4310
    %v4312 = vand.u32 %v4311, 4294901760
    %4313 = vmatpush1.msra.mxu0 %v4312
    %v4314 = vand.u32 %v3201, 4294901760
    %v4315 = vsub.f32 %v3201, %v4314
    %v4316 = vand.u32 %v4315, 4294901760
    %4317 = vmatprep.subr.mxu0 %v4316
    %v4318 = vand.u32 %v3200, 4294901760
    %v4319 = vsub.f32 %v3200, %v4318
    %v4320 = vand.u32 %v4319, 4294901760
    %4321 = vmatpush1.msra.mxu0 %v4320
    %v4322 = vand.u32 %v3203, 4294901760
    %v4323 = vsub.f32 %v3203, %v4322
    %v4324 = vand.u32 %v4323, 4294901760
    %4325 = vmatprep.subr.mxu0 %v4324
    %v4326 = vand.u32 %v3202, 4294901760
    %v4327 = vsub.f32 %v3202, %v4326
    %v4328 = vand.u32 %v4327, 4294901760
    %4329 = vmatpush1.msra.mxu0 %v4328
    %v4330 = vand.u32 %v3205, 4294901760
    %v4331 = vsub.f32 %v3205, %v4330
    %v4332 = vand.u32 %v4331, 4294901760
    %4333 = vmatprep.subr.mxu0 %v4332
    %v4334 = vand.u32 %v3204, 4294901760
    %v4335 = vsub.f32 %v3204, %v4334
    %v4336 = vand.u32 %v4335, 4294901760
    %4337 = vmatpush1.msra.mxu0 %v4336
    %v4338 = vand.u32 %v3207, 4294901760
    %v4339 = vsub.f32 %v3207, %v4338
    %v4340 = vand.u32 %v4339, 4294901760
    %4341 = vmatprep.subr.mxu0 %v4340
    %v4342 = vand.u32 %v3206, 4294901760
    %v4343 = vsub.f32 %v3206, %v4342
    %v4344 = vand.u32 %v4343, 4294901760
    %4345 = vmatpush1.msra.mxu0 %v4344
    %v4346 = vand.u32 %v3079, 4294901760
    %4347 = vmatprep.mubr.f32.mxu0 %v4346
    %v4348 = vand.u32 %v3078, 4294901760
    %4349 = vmatmul.mubr.f32.gmra.mrb[0].mxu0 %v4348
    %v4350 = vpop.f32.mrb[0].mxu0
    %v4351 = vadd.f32 %v4086, %v4350
    %v4352 = vpop.f32.mrb[0].mxu0
    %v4353 = vadd.f32 %v4088, %v4352
    %4354 = vdwg.mxu0
    %v4355 = vand.u32 %v3145, 4294901760
    %4356 = vmatprep.subr.mxu0 %v4355
    %v4357 = vand.u32 %v3144, 4294901760
    %4358 = vmatpush1.msra.mxu0 %v4357
    %v4359 = vand.u32 %v3147, 4294901760
    %4360 = vmatprep.subr.mxu0 %v4359
    %v4361 = vand.u32 %v3146, 4294901760
    %4362 = vmatpush1.msra.mxu0 %v4361
    %v4363 = vand.u32 %v3149, 4294901760
    %4364 = vmatprep.subr.mxu0 %v4363
    %v4365 = vand.u32 %v3148, 4294901760
    %4366 = vmatpush1.msra.mxu0 %v4365
    %v4367 = vand.u32 %v3151, 4294901760
    %4368 = vmatprep.subr.mxu0 %v4367
    %v4369 = vand.u32 %v3150, 4294901760
    %4370 = vmatpush1.msra.mxu0 %v4369
    %v4371 = vand.u32 %v3153, 4294901760
    %4372 = vmatprep.subr.mxu0 %v4371
    %v4373 = vand.u32 %v3152, 4294901760
    %4374 = vmatpush1.msra.mxu0 %v4373
    %v4375 = vand.u32 %v3155, 4294901760
    %4376 = vmatprep.subr.mxu0 %v4375
    %v4377 = vand.u32 %v3154, 4294901760
    %4378 = vmatpush1.msra.mxu0 %v4377
    %v4379 = vand.u32 %v3157, 4294901760
    %4380 = vmatprep.subr.mxu0 %v4379
    %v4381 = vand.u32 %v3156, 4294901760
    %4382 = vmatpush1.msra.mxu0 %v4381
    %v4383 = vand.u32 %v3159, 4294901760
    %4384 = vmatprep.subr.mxu0 %v4383
    %v4385 = vand.u32 %v3158, 4294901760
    %4386 = vmatpush1.msra.mxu0 %v4385
    %v4387 = vand.u32 %v3161, 4294901760
    %4388 = vmatprep.subr.mxu0 %v4387
    %v4389 = vand.u32 %v3160, 4294901760
    %4390 = vmatpush1.msra.mxu0 %v4389
    %v4391 = vand.u32 %v3163, 4294901760
    %4392 = vmatprep.subr.mxu0 %v4391
    %v4393 = vand.u32 %v3162, 4294901760
    %4394 = vmatpush1.msra.mxu0 %v4393
    %v4395 = vand.u32 %v3165, 4294901760
    %4396 = vmatprep.subr.mxu0 %v4395
    %v4397 = vand.u32 %v3164, 4294901760
    %4398 = vmatpush1.msra.mxu0 %v4397
    %v4399 = vand.u32 %v3167, 4294901760
    %4400 = vmatprep.subr.mxu0 %v4399
    %v4401 = vand.u32 %v3166, 4294901760
    %4402 = vmatpush1.msra.mxu0 %v4401
    %v4403 = vand.u32 %v3169, 4294901760
    %4404 = vmatprep.subr.mxu0 %v4403
    %v4405 = vand.u32 %v3168, 4294901760
    %4406 = vmatpush1.msra.mxu0 %v4405
    %v4407 = vand.u32 %v3171, 4294901760
    %4408 = vmatprep.subr.mxu0 %v4407
    %v4409 = vand.u32 %v3170, 4294901760
    %4410 = vmatpush1.msra.mxu0 %v4409
    %v4411 = vand.u32 %v3173, 4294901760
    %4412 = vmatprep.subr.mxu0 %v4411
    %v4413 = vand.u32 %v3172, 4294901760
    %4414 = vmatpush1.msra.mxu0 %v4413
    %v4415 = vand.u32 %v3175, 4294901760
    %4416 = vmatprep.subr.mxu0 %v4415
    %v4417 = vand.u32 %v3174, 4294901760
    %4418 = vmatpush1.msra.mxu0 %v4417
    %v4419 = vand.u32 %v3177, 4294901760
    %4420 = vmatprep.subr.mxu0 %v4419
    %v4421 = vand.u32 %v3176, 4294901760
    %4422 = vmatpush1.msra.mxu0 %v4421
    %v4423 = vand.u32 %v3179, 4294901760
    %4424 = vmatprep.subr.mxu0 %v4423
    %v4425 = vand.u32 %v3178, 4294901760
    %4426 = vmatpush1.msra.mxu0 %v4425
    %v4427 = vand.u32 %v3181, 4294901760
    %4428 = vmatprep.subr.mxu0 %v4427
    %v4429 = vand.u32 %v3180, 4294901760
    %4430 = vmatpush1.msra.mxu0 %v4429
    %v4431 = vand.u32 %v3183, 4294901760
    %4432 = vmatprep.subr.mxu0 %v4431
    %v4433 = vand.u32 %v3182, 4294901760
    %4434 = vmatpush1.msra.mxu0 %v4433
    %v4435 = vand.u32 %v3185, 4294901760
    %4436 = vmatprep.subr.mxu0 %v4435
    %v4437 = vand.u32 %v3184, 4294901760
    %4438 = vmatpush1.msra.mxu0 %v4437
    %v4439 = vand.u32 %v3187, 4294901760
    %4440 = vmatprep.subr.mxu0 %v4439
    %v4441 = vand.u32 %v3186, 4294901760
    %4442 = vmatpush1.msra.mxu0 %v4441
    %v4443 = vand.u32 %v3189, 4294901760
    %4444 = vmatprep.subr.mxu0 %v4443
    %v4445 = vand.u32 %v3188, 4294901760
    %4446 = vmatpush1.msra.mxu0 %v4445
    %v4447 = vand.u32 %v3191, 4294901760
    %4448 = vmatprep.subr.mxu0 %v4447
    %v4449 = vand.u32 %v3190, 4294901760
    %4450 = vmatpush1.msra.mxu0 %v4449
    %v4451 = vand.u32 %v3193, 4294901760
    %4452 = vmatprep.subr.mxu0 %v4451
    %v4453 = vand.u32 %v3192, 4294901760
    %4454 = vmatpush1.msra.mxu0 %v4453
    %v4455 = vand.u32 %v3195, 4294901760
    %4456 = vmatprep.subr.mxu0 %v4455
    %v4457 = vand.u32 %v3194, 4294901760
    %4458 = vmatpush1.msra.mxu0 %v4457
    %v4459 = vand.u32 %v3197, 4294901760
    %4460 = vmatprep.subr.mxu0 %v4459
    %v4461 = vand.u32 %v3196, 4294901760
    %4462 = vmatpush1.msra.mxu0 %v4461
    %v4463 = vand.u32 %v3199, 4294901760
    %4464 = vmatprep.subr.mxu0 %v4463
    %v4465 = vand.u32 %v3198, 4294901760
    %4466 = vmatpush1.msra.mxu0 %v4465
    %v4467 = vand.u32 %v3201, 4294901760
    %4468 = vmatprep.subr.mxu0 %v4467
    %v4469 = vand.u32 %v3200, 4294901760
    %4470 = vmatpush1.msra.mxu0 %v4469
    %v4471 = vand.u32 %v3203, 4294901760
    %4472 = vmatprep.subr.mxu0 %v4471
    %v4473 = vand.u32 %v3202, 4294901760
    %4474 = vmatpush1.msra.mxu0 %v4473
    %v4475 = vand.u32 %v3205, 4294901760
    %4476 = vmatprep.subr.mxu0 %v4475
    %v4477 = vand.u32 %v3204, 4294901760
    %4478 = vmatpush1.msra.mxu0 %v4477
    %v4479 = vand.u32 %v3207, 4294901760
    %4480 = vmatprep.subr.mxu0 %v4479
    %v4481 = vand.u32 %v3206, 4294901760
    %4482 = vmatpush1.msra.mxu0 %v4481
    %v4483 = vand.u32 %v3079, 4294901760
    %4484 = vmatprep.mubr.f32.mxu0 %v4483
    %v4485 = vand.u32 %v3078, 4294901760
    %4486 = vmatmul.mubr.f32.gmra.mrb[0].mxu0 %v4485
    %v4487 = vpop.f32.mrb[0].mxu0
    %v4488 = vadd.f32 %v4351, %v4487
    %v4489 = vpop.f32.mrb[0].mxu0
    %v4490 = vadd.f32 %v4353, %v4489
    %4491 = vdwg.mxu0
    %v4492 = vand.u32 %v3081, 4294901760
    %4493 = vmatprep.subr.mxu0 %v4492
    %v4494 = vand.u32 %v3080, 4294901760
    %4495 = vmatpush1.msra.mxu0 %v4494
    %v4496 = vand.u32 %v3083, 4294901760
    %4497 = vmatprep.subr.mxu0 %v4496
    %v4498 = vand.u32 %v3082, 4294901760
    %4499 = vmatpush1.msra.mxu0 %v4498
    %v4500 = vand.u32 %v3085, 4294901760
    %4501 = vmatprep.subr.mxu0 %v4500
    %v4502 = vand.u32 %v3084, 4294901760
    %4503 = vmatpush1.msra.mxu0 %v4502
    %v4504 = vand.u32 %v3087, 4294901760
    %4505 = vmatprep.subr.mxu0 %v4504
    %v4506 = vand.u32 %v3086, 4294901760
    %4507 = vmatpush1.msra.mxu0 %v4506
    %v4508 = vand.u32 %v3089, 4294901760
    %4509 = vmatprep.subr.mxu0 %v4508
    %v4510 = vand.u32 %v3088, 4294901760
    %4511 = vmatpush1.msra.mxu0 %v4510
    %v4512 = vand.u32 %v3091, 4294901760
    %4513 = vmatprep.subr.mxu0 %v4512
    %v4514 = vand.u32 %v3090, 4294901760
    %4515 = vmatpush1.msra.mxu0 %v4514
    %v4516 = vand.u32 %v3093, 4294901760
    %4517 = vmatprep.subr.mxu0 %v4516
    %v4518 = vand.u32 %v3092, 4294901760
    %4519 = vmatpush1.msra.mxu0 %v4518
    %v4520 = vand.u32 %v3095, 4294901760
    %4521 = vmatprep.subr.mxu0 %v4520
    %v4522 = vand.u32 %v3094, 4294901760
    %4523 = vmatpush1.msra.mxu0 %v4522
    %v4524 = vand.u32 %v3097, 4294901760
    %4525 = vmatprep.subr.mxu0 %v4524
    %v4526 = vand.u32 %v3096, 4294901760
    %4527 = vmatpush1.msra.mxu0 %v4526
    %v4528 = vand.u32 %v3099, 4294901760
    %4529 = vmatprep.subr.mxu0 %v4528
    %v4530 = vand.u32 %v3098, 4294901760
    %4531 = vmatpush1.msra.mxu0 %v4530
    %v4532 = vand.u32 %v3101, 4294901760
    %4533 = vmatprep.subr.mxu0 %v4532
    %v4534 = vand.u32 %v3100, 4294901760
    %4535 = vmatpush1.msra.mxu0 %v4534
    %v4536 = vand.u32 %v3103, 4294901760
    %4537 = vmatprep.subr.mxu0 %v4536
    %v4538 = vand.u32 %v3102, 4294901760
    %4539 = vmatpush1.msra.mxu0 %v4538
    %v4540 = vand.u32 %v3105, 4294901760
    %4541 = vmatprep.subr.mxu0 %v4540
    %v4542 = vand.u32 %v3104, 4294901760
    %4543 = vmatpush1.msra.mxu0 %v4542
    %v4544 = vand.u32 %v3107, 4294901760
    %4545 = vmatprep.subr.mxu0 %v4544
    %v4546 = vand.u32 %v3106, 4294901760
    %4547 = vmatpush1.msra.mxu0 %v4546
    %v4548 = vand.u32 %v3109, 4294901760
    %4549 = vmatprep.subr.mxu0 %v4548
    %v4550 = vand.u32 %v3108, 4294901760
    %4551 = vmatpush1.msra.mxu0 %v4550
    %v4552 = vand.u32 %v3111, 4294901760
    %4553 = vmatprep.subr.mxu0 %v4552
    %v4554 = vand.u32 %v3110, 4294901760
    %4555 = vmatpush1.msra.mxu0 %v4554
    %v4556 = vand.u32 %v3113, 4294901760
    %4557 = vmatprep.subr.mxu0 %v4556
    %v4558 = vand.u32 %v3112, 4294901760
    %4559 = vmatpush1.msra.mxu0 %v4558
    %v4560 = vand.u32 %v3115, 4294901760
    %4561 = vmatprep.subr.mxu0 %v4560
    %v4562 = vand.u32 %v3114, 4294901760
    %4563 = vmatpush1.msra.mxu0 %v4562
    %v4564 = vand.u32 %v3117, 4294901760
    %4565 = vmatprep.subr.mxu0 %v4564
    %v4566 = vand.u32 %v3116, 4294901760
    %4567 = vmatpush1.msra.mxu0 %v4566
    %v4568 = vand.u32 %v3119, 4294901760
    %4569 = vmatprep.subr.mxu0 %v4568
    %v4570 = vand.u32 %v3118, 4294901760
    %4571 = vmatpush1.msra.mxu0 %v4570
    %v4572 = vand.u32 %v3121, 4294901760
    %4573 = vmatprep.subr.mxu0 %v4572
    %v4574 = vand.u32 %v3120, 4294901760
    %4575 = vmatpush1.msra.mxu0 %v4574
    %v4576 = vand.u32 %v3123, 4294901760
    %4577 = vmatprep.subr.mxu0 %v4576
    %v4578 = vand.u32 %v3122, 4294901760
    %4579 = vmatpush1.msra.mxu0 %v4578
    %v4580 = vand.u32 %v3125, 4294901760
    %4581 = vmatprep.subr.mxu0 %v4580
    %v4582 = vand.u32 %v3124, 4294901760
    %4583 = vmatpush1.msra.mxu0 %v4582
    %v4584 = vand.u32 %v3127, 4294901760
    %4585 = vmatprep.subr.mxu0 %v4584
    %v4586 = vand.u32 %v3126, 4294901760
    %4587 = vmatpush1.msra.mxu0 %v4586
    %v4588 = vand.u32 %v3129, 4294901760
    %4589 = vmatprep.subr.mxu0 %v4588
    %v4590 = vand.u32 %v3128, 4294901760
    %4591 = vmatpush1.msra.mxu0 %v4590
    %v4592 = vand.u32 %v3131, 4294901760
    %4593 = vmatprep.subr.mxu0 %v4592
    %v4594 = vand.u32 %v3130, 4294901760
    %4595 = vmatpush1.msra.mxu0 %v4594
    %v4596 = vand.u32 %v3133, 4294901760
    %4597 = vmatprep.subr.mxu0 %v4596
    %v4598 = vand.u32 %v3132, 4294901760
    %4599 = vmatpush1.msra.mxu0 %v4598
    %v4600 = vand.u32 %v3135, 4294901760
    %4601 = vmatprep.subr.mxu0 %v4600
    %v4602 = vand.u32 %v3134, 4294901760
    %4603 = vmatpush1.msra.mxu0 %v4602
    %v4604 = vand.u32 %v3137, 4294901760
    %4605 = vmatprep.subr.mxu0 %v4604
    %v4606 = vand.u32 %v3136, 4294901760
    %4607 = vmatpush1.msra.mxu0 %v4606
    %v4608 = vand.u32 %v3139, 4294901760
    %4609 = vmatprep.subr.mxu0 %v4608
    %v4610 = vand.u32 %v3138, 4294901760
    %4611 = vmatpush1.msra.mxu0 %v4610
    %v4612 = vand.u32 %v3141, 4294901760
    %4613 = vmatprep.subr.mxu0 %v4612
    %v4614 = vand.u32 %v3140, 4294901760
    %4615 = vmatpush1.msra.mxu0 %v4614
    %v4616 = vand.u32 %v3143, 4294901760
    %4617 = vmatprep.subr.mxu0 %v4616
    %v4618 = vand.u32 %v3142, 4294901760
    %4619 = vmatpush1.msra.mxu0 %v4618
    %v4620 = vand.u32 %v3069, 4294901760
    %v4621 = vsub.f32 %v3069, %v4620
    %v4622 = vand.u32 %v4621, 4294901760
    %v4623 = vsub.f32 %v4621, %v4622
    %v4624 = vand.u32 %v4623, 4294901760
    %4625 = vmatprep.mubr.f32.mxu0 %v4624
    %v4626 = vand.u32 %v3068, 4294901760
    %v4627 = vsub.f32 %v3068, %v4626
    %v4628 = vand.u32 %v4627, 4294901760
    %v4629 = vsub.f32 %v4627, %v4628
    %v4630 = vand.u32 %v4629, 4294901760
    %4631 = vmatmul.mubr.f32.gmra.mrb[0].mxu0 %v4630
    %v4632 = vpop.f32.mrb[0].mxu0
    %v4633 = vadd.f32 %v4488, %v4632
    %v4634 = vpop.f32.mrb[0].mxu0
    %v4635 = vadd.f32 %v4490, %v4634
    %4636 = vdwg.mxu0
    %v4637 = vand.u32 %v3081, 4294901760
    %v4638 = vsub.f32 %v3081, %v4637
    %v4639 = vand.u32 %v4638, 4294901760
    %v4640 = vsub.f32 %v4638, %v4639
    %v4641 = vand.u32 %v4640, 4294901760
    %4642 = vmatprep.subr.mxu0 %v4641
    %v4643 = vand.u32 %v3080, 4294901760
    %v4644 = vsub.f32 %v3080, %v4643
    %v4645 = vand.u32 %v4644, 4294901760
    %v4646 = vsub.f32 %v4644, %v4645
    %v4647 = vand.u32 %v4646, 4294901760
    %4648 = vmatpush1.msra.mxu0 %v4647
    %v4649 = vand.u32 %v3083, 4294901760
    %v4650 = vsub.f32 %v3083, %v4649
    %v4651 = vand.u32 %v4650, 4294901760
    %v4652 = vsub.f32 %v4650, %v4651
    %v4653 = vand.u32 %v4652, 4294901760
    %4654 = vmatprep.subr.mxu0 %v4653
    %v4655 = vand.u32 %v3082, 4294901760
    %v4656 = vsub.f32 %v3082, %v4655
    %v4657 = vand.u32 %v4656, 4294901760
    %v4658 = vsub.f32 %v4656, %v4657
    %v4659 = vand.u32 %v4658, 4294901760
    %4660 = vmatpush1.msra.mxu0 %v4659
    %v4661 = vand.u32 %v3085, 4294901760
    %v4662 = vsub.f32 %v3085, %v4661
    %v4663 = vand.u32 %v4662, 4294901760
    %v4664 = vsub.f32 %v4662, %v4663
    %v4665 = vand.u32 %v4664, 4294901760
    %4666 = vmatprep.subr.mxu0 %v4665
    %v4667 = vand.u32 %v3084, 4294901760
    %v4668 = vsub.f32 %v3084, %v4667
    %v4669 = vand.u32 %v4668, 4294901760
    %v4670 = vsub.f32 %v4668, %v4669
    %v4671 = vand.u32 %v4670, 4294901760
    %4672 = vmatpush1.msra.mxu0 %v4671
    %v4673 = vand.u32 %v3087, 4294901760
    %v4674 = vsub.f32 %v3087, %v4673
    %v4675 = vand.u32 %v4674, 4294901760
    %v4676 = vsub.f32 %v4674, %v4675
    %v4677 = vand.u32 %v4676, 4294901760
    %4678 = vmatprep.subr.mxu0 %v4677
    %v4679 = vand.u32 %v3086, 4294901760
    %v4680 = vsub.f32 %v3086, %v4679
    %v4681 = vand.u32 %v4680, 4294901760
    %v4682 = vsub.f32 %v4680, %v4681
    %v4683 = vand.u32 %v4682, 4294901760
    %4684 = vmatpush1.msra.mxu0 %v4683
    %v4685 = vand.u32 %v3089, 4294901760
    %v4686 = vsub.f32 %v3089, %v4685
    %v4687 = vand.u32 %v4686, 4294901760
    %v4688 = vsub.f32 %v4686, %v4687
    %v4689 = vand.u32 %v4688, 4294901760
    %4690 = vmatprep.subr.mxu0 %v4689
    %v4691 = vand.u32 %v3088, 4294901760
    %v4692 = vsub.f32 %v3088, %v4691
    %v4693 = vand.u32 %v4692, 4294901760
    %v4694 = vsub.f32 %v4692, %v4693
    %v4695 = vand.u32 %v4694, 4294901760
    %4696 = vmatpush1.msra.mxu0 %v4695
    %v4697 = vand.u32 %v3091, 4294901760
    %v4698 = vsub.f32 %v3091, %v4697
    %v4699 = vand.u32 %v4698, 4294901760
    %v4700 = vsub.f32 %v4698, %v4699
    %v4701 = vand.u32 %v4700, 4294901760
    %4702 = vmatprep.subr.mxu0 %v4701
    %v4703 = vand.u32 %v3090, 4294901760
    %v4704 = vsub.f32 %v3090, %v4703
    %v4705 = vand.u32 %v4704, 4294901760
    %v4706 = vsub.f32 %v4704, %v4705
    %v4707 = vand.u32 %v4706, 4294901760
    %4708 = vmatpush1.msra.mxu0 %v4707
    %v4709 = vand.u32 %v3093, 4294901760
    %v4710 = vsub.f32 %v3093, %v4709
    %v4711 = vand.u32 %v4710, 4294901760
    %v4712 = vsub.f32 %v4710, %v4711
    %v4713 = vand.u32 %v4712, 4294901760
    %4714 = vmatprep.subr.mxu0 %v4713
    %v4715 = vand.u32 %v3092, 4294901760
    %v4716 = vsub.f32 %v3092, %v4715
    %v4717 = vand.u32 %v4716, 4294901760
    %v4718 = vsub.f32 %v4716, %v4717
    %v4719 = vand.u32 %v4718, 4294901760
    %4720 = vmatpush1.msra.mxu0 %v4719
    %v4721 = vand.u32 %v3095, 4294901760
    %v4722 = vsub.f32 %v3095, %v4721
    %v4723 = vand.u32 %v4722, 4294901760
    %v4724 = vsub.f32 %v4722, %v4723
    %v4725 = vand.u32 %v4724, 4294901760
    %4726 = vmatprep.subr.mxu0 %v4725
    %v4727 = vand.u32 %v3094, 4294901760
    %v4728 = vsub.f32 %v3094, %v4727
    %v4729 = vand.u32 %v4728, 4294901760
    %v4730 = vsub.f32 %v4728, %v4729
    %v4731 = vand.u32 %v4730, 4294901760
    %4732 = vmatpush1.msra.mxu0 %v4731
    %v4733 = vand.u32 %v3097, 4294901760
    %v4734 = vsub.f32 %v3097, %v4733
    %v4735 = vand.u32 %v4734, 4294901760
    %v4736 = vsub.f32 %v4734, %v4735
    %v4737 = vand.u32 %v4736, 4294901760
    %4738 = vmatprep.subr.mxu0 %v4737
    %v4739 = vand.u32 %v3096, 4294901760
    %v4740 = vsub.f32 %v3096, %v4739
    %v4741 = vand.u32 %v4740, 4294901760
    %v4742 = vsub.f32 %v4740, %v4741
    %v4743 = vand.u32 %v4742, 4294901760
    %4744 = vmatpush1.msra.mxu0 %v4743
    %v4745 = vand.u32 %v3099, 4294901760
    %v4746 = vsub.f32 %v3099, %v4745
    %v4747 = vand.u32 %v4746, 4294901760
    %v4748 = vsub.f32 %v4746, %v4747
    %v4749 = vand.u32 %v4748, 4294901760
    %4750 = vmatprep.subr.mxu0 %v4749
    %v4751 = vand.u32 %v3098, 4294901760
    %v4752 = vsub.f32 %v3098, %v4751
    %v4753 = vand.u32 %v4752, 4294901760
    %v4754 = vsub.f32 %v4752, %v4753
    %v4755 = vand.u32 %v4754, 4294901760
    %4756 = vmatpush1.msra.mxu0 %v4755
    %v4757 = vand.u32 %v3101, 4294901760
    %v4758 = vsub.f32 %v3101, %v4757
    %v4759 = vand.u32 %v4758, 4294901760
    %v4760 = vsub.f32 %v4758, %v4759
    %v4761 = vand.u32 %v4760, 4294901760
    %4762 = vmatprep.subr.mxu0 %v4761
    %v4763 = vand.u32 %v3100, 4294901760
    %v4764 = vsub.f32 %v3100, %v4763
    %v4765 = vand.u32 %v4764, 4294901760
    %v4766 = vsub.f32 %v4764, %v4765
    %v4767 = vand.u32 %v4766, 4294901760
    %4768 = vmatpush1.msra.mxu0 %v4767
    %v4769 = vand.u32 %v3103, 4294901760
    %v4770 = vsub.f32 %v3103, %v4769
    %v4771 = vand.u32 %v4770, 4294901760
    %v4772 = vsub.f32 %v4770, %v4771
    %v4773 = vand.u32 %v4772, 4294901760
    %4774 = vmatprep.subr.mxu0 %v4773
    %v4775 = vand.u32 %v3102, 4294901760
    %v4776 = vsub.f32 %v3102, %v4775
    %v4777 = vand.u32 %v4776, 4294901760
    %v4778 = vsub.f32 %v4776, %v4777
    %v4779 = vand.u32 %v4778, 4294901760
    %4780 = vmatpush1.msra.mxu0 %v4779
    %v4781 = vand.u32 %v3105, 4294901760
    %v4782 = vsub.f32 %v3105, %v4781
    %v4783 = vand.u32 %v4782, 4294901760
    %v4784 = vsub.f32 %v4782, %v4783
    %v4785 = vand.u32 %v4784, 4294901760
    %4786 = vmatprep.subr.mxu0 %v4785
    %v4787 = vand.u32 %v3104, 4294901760
    %v4788 = vsub.f32 %v3104, %v4787
    %v4789 = vand.u32 %v4788, 4294901760
    %v4790 = vsub.f32 %v4788, %v4789
    %v4791 = vand.u32 %v4790, 4294901760
    %4792 = vmatpush1.msra.mxu0 %v4791
    %v4793 = vand.u32 %v3107, 4294901760
    %v4794 = vsub.f32 %v3107, %v4793
    %v4795 = vand.u32 %v4794, 4294901760
    %v4796 = vsub.f32 %v4794, %v4795
    %v4797 = vand.u32 %v4796, 4294901760
    %4798 = vmatprep.subr.mxu0 %v4797
    %v4799 = vand.u32 %v3106, 4294901760
    %v4800 = vsub.f32 %v3106, %v4799
    %v4801 = vand.u32 %v4800, 4294901760
    %v4802 = vsub.f32 %v4800, %v4801
    %v4803 = vand.u32 %v4802, 4294901760
    %4804 = vmatpush1.msra.mxu0 %v4803
    %v4805 = vand.u32 %v3109, 4294901760
    %v4806 = vsub.f32 %v3109, %v4805
    %v4807 = vand.u32 %v4806, 4294901760
    %v4808 = vsub.f32 %v4806, %v4807
    %v4809 = vand.u32 %v4808, 4294901760
    %4810 = vmatprep.subr.mxu0 %v4809
    %v4811 = vand.u32 %v3108, 4294901760
    %v4812 = vsub.f32 %v3108, %v4811
    %v4813 = vand.u32 %v4812, 4294901760
    %v4814 = vsub.f32 %v4812, %v4813
    %v4815 = vand.u32 %v4814, 4294901760
    %4816 = vmatpush1.msra.mxu0 %v4815
    %v4817 = vand.u32 %v3111, 4294901760
    %v4818 = vsub.f32 %v3111, %v4817
    %v4819 = vand.u32 %v4818, 4294901760
    %v4820 = vsub.f32 %v4818, %v4819
    %v4821 = vand.u32 %v4820, 4294901760
    %4822 = vmatprep.subr.mxu0 %v4821
    %v4823 = vand.u32 %v3110, 4294901760
    %v4824 = vsub.f32 %v3110, %v4823
    %v4825 = vand.u32 %v4824, 4294901760
    %v4826 = vsub.f32 %v4824, %v4825
    %v4827 = vand.u32 %v4826, 4294901760
    %4828 = vmatpush1.msra.mxu0 %v4827
    %v4829 = vand.u32 %v3113, 4294901760
    %v4830 = vsub.f32 %v3113, %v4829
    %v4831 = vand.u32 %v4830, 4294901760
    %v4832 = vsub.f32 %v4830, %v4831
    %v4833 = vand.u32 %v4832, 4294901760
    %4834 = vmatprep.subr.mxu0 %v4833
    %v4835 = vand.u32 %v3112, 4294901760
    %v4836 = vsub.f32 %v3112, %v4835
    %v4837 = vand.u32 %v4836, 4294901760
    %v4838 = vsub.f32 %v4836, %v4837
    %v4839 = vand.u32 %v4838, 4294901760
    %4840 = vmatpush1.msra.mxu0 %v4839
    %v4841 = vand.u32 %v3115, 4294901760
    %v4842 = vsub.f32 %v3115, %v4841
    %v4843 = vand.u32 %v4842, 4294901760
    %v4844 = vsub.f32 %v4842, %v4843
    %v4845 = vand.u32 %v4844, 4294901760
    %4846 = vmatprep.subr.mxu0 %v4845
    %v4847 = vand.u32 %v3114, 4294901760
    %v4848 = vsub.f32 %v3114, %v4847
    %v4849 = vand.u32 %v4848, 4294901760
    %v4850 = vsub.f32 %v4848, %v4849
    %v4851 = vand.u32 %v4850, 4294901760
    %4852 = vmatpush1.msra.mxu0 %v4851
    %v4853 = vand.u32 %v3117, 4294901760
    %v4854 = vsub.f32 %v3117, %v4853
    %v4855 = vand.u32 %v4854, 4294901760
    %v4856 = vsub.f32 %v4854, %v4855
    %v4857 = vand.u32 %v4856, 4294901760
    %4858 = vmatprep.subr.mxu0 %v4857
    %v4859 = vand.u32 %v3116, 4294901760
    %v4860 = vsub.f32 %v3116, %v4859
    %v4861 = vand.u32 %v4860, 4294901760
    %v4862 = vsub.f32 %v4860, %v4861
    %v4863 = vand.u32 %v4862, 4294901760
    %4864 = vmatpush1.msra.mxu0 %v4863
    %v4865 = vand.u32 %v3119, 4294901760
    %v4866 = vsub.f32 %v3119, %v4865
    %v4867 = vand.u32 %v4866, 4294901760
    %v4868 = vsub.f32 %v4866, %v4867
    %v4869 = vand.u32 %v4868, 4294901760
    %4870 = vmatprep.subr.mxu0 %v4869
    %v4871 = vand.u32 %v3118, 4294901760
    %v4872 = vsub.f32 %v3118, %v4871
    %v4873 = vand.u32 %v4872, 4294901760
    %v4874 = vsub.f32 %v4872, %v4873
    %v4875 = vand.u32 %v4874, 4294901760
    %4876 = vmatpush1.msra.mxu0 %v4875
    %v4877 = vand.u32 %v3121, 4294901760
    %v4878 = vsub.f32 %v3121, %v4877
    %v4879 = vand.u32 %v4878, 4294901760
    %v4880 = vsub.f32 %v4878, %v4879
    %v4881 = vand.u32 %v4880, 4294901760
    %4882 = vmatprep.subr.mxu0 %v4881
    %v4883 = vand.u32 %v3120, 4294901760
    %v4884 = vsub.f32 %v3120, %v4883
    %v4885 = vand.u32 %v4884, 4294901760
    %v4886 = vsub.f32 %v4884, %v4885
    %v4887 = vand.u32 %v4886, 4294901760
    %4888 = vmatpush1.msra.mxu0 %v4887
    %v4889 = vand.u32 %v3123, 4294901760
    %v4890 = vsub.f32 %v3123, %v4889
    %v4891 = vand.u32 %v4890, 4294901760
    %v4892 = vsub.f32 %v4890, %v4891
    %v4893 = vand.u32 %v4892, 4294901760
    %4894 = vmatprep.subr.mxu0 %v4893
    %v4895 = vand.u32 %v3122, 4294901760
    %v4896 = vsub.f32 %v3122, %v4895
    %v4897 = vand.u32 %v4896, 4294901760
    %v4898 = vsub.f32 %v4896, %v4897
    %v4899 = vand.u32 %v4898, 4294901760
    %4900 = vmatpush1.msra.mxu0 %v4899
    %v4901 = vand.u32 %v3125, 4294901760
    %v4902 = vsub.f32 %v3125, %v4901
    %v4903 = vand.u32 %v4902, 4294901760
    %v4904 = vsub.f32 %v4902, %v4903
    %v4905 = vand.u32 %v4904, 4294901760
    %4906 = vmatprep.subr.mxu0 %v4905
    %v4907 = vand.u32 %v3124, 4294901760
    %v4908 = vsub.f32 %v3124, %v4907
    %v4909 = vand.u32 %v4908, 4294901760
    %v4910 = vsub.f32 %v4908, %v4909
    %v4911 = vand.u32 %v4910, 4294901760
    %4912 = vmatpush1.msra.mxu0 %v4911
    %v4913 = vand.u32 %v3127, 4294901760
    %v4914 = vsub.f32 %v3127, %v4913
    %v4915 = vand.u32 %v4914, 4294901760
    %v4916 = vsub.f32 %v4914, %v4915
    %v4917 = vand.u32 %v4916, 4294901760
    %4918 = vmatprep.subr.mxu0 %v4917
    %v4919 = vand.u32 %v3126, 4294901760
    %v4920 = vsub.f32 %v3126, %v4919
    %v4921 = vand.u32 %v4920, 4294901760
    %v4922 = vsub.f32 %v4920, %v4921
    %v4923 = vand.u32 %v4922, 4294901760
    %4924 = vmatpush1.msra.mxu0 %v4923
    %v4925 = vand.u32 %v3129, 4294901760
    %v4926 = vsub.f32 %v3129, %v4925
    %v4927 = vand.u32 %v4926, 4294901760
    %v4928 = vsub.f32 %v4926, %v4927
    %v4929 = vand.u32 %v4928, 4294901760
    %4930 = vmatprep.subr.mxu0 %v4929
    %v4931 = vand.u32 %v3128, 4294901760
    %v4932 = vsub.f32 %v3128, %v4931
    %v4933 = vand.u32 %v4932, 4294901760
    %v4934 = vsub.f32 %v4932, %v4933
    %v4935 = vand.u32 %v4934, 4294901760
    %4936 = vmatpush1.msra.mxu0 %v4935
    %v4937 = vand.u32 %v3131, 4294901760
    %v4938 = vsub.f32 %v3131, %v4937
    %v4939 = vand.u32 %v4938, 4294901760
    %v4940 = vsub.f32 %v4938, %v4939
    %v4941 = vand.u32 %v4940, 4294901760
    %4942 = vmatprep.subr.mxu0 %v4941
    %v4943 = vand.u32 %v3130, 4294901760
    %v4944 = vsub.f32 %v3130, %v4943
    %v4945 = vand.u32 %v4944, 4294901760
    %v4946 = vsub.f32 %v4944, %v4945
    %v4947 = vand.u32 %v4946, 4294901760
    %4948 = vmatpush1.msra.mxu0 %v4947
    %v4949 = vand.u32 %v3133, 4294901760
    %v4950 = vsub.f32 %v3133, %v4949
    %v4951 = vand.u32 %v4950, 4294901760
    %v4952 = vsub.f32 %v4950, %v4951
    %v4953 = vand.u32 %v4952, 4294901760
    %4954 = vmatprep.subr.mxu0 %v4953
    %v4955 = vand.u32 %v3132, 4294901760
    %v4956 = vsub.f32 %v3132, %v4955
    %v4957 = vand.u32 %v4956, 4294901760
    %v4958 = vsub.f32 %v4956, %v4957
    %v4959 = vand.u32 %v4958, 4294901760
    %4960 = vmatpush1.msra.mxu0 %v4959
    %v4961 = vand.u32 %v3135, 4294901760
    %v4962 = vsub.f32 %v3135, %v4961
    %v4963 = vand.u32 %v4962, 4294901760
    %v4964 = vsub.f32 %v4962, %v4963
    %v4965 = vand.u32 %v4964, 4294901760
    %4966 = vmatprep.subr.mxu0 %v4965
    %v4967 = vand.u32 %v3134, 4294901760
    %v4968 = vsub.f32 %v3134, %v4967
    %v4969 = vand.u32 %v4968, 4294901760
    %v4970 = vsub.f32 %v4968, %v4969
    %v4971 = vand.u32 %v4970, 4294901760
    %4972 = vmatpush1.msra.mxu0 %v4971
    %v4973 = vand.u32 %v3137, 4294901760
    %v4974 = vsub.f32 %v3137, %v4973
    %v4975 = vand.u32 %v4974, 4294901760
    %v4976 = vsub.f32 %v4974, %v4975
    %v4977 = vand.u32 %v4976, 4294901760
    %4978 = vmatprep.subr.mxu0 %v4977
    %v4979 = vand.u32 %v3136, 4294901760
    %v4980 = vsub.f32 %v3136, %v4979
    %v4981 = vand.u32 %v4980, 4294901760
    %v4982 = vsub.f32 %v4980, %v4981
    %v4983 = vand.u32 %v4982, 4294901760
    %4984 = vmatpush1.msra.mxu0 %v4983
    %v4985 = vand.u32 %v3139, 4294901760
    %v4986 = vsub.f32 %v3139, %v4985
    %v4987 = vand.u32 %v4986, 4294901760
    %v4988 = vsub.f32 %v4986, %v4987
    %v4989 = vand.u32 %v4988, 4294901760
    %4990 = vmatprep.subr.mxu0 %v4989
    %v4991 = vand.u32 %v3138, 4294901760
    %v4992 = vsub.f32 %v3138, %v4991
    %v4993 = vand.u32 %v4992, 4294901760
    %v4994 = vsub.f32 %v4992, %v4993
    %v4995 = vand.u32 %v4994, 4294901760
    %4996 = vmatpush1.msra.mxu0 %v4995
    %v4997 = vand.u32 %v3141, 4294901760
    %v4998 = vsub.f32 %v3141, %v4997
    %v4999 = vand.u32 %v4998, 4294901760
    %v5000 = vsub.f32 %v4998, %v4999
    %v5001 = vand.u32 %v5000, 4294901760
    %5002 = vmatprep.subr.mxu0 %v5001
    %v5003 = vand.u32 %v3140, 4294901760
    %v5004 = vsub.f32 %v3140, %v5003
    %v5005 = vand.u32 %v5004, 4294901760
    %v5006 = vsub.f32 %v5004, %v5005
    %v5007 = vand.u32 %v5006, 4294901760
    %5008 = vmatpush1.msra.mxu0 %v5007
    %v5009 = vand.u32 %v3143, 4294901760
    %v5010 = vsub.f32 %v3143, %v5009
    %v5011 = vand.u32 %v5010, 4294901760
    %v5012 = vsub.f32 %v5010, %v5011
    %v5013 = vand.u32 %v5012, 4294901760
    %5014 = vmatprep.subr.mxu0 %v5013
    %v5015 = vand.u32 %v3142, 4294901760
    %v5016 = vsub.f32 %v3142, %v5015
    %v5017 = vand.u32 %v5016, 4294901760
    %v5018 = vsub.f32 %v5016, %v5017
    %v5019 = vand.u32 %v5018, 4294901760
    %5020 = vmatpush1.msra.mxu0 %v5019
    %v5021 = vand.u32 %v3069, 4294901760
    %5022 = vmatprep.mubr.f32.mxu0 %v5021
    %v5023 = vand.u32 %v3068, 4294901760
    %5024 = vmatmul.mubr.f32.gmra.mrb[0].mxu0 %v5023
    %v5025 = vpop.f32.mrb[0].mxu0
    %v5026 = vadd.f32 %v4633, %v5025
    %v5027 = vpop.f32.mrb[0].mxu0
    %v5028 = vadd.f32 %v4635, %v5027
    %5029 = vdwg.mxu0
    %v5030 = vand.u32 %v3081, 4294901760
    %v5031 = vsub.f32 %v3081, %v5030
    %5032 = vmatprep.subr.mxu0 %v5031
    %v5033 = vand.u32 %v3080, 4294901760
    %v5034 = vsub.f32 %v3080, %v5033
    %5035 = vmatpush1.msra.mxu0 %v5034
    %v5036 = vand.u32 %v3083, 4294901760
    %v5037 = vsub.f32 %v3083, %v5036
    %5038 = vmatprep.subr.mxu0 %v5037
    %v5039 = vand.u32 %v3082, 4294901760
    %v5040 = vsub.f32 %v3082, %v5039
    %5041 = vmatpush1.msra.mxu0 %v5040
    %v5042 = vand.u32 %v3085, 4294901760
    %v5043 = vsub.f32 %v3085, %v5042
    %5044 = vmatprep.subr.mxu0 %v5043
    %v5045 = vand.u32 %v3084, 4294901760
    %v5046 = vsub.f32 %v3084, %v5045
    %5047 = vmatpush1.msra.mxu0 %v5046
    %v5048 = vand.u32 %v3087, 4294901760
    %v5049 = vsub.f32 %v3087, %v5048
    %5050 = vmatprep.subr.mxu0 %v5049
    %v5051 = vand.u32 %v3086, 4294901760
    %v5052 = vsub.f32 %v3086, %v5051
    %5053 = vmatpush1.msra.mxu0 %v5052
    %v5054 = vand.u32 %v3089, 4294901760
    %v5055 = vsub.f32 %v3089, %v5054
    %5056 = vmatprep.subr.mxu0 %v5055
    %v5057 = vand.u32 %v3088, 4294901760
    %v5058 = vsub.f32 %v3088, %v5057
    %5059 = vmatpush1.msra.mxu0 %v5058
    %v5060 = vand.u32 %v3091, 4294901760
    %v5061 = vsub.f32 %v3091, %v5060
    %5062 = vmatprep.subr.mxu0 %v5061
    %v5063 = vand.u32 %v3090, 4294901760
    %v5064 = vsub.f32 %v3090, %v5063
    %5065 = vmatpush1.msra.mxu0 %v5064
    %v5066 = vand.u32 %v3093, 4294901760
    %v5067 = vsub.f32 %v3093, %v5066
    %5068 = vmatprep.subr.mxu0 %v5067
    %v5069 = vand.u32 %v3092, 4294901760
    %v5070 = vsub.f32 %v3092, %v5069
    %5071 = vmatpush1.msra.mxu0 %v5070
    %v5072 = vand.u32 %v3095, 4294901760
    %v5073 = vsub.f32 %v3095, %v5072
    %5074 = vmatprep.subr.mxu0 %v5073
    %v5075 = vand.u32 %v3094, 4294901760
    %v5076 = vsub.f32 %v3094, %v5075
    %5077 = vmatpush1.msra.mxu0 %v5076
    %v5078 = vand.u32 %v3097, 4294901760
    %v5079 = vsub.f32 %v3097, %v5078
    %5080 = vmatprep.subr.mxu0 %v5079
    %v5081 = vand.u32 %v3096, 4294901760
    %v5082 = vsub.f32 %v3096, %v5081
    %5083 = vmatpush1.msra.mxu0 %v5082
    %v5084 = vand.u32 %v3099, 4294901760
    %v5085 = vsub.f32 %v3099, %v5084
    %5086 = vmatprep.subr.mxu0 %v5085
    %v5087 = vand.u32 %v3098, 4294901760
    %v5088 = vsub.f32 %v3098, %v5087
    %5089 = vmatpush1.msra.mxu0 %v5088
    %v5090 = vand.u32 %v3101, 4294901760
    %v5091 = vsub.f32 %v3101, %v5090
    %5092 = vmatprep.subr.mxu0 %v5091
    %v5093 = vand.u32 %v3100, 4294901760
    %v5094 = vsub.f32 %v3100, %v5093
    %5095 = vmatpush1.msra.mxu0 %v5094
    %v5096 = vand.u32 %v3103, 4294901760
    %v5097 = vsub.f32 %v3103, %v5096
    %5098 = vmatprep.subr.mxu0 %v5097
    %v5099 = vand.u32 %v3102, 4294901760
    %v5100 = vsub.f32 %v3102, %v5099
    %5101 = vmatpush1.msra.mxu0 %v5100
    %v5102 = vand.u32 %v3105, 4294901760
    %v5103 = vsub.f32 %v3105, %v5102
    %5104 = vmatprep.subr.mxu0 %v5103
    %v5105 = vand.u32 %v3104, 4294901760
    %v5106 = vsub.f32 %v3104, %v5105
    %5107 = vmatpush1.msra.mxu0 %v5106
    %v5108 = vand.u32 %v3107, 4294901760
    %v5109 = vsub.f32 %v3107, %v5108
    %5110 = vmatprep.subr.mxu0 %v5109
    %v5111 = vand.u32 %v3106, 4294901760
    %v5112 = vsub.f32 %v3106, %v5111
    %5113 = vmatpush1.msra.mxu0 %v5112
    %v5114 = vand.u32 %v3109, 4294901760
    %v5115 = vsub.f32 %v3109, %v5114
    %5116 = vmatprep.subr.mxu0 %v5115
    %v5117 = vand.u32 %v3108, 4294901760
    %v5118 = vsub.f32 %v3108, %v5117
    %5119 = vmatpush1.msra.mxu0 %v5118
    %v5120 = vand.u32 %v3111, 4294901760
    %v5121 = vsub.f32 %v3111, %v5120
    %5122 = vmatprep.subr.mxu0 %v5121
    %v5123 = vand.u32 %v3110, 4294901760
    %v5124 = vsub.f32 %v3110, %v5123
    %5125 = vmatpush1.msra.mxu0 %v5124
    %v5126 = vand.u32 %v3113, 4294901760
    %v5127 = vsub.f32 %v3113, %v5126
    %5128 = vmatprep.subr.mxu0 %v5127
    %v5129 = vand.u32 %v3112, 4294901760
    %v5130 = vsub.f32 %v3112, %v5129
    %5131 = vmatpush1.msra.mxu0 %v5130
    %v5132 = vand.u32 %v3115, 4294901760
    %v5133 = vsub.f32 %v3115, %v5132
    %5134 = vmatprep.subr.mxu0 %v5133
    %v5135 = vand.u32 %v3114, 4294901760
    %v5136 = vsub.f32 %v3114, %v5135
    %5137 = vmatpush1.msra.mxu0 %v5136
    %v5138 = vand.u32 %v3117, 4294901760
    %v5139 = vsub.f32 %v3117, %v5138
    %5140 = vmatprep.subr.mxu0 %v5139
    %v5141 = vand.u32 %v3116, 4294901760
    %v5142 = vsub.f32 %v3116, %v5141
    %5143 = vmatpush1.msra.mxu0 %v5142
    %v5144 = vand.u32 %v3119, 4294901760
    %v5145 = vsub.f32 %v3119, %v5144
    %5146 = vmatprep.subr.mxu0 %v5145
    %v5147 = vand.u32 %v3118, 4294901760
    %v5148 = vsub.f32 %v3118, %v5147
    %5149 = vmatpush1.msra.mxu0 %v5148
    %v5150 = vand.u32 %v3121, 4294901760
    %v5151 = vsub.f32 %v3121, %v5150
    %5152 = vmatprep.subr.mxu0 %v5151
    %v5153 = vand.u32 %v3120, 4294901760
    %v5154 = vsub.f32 %v3120, %v5153
    %5155 = vmatpush1.msra.mxu0 %v5154
    %v5156 = vand.u32 %v3123, 4294901760
    %v5157 = vsub.f32 %v3123, %v5156
    %5158 = vmatprep.subr.mxu0 %v5157
    %v5159 = vand.u32 %v3122, 4294901760
    %v5160 = vsub.f32 %v3122, %v5159
    %5161 = vmatpush1.msra.mxu0 %v5160
    %v5162 = vand.u32 %v3125, 4294901760
    %v5163 = vsub.f32 %v3125, %v5162
    %5164 = vmatprep.subr.mxu0 %v5163
    %v5165 = vand.u32 %v3124, 4294901760
    %v5166 = vsub.f32 %v3124, %v5165
    %5167 = vmatpush1.msra.mxu0 %v5166
    %v5168 = vand.u32 %v3127, 4294901760
    %v5169 = vsub.f32 %v3127, %v5168
    %5170 = vmatprep.subr.mxu0 %v5169
    %v5171 = vand.u32 %v3126, 4294901760
    %v5172 = vsub.f32 %v3126, %v5171
    %5173 = vmatpush1.msra.mxu0 %v5172
    %v5174 = vand.u32 %v3129, 4294901760
    %v5175 = vsub.f32 %v3129, %v5174
    %5176 = vmatprep.subr.mxu0 %v5175
    %v5177 = vand.u32 %v3128, 4294901760
    %v5178 = vsub.f32 %v3128, %v5177
    %5179 = vmatpush1.msra.mxu0 %v5178
    %v5180 = vand.u32 %v3131, 4294901760
    %v5181 = vsub.f32 %v3131, %v5180
    %5182 = vmatprep.subr.mxu0 %v5181
    %v5183 = vand.u32 %v3130, 4294901760
    %v5184 = vsub.f32 %v3130, %v5183
    %5185 = vmatpush1.msra.mxu0 %v5184
    %v5186 = vand.u32 %v3133, 4294901760
    %v5187 = vsub.f32 %v3133, %v5186
    %5188 = vmatprep.subr.mxu0 %v5187
    %v5189 = vand.u32 %v3132, 4294901760
    %v5190 = vsub.f32 %v3132, %v5189
    %5191 = vmatpush1.msra.mxu0 %v5190
    %v5192 = vand.u32 %v3135, 4294901760
    %v5193 = vsub.f32 %v3135, %v5192
    %5194 = vmatprep.subr.mxu0 %v5193
    %v5195 = vand.u32 %v3134, 4294901760
    %v5196 = vsub.f32 %v3134, %v5195
    %5197 = vmatpush1.msra.mxu0 %v5196
    %v5198 = vand.u32 %v3137, 4294901760
    %v5199 = vsub.f32 %v3137, %v5198
    %5200 = vmatprep.subr.mxu0 %v5199
    %v5201 = vand.u32 %v3136, 4294901760
    %v5202 = vsub.f32 %v3136, %v5201
    %5203 = vmatpush1.msra.mxu0 %v5202
    %v5204 = vand.u32 %v3139, 4294901760
    %v5205 = vsub.f32 %v3139, %v5204
    %5206 = vmatprep.subr.mxu0 %v5205
    %v5207 = vand.u32 %v3138, 4294901760
    %v5208 = vsub.f32 %v3138, %v5207
    %5209 = vmatpush1.msra.mxu0 %v5208
    %v5210 = vand.u32 %v3141, 4294901760
    %v5211 = vsub.f32 %v3141, %v5210
    %5212 = vmatprep.subr.mxu0 %v5211
    %v5213 = vand.u32 %v3140, 4294901760
    %v5214 = vsub.f32 %v3140, %v5213
    %5215 = vmatpush1.msra.mxu0 %v5214
    %v5216 = vand.u32 %v3143, 4294901760
    %v5217 = vsub.f32 %v3143, %v5216
    %5218 = vmatprep.subr.mxu0 %v5217
    %v5219 = vand.u32 %v3142, 4294901760
    %v5220 = vsub.f32 %v3142, %v5219
    %5221 = vmatpush1.msra.mxu0 %v5220
    %v5222 = vand.u32 %v3069, 4294901760
    %v5223 = vsub.f32 %v3069, %v5222
    %5224 = vmatprep.mubr.f32.mxu0 %v5223
    %v5225 = vand.u32 %v3068, 4294901760
    %v5226 = vsub.f32 %v3068, %v5225
    %5227 = vmatmul.mubr.f32.gmra.mrb[0].mxu0 %v5226
    %v5228 = vpop.f32.mrb[0].mxu0
    %v5229 = vadd.f32 %v5026, %v5228
    %v5230 = vpop.f32.mrb[0].mxu0
    %v5231 = vadd.f32 %v5028, %v5230
    %5232 = vdwg.mxu0
    %v5233 = vand.u32 %v3081, 4294901760
    %5234 = vmatprep.subr.mxu0 %v5233
    %v5235 = vand.u32 %v3080, 4294901760
    %5236 = vmatpush1.msra.mxu0 %v5235
    %v5237 = vand.u32 %v3083, 4294901760
    %5238 = vmatprep.subr.mxu0 %v5237
    %v5239 = vand.u32 %v3082, 4294901760
    %5240 = vmatpush1.msra.mxu0 %v5239
    %v5241 = vand.u32 %v3085, 4294901760
    %5242 = vmatprep.subr.mxu0 %v5241
    %v5243 = vand.u32 %v3084, 4294901760
    %5244 = vmatpush1.msra.mxu0 %v5243
    %v5245 = vand.u32 %v3087, 4294901760
    %5246 = vmatprep.subr.mxu0 %v5245
    %v5247 = vand.u32 %v3086, 4294901760
    %5248 = vmatpush1.msra.mxu0 %v5247
    %v5249 = vand.u32 %v3089, 4294901760
    %5250 = vmatprep.subr.mxu0 %v5249
    %v5251 = vand.u32 %v3088, 4294901760
    %5252 = vmatpush1.msra.mxu0 %v5251
    %v5253 = vand.u32 %v3091, 4294901760
    %5254 = vmatprep.subr.mxu0 %v5253
    %v5255 = vand.u32 %v3090, 4294901760
    %5256 = vmatpush1.msra.mxu0 %v5255
    %v5257 = vand.u32 %v3093, 4294901760
    %5258 = vmatprep.subr.mxu0 %v5257
    %v5259 = vand.u32 %v3092, 4294901760
    %5260 = vmatpush1.msra.mxu0 %v5259
    %v5261 = vand.u32 %v3095, 4294901760
    %5262 = vmatprep.subr.mxu0 %v5261
    %v5263 = vand.u32 %v3094, 4294901760
    %5264 = vmatpush1.msra.mxu0 %v5263
    %v5265 = vand.u32 %v3097, 4294901760
    %5266 = vmatprep.subr.mxu0 %v5265
    %v5267 = vand.u32 %v3096, 4294901760
    %5268 = vmatpush1.msra.mxu0 %v5267
    %v5269 = vand.u32 %v3099, 4294901760
    %5270 = vmatprep.subr.mxu0 %v5269
    %v5271 = vand.u32 %v3098, 4294901760
    %5272 = vmatpush1.msra.mxu0 %v5271
    %v5273 = vand.u32 %v3101, 4294901760
    %5274 = vmatprep.subr.mxu0 %v5273
    %v5275 = vand.u32 %v3100, 4294901760
    %5276 = vmatpush1.msra.mxu0 %v5275
    %v5277 = vand.u32 %v3103, 4294901760
    %5278 = vmatprep.subr.mxu0 %v5277
    %v5279 = vand.u32 %v3102, 4294901760
    %5280 = vmatpush1.msra.mxu0 %v5279
    %v5281 = vand.u32 %v3105, 4294901760
    %5282 = vmatprep.subr.mxu0 %v5281
    %v5283 = vand.u32 %v3104, 4294901760
    %5284 = vmatpush1.msra.mxu0 %v5283
    %v5285 = vand.u32 %v3107, 4294901760
    %5286 = vmatprep.subr.mxu0 %v5285
    %v5287 = vand.u32 %v3106, 4294901760
    %5288 = vmatpush1.msra.mxu0 %v5287
    %v5289 = vand.u32 %v3109, 4294901760
    %5290 = vmatprep.subr.mxu0 %v5289
    %v5291 = vand.u32 %v3108, 4294901760
    %5292 = vmatpush1.msra.mxu0 %v5291
    %v5293 = vand.u32 %v3111, 4294901760
    %5294 = vmatprep.subr.mxu0 %v5293
    %v5295 = vand.u32 %v3110, 4294901760
    %5296 = vmatpush1.msra.mxu0 %v5295
    %v5297 = vand.u32 %v3113, 4294901760
    %5298 = vmatprep.subr.mxu0 %v5297
    %v5299 = vand.u32 %v3112, 4294901760
    %5300 = vmatpush1.msra.mxu0 %v5299
    %v5301 = vand.u32 %v3115, 4294901760
    %5302 = vmatprep.subr.mxu0 %v5301
    %v5303 = vand.u32 %v3114, 4294901760
    %5304 = vmatpush1.msra.mxu0 %v5303
    %v5305 = vand.u32 %v3117, 4294901760
    %5306 = vmatprep.subr.mxu0 %v5305
    %v5307 = vand.u32 %v3116, 4294901760
    %5308 = vmatpush1.msra.mxu0 %v5307
    %v5309 = vand.u32 %v3119, 4294901760
    %5310 = vmatprep.subr.mxu0 %v5309
    %v5311 = vand.u32 %v3118, 4294901760
    %5312 = vmatpush1.msra.mxu0 %v5311
    %v5313 = vand.u32 %v3121, 4294901760
    %5314 = vmatprep.subr.mxu0 %v5313
    %v5315 = vand.u32 %v3120, 4294901760
    %5316 = vmatpush1.msra.mxu0 %v5315
    %v5317 = vand.u32 %v3123, 4294901760
    %5318 = vmatprep.subr.mxu0 %v5317
    %v5319 = vand.u32 %v3122, 4294901760
    %5320 = vmatpush1.msra.mxu0 %v5319
    %v5321 = vand.u32 %v3125, 4294901760
    %5322 = vmatprep.subr.mxu0 %v5321
    %v5323 = vand.u32 %v3124, 4294901760
    %5324 = vmatpush1.msra.mxu0 %v5323
    %v5325 = vand.u32 %v3127, 4294901760
    %5326 = vmatprep.subr.mxu0 %v5325
    %v5327 = vand.u32 %v3126, 4294901760
    %5328 = vmatpush1.msra.mxu0 %v5327
    %v5329 = vand.u32 %v3129, 4294901760
    %5330 = vmatprep.subr.mxu0 %v5329
    %v5331 = vand.u32 %v3128, 4294901760
    %5332 = vmatpush1.msra.mxu0 %v5331
    %v5333 = vand.u32 %v3131, 4294901760
    %5334 = vmatprep.subr.mxu0 %v5333
    %v5335 = vand.u32 %v3130, 4294901760
    %5336 = vmatpush1.msra.mxu0 %v5335
    %v5337 = vand.u32 %v3133, 4294901760
    %5338 = vmatprep.subr.mxu0 %v5337
    %v5339 = vand.u32 %v3132, 4294901760
    %5340 = vmatpush1.msra.mxu0 %v5339
    %v5341 = vand.u32 %v3135, 4294901760
    %5342 = vmatprep.subr.mxu0 %v5341
    %v5343 = vand.u32 %v3134, 4294901760
    %5344 = vmatpush1.msra.mxu0 %v5343
    %v5345 = vand.u32 %v3137, 4294901760
    %5346 = vmatprep.subr.mxu0 %v5345
    %v5347 = vand.u32 %v3136, 4294901760
    %5348 = vmatpush1.msra.mxu0 %v5347
    %v5349 = vand.u32 %v3139, 4294901760
    %5350 = vmatprep.subr.mxu0 %v5349
    %v5351 = vand.u32 %v3138, 4294901760
    %5352 = vmatpush1.msra.mxu0 %v5351
    %v5353 = vand.u32 %v3141, 4294901760
    %5354 = vmatprep.subr.mxu0 %v5353
    %v5355 = vand.u32 %v3140, 4294901760
    %5356 = vmatpush1.msra.mxu0 %v5355
    %v5357 = vand.u32 %v3143, 4294901760
    %5358 = vmatprep.subr.mxu0 %v5357
    %v5359 = vand.u32 %v3142, 4294901760
    %5360 = vmatpush1.msra.mxu0 %v5359
    %v5361 = vand.u32 %v3069, 4294901760
    %v5362 = vsub.f32 %v3069, %v5361
    %v5363 = vand.u32 %v5362, 4294901760
    %5364 = vmatprep.mubr.f32.mxu0 %v5363
    %v5365 = vand.u32 %v3068, 4294901760
    %v5366 = vsub.f32 %v3068, %v5365
    %v5367 = vand.u32 %v5366, 4294901760
    %5368 = vmatmul.mubr.f32.gmra.mrb[0].mxu0 %v5367
    %v5369 = vpop.f32.mrb[0].mxu0
    %v5370 = vadd.f32 %v5229, %v5369
    %v5371 = vpop.f32.mrb[0].mxu0
    %v5372 = vadd.f32 %v5231, %v5371
    %5373 = vdwg.mxu0
    %v5374 = vand.u32 %v3081, 4294901760
    %v5375 = vsub.f32 %v3081, %v5374
    %v5376 = vand.u32 %v5375, 4294901760
    %5377 = vmatprep.subr.mxu0 %v5376
    %v5378 = vand.u32 %v3080, 4294901760
    %v5379 = vsub.f32 %v3080, %v5378
    %v5380 = vand.u32 %v5379, 4294901760
    %5381 = vmatpush1.msra.mxu0 %v5380
    %v5382 = vand.u32 %v3083, 4294901760
    %v5383 = vsub.f32 %v3083, %v5382
    %v5384 = vand.u32 %v5383, 4294901760
    %5385 = vmatprep.subr.mxu0 %v5384
    %v5386 = vand.u32 %v3082, 4294901760
    %v5387 = vsub.f32 %v3082, %v5386
    %v5388 = vand.u32 %v5387, 4294901760
    %5389 = vmatpush1.msra.mxu0 %v5388
    %v5390 = vand.u32 %v3085, 4294901760
    %v5391 = vsub.f32 %v3085, %v5390
    %v5392 = vand.u32 %v5391, 4294901760
    %5393 = vmatprep.subr.mxu0 %v5392
    %v5394 = vand.u32 %v3084, 4294901760
    %v5395 = vsub.f32 %v3084, %v5394
    %v5396 = vand.u32 %v5395, 4294901760
    %5397 = vmatpush1.msra.mxu0 %v5396
    %v5398 = vand.u32 %v3087, 4294901760
    %v5399 = vsub.f32 %v3087, %v5398
    %v5400 = vand.u32 %v5399, 4294901760
    %5401 = vmatprep.subr.mxu0 %v5400
    %v5402 = vand.u32 %v3086, 4294901760
    %v5403 = vsub.f32 %v3086, %v5402
    %v5404 = vand.u32 %v5403, 4294901760
    %5405 = vmatpush1.msra.mxu0 %v5404
    %v5406 = vand.u32 %v3089, 4294901760
    %v5407 = vsub.f32 %v3089, %v5406
    %v5408 = vand.u32 %v5407, 4294901760
    %5409 = vmatprep.subr.mxu0 %v5408
    %v5410 = vand.u32 %v3088, 4294901760
    %v5411 = vsub.f32 %v3088, %v5410
    %v5412 = vand.u32 %v5411, 4294901760
    %5413 = vmatpush1.msra.mxu0 %v5412
    %v5414 = vand.u32 %v3091, 4294901760
    %v5415 = vsub.f32 %v3091, %v5414
    %v5416 = vand.u32 %v5415, 4294901760
    %5417 = vmatprep.subr.mxu0 %v5416
    %v5418 = vand.u32 %v3090, 4294901760
    %v5419 = vsub.f32 %v3090, %v5418
    %v5420 = vand.u32 %v5419, 4294901760
    %5421 = vmatpush1.msra.mxu0 %v5420
    %v5422 = vand.u32 %v3093, 4294901760
    %v5423 = vsub.f32 %v3093, %v5422
    %v5424 = vand.u32 %v5423, 4294901760
    %5425 = vmatprep.subr.mxu0 %v5424
    %v5426 = vand.u32 %v3092, 4294901760
    %v5427 = vsub.f32 %v3092, %v5426
    %v5428 = vand.u32 %v5427, 4294901760
    %5429 = vmatpush1.msra.mxu0 %v5428
    %v5430 = vand.u32 %v3095, 4294901760
    %v5431 = vsub.f32 %v3095, %v5430
    %v5432 = vand.u32 %v5431, 4294901760
    %5433 = vmatprep.subr.mxu0 %v5432
    %v5434 = vand.u32 %v3094, 4294901760
    %v5435 = vsub.f32 %v3094, %v5434
    %v5436 = vand.u32 %v5435, 4294901760
    %5437 = vmatpush1.msra.mxu0 %v5436
    %v5438 = vand.u32 %v3097, 4294901760
    %v5439 = vsub.f32 %v3097, %v5438
    %v5440 = vand.u32 %v5439, 4294901760
    %5441 = vmatprep.subr.mxu0 %v5440
    %v5442 = vand.u32 %v3096, 4294901760
    %v5443 = vsub.f32 %v3096, %v5442
    %v5444 = vand.u32 %v5443, 4294901760
    %5445 = vmatpush1.msra.mxu0 %v5444
    %v5446 = vand.u32 %v3099, 4294901760
    %v5447 = vsub.f32 %v3099, %v5446
    %v5448 = vand.u32 %v5447, 4294901760
    %5449 = vmatprep.subr.mxu0 %v5448
    %v5450 = vand.u32 %v3098, 4294901760
    %v5451 = vsub.f32 %v3098, %v5450
    %v5452 = vand.u32 %v5451, 4294901760
    %5453 = vmatpush1.msra.mxu0 %v5452
    %v5454 = vand.u32 %v3101, 4294901760
    %v5455 = vsub.f32 %v3101, %v5454
    %v5456 = vand.u32 %v5455, 4294901760
    %5457 = vmatprep.subr.mxu0 %v5456
    %v5458 = vand.u32 %v3100, 4294901760
    %v5459 = vsub.f32 %v3100, %v5458
    %v5460 = vand.u32 %v5459, 4294901760
    %5461 = vmatpush1.msra.mxu0 %v5460
    %v5462 = vand.u32 %v3103, 4294901760
    %v5463 = vsub.f32 %v3103, %v5462
    %v5464 = vand.u32 %v5463, 4294901760
    %5465 = vmatprep.subr.mxu0 %v5464
    %v5466 = vand.u32 %v3102, 4294901760
    %v5467 = vsub.f32 %v3102, %v5466
    %v5468 = vand.u32 %v5467, 4294901760
    %5469 = vmatpush1.msra.mxu0 %v5468
    %v5470 = vand.u32 %v3105, 4294901760
    %v5471 = vsub.f32 %v3105, %v5470
    %v5472 = vand.u32 %v5471, 4294901760
    %5473 = vmatprep.subr.mxu0 %v5472
    %v5474 = vand.u32 %v3104, 4294901760
    %v5475 = vsub.f32 %v3104, %v5474
    %v5476 = vand.u32 %v5475, 4294901760
    %5477 = vmatpush1.msra.mxu0 %v5476
    %v5478 = vand.u32 %v3107, 4294901760
    %v5479 = vsub.f32 %v3107, %v5478
    %v5480 = vand.u32 %v5479, 4294901760
    %5481 = vmatprep.subr.mxu0 %v5480
    %v5482 = vand.u32 %v3106, 4294901760
    %v5483 = vsub.f32 %v3106, %v5482
    %v5484 = vand.u32 %v5483, 4294901760
    %5485 = vmatpush1.msra.mxu0 %v5484
    %v5486 = vand.u32 %v3109, 4294901760
    %v5487 = vsub.f32 %v3109, %v5486
    %v5488 = vand.u32 %v5487, 4294901760
    %5489 = vmatprep.subr.mxu0 %v5488
    %v5490 = vand.u32 %v3108, 4294901760
    %v5491 = vsub.f32 %v3108, %v5490
    %v5492 = vand.u32 %v5491, 4294901760
    %5493 = vmatpush1.msra.mxu0 %v5492
    %v5494 = vand.u32 %v3111, 4294901760
    %v5495 = vsub.f32 %v3111, %v5494
    %v5496 = vand.u32 %v5495, 4294901760
    %5497 = vmatprep.subr.mxu0 %v5496
    %v5498 = vand.u32 %v3110, 4294901760
    %v5499 = vsub.f32 %v3110, %v5498
    %v5500 = vand.u32 %v5499, 4294901760
    %5501 = vmatpush1.msra.mxu0 %v5500
    %v5502 = vand.u32 %v3113, 4294901760
    %v5503 = vsub.f32 %v3113, %v5502
    %v5504 = vand.u32 %v5503, 4294901760
    %5505 = vmatprep.subr.mxu0 %v5504
    %v5506 = vand.u32 %v3112, 4294901760
    %v5507 = vsub.f32 %v3112, %v5506
    %v5508 = vand.u32 %v5507, 4294901760
    %5509 = vmatpush1.msra.mxu0 %v5508
    %v5510 = vand.u32 %v3115, 4294901760
    %v5511 = vsub.f32 %v3115, %v5510
    %v5512 = vand.u32 %v5511, 4294901760
    %5513 = vmatprep.subr.mxu0 %v5512
    %v5514 = vand.u32 %v3114, 4294901760
    %v5515 = vsub.f32 %v3114, %v5514
    %v5516 = vand.u32 %v5515, 4294901760
    %5517 = vmatpush1.msra.mxu0 %v5516
    %v5518 = vand.u32 %v3117, 4294901760
    %v5519 = vsub.f32 %v3117, %v5518
    %v5520 = vand.u32 %v5519, 4294901760
    %5521 = vmatprep.subr.mxu0 %v5520
    %v5522 = vand.u32 %v3116, 4294901760
    %v5523 = vsub.f32 %v3116, %v5522
    %v5524 = vand.u32 %v5523, 4294901760
    %5525 = vmatpush1.msra.mxu0 %v5524
    %v5526 = vand.u32 %v3119, 4294901760
    %v5527 = vsub.f32 %v3119, %v5526
    %v5528 = vand.u32 %v5527, 4294901760
    %5529 = vmatprep.subr.mxu0 %v5528
    %v5530 = vand.u32 %v3118, 4294901760
    %v5531 = vsub.f32 %v3118, %v5530
    %v5532 = vand.u32 %v5531, 4294901760
    %5533 = vmatpush1.msra.mxu0 %v5532
    %v5534 = vand.u32 %v3121, 4294901760
    %v5535 = vsub.f32 %v3121, %v5534
    %v5536 = vand.u32 %v5535, 4294901760
    %5537 = vmatprep.subr.mxu0 %v5536
    %v5538 = vand.u32 %v3120, 4294901760
    %v5539 = vsub.f32 %v3120, %v5538
    %v5540 = vand.u32 %v5539, 4294901760
    %5541 = vmatpush1.msra.mxu0 %v5540
    %v5542 = vand.u32 %v3123, 4294901760
    %v5543 = vsub.f32 %v3123, %v5542
    %v5544 = vand.u32 %v5543, 4294901760
    %5545 = vmatprep.subr.mxu0 %v5544
    %v5546 = vand.u32 %v3122, 4294901760
    %v5547 = vsub.f32 %v3122, %v5546
    %v5548 = vand.u32 %v5547, 4294901760
    %5549 = vmatpush1.msra.mxu0 %v5548
    %v5550 = vand.u32 %v3125, 4294901760
    %v5551 = vsub.f32 %v3125, %v5550
    %v5552 = vand.u32 %v5551, 4294901760
    %5553 = vmatprep.subr.mxu0 %v5552
    %v5554 = vand.u32 %v3124, 4294901760
    %v5555 = vsub.f32 %v3124, %v5554
    %v5556 = vand.u32 %v5555, 4294901760
    %5557 = vmatpush1.msra.mxu0 %v5556
    %v5558 = vand.u32 %v3127, 4294901760
    %v5559 = vsub.f32 %v3127, %v5558
    %v5560 = vand.u32 %v5559, 4294901760
    %5561 = vmatprep.subr.mxu0 %v5560
    %v5562 = vand.u32 %v3126, 4294901760
    %v5563 = vsub.f32 %v3126, %v5562
    %v5564 = vand.u32 %v5563, 4294901760
    %5565 = vmatpush1.msra.mxu0 %v5564
    %v5566 = vand.u32 %v3129, 4294901760
    %v5567 = vsub.f32 %v3129, %v5566
    %v5568 = vand.u32 %v5567, 4294901760
    %5569 = vmatprep.subr.mxu0 %v5568
    %v5570 = vand.u32 %v3128, 4294901760
    %v5571 = vsub.f32 %v3128, %v5570
    %v5572 = vand.u32 %v5571, 4294901760
    %5573 = vmatpush1.msra.mxu0 %v5572
    %v5574 = vand.u32 %v3131, 4294901760
    %v5575 = vsub.f32 %v3131, %v5574
    %v5576 = vand.u32 %v5575, 4294901760
    %5577 = vmatprep.subr.mxu0 %v5576
    %v5578 = vand.u32 %v3130, 4294901760
    %v5579 = vsub.f32 %v3130, %v5578
    %v5580 = vand.u32 %v5579, 4294901760
    %5581 = vmatpush1.msra.mxu0 %v5580
    %v5582 = vand.u32 %v3133, 4294901760
    %v5583 = vsub.f32 %v3133, %v5582
    %v5584 = vand.u32 %v5583, 4294901760
    %5585 = vmatprep.subr.mxu0 %v5584
    %v5586 = vand.u32 %v3132, 4294901760
    %v5587 = vsub.f32 %v3132, %v5586
    %v5588 = vand.u32 %v5587, 4294901760
    %5589 = vmatpush1.msra.mxu0 %v5588
    %v5590 = vand.u32 %v3135, 4294901760
    %v5591 = vsub.f32 %v3135, %v5590
    %v5592 = vand.u32 %v5591, 4294901760
    %5593 = vmatprep.subr.mxu0 %v5592
    %v5594 = vand.u32 %v3134, 4294901760
    %v5595 = vsub.f32 %v3134, %v5594
    %v5596 = vand.u32 %v5595, 4294901760
    %5597 = vmatpush1.msra.mxu0 %v5596
    %v5598 = vand.u32 %v3137, 4294901760
    %v5599 = vsub.f32 %v3137, %v5598
    %v5600 = vand.u32 %v5599, 4294901760
    %5601 = vmatprep.subr.mxu0 %v5600
    %v5602 = vand.u32 %v3136, 4294901760
    %v5603 = vsub.f32 %v3136, %v5602
    %v5604 = vand.u32 %v5603, 4294901760
    %5605 = vmatpush1.msra.mxu0 %v5604
    %v5606 = vand.u32 %v3139, 4294901760
    %v5607 = vsub.f32 %v3139, %v5606
    %v5608 = vand.u32 %v5607, 4294901760
    %5609 = vmatprep.subr.mxu0 %v5608
    %v5610 = vand.u32 %v3138, 4294901760
    %v5611 = vsub.f32 %v3138, %v5610
    %v5612 = vand.u32 %v5611, 4294901760
    %5613 = vmatpush1.msra.mxu0 %v5612
    %v5614 = vand.u32 %v3141, 4294901760
    %v5615 = vsub.f32 %v3141, %v5614
    %v5616 = vand.u32 %v5615, 4294901760
    %5617 = vmatprep.subr.mxu0 %v5616
    %v5618 = vand.u32 %v3140, 4294901760
    %v5619 = vsub.f32 %v3140, %v5618
    %v5620 = vand.u32 %v5619, 4294901760
    %5621 = vmatpush1.msra.mxu0 %v5620
    %v5622 = vand.u32 %v3143, 4294901760
    %v5623 = vsub.f32 %v3143, %v5622
    %v5624 = vand.u32 %v5623, 4294901760
    %5625 = vmatprep.subr.mxu0 %v5624
    %v5626 = vand.u32 %v3142, 4294901760
    %v5627 = vsub.f32 %v3142, %v5626
    %v5628 = vand.u32 %v5627, 4294901760
    %5629 = vmatpush1.msra.mxu0 %v5628
    %v5630 = vand.u32 %v3069, 4294901760
    %5631 = vmatprep.mubr.f32.mxu0 %v5630
    %v5632 = vand.u32 %v3068, 4294901760
    %5633 = vmatmul.mubr.f32.gmra.mrb[0].mxu0 %v5632
    %v5634 = vpop.f32.mrb[0].mxu0
    %v5635 = vadd.f32 %v5370, %v5634
    %v5636 = vpop.f32.mrb[0].mxu0
    %v5637 = vadd.f32 %v5372, %v5636
    %5638 = vdwg.mxu0
    %v5639 = vand.u32 %v3081, 4294901760
    %5640 = vmatprep.subr.mxu0 %v5639
    %v5641 = vand.u32 %v3080, 4294901760
    %5642 = vmatpush1.msra.mxu0 %v5641
    %v5643 = vand.u32 %v3083, 4294901760
    %5644 = vmatprep.subr.mxu0 %v5643
    %v5645 = vand.u32 %v3082, 4294901760
    %5646 = vmatpush1.msra.mxu0 %v5645
    %v5647 = vand.u32 %v3085, 4294901760
    %5648 = vmatprep.subr.mxu0 %v5647
    %v5649 = vand.u32 %v3084, 4294901760
    %5650 = vmatpush1.msra.mxu0 %v5649
    %v5651 = vand.u32 %v3087, 4294901760
    %5652 = vmatprep.subr.mxu0 %v5651
    %v5653 = vand.u32 %v3086, 4294901760
    %5654 = vmatpush1.msra.mxu0 %v5653
    %v5655 = vand.u32 %v3089, 4294901760
    %5656 = vmatprep.subr.mxu0 %v5655
    %v5657 = vand.u32 %v3088, 4294901760
    %5658 = vmatpush1.msra.mxu0 %v5657
    %v5659 = vand.u32 %v3091, 4294901760
    %5660 = vmatprep.subr.mxu0 %v5659
    %v5661 = vand.u32 %v3090, 4294901760
    %5662 = vmatpush1.msra.mxu0 %v5661
    %v5663 = vand.u32 %v3093, 4294901760
    %5664 = vmatprep.subr.mxu0 %v5663
    %v5665 = vand.u32 %v3092, 4294901760
    %5666 = vmatpush1.msra.mxu0 %v5665
    %v5667 = vand.u32 %v3095, 4294901760
    %5668 = vmatprep.subr.mxu0 %v5667
    %v5669 = vand.u32 %v3094, 4294901760
    %5670 = vmatpush1.msra.mxu0 %v5669
    %v5671 = vand.u32 %v3097, 4294901760
    %5672 = vmatprep.subr.mxu0 %v5671
    %v5673 = vand.u32 %v3096, 4294901760
    %5674 = vmatpush1.msra.mxu0 %v5673
    %v5675 = vand.u32 %v3099, 4294901760
    %5676 = vmatprep.subr.mxu0 %v5675
    %v5677 = vand.u32 %v3098, 4294901760
    %5678 = vmatpush1.msra.mxu0 %v5677
    %v5679 = vand.u32 %v3101, 4294901760
    %5680 = vmatprep.subr.mxu0 %v5679
    %v5681 = vand.u32 %v3100, 4294901760
    %5682 = vmatpush1.msra.mxu0 %v5681
    %v5683 = vand.u32 %v3103, 4294901760
    %5684 = vmatprep.subr.mxu0 %v5683
    %v5685 = vand.u32 %v3102, 4294901760
    %5686 = vmatpush1.msra.mxu0 %v5685
    %v5687 = vand.u32 %v3105, 4294901760
    %5688 = vmatprep.subr.mxu0 %v5687
    %v5689 = vand.u32 %v3104, 4294901760
    %5690 = vmatpush1.msra.mxu0 %v5689
    %v5691 = vand.u32 %v3107, 4294901760
    %5692 = vmatprep.subr.mxu0 %v5691
    %v5693 = vand.u32 %v3106, 4294901760
    %5694 = vmatpush1.msra.mxu0 %v5693
    %v5695 = vand.u32 %v3109, 4294901760
    %5696 = vmatprep.subr.mxu0 %v5695
    %v5697 = vand.u32 %v3108, 4294901760
    %5698 = vmatpush1.msra.mxu0 %v5697
    %v5699 = vand.u32 %v3111, 4294901760
    %5700 = vmatprep.subr.mxu0 %v5699
    %v5701 = vand.u32 %v3110, 4294901760
    %5702 = vmatpush1.msra.mxu0 %v5701
    %v5703 = vand.u32 %v3113, 4294901760
    %5704 = vmatprep.subr.mxu0 %v5703
    %v5705 = vand.u32 %v3112, 4294901760
    %5706 = vmatpush1.msra.mxu0 %v5705
    %v5707 = vand.u32 %v3115, 4294901760
    %5708 = vmatprep.subr.mxu0 %v5707
    %v5709 = vand.u32 %v3114, 4294901760
    %5710 = vmatpush1.msra.mxu0 %v5709
    %v5711 = vand.u32 %v3117, 4294901760
    %5712 = vmatprep.subr.mxu0 %v5711
    %v5713 = vand.u32 %v3116, 4294901760
    %5714 = vmatpush1.msra.mxu0 %v5713
    %v5715 = vand.u32 %v3119, 4294901760
    %5716 = vmatprep.subr.mxu0 %v5715
    %v5717 = vand.u32 %v3118, 4294901760
    %5718 = vmatpush1.msra.mxu0 %v5717
    %v5719 = vand.u32 %v3121, 4294901760
    %5720 = vmatprep.subr.mxu0 %v5719
    %v5721 = vand.u32 %v3120, 4294901760
    %5722 = vmatpush1.msra.mxu0 %v5721
    %v5723 = vand.u32 %v3123, 4294901760
    %5724 = vmatprep.subr.mxu0 %v5723
    %v5725 = vand.u32 %v3122, 4294901760
    %5726 = vmatpush1.msra.mxu0 %v5725
    %v5727 = vand.u32 %v3125, 4294901760
    %5728 = vmatprep.subr.mxu0 %v5727
    %v5729 = vand.u32 %v3124, 4294901760
    %5730 = vmatpush1.msra.mxu0 %v5729
    %v5731 = vand.u32 %v3127, 4294901760
    %5732 = vmatprep.subr.mxu0 %v5731
    %v5733 = vand.u32 %v3126, 4294901760
    %5734 = vmatpush1.msra.mxu0 %v5733
    %v5735 = vand.u32 %v3129, 4294901760
    %5736 = vmatprep.subr.mxu0 %v5735
    %v5737 = vand.u32 %v3128, 4294901760
    %5738 = vmatpush1.msra.mxu0 %v5737
    %v5739 = vand.u32 %v3131, 4294901760
    %5740 = vmatprep.subr.mxu0 %v5739
    %v5741 = vand.u32 %v3130, 4294901760
    %5742 = vmatpush1.msra.mxu0 %v5741
    %v5743 = vand.u32 %v3133, 4294901760
    %5744 = vmatprep.subr.mxu0 %v5743
    %v5745 = vand.u32 %v3132, 4294901760
    %5746 = vmatpush1.msra.mxu0 %v5745
    %v5747 = vand.u32 %v3135, 4294901760
    %5748 = vmatprep.subr.mxu0 %v5747
    %v5749 = vand.u32 %v3134, 4294901760
    %5750 = vmatpush1.msra.mxu0 %v5749
    %v5751 = vand.u32 %v3137, 4294901760
    %5752 = vmatprep.subr.mxu0 %v5751
    %v5753 = vand.u32 %v3136, 4294901760
    %5754 = vmatpush1.msra.mxu0 %v5753
    %v5755 = vand.u32 %v3139, 4294901760
    %5756 = vmatprep.subr.mxu0 %v5755
    %v5757 = vand.u32 %v3138, 4294901760
    %5758 = vmatpush1.msra.mxu0 %v5757
    %v5759 = vand.u32 %v3141, 4294901760
    %5760 = vmatprep.subr.mxu0 %v5759
    %v5761 = vand.u32 %v3140, 4294901760
    %5762 = vmatpush1.msra.mxu0 %v5761
    %v5763 = vand.u32 %v3143, 4294901760
    %5764 = vmatprep.subr.mxu0 %v5763
    %v5765 = vand.u32 %v3142, 4294901760
    %5766 = vmatpush1.msra.mxu0 %v5765
    %v5767 = vand.u32 %v3069, 4294901760
    %5768 = vmatprep.mubr.f32.mxu0 %v5767
    %v5769 = vand.u32 %v3068, 4294901760
    %5770 = vmatmul.mubr.f32.gmra.mrb[0].mxu0 %v5769
    %v5771 = vpop.f32.mrb[0].mxu0
    %v5772 = vadd.f32 %v5635, %v5771
    %v5773 = vpop.f32.mrb[0].mxu0
    %v5774 = vadd.f32 %v5637, %v5773
    %5775 = vdwg.mxu0
    %v5776 = vadd.f32 %v144, %v5772
    %v5777 = vadd.f32 %v145, %v5774
    %v5780 = vrot.slane %v5772, 2
    %v5781 = vrot.slane %v5774, 2
    %v5784 = vadd.f32 %v190, %v5780
    %v5785 = vadd.f32 %v191, %v5781
    %s5786 = sld [smem:[#allocation7 + $0x18]]
    %v5787 = vstv %s5786
    %v5788 = vmul.f32 %v84, %v5787
    %v5789 = vmul.f32 %v85, %v5787
    %s5790 = sld [smem:[#allocation7 + $0x19]]
    %v5791 = vstv %s5790
    %v5792 = vmul.f32 %v86, %v5791
    %v5793 = vmul.f32 %v87, %v5791
    %v5796 = vrot.slane %v5792, 2
    %v5797 = vrot.slane %v5793, 2
    %v5800 = vadd.f32 %v5788, %v5796
    %v5801 = vadd.f32 %v5789, %v5797
    %s5802 = sld [smem:[#allocation7 + $0x1a]]
    %v5803 = vstv %s5802
    %v5804 = vmul.f32 %v88, %v5803
    %v5805 = vmul.f32 %v89, %v5803
    %v5808 = vrot.slane %v5804, 4
    %v5809 = vrot.slane %v5805, 4
    %v5812 = vadd.f32 %v5800, %v5808
    %v5813 = vadd.f32 %v5801, %v5809
    %s5814 = sld [smem:[#allocation7 + $0x1b]]
    %v5815 = vstv %s5814
    %v5816 = vmul.f32 %v90, %v5815
    %v5817 = vmul.f32 %v91, %v5815
    %v5820 = vrot.slane %v5816, 6
    %v5821 = vrot.slane %v5817, 6
    %v5824 = vadd.f32 %v5812, %v5820
    %v5825 = vadd.f32 %v5813, %v5821
    %s5826 = sld [smem:[#allocation7 + $0x28]]
    %v5827 = vstv %s5826
    %v5828 = vmul.f32 %v92, %v5827
    %v5829 = vmul.f32 %v93, %v5827
    %v5830 = vadd.f32 %v5824, %v5828
    %v5831 = vadd.f32 %v5825, %v5829
    %s5832 = sld [smem:[#allocation7 + $0x29]]
    %v5833 = vstv %s5832
    %v5834 = vmul.f32 %v94, %v5833
    %v5835 = vmul.f32 %v95, %v5833
    %v5838 = vrot.slane %v5834, 2
    %v5839 = vrot.slane %v5835, 2
    %v5842 = vadd.f32 %v5830, %v5838
    %v5843 = vadd.f32 %v5831, %v5839
    %s5844 = sld [smem:[#allocation7 + $0x2a]]
    %v5845 = vstv %s5844
    %v5846 = vmul.f32 %v96, %v5845
    %v5847 = vmul.f32 %v97, %v5845
    %v5850 = vrot.slane %v5846, 4
    %v5851 = vrot.slane %v5847, 4
    %v5854 = vadd.f32 %v5842, %v5850
    %v5855 = vadd.f32 %v5843, %v5851
    %s5856 = sld [smem:[#allocation7 + $0x2b]]
    %v5857 = vstv %s5856
    %v5858 = vmul.f32 %v98, %v5857
    %v5859 = vmul.f32 %v99, %v5857
    %v5862 = vrot.slane %v5858, 6
    %v5863 = vrot.slane %v5859, 6
    %v5866 = vadd.f32 %v5854, %v5862
    %v5867 = vadd.f32 %v5855, %v5863
    %s5868 = sld [smem:[#allocation8 + $0x6]]
    %v5869 = vstv %s5868
    %v5870 = vadd.f32 %v5866, %v5869
    %v5871 = vadd.f32 %v5867, %v5869
    %v5872 = vmax.f32 %v5870, 0.0
    %v5873 = vmax.f32 %v5871, 0.0
    %5874 = vst [vmem:[%s8] sm:$0x3] %v5872
    %5875 = vst [vmem:[%s8 + $0x8] sm:$0x3] %v5873
    %s5876 = sld [smem:[#allocation7 + $0x1c]]
    %v5877 = vstv %s5876
    %v5878 = vmul.f32 %v84, %v5877
    %v5879 = vmul.f32 %v85, %v5877
    %s5880 = sld [smem:[#allocation7 + $0x1d]]
    %v5881 = vstv %s5880
    %v5882 = vmul.f32 %v86, %v5881
    %v5883 = vmul.f32 %v87, %v5881
    %v5886 = vrot.slane %v5882, 2
    %v5887 = vrot.slane %v5883, 2
    %v5890 = vadd.f32 %v5878, %v5886
    %v5891 = vadd.f32 %v5879, %v5887
    %s5892 = sld [smem:[#allocation7 + $0x1e]]
    %v5893 = vstv %s5892
    %v5894 = vmul.f32 %v88, %v5893
    %v5895 = vmul.f32 %v89, %v5893
    %v5898 = vrot.slane %v5894, 4
    %v5899 = vrot.slane %v5895, 4
    %v5902 = vadd.f32 %v5890, %v5898
    %v5903 = vadd.f32 %v5891, %v5899
    %s5904 = sld [smem:[#allocation7 + $0x1f]]
    %v5905 = vstv %s5904
    %v5906 = vmul.f32 %v90, %v5905
    %v5907 = vmul.f32 %v91, %v5905
    %v5910 = vrot.slane %v5906, 6
    %v5911 = vrot.slane %v5907, 6
    %v5914 = vadd.f32 %v5902, %v5910
    %v5915 = vadd.f32 %v5903, %v5911
    %s5916 = sld [smem:[#allocation7 + $0x2c]]
    %v5917 = vstv %s5916
    %v5918 = vmul.f32 %v92, %v5917
    %v5919 = vmul.f32 %v93, %v5917
    %v5920 = vadd.f32 %v5914, %v5918
    %v5921 = vadd.f32 %v5915, %v5919
    %s5922 = sld [smem:[#allocation7 + $0x2d]]
    %v5923 = vstv %s5922
    %v5924 = vmul.f32 %v94, %v5923
    %v5925 = vmul.f32 %v95, %v5923
    %v5928 = vrot.slane %v5924, 2
    %v5929 = vrot.slane %v5925, 2
    %v5932 = vadd.f32 %v5920, %v5928
    %v5933 = vadd.f32 %v5921, %v5929
    %s5934 = sld [smem:[#allocation7 + $0x2e]]
    %v5935 = vstv %s5934
    %v5936 = vmul.f32 %v96, %v5935
    %v5937 = vmul.f32 %v97, %v5935
    %v5940 = vrot.slane %v5936, 4
    %v5941 = vrot.slane %v5937, 4
    %v5944 = vadd.f32 %v5932, %v5940
    %v5945 = vadd.f32 %v5933, %v5941
    %s5946 = sld [smem:[#allocation7 + $0x2f]]
    %v5947 = vstv %s5946
    %v5948 = vmul.f32 %v98, %v5947
    %v5949 = vmul.f32 %v99, %v5947
    %v5952 = vrot.slane %v5948, 6
    %v5953 = vrot.slane %v5949, 6
    %v5956 = vadd.f32 %v5944, %v5952
    %v5957 = vadd.f32 %v5945, %v5953
    %s5958 = sld [smem:[#allocation8 + $0x7]]
    %v5959 = vstv %s5958
    %v5960 = vadd.f32 %v5956, %v5959
    %v5961 = vadd.f32 %v5957, %v5959
    %v5962 = vmax.f32 %v5960, 0.0
    %v5963 = vmax.f32 %v5961, 0.0
    %v5966 = vrot.slane %v5962, 6
    %v5967 = vrot.slane %v5963, 6
    %5970 = vst [vmem:[%s8] sm:$0xc] %v5966
    %5971 = vst [vmem:[%s8 + $0x8] sm:$0xc] %v5967
    %s5972 = sld [smem:[#allocation7 + $0x20]]
    %v5973 = vstv %s5972
    %v5974 = vmul.f32 %v84, %v5973
    %v5975 = vmul.f32 %v85, %v5973
    %s5976 = sld [smem:[#allocation7 + $0x21]]
    %v5977 = vstv %s5976
    %v5978 = vmul.f32 %v86, %v5977
    %v5979 = vmul.f32 %v87, %v5977
    %v5982 = vrot.slane %v5978, 2
    %v5983 = vrot.slane %v5979, 2
    %v5986 = vadd.f32 %v5974, %v5982
    %v5987 = vadd.f32 %v5975, %v5983
    %s5988 = sld [smem:[#allocation7 + $0x22]]
    %v5989 = vstv %s5988
    %v5990 = vmul.f32 %v88, %v5989
    %v5991 = vmul.f32 %v89, %v5989
    %v5994 = vrot.slane %v5990, 4
    %v5995 = vrot.slane %v5991, 4
    %v5998 = vadd.f32 %v5986, %v5994
    %v5999 = vadd.f32 %v5987, %v5995
    %s6000 = sld [smem:[#allocation7 + $0x23]]
    %v6001 = vstv %s6000
    %v6002 = vmul.f32 %v90, %v6001
    %v6003 = vmul.f32 %v91, %v6001
    %v6006 = vrot.slane %v6002, 6
    %v6007 = vrot.slane %v6003, 6
    %v6010 = vadd.f32 %v5998, %v6006
    %v6011 = vadd.f32 %v5999, %v6007
    %s6012 = sld [smem:[#allocation7 + $0x30]]
    %v6013 = vstv %s6012
    %v6014 = vmul.f32 %v92, %v6013
    %v6015 = vmul.f32 %v93, %v6013
    %v6016 = vadd.f32 %v6010, %v6014
    %v6017 = vadd.f32 %v6011, %v6015
    %s6018 = sld [smem:[#allocation7 + $0x31]]
    %v6019 = vstv %s6018
    %v6020 = vmul.f32 %v94, %v6019
    %v6021 = vmul.f32 %v95, %v6019
    %v6024 = vrot.slane %v6020, 2
    %v6025 = vrot.slane %v6021, 2
    %v6028 = vadd.f32 %v6016, %v6024
    %v6029 = vadd.f32 %v6017, %v6025
    %s6030 = sld [smem:[#allocation7 + $0x32]]
    %v6031 = vstv %s6030
    %v6032 = vmul.f32 %v96, %v6031
    %v6033 = vmul.f32 %v97, %v6031
    %v6036 = vrot.slane %v6032, 4
    %v6037 = vrot.slane %v6033, 4
    %v6040 = vadd.f32 %v6028, %v6036
    %v6041 = vadd.f32 %v6029, %v6037
    %s6042 = sld [smem:[#allocation7 + $0x33]]
    %v6043 = vstv %s6042
    %v6044 = vmul.f32 %v98, %v6043
    %v6045 = vmul.f32 %v99, %v6043
    %v6048 = vrot.slane %v6044, 6
    %v6049 = vrot.slane %v6045, 6
    %v6052 = vadd.f32 %v6040, %v6048
    %v6053 = vadd.f32 %v6041, %v6049
    %s6054 = sld [smem:[#allocation8 + $0x8]]
    %v6055 = vstv %s6054
    %v6056 = vadd.f32 %v6052, %v6055
    %v6057 = vadd.f32 %v6053, %v6055
    %v6058 = vmax.f32 %v6056, 0.0
    %v6059 = vmax.f32 %v6057, 0.0
    %v6062 = vrot.slane %v6058, 4
    %v6063 = vrot.slane %v6059, 4
    %6066 = vst [vmem:[%s8] sm:$0x30] %v6062
    %6067 = vst [vmem:[%s8 + $0x8] sm:$0x30] %v6063
    %s6068 = sld [smem:[#allocation7 + $0x24]]
    %v6069 = vstv %s6068
    %v6070 = vmul.f32 %v84, %v6069
    %v6071 = vmul.f32 %v85, %v6069
    %s6072 = sld [smem:[#allocation7 + $0x25]]
    %v6073 = vstv %s6072
    %v6074 = vmul.f32 %v86, %v6073
    %v6075 = vmul.f32 %v87, %v6073
    %v6078 = vrot.slane %v6074, 2
    %v6079 = vrot.slane %v6075, 2
    %v6082 = vadd.f32 %v6070, %v6078
    %v6083 = vadd.f32 %v6071, %v6079
    %s6084 = sld [smem:[#allocation7 + $0x26]]
    %v6085 = vstv %s6084
    %v6086 = vmul.f32 %v88, %v6085
    %v6087 = vmul.f32 %v89, %v6085
    %v6090 = vrot.slane %v6086, 4
    %v6091 = vrot.slane %v6087, 4
    %v6094 = vadd.f32 %v6082, %v6090
    %v6095 = vadd.f32 %v6083, %v6091
    %s6096 = sld [smem:[#allocation7 + $0x27]]
    %v6097 = vstv %s6096
    %v6098 = vmul.f32 %v90, %v6097
    %v6099 = vmul.f32 %v91, %v6097
    %v6102 = vrot.slane %v6098, 6
    %v6103 = vrot.slane %v6099, 6
    %v6106 = vadd.f32 %v6094, %v6102
    %v6107 = vadd.f32 %v6095, %v6103
    %s6108 = sld [smem:[#allocation7 + $0x34]]
    %v6109 = vstv %s6108
    %v6110 = vmul.f32 %v92, %v6109
    %v6111 = vmul.f32 %v93, %v6109
    %v6112 = vadd.f32 %v6106, %v6110
    %v6113 = vadd.f32 %v6107, %v6111
    %s6114 = sld [smem:[#allocation7 + $0x35]]
    %v6115 = vstv %s6114
    %v6116 = vmul.f32 %v94, %v6115
    %v6117 = vmul.f32 %v95, %v6115
    %v6120 = vrot.slane %v6116, 2
    %v6121 = vrot.slane %v6117, 2
    %v6124 = vadd.f32 %v6112, %v6120
    %v6125 = vadd.f32 %v6113, %v6121
    %s6126 = sld [smem:[#allocation7 + $0x36]]
    %v6127 = vstv %s6126
    %v6128 = vmul.f32 %v96, %v6127
    %v6129 = vmul.f32 %v97, %v6127
    %v6132 = vrot.slane %v6128, 4
    %v6133 = vrot.slane %v6129, 4
    %v6136 = vadd.f32 %v6124, %v6132
    %v6137 = vadd.f32 %v6125, %v6133
    %s6138 = sld [smem:[#allocation7 + $0x37]]
    %v6139 = vstv %s6138
    %v6140 = vmul.f32 %v98, %v6139
    %v6141 = vmul.f32 %v99, %v6139
    %v6144 = vrot.slane %v6140, 6
    %v6145 = vrot.slane %v6141, 6
    %v6148 = vadd.f32 %v6136, %v6144
    %v6149 = vadd.f32 %v6137, %v6145
    %s6150 = sld [smem:[#allocation8 + $0x9]]
    %v6151 = vstv %s6150
    %v6152 = vadd.f32 %v6148, %v6151
    %v6153 = vadd.f32 %v6149, %v6151
    %v6154 = vmax.f32 %v6152, 0.0
    %v6155 = vmax.f32 %v6153, 0.0
    %v6158 = vrot.slane %v6154, 2
    %v6159 = vrot.slane %v6155, 2
    %6162 = vst [vmem:[%s8] sm:$0xc0] %v6158
    %6163 = vst [vmem:[%s8 + $0x8] sm:$0xc0] %v6159
    %s6164 = sld [smem:[#allocation7 + $0x38]]
    %v6165 = vstv %s6164
    %v6166 = vmul.f32 %v84, %v6165
    %v6167 = vmul.f32 %v85, %v6165
    %s6168 = sld [smem:[#allocation7 + $0x39]]
    %v6169 = vstv %s6168
    %v6170 = vmul.f32 %v86, %v6169
    %v6171 = vmul.f32 %v87, %v6169
    %v6174 = vrot.slane %v6170, 2
    %v6175 = vrot.slane %v6171, 2
    %v6178 = vadd.f32 %v6166, %v6174
    %v6179 = vadd.f32 %v6167, %v6175
    %s6180 = sld [smem:[#allocation7 + $0x3a]]
    %v6181 = vstv %s6180
    %v6182 = vmul.f32 %v88, %v6181
    %v6183 = vmul.f32 %v89, %v6181
    %v6186 = vrot.slane %v6182, 4
    %v6187 = vrot.slane %v6183, 4
    %v6190 = vadd.f32 %v6178, %v6186
    %v6191 = vadd.f32 %v6179, %v6187
    %s6192 = sld [smem:[#allocation7 + $0x3b]]
    %v6193 = vstv %s6192
    %v6194 = vmul.f32 %v90, %v6193
    %v6195 = vmul.f32 %v91, %v6193
    %v6198 = vrot.slane %v6194, 6
    %v6199 = vrot.slane %v6195, 6
    %v6202 = vadd.f32 %v6190, %v6198
    %v6203 = vadd.f32 %v6191, %v6199
    %s6204 = sld [smem:[#allocation7 + $0x48]]
    %v6205 = vstv %s6204
    %v6206 = vmul.f32 %v5776, %v6205
    %v6207 = vmul.f32 %v5777, %v6205
    %v6208 = vadd.f32 %v6202, %v6206
    %v6209 = vadd.f32 %v6203, %v6207
    %s6210 = sld [smem:[#allocation7 + $0x49]]
    %v6211 = vstv %s6210
    %v6212 = vmul.f32 %v5784, %v6211
    %v6213 = vmul.f32 %v5785, %v6211
    %v6214 = vadd.f32 %v6208, %v6212
    %v6215 = vadd.f32 %v6209, %v6213
    %s6216 = sld [smem:[#allocation8 + $0xa]]
    %v6217 = vstv %s6216
    %v6218 = vadd.f32 %v6214, %v6217
    %v6219 = vadd.f32 %v6215, %v6217
    %v6220 = vmax.f32 %v6218, 0.0
    %v6221 = vmax.f32 %v6219, 0.0
    %6222 = vst [vmem:[%s9] sm:$0x3] %v6220
    %6223 = vst [vmem:[%s9 + $0x8] sm:$0x3] %v6221
    %s6224 = sld [smem:[#allocation7 + $0x3c]]
    %v6225 = vstv %s6224
    %v6226 = vmul.f32 %v84, %v6225
    %v6227 = vmul.f32 %v85, %v6225
    %s6228 = sld [smem:[#allocation7 + $0x3d]]
    %v6229 = vstv %s6228
    %v6230 = vmul.f32 %v86, %v6229
    %v6231 = vmul.f32 %v87, %v6229
    %v6234 = vrot.slane %v6230, 2
    %v6235 = vrot.slane %v6231, 2
    %v6238 = vadd.f32 %v6226, %v6234
    %v6239 = vadd.f32 %v6227, %v6235
    %s6240 = sld [smem:[#allocation7 + $0x3e]]
    %v6241 = vstv %s6240
    %v6242 = vmul.f32 %v88, %v6241
    %v6243 = vmul.f32 %v89, %v6241
    %v6246 = vrot.slane %v6242, 4
    %v6247 = vrot.slane %v6243, 4
    %v6250 = vadd.f32 %v6238, %v6246
    %v6251 = vadd.f32 %v6239, %v6247
    %s6252 = sld [smem:[#allocation7 + $0x3f]]
    %v6253 = vstv %s6252
    %v6254 = vmul.f32 %v90, %v6253
    %v6255 = vmul.f32 %v91, %v6253
    %v6258 = vrot.slane %v6254, 6
    %v6259 = vrot.slane %v6255, 6
    %v6262 = vadd.f32 %v6250, %v6258
    %v6263 = vadd.f32 %v6251, %v6259
    %s6264 = sld [smem:[#allocation7 + $0x4a]]
    %v6265 = vstv %s6264
    %v6266 = vmul.f32 %v5776, %v6265
    %v6267 = vmul.f32 %v5777, %v6265
    %v6268 = vadd.f32 %v6262, %v6266
    %v6269 = vadd.f32 %v6263, %v6267
    %s6270 = sld [smem:[#allocation7 + $0x4b]]
    %v6271 = vstv %s6270
    %v6272 = vmul.f32 %v5784, %v6271
    %v6273 = vmul.f32 %v5785, %v6271
    %v6274 = vadd.f32 %v6268, %v6272
    %v6275 = vadd.f32 %v6269, %v6273
    %s6276 = sld [smem:[#allocation8 + $0xb]]
    %v6277 = vstv %s6276
    %v6278 = vadd.f32 %v6274, %v6277
    %v6279 = vadd.f32 %v6275, %v6277
    %v6280 = vmax.f32 %v6278, 0.0
    %v6281 = vmax.f32 %v6279, 0.0
    %v6284 = vrot.slane %v6280, 6
    %v6285 = vrot.slane %v6281, 6
    %6288 = vst [vmem:[%s9] sm:$0xc] %v6284
    %6289 = vst [vmem:[%s9 + $0x8] sm:$0xc] %v6285
    %s6290 = sld [smem:[#allocation7 + $0x40]]
    %v6291 = vstv %s6290
    %v6292 = vmul.f32 %v84, %v6291
    %v6293 = vmul.f32 %v85, %v6291
    %s6294 = sld [smem:[#allocation7 + $0x41]]
    %v6295 = vstv %s6294
    %v6296 = vmul.f32 %v86, %v6295
    %v6297 = vmul.f32 %v87, %v6295
    %v6300 = vrot.slane %v6296, 2
    %v6301 = vrot.slane %v6297, 2
    %v6304 = vadd.f32 %v6292, %v6300
    %v6305 = vadd.f32 %v6293, %v6301
    %s6306 = sld [smem:[#allocation7 + $0x42]]
    %v6307 = vstv %s6306
    %v6308 = vmul.f32 %v88, %v6307
    %v6309 = vmul.f32 %v89, %v6307
    %v6312 = vrot.slane %v6308, 4
    %v6313 = vrot.slane %v6309, 4
    %v6316 = vadd.f32 %v6304, %v6312
    %v6317 = vadd.f32 %v6305, %v6313
    %s6318 = sld [smem:[#allocation7 + $0x43]]
    %v6319 = vstv %s6318
    %v6320 = vmul.f32 %v90, %v6319
    %v6321 = vmul.f32 %v91, %v6319
    %v6324 = vrot.slane %v6320, 6
    %v6325 = vrot.slane %v6321, 6
    %v6328 = vadd.f32 %v6316, %v6324
    %v6329 = vadd.f32 %v6317, %v6325
    %s6330 = sld [smem:[#allocation7 + $0x4c]]
    %v6331 = vstv %s6330
    %v6332 = vmul.f32 %v5776, %v6331
    %v6333 = vmul.f32 %v5777, %v6331
    %v6334 = vadd.f32 %v6328, %v6332
    %v6335 = vadd.f32 %v6329, %v6333
    %s6336 = sld [smem:[#allocation7 + $0x4d]]
    %v6337 = vstv %s6336
    %v6338 = vmul.f32 %v5784, %v6337
    %v6339 = vmul.f32 %v5785, %v6337
    %v6340 = vadd.f32 %v6334, %v6338
    %v6341 = vadd.f32 %v6335, %v6339
    %s6342 = sld [smem:[#allocation8 + $0xc]]
    %v6343 = vstv %s6342
    %v6344 = vadd.f32 %v6340, %v6343
    %v6345 = vadd.f32 %v6341, %v6343
    %v6346 = vmax.f32 %v6344, 0.0
    %v6347 = vmax.f32 %v6345, 0.0
    %v6350 = vrot.slane %v6346, 4
    %v6351 = vrot.slane %v6347, 4
    %6354 = vst [vmem:[%s9] sm:$0x30] %v6350
    %6355 = vst [vmem:[%s9 + $0x8] sm:$0x30] %v6351
    %s6356 = sld [smem:[#allocation7 + $0x44]]
    %v6357 = vstv %s6356
    %v6358 = vmul.f32 %v84, %v6357
    %v6359 = vmul.f32 %v85, %v6357
    %s6360 = sld [smem:[#allocation7 + $0x45]]
    %v6361 = vstv %s6360
    %v6362 = vmul.f32 %v86, %v6361
    %v6363 = vmul.f32 %v87, %v6361
    %v6366 = vrot.slane %v6362, 2
    %v6367 = vrot.slane %v6363, 2
    %v6370 = vadd.f32 %v6358, %v6366
    %v6371 = vadd.f32 %v6359, %v6367
    %s6372 = sld [smem:[#allocation7 + $0x46]]
    %v6373 = vstv %s6372
    %v6374 = vmul.f32 %v88, %v6373
    %v6375 = vmul.f32 %v89, %v6373
    %v6378 = vrot.slane %v6374, 4
    %v6379 = vrot.slane %v6375, 4
    %v6382 = vadd.f32 %v6370, %v6378
    %v6383 = vadd.f32 %v6371, %v6379
    %s6384 = sld [smem:[#allocation7 + $0x47]]
    %v6385 = vstv %s6384
    %v6386 = vmul.f32 %v90, %v6385
    %v6387 = vmul.f32 %v91, %v6385
    %v6390 = vrot.slane %v6386, 6
    %v6391 = vrot.slane %v6387, 6
    %v6394 = vadd.f32 %v6382, %v6390
    %v6395 = vadd.f32 %v6383, %v6391
    %s6396 = sld [smem:[#allocation7 + $0x4e]]
    %v6397 = vstv %s6396
    %v6398 = vmul.f32 %v5776, %v6397
    %v6399 = vmul.f32 %v5777, %v6397
    %v6400 = vadd.f32 %v6394, %v6398
    %v6401 = vadd.f32 %v6395, %v6399
    %s6402 = sld [smem:[#allocation7 + $0x4f]]
    %v6403 = vstv %s6402
    %v6404 = vmul.f32 %v5784, %v6403
    %v6405 = vmul.f32 %v5785, %v6403
    %v6406 = vadd.f32 %v6400, %v6404
    %v6407 = vadd.f32 %v6401, %v6405
    %s6408 = sld [smem:[#allocation8 + $0xd]]
    %v6409 = vstv %s6408
    %v6410 = vadd.f32 %v6406, %v6409
    %v6411 = vadd.f32 %v6407, %v6409
    %v6412 = vmax.f32 %v6410, 0.0
    %v6413 = vmax.f32 %v6411, 0.0
    %v6416 = vrot.slane %v6412, 2
    %v6417 = vrot.slane %v6413, 2
    %6420 = vst [vmem:[%s9] sm:$0xc0] %v6416
    %6421 = vst [vmem:[%s9 + $0x8] sm:$0xc0] %v6417
    // Predicated region
    $region50: #{ffc_bn_act_forward.1} parent=1 // pred_check
      _
    $region51: #{ffc_bn_act_forward.1} parent=1 // pred_check_branch
      %6423 = sbr.rel (0) target = $region53
    $region52: #{ffc_bn_act_forward.1} parent=1 // pred_region
      _
    $region53: #{ffc_bn_act_forward.1} parent=1 // pred_fallthru
      _
    // Predicated region
    $region54: #{ffc_bn_act_forward.1} parent=1 // pred_check
      _
    $region55: #{ffc_bn_act_forward.1} parent=1 // pred_check_branch
      %6425 = sbr.rel (0) target = $region57
    $region56: #{ffc_bn_act_forward.1} parent=1 // pred_region
      _
    $region57: #{ffc_bn_act_forward.1} parent=1 // pred_fallthru
      _
    // Predicated region
    $region58: #{ffc_bn_act_forward.1} parent=1 // pred_check
      _
    $region59: #{ffc_bn_act_forward.1} parent=1 // pred_check_branch
      %6427 = sbr.rel (0) target = $region61
    $region60: #{ffc_bn_act_forward.1} parent=1 // pred_region
      _
    $region61: #{ffc_bn_act_forward.1} parent=1 // pred_fallthru
      _
    // Predicated region
    $region62: #{ffc_bn_act_forward.1} parent=1 // pred_check
      _
    $region63: #{ffc_bn_act_forward.1} parent=1 // pred_check_branch
      %6429 = sbr.rel (0) target = $region65
    $region64: #{ffc_bn_act_forward.1} parent=1 // pred_region
      _
    $region65: #{ffc_bn_act_forward.1} parent=1 // pred_fallthru
      _
    %6430 = vsyncpa [#allocation3], 1
    %6431 = vsyncpa [#allocation6], 1
    %6432 = vsyncpa [#allocation4], 1
    %6433 = vsyncpa [#allocation9], 1

</llo_original>
